<compile_context>
chip_gen: v5e
topology: v5e:2x2
jax: 0.10.0
libtpu: 0.0.40
codegen_flags: <defaults>
</compile_context>

<pallas_src>
import math

import jax
import jax.numpy as jnp
from jax.experimental import pallas as pl
from jax.experimental.pallas import tpu as pltpu

_VMEM_LIMIT_BYTES = 32 * 1024 * 1024   # explicit scoped-VMEM limit (v5e default is 16 MiB)


def _sigmoid(x):
    # Single EUP tanh per element instead of exp + add + divide.
    return 0.5 * jnp.tanh(0.5 * x) + 0.5


def _round_up(n, m):
    return ((n + m - 1) // m) * m


# ----------------------------------------------------------------------------
# Kernels
# ----------------------------------------------------------------------------
def _input_proj_kernel(x_ref, w_ref, b_ref, o_ref):
    """Layer-0 input projection, hoisted off the recurrent critical path:
    one (TM, I) @ (I, 4Hp) GEMM + bias per grid step."""
    o_ref[...] = (
        jnp.dot(x_ref[...], w_ref[...], preferred_element_type=jnp.float32)
        + b_ref[...]
    ).astype(o_ref.dtype)


def _lstm_fused_kernel(xg_ref, wih_ref, whh_ref, b_ref, wfc_ref, bfc_ref,
                       y_ref, h_scr, c_scr):
    """All LSTM layers fused; T_BLK timesteps per grid step; FC fused into the
    last timestep of the last grid step.

    xg_ref : (T_BLK, Bp, 4Hp)  precomputed x_t @ Wih0 + b0 (time-major)
    wih_ref: (L, Hp, 4Hp)      input weights for layers >= 1 (row 0 unused)
    whh_ref: (L, Hp, 4Hp)      recurrent weights, all layers
    b_ref  : (L, 1, 4Hp)       biases for layers >= 1 (row 0 unused/zero)
    h_scr/c_scr : (L, Bp, Hp)  VMEM-resident recurrent state
    """
    tb = pl.program_id(0)

    @pl.when(tb == 0)
    def _():
        h_scr[...] = jnp.zeros_like(h_scr)
        c_scr[...] = jnp.zeros_like(c_scr)

    L, _, Hp = h_scr.shape
    t_blk = xg_ref.shape[0]

    # Static unroll over the timesteps in this block (equivalent to
    # lax.fori_loop(..., unroll=True); t_blk and L are small).
    for tt in range(t_blk):
        x_gates = xg_ref[tt]                                   # (Bp, 4Hp)
        h_below = None
        for l in range(L):
            if l == 0:
                gates = x_gates + jnp.dot(
                    h_scr[0], whh_ref[0], preferred_element_type=jnp.float32)
            else:
                gates = (
                    jnp.dot(h_below, wih_ref[l], preferred_element_type=jnp.float32)
                    + jnp.dot(h_scr[l], whh_ref[l], preferred_element_type=jnp.float32)
                    + b_ref[l]
                )                                              # (Bp, 4Hp) i|f|g|o
            # Lane-aligned gate slices (Hp is a multiple of 128).
            i_g = _sigmoid(gates[:, 0 * Hp:1 * Hp])
            f_g = _sigmoid(gates[:, 1 * Hp:2 * Hp])
            g_g = jnp.tanh(gates[:, 2 * Hp:3 * Hp])
            o_g = _sigmoid(gates[:, 3 * Hp:4 * Hp])

            c_new = f_g * c_scr[l] + i_g * g_g
            h_new = o_g * jnp.tanh(c_new)
            c_scr[l] = c_new
            h_scr[l] = h_new
            h_below = h_new                                    # feeds layer l+1

    @pl.when(tb == pl.num_programs(0) - 1)
    def _():
        y_ref[...] = (
            jnp.dot(h_scr[L - 1], wfc_ref[...], preferred_element_type=jnp.float32)
            + bfc_ref[...]
        ).astype(y_ref.dtype)


# ----------------------------------------------------------------------------
# pallas_call wrappers
# ----------------------------------------------------------------------------
def _row_tile(rows, max_tile=512):
    if rows <= max_tile:
        return rows
    for cand in (512, 256, 128, 64, 32, 16, 8):
        if rows % cand == 0:
            return cand
    return rows


def _time_block(S, max_block=32):
    best = 1
    for cand in range(1, min(S, max_block) + 1):
        if S % cand == 0:
            best = cand
    return best


def _input_projection(x_flat, w, b):
    """x_flat: (R, I) time-major rows. Returns (R, 4Hp) = x_flat @ w + b."""
    R, I = x_flat.shape
    G = w.shape[1]
    tm = _row_tile(R)
    return pl.pallas_call(
        _input_proj_kernel,
        out_shape=jax.ShapeDtypeStruct((R, G), jnp.float32),
        grid_spec=pltpu.PrefetchScalarGridSpec(
            num_scalar_prefetch=0,
            grid=(R // tm,),
            in_specs=[
                pl.BlockSpec((tm, I), lambda r: (r, 0)),
                pl.BlockSpec((I, G), lambda r: (0, 0)),       # resident
                pl.BlockSpec((1, G), lambda r: (0, 0)),       # resident
            ],
            out_specs=pl.BlockSpec((tm, G), lambda r: (r, 0)),
        ),
        compiler_params=pltpu.CompilerParams(
            dimension_semantics=("parallel",),
            vmem_limit_bytes=_VMEM_LIMIT_BYTES),
    )(x_flat, w, b)


def _lstm_recurrent_fc(xg_tm, wih_stack, whh_stack, b_stack, wfc, bfc, *, t_block):
    """Fused multi-layer recurrence + final FC. Returns (Bp, O)."""
    S, Bp, G = xg_tm.shape
    L, Hp, _ = whh_stack.shape
    O = wfc.shape[1]
    return pl.pallas_call(
        _lstm_fused_kernel,
        out_shape=jax.ShapeDtypeStruct((Bp, O), jnp.float32),
        grid_spec=pltpu.PrefetchScalarGridSpec(
            num_scalar_prefetch=0,
            grid=(S // t_block,),
            in_specs=[
                pl.BlockSpec((t_block, Bp, G), lambda t: (t, 0, 0)),  # stream gate slab
                pl.BlockSpec((L, Hp, G), lambda t: (0, 0, 0)),        # resident
                pl.BlockSpec((L, Hp, G), lambda t: (0, 0, 0)),        # resident
                pl.BlockSpec((L, 1, G), lambda t: (0, 0, 0)),         # resident
                pl.BlockSpec((Hp, O), lambda t: (0, 0)),              # resident
                pl.BlockSpec((1, O), lambda t: (0, 0)),               # resident
            ],
            out_specs=pl.BlockSpec((Bp, O), lambda t: (0, 0)),        # written at last step
            scratch_shapes=[
                pltpu.VMEM((L, Bp, Hp), jnp.float32),                 # h per layer
                pltpu.VMEM((L, Bp, Hp), jnp.float32),                 # c per layer
            ],
        ),
        compiler_params=pltpu.CompilerParams(
            dimension_semantics=("arbitrary",),                       # recurrence
            vmem_limit_bytes=_VMEM_LIMIT_BYTES),
    )(xg_tm, wih_stack, whh_stack, b_stack, wfc, bfc)


def _pad_gate_cols(w, H, Hp):
    """Pad each of the 4 gate column-blocks (i|f|g|o) from H to Hp columns."""
    if Hp == H:
        return w
    parts = []
    for g in range(4):
        chunk = w[..., g * H:(g + 1) * H]
        pad = [(0, 0)] * (w.ndim - 1) + [(0, Hp - H)]
        parts.append(jnp.pad(chunk, pad))
    return jnp.concatenate(parts, axis=-1)


def lstm_model_forward(x, params):
    """x: (B, S, input_size) float32 -> (B, output_size) float32."""
    B, S, I = x.shape
    layers = params["layers"]
    L = len(layers)
    H = layers[0]["whh_t"].shape[0]
    O = params["wfc_t"].shape[1]
    Bp = _round_up(B, 8)       # sublane-aligned batch
    Hp = _round_up(H, 128)     # lane-aligned hidden (per-gate)
    G = 4 * Hp

    # --- repack / zero-pad parameters (exact: padded units stay zero) -------
    wih0_p = _pad_gate_cols(layers[0]["wih_t"], H, Hp)                 # (I, 4Hp)
    b0_p = _pad_gate_cols(layers[0]["b"], H, Hp)                       # (1, 4Hp)

    whh_rows, wih_rows, b_rows = [], [], []
    for l in range(L):
        whh_p = _pad_gate_cols(layers[l]["whh_t"], H, Hp)
        whh_rows.append(jnp.pad(whh_p, ((0, Hp - H), (0, 0))))
        if l == 0:
            # Layer-0 input projection + bias are hoisted into xg below.
            wih_rows.append(jnp.zeros((Hp, G), jnp.float32))
            b_rows.append(jnp.zeros((1, G), jnp.float32))
        else:
            wih_p = _pad_gate_cols(layers[l]["wih_t"], H, Hp)
            wih_rows.append(jnp.pad(wih_p, ((0, Hp - H), (0, 0))))
            b_rows.append(_pad_gate_cols(layers[l]["b"], H, Hp))
    whh_stack = jnp.stack(whh_rows)                                    # (L, Hp, 4Hp)
    wih_stack = jnp.stack(wih_rows)                                    # (L, Hp, 4Hp)
    b_stack = jnp.stack(b_rows)                                        # (L, 1, 4Hp)
    wfc_p = jnp.pad(params["wfc_t"], ((0, Hp - H), (0, 0)))            # (Hp, O)
    bfc = params["bfc"]                                                # (1, O)

    # --- layer-0 input projection for ALL timesteps: one GEMM (Pallas) ------
    x_pad = jnp.pad(x, ((0, Bp - B), (0, 0), (0, 0)))                  # (Bp, S, I)
    x_tm = jnp.transpose(x_pad, (1, 0, 2)).reshape(S * Bp, I)          # time-major rows
    xg = _input_projection(x_tm, wih0_p, b0_p).reshape(S, Bp, G)       # (S, Bp, 4Hp)

    # --- fused multi-layer recurrence + final FC (single Pallas call) -------
    t_block = _time_block(S)
    y_pad = _lstm_recurrent_fc(xg, wih_stack, whh_stack, b_stack, wfc_p, bfc,
                               t_block=t_block)                        # (Bp, O)
    return y_pad[:B, :]


# ----------------------------------------------------------------------------
# Pure-JAX reference (mirrors PyTorch nn.LSTM gate equations, eval mode)
# ----------------------------------------------------------------------------
def lstm_reference(x, params):
    B, S, _ = x.shape
    layer_in = x
    for lyr in params["layers"]:
        H = lyr["whh_t"].shape[0]
        h = jnp.zeros((B, H), jnp.float32)
        c = jnp.zeros((B, H), jnp.float32)
        outs = []
        for t in range(S):
            gates = layer_in[:, t, :] @ lyr["wih_t"] + h @ lyr["whh_t"] + lyr["b"]
            i_g = 1.0 / (1.0 + jnp.exp(-gates[:, 0 * H:1 * H]))
            f_g = 1.0 / (1.0 + jnp.exp(-gates[:, 1 * H:2 * H]))
            g_g = jnp.tanh(gates[:, 2 * H:3 * H])
            o_g = 1.0 / (1.0 + jnp.exp(-gates[:, 3 * H:4 * H]))
            c = f_g * c + i_g * g_g
            h = o_g * jnp.tanh(c)
            outs.append(h)
        layer_in = jnp.stack(outs, axis=1)
    return layer_in[:, -1, :] @ params["wfc_t"] + params["bfc"]


# ----------------------------------------------------------------------------
# Demo / self-check
# ----------------------------------------------------------------------------
def _init_params(key, input_size, hidden_size, num_layers, output_size):
    """Deterministic params; layout matches PyTorch (gate order i|f|g|o),
    stored pre-transposed: wih_t (in,4H), whh_t (H,4H), combined bias."""
    k = 1.0 / math.sqrt(hidden_size)
    layers = []
    for l in range(num_layers):
        in_dim = input_size if l == 0 else hidden_size
        key, k1, k2, k3, k4 = jax.random.split(key, 5)
        wih_t = jax.random.uniform(k1, (in_dim, 4 * hidden_size), jnp.float32, -k, k)
        whh_t = jax.random.uniform(k2, (hidden_size, 4 * hidden_size), jnp.float32, -k, k)
        b_ih = jax.random.uniform(k3, (4 * hidden_size,), jnp.float32, -k, k)
        b_hh = jax.random.uniform(k4, (4 * hidden_size,), jnp.float32, -k, k)
        layers.append({"wih_t": wih_t, "whh_t": whh_t,
                       "b": (b_ih + b_hh)[None, :]})
    key, k5, k6 = jax.random.split(key, 3)
    kf = 1.0 / math.sqrt(hidden_size)
    wfc_t = jax.random.uniform(k5, (hidden_size, output_size), jnp.float32, -kf, kf)
    bfc = jax.random.uniform(k6, (output_size,), jnp.float32, -kf, kf)[None, :]
    return {"layers": layers, "wfc_t": wfc_t, "bfc": bfc}


if __name__ == "__main__":
    B, S = 2, 8
    INPUT_SIZE, HIDDEN_SIZE, NUM_LAYERS, OUTPUT_SIZE = 8, 32, 2, 4

    key = jax.random.PRNGKey(0)
    key, kx, kp = jax.random.split(key, 3)
    x = jax.random.normal(kx, (B, S, INPUT_SIZE), dtype=jnp.float32)
    params = _init_params(kp, INPUT_SIZE, HIDDEN_SIZE, NUM_LAYERS, OUTPUT_SIZE)

    forward = jax.jit(lstm_model_forward)
    out = jax.block_until_ready(forward(x, params))

    ref = lstm_reference(x, params)
    assert out.shape == (B, OUTPUT_SIZE), out.shape
    max_err = float(jnp.max(jnp.abs(out - ref)))
    assert jnp.allclose(out, ref, atol=1e-4, rtol=1e-4), (
        f"mismatch vs reference: max abs err = {max_err}")

    print("KERNEL_OK")
</pallas_src>

<mosaic_0001>
module attributes {stable_mosaic.version = 11 : i64} {
  func.func @_input_proj_kernel(%arg0: i32, %arg1: memref<64x8xf32, #tpu.memory_space<vmem>>, %arg2: memref<8x512xf32, #tpu.memory_space<vmem>>, %arg3: memref<1x512xf32, #tpu.memory_space<vmem>>, %arg4: memref<64x512xf32, #tpu.memory_space<vmem>>) attributes {dimension_semantics = [#tpu.dimension_semantics<parallel>], iteration_bounds = array<i64: 1>, scalar_prefetch = 0 : i64, scratch_operands = 0 : i64, tpu.core_type = #tpu.core_type<tc>, window_params = [{transform_indices = @transform_0, window_bounds = array<i64: 64, 8>}, {pipeline_mode = #tpu.pipeline_mode<synchronous>, transform_indices = @transform_1, window_bounds = array<i64: 8, 512>}, {pipeline_mode = #tpu.pipeline_mode<synchronous>, transform_indices = @transform_2, window_bounds = array<i64: 1, 512>}, {transform_indices = @transform_3, window_bounds = array<i64: 64, 512>}]} {
    %c0 = arith.constant 0 : index
    %c0_0 = arith.constant 0 : index
    %0 = vector.load %arg1[%c0, %c0_0] : memref<64x8xf32, #tpu.memory_space<vmem>>, vector<64x8xf32>
    %c0_1 = arith.constant 0 : index
    %c0_2 = arith.constant 0 : index
    %1 = vector.load %arg2[%c0_1, %c0_2] : memref<8x512xf32, #tpu.memory_space<vmem>>, vector<8x512xf32>
    %cst = arith.constant dense<0.000000e+00> : vector<64x512xf32>
    %2 = tpu.matmul %0, %1, %cst {dimension_numbers = #tpu.dot_dimension_numbers<[1], [0], [0], [1], [0, 0, 1, 1], [], []>} : vector<64x8xf32>, vector<8x512xf32>, vector<64x512xf32> -> vector<64x512xf32>
    %c0_3 = arith.constant 0 : index
    %c0_4 = arith.constant 0 : index
    %3 = vector.load %arg3[%c0_3, %c0_4] : memref<1x512xf32, #tpu.memory_space<vmem>>, vector<1x512xf32>
    %4 = vector.broadcast %3 : vector<1x512xf32> to vector<64x512xf32>
    %5 = arith.addf %2, %4 : vector<64x512xf32>
    %c0_5 = arith.constant 0 : index
    %c0_6 = arith.constant 0 : index
    %6 = vector.load %arg4[%c0_5, %c0_6] : memref<64x512xf32, #tpu.memory_space<vmem>>, vector<64x512xf32>
    tpu.vector_store %arg4[%c0_5, %c0_6], %5 {strides = array<i32>} : memref<64x512xf32, #tpu.memory_space<vmem>>, vector<64x512xf32>,
    return
  }
  func.func @transform_0(%arg0: i32) -> (i32, i32) {
    %c0_i32 = arith.constant 0 : i32
    %c0_i32_0 = arith.constant 0 : i32
    return %arg0, %c0_i32 : i32, i32
  }
  func.func @transform_1(%arg0: i32) -> (i32, i32) {
    %c0_i32 = arith.constant 0 : i32
    %c0_i32_0 = arith.constant 0 : i32
    %c0_i32_1 = arith.constant 0 : i32
    return %c0_i32, %c0_i32_0 : i32, i32
  }
  func.func @transform_2(%arg0: i32) -> (i32, i32) {
    %c0_i32 = arith.constant 0 : i32
    %c0_i32_0 = arith.constant 0 : i32
    %c0_i32_1 = arith.constant 0 : i32
    return %c0_i32, %c0_i32_0 : i32, i32
  }
  func.func @transform_3(%arg0: i32) -> (i32, i32) {
    %c0_i32 = arith.constant 0 : i32
    %c0_i32_0 = arith.constant 0 : i32
    return %arg0, %c0_i32 : i32, i32
  }
}

module attributes {stable_mosaic.version = 11 : i64} {
  func.func @_lstm_fused_kernel(%arg0: i32, %arg1: memref<8x8x512xf32, #tpu.memory_space<vmem>>, %arg2: memref<2x128x512xf32, #tpu.memory_space<vmem>>, %arg3: memref<2x128x512xf32, #tpu.memory_space<vmem>>, %arg4: memref<2x1x512xf32, #tpu.memory_space<vmem>>, %arg5: memref<128x4xf32, #tpu.memory_space<vmem>>, %arg6: memref<1x4xf32, #tpu.memory_space<vmem>>, %arg7: memref<8x4xf32, #tpu.memory_space<vmem>>, %arg8: memref<2x8x128xf32, #tpu.memory_space<vmem>>, %arg9: memref<2x8x128xf32, #tpu.memory_space<vmem>>) attributes {dimension_semantics = [#tpu.dimension_semantics<arbitrary>], iteration_bounds = array<i64: 1>, scalar_prefetch = 0 : i64, scratch_operands = 2 : i64, tpu.core_type = #tpu.core_type<tc>, window_params = [{transform_indices = @transform_0, window_bounds = array<i64: 8, 8, 512>}, {pipeline_mode = #tpu.pipeline_mode<synchronous>, transform_indices = @transform_1, window_bounds = array<i64: 2, 128, 512>}, {pipeline_mode = #tpu.pipeline_mode<synchronous>, transform_indices = @transform_2, window_bounds = array<i64: 2, 128, 512>}, {pipeline_mode = #tpu.pipeline_mode<synchronous>, transform_indices = @transform_3, window_bounds = array<i64: 2, 1, 512>}, {pipeline_mode = #tpu.pipeline_mode<synchronous>, transform_indices = @transform_4, window_bounds = array<i64: 128, 4>}, {pipeline_mode = #tpu.pipeline_mode<synchronous>, transform_indices = @transform_5, window_bounds = array<i64: 1, 4>}, {pipeline_mode = #tpu.pipeline_mode<synchronous>, transform_indices = @transform_6, window_bounds = array<i64: 8, 4>}]} {
    %c0_i32 = arith.constant 0 : i32
    %0 = arith.cmpi eq, %arg0, %c0_i32 : i32
    %1 = arith.extui %0 : i1 to i32
    %c0_i32_0 = arith.constant 0 : i32
    %2 = arith.cmpi ne, %1, %c0_i32_0 : i32
    scf.if %2 {
      %cst_474 = arith.constant 0.000000e+00 : f32
      %798 = vector.broadcast %cst_474 : f32 to vector<2x8x128xf32>
      %c0_475 = arith.constant 0 : index
      %c0_476 = arith.constant 0 : index
      %c0_477 = arith.constant 0 : index
      %799 = vector.load %arg8[%c0_475, %c0_476, %c0_477] : memref<2x8x128xf32, #tpu.memory_space<vmem>>, vector<2x8x128xf32>
      tpu.vector_store %arg8[%c0_475, %c0_476, %c0_477], %798 {strides = array<i32>} : memref<2x8x128xf32, #tpu.memory_space<vmem>>, vector<2x8x128xf32>,
      %cst_478 = arith.constant 0.000000e+00 : f32
      %800 = vector.broadcast %cst_478 : f32 to vector<2x8x128xf32>
      %c0_479 = arith.constant 0 : index
      %c0_480 = arith.constant 0 : index
      %c0_481 = arith.constant 0 : index
      %801 = vector.load %arg9[%c0_479, %c0_480, %c0_481] : memref<2x8x128xf32, #tpu.memory_space<vmem>>, vector<2x8x128xf32>
      tpu.vector_store %arg9[%c0_479, %c0_480, %c0_481], %800 {strides = array<i32>} : memref<2x8x128xf32, #tpu.memory_space<vmem>>, vector<2x8x128xf32>,
    } else {
    }
    %c0 = arith.constant 0 : index
    %c0_1 = arith.constant 0 : index
    %c0_2 = arith.constant 0 : index
    %3 = vector.load %arg1[%c0, %c0_1, %c0_2] : memref<8x8x512xf32, #tpu.memory_space<vmem>>, vector<1x8x512xf32>
    %4 = vector.shape_cast %3 : vector<1x8x512xf32> to vector<8x512xf32>
    %c0_3 = arith.constant 0 : index
    %c0_4 = arith.constant 0 : index
    %c0_5 = arith.constant 0 : index
    %5 = vector.load %arg8[%c0_3, %c0_4, %c0_5] : memref<2x8x128xf32, #tpu.memory_space<vmem>>, vector<1x8x128xf32>
    %6 = vector.shape_cast %5 : vector<1x8x128xf32> to vector<8x128xf32>
    %c0_6 = arith.constant 0 : index
    %c0_7 = arith.constant 0 : index
    %c0_8 = arith.constant 0 : index
    %7 = vector.load %arg3[%c0_6, %c0_7, %c0_8] : memref<2x128x512xf32, #tpu.memory_space<vmem>>, vector<1x128x512xf32>
    %8 = vector.shape_cast %7 : vector<1x128x512xf32> to vector<128x512xf32>
    %cst = arith.constant dense<0.000000e+00> : vector<8x512xf32>
    %9 = tpu.matmul %6, %8, %cst {dimension_numbers = #tpu.dot_dimension_numbers<[1], [0], [0], [1], [0, 0, 1, 1], [], []>} : vector<8x128xf32>, vector<128x512xf32>, vector<8x512xf32> -> vector<8x512xf32>
    %10 = arith.addf %4, %9 : vector<8x512xf32>
    %11 = vector.extract_strided_slice %10 {offsets = [0, 0], sizes = [8, 128], strides = [1, 1]} : vector<8x512xf32> to vector<8x128xf32>
    %cst_9 = arith.constant 5.000000e-01 : f32
    %12 = vector.broadcast %cst_9 : f32 to vector<8x128xf32>
    %13 = arith.mulf %12, %11 : vector<8x128xf32>
    %14 = math.tanh %13 : vector<8x128xf32>
    %cst_10 = arith.constant 5.000000e-01 : f32
    %15 = vector.broadcast %cst_10 : f32 to vector<8x128xf32>
    %16 = arith.mulf %15, %14 : vector<8x128xf32>
    %cst_11 = arith.constant 5.000000e-01 : f32
    %17 = vector.broadcast %cst_11 : f32 to vector<8x128xf32>
    %18 = arith.addf %16, %17 : vector<8x128xf32>
    %19 = vector.extract_strided_slice %10 {offsets = [0, 128], sizes = [8, 128], strides = [1, 1]} : vector<8x512xf32> to vector<8x128xf32>
    %cst_12 = arith.constant 5.000000e-01 : f32
    %20 = vector.broadcast %cst_12 : f32 to vector<8x128xf32>
    %21 = arith.mulf %20, %19 : vector<8x128xf32>
    %22 = math.tanh %21 : vector<8x128xf32>
    %cst_13 = arith.constant 5.000000e-01 : f32
    %23 = vector.broadcast %cst_13 : f32 to vector<8x128xf32>
    %24 = arith.mulf %23, %22 : vector<8x128xf32>
    %cst_14 = arith.constant 5.000000e-01 : f32
    %25 = vector.broadcast %cst_14 : f32 to vector<8x128xf32>
    %26 = arith.addf %24, %25 : vector<8x128xf32>
    %27 = vector.extract_strided_slice %10 {offsets = [0, 256], sizes = [8, 128], strides = [1, 1]} : vector<8x512xf32> to vector<8x128xf32>
    %28 = math.tanh %27 : vector<8x128xf32>
    %29 = vector.extract_strided_slice %10 {offsets = [0, 384], sizes = [8, 128], strides = [1, 1]} : vector<8x512xf32> to vector<8x128xf32>
    %cst_15 = arith.constant 5.000000e-01 : f32
    %30 = vector.broadcast %cst_15 : f32 to vector<8x128xf32>
    %31 = arith.mulf %30, %29 : vector<8x128xf32>
    %32 = math.tanh %31 : vector<8x128xf32>
    %cst_16 = arith.constant 5.000000e-01 : f32
    %33 = vector.broadcast %cst_16 : f32 to vector<8x128xf32>
    %34 = arith.mulf %33, %32 : vector<8x128xf32>
    %cst_17 = arith.constant 5.000000e-01 : f32
    %35 = vector.broadcast %cst_17 : f32 to vector<8x128xf32>
    %36 = arith.addf %34, %35 : vector<8x128xf32>
    %c0_18 = arith.constant 0 : index
    %c0_19 = arith.constant 0 : index
    %c0_20 = arith.constant 0 : index
    %37 = vector.load %arg9[%c0_18, %c0_19, %c0_20] : memref<2x8x128xf32, #tpu.memory_space<vmem>>, vector<1x8x128xf32>
    %38 = vector.shape_cast %37 : vector<1x8x128xf32> to vector<8x128xf32>
    %39 = arith.mulf %26, %38 : vector<8x128xf32>
    %40 = arith.mulf %18, %28 : vector<8x128xf32>
    %41 = arith.addf %39, %40 : vector<8x128xf32>
    %42 = math.tanh %41 : vector<8x128xf32>
    %43 = arith.mulf %36, %42 : vector<8x128xf32>
    %c0_21 = arith.constant 0 : index
    %c0_22 = arith.constant 0 : index
    %c0_23 = arith.constant 0 : index
    %44 = vector.load %arg9[%c0_21, %c0_22, %c0_23] : memref<2x8x128xf32, #tpu.memory_space<vmem>>, vector<1x8x128xf32>
    %45 = vector.shape_cast %44 : vector<1x8x128xf32> to vector<8x128xf32>
    %46 = vector.shape_cast %41 : vector<8x128xf32> to vector<1x8x128xf32>
    tpu.vector_store %arg9[%c0_21, %c0_22, %c0_23], %46 {strides = array<i32>} : memref<2x8x128xf32, #tpu.memory_space<vmem>>, vector<1x8x128xf32>,
    %c0_24 = arith.constant 0 : index
    %c0_25 = arith.constant 0 : index
    %c0_26 = arith.constant 0 : index
    %47 = vector.load %arg8[%c0_24, %c0_25, %c0_26] : memref<2x8x128xf32, #tpu.memory_space<vmem>>, vector<1x8x128xf32>
    %48 = vector.shape_cast %47 : vector<1x8x128xf32> to vector<8x128xf32>
    %49 = vector.shape_cast %43 : vector<8x128xf32> to vector<1x8x128xf32>
    tpu.vector_store %arg8[%c0_24, %c0_25, %c0_26], %49 {strides = array<i32>} : memref<2x8x128xf32, #tpu.memory_space<vmem>>, vector<1x8x128xf32>,
    %c1 = arith.constant 1 : index
    %c0_27 = arith.constant 0 : index
    %c0_28 = arith.constant 0 : index
    %50 = vector.load %arg2[%c1, %c0_27, %c0_28] : memref<2x128x512xf32, #tpu.memory_space<vmem>>, vector<1x128x512xf32>
    %51 = vector.shape_cast %50 : vector<1x128x512xf32> to vector<128x512xf32>
    %cst_29 = arith.constant dense<0.000000e+00> : vector<8x512xf32>
    %52 = tpu.matmul %43, %51, %cst_29 {dimension_numbers = #tpu.dot_dimension_numbers<[1], [0], [0], [1], [0, 0, 1, 1], [], []>} : vector<8x128xf32>, vector<128x512xf32>, vector<8x512xf32> -> vector<8x512xf32>
    %c1_30 = arith.constant 1 : index
    %c0_31 = arith.constant 0 : index
    %c0_32 = arith.constant 0 : index
    %53 = vector.load %arg8[%c1_30, %c0_31, %c0_32] : memref<2x8x128xf32, #tpu.memory_space<vmem>>, vector<1x8x128xf32>
    %54 = vector.shape_cast %53 : vector<1x8x128xf32> to vector<8x128xf32>
    %c1_33 = arith.constant 1 : index
    %c0_34 = arith.constant 0 : index
    %c0_35 = arith.constant 0 : index
    %55 = vector.load %arg3[%c1_33, %c0_34, %c0_35] : memref<2x128x512xf32, #tpu.memory_space<vmem>>, vector<1x128x512xf32>
    %56 = vector.shape_cast %55 : vector<1x128x512xf32> to vector<128x512xf32>
    %cst_36 = arith.constant dense<0.000000e+00> : vector<8x512xf32>
    %57 = tpu.matmul %54, %56, %cst_36 {dimension_numbers = #tpu.dot_dimension_numbers<[1], [0], [0], [1], [0, 0, 1, 1], [], []>} : vector<8x128xf32>, vector<128x512xf32>, vector<8x512xf32> -> vector<8x512xf32>
    %58 = arith.addf %52, %57 : vector<8x512xf32>
    %c1_37 = arith.constant 1 : index
    %c0_38 = arith.constant 0 : index
    %c0_39 = arith.constant 0 : index
    %59 = vector.load %arg4[%c1_37, %c0_38, %c0_39] : memref<2x1x512xf32, #tpu.memory_space<vmem>>, vector<1x1x512xf32>
    %60 = vector.shape_cast %59 : vector<1x1x512xf32> to vector<1x512xf32>
    %61 = vector.broadcast %60 : vector<1x512xf32> to vector<8x512xf32>
    %62 = arith.addf %58, %61 : vector<8x512xf32>
    %63 = vector.extract_strided_slice %62 {offsets = [0, 0], sizes = [8, 128], strides = [1, 1]} : vector<8x512xf32> to vector<8x128xf32>
    %cst_40 = arith.constant 5.000000e-01 : f32
    %64 = vector.broadcast %cst_40 : f32 to vector<8x128xf32>
    %65 = arith.mulf %64, %63 : vector<8x128xf32>
    %66 = math.tanh %65 : vector<8x128xf32>
    %cst_41 = arith.constant 5.000000e-01 : f32
    %67 = vector.broadcast %cst_41 : f32 to vector<8x128xf32>
    %68 = arith.mulf %67, %66 : vector<8x128xf32>
    %cst_42 = arith.constant 5.000000e-01 : f32
    %69 = vector.broadcast %cst_42 : f32 to vector<8x128xf32>
    %70 = arith.addf %68, %69 : vector<8x128xf32>
    %71 = vector.extract_strided_slice %62 {offsets = [0, 128], sizes = [8, 128], strides = [1, 1]} : vector<8x512xf32> to vector<8x128xf32>
    %cst_43 = arith.constant 5.000000e-01 : f32
    %72 = vector.broadcast %cst_43 : f32 to vector<8x128xf32>
    %73 = arith.mulf %72, %71 : vector<8x128xf32>
    %74 = math.tanh %73 : vector<8x128xf32>
    %cst_44 = arith.constant 5.000000e-01 : f32
    %75 = vector.broadcast %cst_44 : f32 to vector<8x128xf32>
    %76 = arith.mulf %75, %74 : vector<8x128xf32>
    %cst_45 = arith.constant 5.000000e-01 : f32
    %77 = vector.broadcast %cst_45 : f32 to vector<8x128xf32>
    %78 = arith.addf %76, %77 : vector<8x128xf32>
    %79 = vector.extract_strided_slice %62 {offsets = [0, 256], sizes = [8, 128], strides = [1, 1]} : vector<8x512xf32> to vector<8x128xf32>
    %80 = math.tanh %79 : vector<8x128xf32>
    %81 = vector.extract_strided_slice %62 {offsets = [0, 384], sizes = [8, 128], strides = [1, 1]} : vector<8x512xf32> to vector<8x128xf32>
    %cst_46 = arith.constant 5.000000e-01 : f32
    %82 = vector.broadcast %cst_46 : f32 to vector<8x128xf32>
    %83 = arith.mulf %82, %81 : vector<8x128xf32>
    %84 = math.tanh %83 : vector<8x128xf32>
    %cst_47 = arith.constant 5.000000e-01 : f32
    %85 = vector.broadcast %cst_47 : f32 to vector<8x128xf32>
    %86 = arith.mulf %85, %84 : vector<8x128xf32>
    %cst_48 = arith.constant 5.000000e-01 : f32
    %87 = vector.broadcast %cst_48 : f32 to vector<8x128xf32>
    %88 = arith.addf %86, %87 : vector<8x128xf32>
    %c1_49 = arith.constant 1 : index
    %c0_50 = arith.constant 0 : index
    %c0_51 = arith.constant 0 : index
    %89 = vector.load %arg9[%c1_49, %c0_50, %c0_51] : memref<2x8x128xf32, #tpu.memory_space<vmem>>, vector<1x8x128xf32>
    %90 = vector.shape_cast %89 : vector<1x8x128xf32> to vector<8x128xf32>
    %91 = arith.mulf %78, %90 : vector<8x128xf32>
    %92 = arith.mulf %70, %80 : vector<8x128xf32>
    %93 = arith.addf %91, %92 : vector<8x128xf32>
    %94 = math.tanh %93 : vector<8x128xf32>
    %95 = arith.mulf %88, %94 : vector<8x128xf32>
    %c1_52 = arith.constant 1 : index
    %c0_53 = arith.constant 0 : index
    %c0_54 = arith.constant 0 : index
    %96 = vector.load %arg9[%c1_52, %c0_53, %c0_54] : memref<2x8x128xf32, #tpu.memory_space<vmem>>, vector<1x8x128xf32>
    %97 = vector.shape_cast %96 : vector<1x8x128xf32> to vector<8x128xf32>
    %98 = vector.shape_cast %93 : vector<8x128xf32> to vector<1x8x128xf32>
    tpu.vector_store %arg9[%c1_52, %c0_53, %c0_54], %98 {strides = array<i32>} : memref<2x8x128xf32, #tpu.memory_space<vmem>>, vector<1x8x128xf32>,
    %c1_55 = arith.constant 1 : index
    %c0_56 = arith.constant 0 : index
    %c0_57 = arith.constant 0 : index
    %99 = vector.load %arg8[%c1_55, %c0_56, %c0_57] : memref<2x8x128xf32, #tpu.memory_space<vmem>>, vector<1x8x128xf32>
    %100 = vector.shape_cast %99 : vector<1x8x128xf32> to vector<8x128xf32>
    %101 = vector.shape_cast %95 : vector<8x128xf32> to vector<1x8x128xf32>
    tpu.vector_store %arg8[%c1_55, %c0_56, %c0_57], %101 {strides = array<i32>} : memref<2x8x128xf32, #tpu.memory_space<vmem>>, vector<1x8x128xf32>,
    %c1_58 = arith.constant 1 : index
    %c0_59 = arith.constant 0 : index
    %c0_60 = arith.constant 0 : index
    %102 = vector.load %arg1[%c1_58, %c0_59, %c0_60] : memref<8x8x512xf32, #tpu.memory_space<vmem>>, vector<1x8x512xf32>
    %103 = vector.shape_cast %102 : vector<1x8x512xf32> to vector<8x512xf32>
    %c0_61 = arith.constant 0 : index
    %c0_62 = arith.constant 0 : index
    %c0_63 = arith.constant 0 : index
    %104 = vector.load %arg8[%c0_61, %c0_62, %c0_63] : memref<2x8x128xf32, #tpu.memory_space<vmem>>, vector<1x8x128xf32>
    %105 = vector.shape_cast %104 : vector<1x8x128xf32> to vector<8x128xf32>
    %c0_64 = arith.constant 0 : index
    %c0_65 = arith.constant 0 : index
    %c0_66 = arith.constant 0 : index
    %106 = vector.load %arg3[%c0_64, %c0_65, %c0_66] : memref<2x128x512xf32, #tpu.memory_space<vmem>>, vector<1x128x512xf32>
    %107 = vector.shape_cast %106 : vector<1x128x512xf32> to vector<128x512xf32>
    %cst_67 = arith.constant dense<0.000000e+00> : vector<8x512xf32>
    %108 = tpu.matmul %105, %107, %cst_67 {dimension_numbers = #tpu.dot_dimension_numbers<[1], [0], [0], [1], [0, 0, 1, 1], [], []>} : vector<8x128xf32>, vector<128x512xf32>, vector<8x512xf32> -> vector<8x512xf32>
    %109 = arith.addf %103, %108 : vector<8x512xf32>
    %110 = vector.extract_strided_slice %109 {offsets = [0, 0], sizes = [8, 128], strides = [1, 1]} : vector<8x512xf32> to vector<8x128xf32>
    %cst_68 = arith.constant 5.000000e-01 : f32
    %111 = vector.broadcast %cst_68 : f32 to vector<8x128xf32>
    %112 = arith.mulf %111, %110 : vector<8x128xf32>
    %113 = math.tanh %112 : vector<8x128xf32>
    %cst_69 = arith.constant 5.000000e-01 : f32
    %114 = vector.broadcast %cst_69 : f32 to vector<8x128xf32>
    %115 = arith.mulf %114, %113 : vector<8x128xf32>
    %cst_70 = arith.constant 5.000000e-01 : f32
    %116 = vector.broadcast %cst_70 : f32 to vector<8x128xf32>
    %117 = arith.addf %115, %116 : vector<8x128xf32>
    %118 = vector.extract_strided_slice %109 {offsets = [0, 128], sizes = [8, 128], strides = [1, 1]} : vector<8x512xf32> to vector<8x128xf32>
    %cst_71 = arith.constant 5.000000e-01 : f32
    %119 = vector.broadcast %cst_71 : f32 to vector<8x128xf32>
    %120 = arith.mulf %119, %118 : vector<8x128xf32>
    %121 = math.tanh %120 : vector<8x128xf32>
    %cst_72 = arith.constant 5.000000e-01 : f32
    %122 = vector.broadcast %cst_72 : f32 to vector<8x128xf32>
    %123 = arith.mulf %122, %121 : vector<8x128xf32>
    %cst_73 = arith.constant 5.000000e-01 : f32
    %124 = vector.broadcast %cst_73 : f32 to vector<8x128xf32>
    %125 = arith.addf %123, %124 : vector<8x128xf32>
    %126 = vector.extract_strided_slice %109 {offsets = [0, 256], sizes = [8, 128], strides = [1, 1]} : vector<8x512xf32> to vector<8x128xf32>
    %127 = math.tanh %126 : vector<8x128xf32>
    %128 = vector.extract_strided_slice %109 {offsets = [0, 384], sizes = [8, 128], strides = [1, 1]} : vector<8x512xf32> to vector<8x128xf32>
    %cst_74 = arith.constant 5.000000e-01 : f32
    %129 = vector.broadcast %cst_74 : f32 to vector<8x128xf32>
    %130 = arith.mulf %129, %128 : vector<8x128xf32>
    %131 = math.tanh %130 : vector<8x128xf32>
    %cst_75 = arith.constant 5.000000e-01 : f32
    %132 = vector.broadcast %cst_75 : f32 to vector<8x128xf32>
    %133 = arith.mulf %132, %131 : vector<8x128xf32>
    %cst_76 = arith.constant 5.000000e-01 : f32
    %134 = vector.broadcast %cst_76 : f32 to vector<8x128xf32>
    %135 = arith.addf %133, %134 : vector<8x128xf32>
    %c0_77 = arith.constant 0 : index
    %c0_78 = arith.constant 0 : index
    %c0_79 = arith.constant 0 : index
    %136 = vector.load %arg9[%c0_77, %c0_78, %c0_79] : memref<2x8x128xf32, #tpu.memory_space<vmem>>, vector<1x8x128xf32>
    %137 = vector.shape_cast %136 : vector<1x8x128xf32> to vector<8x128xf32>
    %138 = arith.mulf %125, %137 : vector<8x128xf32>
    %139 = arith.mulf %117, %127 : vector<8x128xf32>
    %140 = arith.addf %138, %139 : vector<8x128xf32>
    %141 = math.tanh %140 : vector<8x128xf32>
    %142 = arith.mulf %135, %141 : vector<8x128xf32>
    %c0_80 = arith.constant 0 : index
    %c0_81 = arith.constant 0 : index
    %c0_82 = arith.constant 0 : index
    %143 = vector.load %arg9[%c0_80, %c0_81, %c0_82] : memref<2x8x128xf32, #tpu.memory_space<vmem>>, vector<1x8x128xf32>
    %144 = vector.shape_cast %143 : vector<1x8x128xf32> to vector<8x128xf32>
    %145 = vector.shape_cast %140 : vector<8x128xf32> to vector<1x8x128xf32>
    tpu.vector_store %arg9[%c0_80, %c0_81, %c0_82], %145 {strides = array<i32>} : memref<2x8x128xf32, #tpu.memory_space<vmem>>, vector<1x8x128xf32>,
    %c0_83 = arith.constant 0 : index
    %c0_84 = arith.constant 0 : index
    %c0_85 = arith.constant 0 : index
    %146 = vector.load %arg8[%c0_83, %c0_84, %c0_85] : memref<2x8x128xf32, #tpu.memory_space<vmem>>, vector<1x8x128xf32>
    %147 = vector.shape_cast %146 : vector<1x8x128xf32> to vector<8x128xf32>
    %148 = vector.shape_cast %142 : vector<8x128xf32> to vector<1x8x128xf32>
    tpu.vector_store %arg8[%c0_83, %c0_84, %c0_85], %148 {strides = array<i32>} : memref<2x8x128xf32, #tpu.memory_space<vmem>>, vector<1x8x128xf32>,
    %c1_86 = arith.constant 1 : index
    %c0_87 = arith.constant 0 : index
    %c0_88 = arith.constant 0 : index
    %149 = vector.load %arg2[%c1_86, %c0_87, %c0_88] : memref<2x128x512xf32, #tpu.memory_space<vmem>>, vector<1x128x512xf32>
    %150 = vector.shape_cast %149 : vector<1x128x512xf32> to vector<128x512xf32>
    %cst_89 = arith.constant dense<0.000000e+00> : vector<8x512xf32>
    %151 = tpu.matmul %142, %150, %cst_89 {dimension_numbers = #tpu.dot_dimension_numbers<[1], [0], [0], [1], [0, 0, 1, 1], [], []>} : vector<8x128xf32>, vector<128x512xf32>, vector<8x512xf32> -> vector<8x512xf32>
    %c1_90 = arith.constant 1 : index
    %c0_91 = arith.constant 0 : index
    %c0_92 = arith.constant 0 : index
    %152 = vector.load %arg8[%c1_90, %c0_91, %c0_92] : memref<2x8x128xf32, #tpu.memory_space<vmem>>, vector<1x8x128xf32>
    %153 = vector.shape_cast %152 : vector<1x8x128xf32> to vector<8x128xf32>
    %c1_93 = arith.constant 1 : index
    %c0_94 = arith.constant 0 : index
    %c0_95 = arith.constant 0 : index
    %154 = vector.load %arg3[%c1_93, %c0_94, %c0_95] : memref<2x128x512xf32, #tpu.memory_space<vmem>>, vector<1x128x512xf32>
    %155 = vector.shape_cast %154 : vector<1x128x512xf32> to vector<128x512xf32>
    %cst_96 = arith.constant dense<0.000000e+00> : vector<8x512xf32>
    %156 = tpu.matmul %153, %155, %cst_96 {dimension_numbers = #tpu.dot_dimension_numbers<[1], [0], [0], [1], [0, 0, 1, 1], [], []>} : vector<8x128xf32>, vector<128x512xf32>, vector<8x512xf32> -> vector<8x512xf32>
    %157 = arith.addf %151, %156 : vector<8x512xf32>
    %c1_97 = arith.constant 1 : index
    %c0_98 = arith.constant 0 : index
    %c0_99 = arith.constant 0 : index
    %158 = vector.load %arg4[%c1_97, %c0_98, %c0_99] : memref<2x1x512xf32, #tpu.memory_space<vmem>>, vector<1x1x512xf32>
    %159 = vector.shape_cast %158 : vector<1x1x512xf32> to vector<1x512xf32>
    %160 = vector.broadcast %159 : vector<1x512xf32> to vector<8x512xf32>
    %161 = arith.addf %157, %160 : vector<8x512xf32>
    %162 = vector.extract_strided_slice %161 {offsets = [0, 0], sizes = [8, 128], strides = [1, 1]} : vector<8x512xf32> to vector<8x128xf32>
    %cst_100 = arith.constant 5.000000e-01 : f32
    %163 = vector.broadcast %cst_100 : f32 to vector<8x128xf32>
    %164 = arith.mulf %163, %162 : vector<8x128xf32>
    %165 = math.tanh %164 : vector<8x128xf32>
    %cst_101 = arith.constant 5.000000e-01 : f32
    %166 = vector.broadcast %cst_101 : f32 to vector<8x128xf32>
    %167 = arith.mulf %166, %165 : vector<8x128xf32>
    %cst_102 = arith.constant 5.000000e-01 : f32
    %168 = vector.broadcast %cst_102 : f32 to vector<8x128xf32>
    %169 = arith.addf %167, %168 : vector<8x128xf32>
    %170 = vector.extract_strided_slice %161 {offsets = [0, 128], sizes = [8, 128], strides = [1, 1]} : vector<8x512xf32> to vector<8x128xf32>
    %cst_103 = arith.constant 5.000000e-01 : f32
    %171 = vector.broadcast %cst_103 : f32 to vector<8x128xf32>
    %172 = arith.mulf %171, %170 : vector<8x128xf32>
    %173 = math.tanh %172 : vector<8x128xf32>
    %cst_104 = arith.constant 5.000000e-01 : f32
    %174 = vector.broadcast %cst_104 : f32 to vector<8x128xf32>
    %175 = arith.mulf %174, %173 : vector<8x128xf32>
    %cst_105 = arith.constant 5.000000e-01 : f32
    %176 = vector.broadcast %cst_105 : f32 to vector<8x128xf32>
    %177 = arith.addf %175, %176 : vector<8x128xf32>
    %178 = vector.extract_strided_slice %161 {offsets = [0, 256], sizes = [8, 128], strides = [1, 1]} : vector<8x512xf32> to vector<8x128xf32>
    %179 = math.tanh %178 : vector<8x128xf32>
    %180 = vector.extract_strided_slice %161 {offsets = [0, 384], sizes = [8, 128], strides = [1, 1]} : vector<8x512xf32> to vector<8x128xf32>
    %cst_106 = arith.constant 5.000000e-01 : f32
    %181 = vector.broadcast %cst_106 : f32 to vector<8x128xf32>
    %182 = arith.mulf %181, %180 : vector<8x128xf32>
    %183 = math.tanh %182 : vector<8x128xf32>
    %cst_107 = arith.constant 5.000000e-01 : f32
    %184 = vector.broadcast %cst_107 : f32 to vector<8x128xf32>
    %185 = arith.mulf %184, %183 : vector<8x128xf32>
    %cst_108 = arith.constant 5.000000e-01 : f32
    %186 = vector.broadcast %cst_108 : f32 to vector<8x128xf32>
    %187 = arith.addf %185, %186 : vector<8x128xf32>
    %c1_109 = arith.constant 1 : index
    %c0_110 = arith.constant 0 : index
    %c0_111 = arith.constant 0 : index
    %188 = vector.load %arg9[%c1_109, %c0_110, %c0_111] : memref<2x8x128xf32, #tpu.memory_space<vmem>>, vector<1x8x128xf32>
    %189 = vector.shape_cast %188 : vector<1x8x128xf32> to vector<8x128xf32>
    %190 = arith.mulf %177, %189 : vector<8x128xf32>
    %191 = arith.mulf %169, %179 : vector<8x128xf32>
    %192 = arith.addf %190, %191 : vector<8x128xf32>
    %193 = math.tanh %192 : vector<8x128xf32>
    %194 = arith.mulf %187, %193 : vector<8x128xf32>
    %c1_112 = arith.constant 1 : index
    %c0_113 = arith.constant 0 : index
    %c0_114 = arith.constant 0 : index
    %195 = vector.load %arg9[%c1_112, %c0_113, %c0_114] : memref<2x8x128xf32, #tpu.memory_space<vmem>>, vector<1x8x128xf32>
    %196 = vector.shape_cast %195 : vector<1x8x128xf32> to vector<8x128xf32>
    %197 = vector.shape_cast %192 : vector<8x128xf32> to vector<1x8x128xf32>
    tpu.vector_store %arg9[%c1_112, %c0_113, %c0_114], %197 {strides = array<i32>} : memref<2x8x128xf32, #tpu.memory_space<vmem>>, vector<1x8x128xf32>,
    %c1_115 = arith.constant 1 : index
    %c0_116 = arith.constant 0 : index
    %c0_117 = arith.constant 0 : index
    %198 = vector.load %arg8[%c1_115, %c0_116, %c0_117] : memref<2x8x128xf32, #tpu.memory_space<vmem>>, vector<1x8x128xf32>
    %199 = vector.shape_cast %198 : vector<1x8x128xf32> to vector<8x128xf32>
    %200 = vector.shape_cast %194 : vector<8x128xf32> to vector<1x8x128xf32>
    tpu.vector_store %arg8[%c1_115, %c0_116, %c0_117], %200 {strides = array<i32>} : memref<2x8x128xf32, #tpu.memory_space<vmem>>, vector<1x8x128xf32>,
    %c2 = arith.constant 2 : index
    %c0_118 = arith.constant 0 : index
    %c0_119 = arith.constant 0 : index
    %201 = vector.load %arg1[%c2, %c0_118, %c0_119] : memref<8x8x512xf32, #tpu.memory_space<vmem>>, vector<1x8x512xf32>
    %202 = vector.shape_cast %201 : vector<1x8x512xf32> to vector<8x512xf32>
    %c0_120 = arith.constant 0 : index
    %c0_121 = arith.constant 0 : index
    %c0_122 = arith.constant 0 : index
    %203 = vector.load %arg8[%c0_120, %c0_121, %c0_122] : memref<2x8x128xf32, #tpu.memory_space<vmem>>, vector<1x8x128xf32>
    %204 = vector.shape_cast %203 : vector<1x8x128xf32> to vector<8x128xf32>
    %c0_123 = arith.constant 0 : index
    %c0_124 = arith.constant 0 : index
    %c0_125 = arith.constant 0 : index
    %205 = vector.load %arg3[%c0_123, %c0_124, %c0_125] : memref<2x128x512xf32, #tpu.memory_space<vmem>>, vector<1x128x512xf32>
    %206 = vector.shape_cast %205 : vector<1x128x512xf32> to vector<128x512xf32>
    %cst_126 = arith.constant dense<0.000000e+00> : vector<8x512xf32>
    %207 = tpu.matmul %204, %206, %cst_126 {dimension_numbers = #tpu.dot_dimension_numbers<[1], [0], [0], [1], [0, 0, 1, 1], [], []>} : vector<8x128xf32>, vector<128x512xf32>, vector<8x512xf32> -> vector<8x512xf32>
    %208 = arith.addf %202, %207 : vector<8x512xf32>
    %209 = vector.extract_strided_slice %208 {offsets = [0, 0], sizes = [8, 128], strides = [1, 1]} : vector<8x512xf32> to vector<8x128xf32>
    %cst_127 = arith.constant 5.000000e-01 : f32
    %210 = vector.broadcast %cst_127 : f32 to vector<8x128xf32>
    %211 = arith.mulf %210, %209 : vector<8x128xf32>
    %212 = math.tanh %211 : vector<8x128xf32>
    %cst_128 = arith.constant 5.000000e-01 : f32
    %213 = vector.broadcast %cst_128 : f32 to vector<8x128xf32>
    %214 = arith.mulf %213, %212 : vector<8x128xf32>
    %cst_129 = arith.constant 5.000000e-01 : f32
    %215 = vector.broadcast %cst_129 : f32 to vector<8x128xf32>
    %216 = arith.addf %214, %215 : vector<8x128xf32>
    %217 = vector.extract_strided_slice %208 {offsets = [0, 128], sizes = [8, 128], strides = [1, 1]} : vector<8x512xf32> to vector<8x128xf32>
    %cst_130 = arith.constant 5.000000e-01 : f32
    %218 = vector.broadcast %cst_130 : f32 to vector<8x128xf32>
    %219 = arith.mulf %218, %217 : vector<8x128xf32>
    %220 = math.tanh %219 : vector<8x128xf32>
    %cst_131 = arith.constant 5.000000e-01 : f32
    %221 = vector.broadcast %cst_131 : f32 to vector<8x128xf32>
    %222 = arith.mulf %221, %220 : vector<8x128xf32>
    %cst_132 = arith.constant 5.000000e-01 : f32
    %223 = vector.broadcast %cst_132 : f32 to vector<8x128xf32>
    %224 = arith.addf %222, %223 : vector<8x128xf32>
    %225 = vector.extract_strided_slice %208 {offsets = [0, 256], sizes = [8, 128], strides = [1, 1]} : vector<8x512xf32> to vector<8x128xf32>
    %226 = math.tanh %225 : vector<8x128xf32>
    %227 = vector.extract_strided_slice %208 {offsets = [0, 384], sizes = [8, 128], strides = [1, 1]} : vector<8x512xf32> to vector<8x128xf32>
    %cst_133 = arith.constant 5.000000e-01 : f32
    %228 = vector.broadcast %cst_133 : f32 to vector<8x128xf32>
    %229 = arith.mulf %228, %227 : vector<8x128xf32>
    %230 = math.tanh %229 : vector<8x128xf32>
    %cst_134 = arith.constant 5.000000e-01 : f32
    %231 = vector.broadcast %cst_134 : f32 to vector<8x128xf32>
    %232 = arith.mulf %231, %230 : vector<8x128xf32>
    %cst_135 = arith.constant 5.000000e-01 : f32
    %233 = vector.broadcast %cst_135 : f32 to vector<8x128xf32>
    %234 = arith.addf %232, %233 : vector<8x128xf32>
    %c0_136 = arith.constant 0 : index
    %c0_137 = arith.constant 0 : index
    %c0_138 = arith.constant 0 : index
    %235 = vector.load %arg9[%c0_136, %c0_137, %c0_138] : memref<2x8x128xf32, #tpu.memory_space<vmem>>, vector<1x8x128xf32>
    %236 = vector.shape_cast %235 : vector<1x8x128xf32> to vector<8x128xf32>
    %237 = arith.mulf %224, %236 : vector<8x128xf32>
    %238 = arith.mulf %216, %226 : vector<8x128xf32>
    %239 = arith.addf %237, %238 : vector<8x128xf32>
    %240 = math.tanh %239 : vector<8x128xf32>
    %241 = arith.mulf %234, %240 : vector<8x128xf32>
    %c0_139 = arith.constant 0 : index
    %c0_140 = arith.constant 0 : index
    %c0_141 = arith.constant 0 : index
    %242 = vector.load %arg9[%c0_139, %c0_140, %c0_141] : memref<2x8x128xf32, #tpu.memory_space<vmem>>, vector<1x8x128xf32>
    %243 = vector.shape_cast %242 : vector<1x8x128xf32> to vector<8x128xf32>
    %244 = vector.shape_cast %239 : vector<8x128xf32> to vector<1x8x128xf32>
    tpu.vector_store %arg9[%c0_139, %c0_140, %c0_141], %244 {strides = array<i32>} : memref<2x8x128xf32, #tpu.memory_space<vmem>>, vector<1x8x128xf32>,
    %c0_142 = arith.constant 0 : index
    %c0_143 = arith.constant 0 : index
    %c0_144 = arith.constant 0 : index
    %245 = vector.load %arg8[%c0_142, %c0_143, %c0_144] : memref<2x8x128xf32, #tpu.memory_space<vmem>>, vector<1x8x128xf32>
    %246 = vector.shape_cast %245 : vector<1x8x128xf32> to vector<8x128xf32>
    %247 = vector.shape_cast %241 : vector<8x128xf32> to vector<1x8x128xf32>
    tpu.vector_store %arg8[%c0_142, %c0_143, %c0_144], %247 {strides = array<i32>} : memref<2x8x128xf32, #tpu.memory_space<vmem>>, vector<1x8x128xf32>,
    %c1_145 = arith.constant 1 : index
    %c0_146 = arith.constant 0 : index
    %c0_147 = arith.constant 0 : index
    %248 = vector.load %arg2[%c1_145, %c0_146, %c0_147] : memref<2x128x512xf32, #tpu.memory_space<vmem>>, vector<1x128x512xf32>
    %249 = vector.shape_cast %248 : vector<1x128x512xf32> to vector<128x512xf32>
    %cst_148 = arith.constant dense<0.000000e+00> : vector<8x512xf32>
    %250 = tpu.matmul %241, %249, %cst_148 {dimension_numbers = #tpu.dot_dimension_numbers<[1], [0], [0], [1], [0, 0, 1, 1], [], []>} : vector<8x128xf32>, vector<128x512xf32>, vector<8x512xf32> -> vector<8x512xf32>
    %c1_149 = arith.constant 1 : index
    %c0_150 = arith.constant 0 : index
    %c0_151 = arith.constant 0 : index
    %251 = vector.load %arg8[%c1_149, %c0_150, %c0_151] : memref<2x8x128xf32, #tpu.memory_space<vmem>>, vector<1x8x128xf32>
    %252 = vector.shape_cast %251 : vector<1x8x128xf32> to vector<8x128xf32>
    %c1_152 = arith.constant 1 : index
    %c0_153 = arith.constant 0 : index
    %c0_154 = arith.constant 0 : index
    %253 = vector.load %arg3[%c1_152, %c0_153, %c0_154] : memref<2x128x512xf32, #tpu.memory_space<vmem>>, vector<1x128x512xf32>
    %254 = vector.shape_cast %253 : vector<1x128x512xf32> to vector<128x512xf32>
    %cst_155 = arith.constant dense<0.000000e+00> : vector<8x512xf32>
    %255 = tpu.matmul %252, %254, %cst_155 {dimension_numbers = #tpu.dot_dimension_numbers<[1], [0], [0], [1], [0, 0, 1, 1], [], []>} : vector<8x128xf32>, vector<128x512xf32>, vector<8x512xf32> -> vector<8x512xf32>
    %256 = arith.addf %250, %255 : vector<8x512xf32>
    %c1_156 = arith.constant 1 : index
    %c0_157 = arith.constant 0 : index
    %c0_158 = arith.constant 0 : index
    %257 = vector.load %arg4[%c1_156, %c0_157, %c0_158] : memref<2x1x512xf32, #tpu.memory_space<vmem>>, vector<1x1x512xf32>
    %258 = vector.shape_cast %257 : vector<1x1x512xf32> to vector<1x512xf32>
    %259 = vector.broadcast %258 : vector<1x512xf32> to vector<8x512xf32>
    %260 = arith.addf %256, %259 : vector<8x512xf32>
    %261 = vector.extract_strided_slice %260 {offsets = [0, 0], sizes = [8, 128], strides = [1, 1]} : vector<8x512xf32> to vector<8x128xf32>
    %cst_159 = arith.constant 5.000000e-01 : f32
    %262 = vector.broadcast %cst_159 : f32 to vector<8x128xf32>
    %263 = arith.mulf %262, %261 : vector<8x128xf32>
    %264 = math.tanh %263 : vector<8x128xf32>
    %cst_160 = arith.constant 5.000000e-01 : f32
    %265 = vector.broadcast %cst_160 : f32 to vector<8x128xf32>
    %266 = arith.mulf %265, %264 : vector<8x128xf32>
    %cst_161 = arith.constant 5.000000e-01 : f32
    %267 = vector.broadcast %cst_161 : f32 to vector<8x128xf32>
    %268 = arith.addf %266, %267 : vector<8x128xf32>
    %269 = vector.extract_strided_slice %260 {offsets = [0, 128], sizes = [8, 128], strides = [1, 1]} : vector<8x512xf32> to vector<8x128xf32>
    %cst_162 = arith.constant 5.000000e-01 : f32
    %270 = vector.broadcast %cst_162 : f32 to vector<8x128xf32>
    %271 = arith.mulf %270, %269 : vector<8x128xf32>
    %272 = math.tanh %271 : vector<8x128xf32>
    %cst_163 = arith.constant 5.000000e-01 : f32
    %273 = vector.broadcast %cst_163 : f32 to vector<8x128xf32>
    %274 = arith.mulf %273, %272 : vector<8x128xf32>
    %cst_164 = arith.constant 5.000000e-01 : f32
    %275 = vector.broadcast %cst_164 : f32 to vector<8x128xf32>
    %276 = arith.addf %274, %275 : vector<8x128xf32>
    %277 = vector.extract_strided_slice %260 {offsets = [0, 256], sizes = [8, 128], strides = [1, 1]} : vector<8x512xf32> to vector<8x128xf32>
    %278 = math.tanh %277 : vector<8x128xf32>
    %279 = vector.extract_strided_slice %260 {offsets = [0, 384], sizes = [8, 128], strides = [1, 1]} : vector<8x512xf32> to vector<8x128xf32>
    %cst_165 = arith.constant 5.000000e-01 : f32
    %280 = vector.broadcast %cst_165 : f32 to vector<8x128xf32>
    %281 = arith.mulf %280, %279 : vector<8x128xf32>
    %282 = math.tanh %281 : vector<8x128xf32>
    %cst_166 = arith.constant 5.000000e-01 : f32
    %283 = vector.broadcast %cst_166 : f32 to vector<8x128xf32>
    %284 = arith.mulf %283, %282 : vector<8x128xf32>
    %cst_167 = arith.constant 5.000000e-01 : f32
    %285 = vector.broadcast %cst_167 : f32 to vector<8x128xf32>
    %286 = arith.addf %284, %285 : vector<8x128xf32>
    %c1_168 = arith.constant 1 : index
    %c0_169 = arith.constant 0 : index
    %c0_170 = arith.constant 0 : index
    %287 = vector.load %arg9[%c1_168, %c0_169, %c0_170] : memref<2x8x128xf32, #tpu.memory_space<vmem>>, vector<1x8x128xf32>
    %288 = vector.shape_cast %287 : vector<1x8x128xf32> to vector<8x128xf32>
    %289 = arith.mulf %276, %288 : vector<8x128xf32>
    %290 = arith.mulf %268, %278 : vector<8x128xf32>
    %291 = arith.addf %289, %290 : vector<8x128xf32>
    %292 = math.tanh %291 : vector<8x128xf32>
    %293 = arith.mulf %286, %292 : vector<8x128xf32>
    %c1_171 = arith.constant 1 : index
    %c0_172 = arith.constant 0 : index
    %c0_173 = arith.constant 0 : index
    %294 = vector.load %arg9[%c1_171, %c0_172, %c0_173] : memref<2x8x128xf32, #tpu.memory_space<vmem>>, vector<1x8x128xf32>
    %295 = vector.shape_cast %294 : vector<1x8x128xf32> to vector<8x128xf32>
    %296 = vector.shape_cast %291 : vector<8x128xf32> to vector<1x8x128xf32>
    tpu.vector_store %arg9[%c1_171, %c0_172, %c0_173], %296 {strides = array<i32>} : memref<2x8x128xf32, #tpu.memory_space<vmem>>, vector<1x8x128xf32>,
    %c1_174 = arith.constant 1 : index
    %c0_175 = arith.constant 0 : index
    %c0_176 = arith.constant 0 : index
    %297 = vector.load %arg8[%c1_174, %c0_175, %c0_176] : memref<2x8x128xf32, #tpu.memory_space<vmem>>, vector<1x8x128xf32>
    %298 = vector.shape_cast %297 : vector<1x8x128xf32> to vector<8x128xf32>
    %299 = vector.shape_cast %293 : vector<8x128xf32> to vector<1x8x128xf32>
    tpu.vector_store %arg8[%c1_174, %c0_175, %c0_176], %299 {strides = array<i32>} : memref<2x8x128xf32, #tpu.memory_space<vmem>>, vector<1x8x128xf32>,
    %c3 = arith.constant 3 : index
    %c0_177 = arith.constant 0 : index
    %c0_178 = arith.constant 0 : index
    %300 = vector.load %arg1[%c3, %c0_177, %c0_178] : memref<8x8x512xf32, #tpu.memory_space<vmem>>, vector<1x8x512xf32>
    %301 = vector.shape_cast %300 : vector<1x8x512xf32> to vector<8x512xf32>
    %c0_179 = arith.constant 0 : index
    %c0_180 = arith.constant 0 : index
    %c0_181 = arith.constant 0 : index
    %302 = vector.load %arg8[%c0_179, %c0_180, %c0_181] : memref<2x8x128xf32, #tpu.memory_space<vmem>>, vector<1x8x128xf32>
    %303 = vector.shape_cast %302 : vector<1x8x128xf32> to vector<8x128xf32>
    %c0_182 = arith.constant 0 : index
    %c0_183 = arith.constant 0 : index
    %c0_184 = arith.constant 0 : index
    %304 = vector.load %arg3[%c0_182, %c0_183, %c0_184] : memref<2x128x512xf32, #tpu.memory_space<vmem>>, vector<1x128x512xf32>
    %305 = vector.shape_cast %304 : vector<1x128x512xf32> to vector<128x512xf32>
    %cst_185 = arith.constant dense<0.000000e+00> : vector<8x512xf32>
    %306 = tpu.matmul %303, %305, %cst_185 {dimension_numbers = #tpu.dot_dimension_numbers<[1], [0], [0], [1], [0, 0, 1, 1], [], []>} : vector<8x128xf32>, vector<128x512xf32>, vector<8x512xf32> -> vector<8x512xf32>
    %307 = arith.addf %301, %306 : vector<8x512xf32>
    %308 = vector.extract_strided_slice %307 {offsets = [0, 0], sizes = [8, 128], strides = [1, 1]} : vector<8x512xf32> to vector<8x128xf32>
    %cst_186 = arith.constant 5.000000e-01 : f32
    %309 = vector.broadcast %cst_186 : f32 to vector<8x128xf32>
    %310 = arith.mulf %309, %308 : vector<8x128xf32>
    %311 = math.tanh %310 : vector<8x128xf32>
    %cst_187 = arith.constant 5.000000e-01 : f32
    %312 = vector.broadcast %cst_187 : f32 to vector<8x128xf32>
    %313 = arith.mulf %312, %311 : vector<8x128xf32>
    %cst_188 = arith.constant 5.000000e-01 : f32
    %314 = vector.broadcast %cst_188 : f32 to vector<8x128xf32>
    %315 = arith.addf %313, %314 : vector<8x128xf32>
    %316 = vector.extract_strided_slice %307 {offsets = [0, 128], sizes = [8, 128], strides = [1, 1]} : vector<8x512xf32> to vector<8x128xf32>
    %cst_189 = arith.constant 5.000000e-01 : f32
    %317 = vector.broadcast %cst_189 : f32 to vector<8x128xf32>
    %318 = arith.mulf %317, %316 : vector<8x128xf32>
    %319 = math.tanh %318 : vector<8x128xf32>
    %cst_190 = arith.constant 5.000000e-01 : f32
    %320 = vector.broadcast %cst_190 : f32 to vector<8x128xf32>
    %321 = arith.mulf %320, %319 : vector<8x128xf32>
    %cst_191 = arith.constant 5.000000e-01 : f32
    %322 = vector.broadcast %cst_191 : f32 to vector<8x128xf32>
    %323 = arith.addf %321, %322 : vector<8x128xf32>
    %324 = vector.extract_strided_slice %307 {offsets = [0, 256], sizes = [8, 128], strides = [1, 1]} : vector<8x512xf32> to vector<8x128xf32>
    %325 = math.tanh %324 : vector<8x128xf32>
    %326 = vector.extract_strided_slice %307 {offsets = [0, 384], sizes = [8, 128], strides = [1, 1]} : vector<8x512xf32> to vector<8x128xf32>
    %cst_192 = arith.constant 5.000000e-01 : f32
    %327 = vector.broadcast %cst_192 : f32 to vector<8x128xf32>
    %328 = arith.mulf %327, %326 : vector<8x128xf32>
    %329 = math.tanh %328 : vector<8x128xf32>
    %cst_193 = arith.constant 5.000000e-01 : f32
    %330 = vector.broadcast %cst_193 : f32 to vector<8x128xf32>
    %331 = arith.mulf %330, %329 : vector<8x128xf32>
    %cst_194 = arith.constant 5.000000e-01 : f32
    %332 = vector.broadcast %cst_194 : f32 to vector<8x128xf32>
    %333 = arith.addf %331, %332 : vector<8x128xf32>
    %c0_195 = arith.constant 0 : index
    %c0_196 = arith.constant 0 : index
    %c0_197 = arith.constant 0 : index
    %334 = vector.load %arg9[%c0_195, %c0_196, %c0_197] : memref<2x8x128xf32, #tpu.memory_space<vmem>>, vector<1x8x128xf32>
    %335 = vector.shape_cast %334 : vector<1x8x128xf32> to vector<8x128xf32>
    %336 = arith.mulf %323, %335 : vector<8x128xf32>
    %337 = arith.mulf %315, %325 : vector<8x128xf32>
    %338 = arith.addf %336, %337 : vector<8x128xf32>
    %339 = math.tanh %338 : vector<8x128xf32>
    %340 = arith.mulf %333, %339 : vector<8x128xf32>
    %c0_198 = arith.constant 0 : index
    %c0_199 = arith.constant 0 : index
    %c0_200 = arith.constant 0 : index
    %341 = vector.load %arg9[%c0_198, %c0_199, %c0_200] : memref<2x8x128xf32, #tpu.memory_space<vmem>>, vector<1x8x128xf32>
    %342 = vector.shape_cast %341 : vector<1x8x128xf32> to vector<8x128xf32>
    %343 = vector.shape_cast %338 : vector<8x128xf32> to vector<1x8x128xf32>
    tpu.vector_store %arg9[%c0_198, %c0_199, %c0_200], %343 {strides = array<i32>} : memref<2x8x128xf32, #tpu.memory_space<vmem>>, vector<1x8x128xf32>,
    %c0_201 = arith.constant 0 : index
    %c0_202 = arith.constant 0 : index
    %c0_203 = arith.constant 0 : index
    %344 = vector.load %arg8[%c0_201, %c0_202, %c0_203] : memref<2x8x128xf32, #tpu.memory_space<vmem>>, vector<1x8x128xf32>
    %345 = vector.shape_cast %344 : vector<1x8x128xf32> to vector<8x128xf32>
    %346 = vector.shape_cast %340 : vector<8x128xf32> to vector<1x8x128xf32>
    tpu.vector_store %arg8[%c0_201, %c0_202, %c0_203], %346 {strides = array<i32>} : memref<2x8x128xf32, #tpu.memory_space<vmem>>, vector<1x8x128xf32>,
    %c1_204 = arith.constant 1 : index
    %c0_205 = arith.constant 0 : index
    %c0_206 = arith.constant 0 : index
    %347 = vector.load %arg2[%c1_204, %c0_205, %c0_206] : memref<2x128x512xf32, #tpu.memory_space<vmem>>, vector<1x128x512xf32>
    %348 = vector.shape_cast %347 : vector<1x128x512xf32> to vector<128x512xf32>
    %cst_207 = arith.constant dense<0.000000e+00> : vector<8x512xf32>
    %349 = tpu.matmul %340, %348, %cst_207 {dimension_numbers = #tpu.dot_dimension_numbers<[1], [0], [0], [1], [0, 0, 1, 1], [], []>} : vector<8x128xf32>, vector<128x512xf32>, vector<8x512xf32> -> vector<8x512xf32>
    %c1_208 = arith.constant 1 : index
    %c0_209 = arith.constant 0 : index
    %c0_210 = arith.constant 0 : index
    %350 = vector.load %arg8[%c1_208, %c0_209, %c0_210] : memref<2x8x128xf32, #tpu.memory_space<vmem>>, vector<1x8x128xf32>
    %351 = vector.shape_cast %350 : vector<1x8x128xf32> to vector<8x128xf32>
    %c1_211 = arith.constant 1 : index
    %c0_212 = arith.constant 0 : index
    %c0_213 = arith.constant 0 : index
    %352 = vector.load %arg3[%c1_211, %c0_212, %c0_213] : memref<2x128x512xf32, #tpu.memory_space<vmem>>, vector<1x128x512xf32>
    %353 = vector.shape_cast %352 : vector<1x128x512xf32> to vector<128x512xf32>
    %cst_214 = arith.constant dense<0.000000e+00> : vector<8x512xf32>
    %354 = tpu.matmul %351, %353, %cst_214 {dimension_numbers = #tpu.dot_dimension_numbers<[1], [0], [0], [1], [0, 0, 1, 1], [], []>} : vector<8x128xf32>, vector<128x512xf32>, vector<8x512xf32> -> vector<8x512xf32>
    %355 = arith.addf %349, %354 : vector<8x512xf32>
    %c1_215 = arith.constant 1 : index
    %c0_216 = arith.constant 0 : index
    %c0_217 = arith.constant 0 : index
    %356 = vector.load %arg4[%c1_215, %c0_216, %c0_217] : memref<2x1x512xf32, #tpu.memory_space<vmem>>, vector<1x1x512xf32>
    %357 = vector.shape_cast %356 : vector<1x1x512xf32> to vector<1x512xf32>
    %358 = vector.broadcast %357 : vector<1x512xf32> to vector<8x512xf32>
    %359 = arith.addf %355, %358 : vector<8x512xf32>
    %360 = vector.extract_strided_slice %359 {offsets = [0, 0], sizes = [8, 128], strides = [1, 1]} : vector<8x512xf32> to vector<8x128xf32>
    %cst_218 = arith.constant 5.000000e-01 : f32
    %361 = vector.broadcast %cst_218 : f32 to vector<8x128xf32>
    %362 = arith.mulf %361, %360 : vector<8x128xf32>
    %363 = math.tanh %362 : vector<8x128xf32>
    %cst_219 = arith.constant 5.000000e-01 : f32
    %364 = vector.broadcast %cst_219 : f32 to vector<8x128xf32>
    %365 = arith.mulf %364, %363 : vector<8x128xf32>
    %cst_220 = arith.constant 5.000000e-01 : f32
    %366 = vector.broadcast %cst_220 : f32 to vector<8x128xf32>
    %367 = arith.addf %365, %366 : vector<8x128xf32>
    %368 = vector.extract_strided_slice %359 {offsets = [0, 128], sizes = [8, 128], strides = [1, 1]} : vector<8x512xf32> to vector<8x128xf32>
    %cst_221 = arith.constant 5.000000e-01 : f32
    %369 = vector.broadcast %cst_221 : f32 to vector<8x128xf32>
    %370 = arith.mulf %369, %368 : vector<8x128xf32>
    %371 = math.tanh %370 : vector<8x128xf32>
    %cst_222 = arith.constant 5.000000e-01 : f32
    %372 = vector.broadcast %cst_222 : f32 to vector<8x128xf32>
    %373 = arith.mulf %372, %371 : vector<8x128xf32>
    %cst_223 = arith.constant 5.000000e-01 : f32
    %374 = vector.broadcast %cst_223 : f32 to vector<8x128xf32>
    %375 = arith.addf %373, %374 : vector<8x128xf32>
    %376 = vector.extract_strided_slice %359 {offsets = [0, 256], sizes = [8, 128], strides = [1, 1]} : vector<8x512xf32> to vector<8x128xf32>
    %377 = math.tanh %376 : vector<8x128xf32>
    %378 = vector.extract_strided_slice %359 {offsets = [0, 384], sizes = [8, 128], strides = [1, 1]} : vector<8x512xf32> to vector<8x128xf32>
    %cst_224 = arith.constant 5.000000e-01 : f32
    %379 = vector.broadcast %cst_224 : f32 to vector<8x128xf32>
    %380 = arith.mulf %379, %378 : vector<8x128xf32>
    %381 = math.tanh %380 : vector<8x128xf32>
    %cst_225 = arith.constant 5.000000e-01 : f32
    %382 = vector.broadcast %cst_225 : f32 to vector<8x128xf32>
    %383 = arith.mulf %382, %381 : vector<8x128xf32>
    %cst_226 = arith.constant 5.000000e-01 : f32
    %384 = vector.broadcast %cst_226 : f32 to vector<8x128xf32>
    %385 = arith.addf %383, %384 : vector<8x128xf32>
    %c1_227 = arith.constant 1 : index
    %c0_228 = arith.constant 0 : index
    %c0_229 = arith.constant 0 : index
    %386 = vector.load %arg9[%c1_227, %c0_228, %c0_229] : memref<2x8x128xf32, #tpu.memory_space<vmem>>, vector<1x8x128xf32>
    %387 = vector.shape_cast %386 : vector<1x8x128xf32> to vector<8x128xf32>
    %388 = arith.mulf %375, %387 : vector<8x128xf32>
    %389 = arith.mulf %367, %377 : vector<8x128xf32>
    %390 = arith.addf %388, %389 : vector<8x128xf32>
    %391 = math.tanh %390 : vector<8x128xf32>
    %392 = arith.mulf %385, %391 : vector<8x128xf32>
    %c1_230 = arith.constant 1 : index
    %c0_231 = arith.constant 0 : index
    %c0_232 = arith.constant 0 : index
    %393 = vector.load %arg9[%c1_230, %c0_231, %c0_232] : memref<2x8x128xf32, #tpu.memory_space<vmem>>, vector<1x8x128xf32>
    %394 = vector.shape_cast %393 : vector<1x8x128xf32> to vector<8x128xf32>
    %395 = vector.shape_cast %390 : vector<8x128xf32> to vector<1x8x128xf32>
    tpu.vector_store %arg9[%c1_230, %c0_231, %c0_232], %395 {strides = array<i32>} : memref<2x8x128xf32, #tpu.memory_space<vmem>>, vector<1x8x128xf32>,
    %c1_233 = arith.constant 1 : index
    %c0_234 = arith.constant 0 : index
    %c0_235 = arith.constant 0 : index
    %396 = vector.load %arg8[%c1_233, %c0_234, %c0_235] : memref<2x8x128xf32, #tpu.memory_space<vmem>>, vector<1x8x128xf32>
    %397 = vector.shape_cast %396 : vector<1x8x128xf32> to vector<8x128xf32>
    %398 = vector.shape_cast %392 : vector<8x128xf32> to vector<1x8x128xf32>
    tpu.vector_store %arg8[%c1_233, %c0_234, %c0_235], %398 {strides = array<i32>} : memref<2x8x128xf32, #tpu.memory_space<vmem>>, vector<1x8x128xf32>,
    %c4 = arith.constant 4 : index
    %c0_236 = arith.constant 0 : index
    %c0_237 = arith.constant 0 : index
    %399 = vector.load %arg1[%c4, %c0_236, %c0_237] : memref<8x8x512xf32, #tpu.memory_space<vmem>>, vector<1x8x512xf32>
    %400 = vector.shape_cast %399 : vector<1x8x512xf32> to vector<8x512xf32>
    %c0_238 = arith.constant 0 : index
    %c0_239 = arith.constant 0 : index
    %c0_240 = arith.constant 0 : index
    %401 = vector.load %arg8[%c0_238, %c0_239, %c0_240] : memref<2x8x128xf32, #tpu.memory_space<vmem>>, vector<1x8x128xf32>
    %402 = vector.shape_cast %401 : vector<1x8x128xf32> to vector<8x128xf32>
    %c0_241 = arith.constant 0 : index
    %c0_242 = arith.constant 0 : index
    %c0_243 = arith.constant 0 : index
    %403 = vector.load %arg3[%c0_241, %c0_242, %c0_243] : memref<2x128x512xf32, #tpu.memory_space<vmem>>, vector<1x128x512xf32>
    %404 = vector.shape_cast %403 : vector<1x128x512xf32> to vector<128x512xf32>
    %cst_244 = arith.constant dense<0.000000e+00> : vector<8x512xf32>
    %405 = tpu.matmul %402, %404, %cst_244 {dimension_numbers = #tpu.dot_dimension_numbers<[1], [0], [0], [1], [0, 0, 1, 1], [], []>} : vector<8x128xf32>, vector<128x512xf32>, vector<8x512xf32> -> vector<8x512xf32>
    %406 = arith.addf %400, %405 : vector<8x512xf32>
    %407 = vector.extract_strided_slice %406 {offsets = [0, 0], sizes = [8, 128], strides = [1, 1]} : vector<8x512xf32> to vector<8x128xf32>
    %cst_245 = arith.constant 5.000000e-01 : f32
    %408 = vector.broadcast %cst_245 : f32 to vector<8x128xf32>
    %409 = arith.mulf %408, %407 : vector<8x128xf32>
    %410 = math.tanh %409 : vector<8x128xf32>
    %cst_246 = arith.constant 5.000000e-01 : f32
    %411 = vector.broadcast %cst_246 : f32 to vector<8x128xf32>
    %412 = arith.mulf %411, %410 : vector<8x128xf32>
    %cst_247 = arith.constant 5.000000e-01 : f32
    %413 = vector.broadcast %cst_247 : f32 to vector<8x128xf32>
    %414 = arith.addf %412, %413 : vector<8x128xf32>
    %415 = vector.extract_strided_slice %406 {offsets = [0, 128], sizes = [8, 128], strides = [1, 1]} : vector<8x512xf32> to vector<8x128xf32>
    %cst_248 = arith.constant 5.000000e-01 : f32
    %416 = vector.broadcast %cst_248 : f32 to vector<8x128xf32>
    %417 = arith.mulf %416, %415 : vector<8x128xf32>
    %418 = math.tanh %417 : vector<8x128xf32>
    %cst_249 = arith.constant 5.000000e-01 : f32
    %419 = vector.broadcast %cst_249 : f32 to vector<8x128xf32>
    %420 = arith.mulf %419, %418 : vector<8x128xf32>
    %cst_250 = arith.constant 5.000000e-01 : f32
    %421 = vector.broadcast %cst_250 : f32 to vector<8x128xf32>
    %422 = arith.addf %420, %421 : vector<8x128xf32>
    %423 = vector.extract_strided_slice %406 {offsets = [0, 256], sizes = [8, 128], strides = [1, 1]} : vector<8x512xf32> to vector<8x128xf32>
    %424 = math.tanh %423 : vector<8x128xf32>
    %425 = vector.extract_strided_slice %406 {offsets = [0, 384], sizes = [8, 128], strides = [1, 1]} : vector<8x512xf32> to vector<8x128xf32>
    %cst_251 = arith.constant 5.000000e-01 : f32
    %426 = vector.broadcast %cst_251 : f32 to vector<8x128xf32>
    %427 = arith.mulf %426, %425 : vector<8x128xf32>
    %428 = math.tanh %427 : vector<8x128xf32>
    %cst_252 = arith.constant 5.000000e-01 : f32
    %429 = vector.broadcast %cst_252 : f32 to vector<8x128xf32>
    %430 = arith.mulf %429, %428 : vector<8x128xf32>
    %cst_253 = arith.constant 5.000000e-01 : f32
    %431 = vector.broadcast %cst_253 : f32 to vector<8x128xf32>
    %432 = arith.addf %430, %431 : vector<8x128xf32>
    %c0_254 = arith.constant 0 : index
    %c0_255 = arith.constant 0 : index
    %c0_256 = arith.constant 0 : index
    %433 = vector.load %arg9[%c0_254, %c0_255, %c0_256] : memref<2x8x128xf32, #tpu.memory_space<vmem>>, vector<1x8x128xf32>
    %434 = vector.shape_cast %433 : vector<1x8x128xf32> to vector<8x128xf32>
    %435 = arith.mulf %422, %434 : vector<8x128xf32>
    %436 = arith.mulf %414, %424 : vector<8x128xf32>
    %437 = arith.addf %435, %436 : vector<8x128xf32>
    %438 = math.tanh %437 : vector<8x128xf32>
    %439 = arith.mulf %432, %438 : vector<8x128xf32>
    %c0_257 = arith.constant 0 : index
    %c0_258 = arith.constant 0 : index
    %c0_259 = arith.constant 0 : index
    %440 = vector.load %arg9[%c0_257, %c0_258, %c0_259] : memref<2x8x128xf32, #tpu.memory_space<vmem>>, vector<1x8x128xf32>
    %441 = vector.shape_cast %440 : vector<1x8x128xf32> to vector<8x128xf32>
    %442 = vector.shape_cast %437 : vector<8x128xf32> to vector<1x8x128xf32>
    tpu.vector_store %arg9[%c0_257, %c0_258, %c0_259], %442 {strides = array<i32>} : memref<2x8x128xf32, #tpu.memory_space<vmem>>, vector<1x8x128xf32>,
    %c0_260 = arith.constant 0 : index
    %c0_261 = arith.constant 0 : index
    %c0_262 = arith.constant 0 : index
    %443 = vector.load %arg8[%c0_260, %c0_261, %c0_262] : memref<2x8x128xf32, #tpu.memory_space<vmem>>, vector<1x8x128xf32>
    %444 = vector.shape_cast %443 : vector<1x8x128xf32> to vector<8x128xf32>
    %445 = vector.shape_cast %439 : vector<8x128xf32> to vector<1x8x128xf32>
    tpu.vector_store %arg8[%c0_260, %c0_261, %c0_262], %445 {strides = array<i32>} : memref<2x8x128xf32, #tpu.memory_space<vmem>>, vector<1x8x128xf32>,
    %c1_263 = arith.constant 1 : index
    %c0_264 = arith.constant 0 : index
    %c0_265 = arith.constant 0 : index
    %446 = vector.load %arg2[%c1_263, %c0_264, %c0_265] : memref<2x128x512xf32, #tpu.memory_space<vmem>>, vector<1x128x512xf32>
    %447 = vector.shape_cast %446 : vector<1x128x512xf32> to vector<128x512xf32>
    %cst_266 = arith.constant dense<0.000000e+00> : vector<8x512xf32>
    %448 = tpu.matmul %439, %447, %cst_266 {dimension_numbers = #tpu.dot_dimension_numbers<[1], [0], [0], [1], [0, 0, 1, 1], [], []>} : vector<8x128xf32>, vector<128x512xf32>, vector<8x512xf32> -> vector<8x512xf32>
    %c1_267 = arith.constant 1 : index
    %c0_268 = arith.constant 0 : index
    %c0_269 = arith.constant 0 : index
    %449 = vector.load %arg8[%c1_267, %c0_268, %c0_269] : memref<2x8x128xf32, #tpu.memory_space<vmem>>, vector<1x8x128xf32>
    %450 = vector.shape_cast %449 : vector<1x8x128xf32> to vector<8x128xf32>
    %c1_270 = arith.constant 1 : index
    %c0_271 = arith.constant 0 : index
    %c0_272 = arith.constant 0 : index
    %451 = vector.load %arg3[%c1_270, %c0_271, %c0_272] : memref<2x128x512xf32, #tpu.memory_space<vmem>>, vector<1x128x512xf32>
    %452 = vector.shape_cast %451 : vector<1x128x512xf32> to vector<128x512xf32>
    %cst_273 = arith.constant dense<0.000000e+00> : vector<8x512xf32>
    %453 = tpu.matmul %450, %452, %cst_273 {dimension_numbers = #tpu.dot_dimension_numbers<[1], [0], [0], [1], [0, 0, 1, 1], [], []>} : vector<8x128xf32>, vector<128x512xf32>, vector<8x512xf32> -> vector<8x512xf32>
    %454 = arith.addf %448, %453 : vector<8x512xf32>
    %c1_274 = arith.constant 1 : index
    %c0_275 = arith.constant 0 : index
    %c0_276 = arith.constant 0 : index
    %455 = vector.load %arg4[%c1_274, %c0_275, %c0_276] : memref<2x1x512xf32, #tpu.memory_space<vmem>>, vector<1x1x512xf32>
    %456 = vector.shape_cast %455 : vector<1x1x512xf32> to vector<1x512xf32>
    %457 = vector.broadcast %456 : vector<1x512xf32> to vector<8x512xf32>
    %458 = arith.addf %454, %457 : vector<8x512xf32>
    %459 = vector.extract_strided_slice %458 {offsets = [0, 0], sizes = [8, 128], strides = [1, 1]} : vector<8x512xf32> to vector<8x128xf32>
    %cst_277 = arith.constant 5.000000e-01 : f32
    %460 = vector.broadcast %cst_277 : f32 to vector<8x128xf32>
    %461 = arith.mulf %460, %459 : vector<8x128xf32>
    %462 = math.tanh %461 : vector<8x128xf32>
    %cst_278 = arith.constant 5.000000e-01 : f32
    %463 = vector.broadcast %cst_278 : f32 to vector<8x128xf32>
    %464 = arith.mulf %463, %462 : vector<8x128xf32>
    %cst_279 = arith.constant 5.000000e-01 : f32
    %465 = vector.broadcast %cst_279 : f32 to vector<8x128xf32>
    %466 = arith.addf %464, %465 : vector<8x128xf32>
    %467 = vector.extract_strided_slice %458 {offsets = [0, 128], sizes = [8, 128], strides = [1, 1]} : vector<8x512xf32> to vector<8x128xf32>
    %cst_280 = arith.constant 5.000000e-01 : f32
    %468 = vector.broadcast %cst_280 : f32 to vector<8x128xf32>
    %469 = arith.mulf %468, %467 : vector<8x128xf32>
    %470 = math.tanh %469 : vector<8x128xf32>
    %cst_281 = arith.constant 5.000000e-01 : f32
    %471 = vector.broadcast %cst_281 : f32 to vector<8x128xf32>
    %472 = arith.mulf %471, %470 : vector<8x128xf32>
    %cst_282 = arith.constant 5.000000e-01 : f32
    %473 = vector.broadcast %cst_282 : f32 to vector<8x128xf32>
    %474 = arith.addf %472, %473 : vector<8x128xf32>
    %475 = vector.extract_strided_slice %458 {offsets = [0, 256], sizes = [8, 128], strides = [1, 1]} : vector<8x512xf32> to vector<8x128xf32>
    %476 = math.tanh %475 : vector<8x128xf32>
    %477 = vector.extract_strided_slice %458 {offsets = [0, 384], sizes = [8, 128], strides = [1, 1]} : vector<8x512xf32> to vector<8x128xf32>
    %cst_283 = arith.constant 5.000000e-01 : f32
    %478 = vector.broadcast %cst_283 : f32 to vector<8x128xf32>
    %479 = arith.mulf %478, %477 : vector<8x128xf32>
    %480 = math.tanh %479 : vector<8x128xf32>
    %cst_284 = arith.constant 5.000000e-01 : f32
    %481 = vector.broadcast %cst_284 : f32 to vector<8x128xf32>
    %482 = arith.mulf %481, %480 : vector<8x128xf32>
    %cst_285 = arith.constant 5.000000e-01 : f32
    %483 = vector.broadcast %cst_285 : f32 to vector<8x128xf32>
    %484 = arith.addf %482, %483 : vector<8x128xf32>
    %c1_286 = arith.constant 1 : index
    %c0_287 = arith.constant 0 : index
    %c0_288 = arith.constant 0 : index
    %485 = vector.load %arg9[%c1_286, %c0_287, %c0_288] : memref<2x8x128xf32, #tpu.memory_space<vmem>>, vector<1x8x128xf32>
    %486 = vector.shape_cast %485 : vector<1x8x128xf32> to vector<8x128xf32>
    %487 = arith.mulf %474, %486 : vector<8x128xf32>
    %488 = arith.mulf %466, %476 : vector<8x128xf32>
    %489 = arith.addf %487, %488 : vector<8x128xf32>
    %490 = math.tanh %489 : vector<8x128xf32>
    %491 = arith.mulf %484, %490 : vector<8x128xf32>
    %c1_289 = arith.constant 1 : index
    %c0_290 = arith.constant 0 : index
    %c0_291 = arith.constant 0 : index
    %492 = vector.load %arg9[%c1_289, %c0_290, %c0_291] : memref<2x8x128xf32, #tpu.memory_space<vmem>>, vector<1x8x128xf32>
    %493 = vector.shape_cast %492 : vector<1x8x128xf32> to vector<8x128xf32>
    %494 = vector.shape_cast %489 : vector<8x128xf32> to vector<1x8x128xf32>
    tpu.vector_store %arg9[%c1_289, %c0_290, %c0_291], %494 {strides = array<i32>} : memref<2x8x128xf32, #tpu.memory_space<vmem>>, vector<1x8x128xf32>,
    %c1_292 = arith.constant 1 : index
    %c0_293 = arith.constant 0 : index
    %c0_294 = arith.constant 0 : index
    %495 = vector.load %arg8[%c1_292, %c0_293, %c0_294] : memref<2x8x128xf32, #tpu.memory_space<vmem>>, vector<1x8x128xf32>
    %496 = vector.shape_cast %495 : vector<1x8x128xf32> to vector<8x128xf32>
    %497 = vector.shape_cast %491 : vector<8x128xf32> to vector<1x8x128xf32>
    tpu.vector_store %arg8[%c1_292, %c0_293, %c0_294], %497 {strides = array<i32>} : memref<2x8x128xf32, #tpu.memory_space<vmem>>, vector<1x8x128xf32>,
    %c5 = arith.constant 5 : index
    %c0_295 = arith.constant 0 : index
    %c0_296 = arith.constant 0 : index
    %498 = vector.load %arg1[%c5, %c0_295, %c0_296] : memref<8x8x512xf32, #tpu.memory_space<vmem>>, vector<1x8x512xf32>
    %499 = vector.shape_cast %498 : vector<1x8x512xf32> to vector<8x512xf32>
    %c0_297 = arith.constant 0 : index
    %c0_298 = arith.constant 0 : index
    %c0_299 = arith.constant 0 : index
    %500 = vector.load %arg8[%c0_297, %c0_298, %c0_299] : memref<2x8x128xf32, #tpu.memory_space<vmem>>, vector<1x8x128xf32>
    %501 = vector.shape_cast %500 : vector<1x8x128xf32> to vector<8x128xf32>
    %c0_300 = arith.constant 0 : index
    %c0_301 = arith.constant 0 : index
    %c0_302 = arith.constant 0 : index
    %502 = vector.load %arg3[%c0_300, %c0_301, %c0_302] : memref<2x128x512xf32, #tpu.memory_space<vmem>>, vector<1x128x512xf32>
    %503 = vector.shape_cast %502 : vector<1x128x512xf32> to vector<128x512xf32>
    %cst_303 = arith.constant dense<0.000000e+00> : vector<8x512xf32>
    %504 = tpu.matmul %501, %503, %cst_303 {dimension_numbers = #tpu.dot_dimension_numbers<[1], [0], [0], [1], [0, 0, 1, 1], [], []>} : vector<8x128xf32>, vector<128x512xf32>, vector<8x512xf32> -> vector<8x512xf32>
    %505 = arith.addf %499, %504 : vector<8x512xf32>
    %506 = vector.extract_strided_slice %505 {offsets = [0, 0], sizes = [8, 128], strides = [1, 1]} : vector<8x512xf32> to vector<8x128xf32>
    %cst_304 = arith.constant 5.000000e-01 : f32
    %507 = vector.broadcast %cst_304 : f32 to vector<8x128xf32>
    %508 = arith.mulf %507, %506 : vector<8x128xf32>
    %509 = math.tanh %508 : vector<8x128xf32>
    %cst_305 = arith.constant 5.000000e-01 : f32
    %510 = vector.broadcast %cst_305 : f32 to vector<8x128xf32>
    %511 = arith.mulf %510, %509 : vector<8x128xf32>
    %cst_306 = arith.constant 5.000000e-01 : f32
    %512 = vector.broadcast %cst_306 : f32 to vector<8x128xf32>
    %513 = arith.addf %511, %512 : vector<8x128xf32>
    %514 = vector.extract_strided_slice %505 {offsets = [0, 128], sizes = [8, 128], strides = [1, 1]} : vector<8x512xf32> to vector<8x128xf32>
    %cst_307 = arith.constant 5.000000e-01 : f32
    %515 = vector.broadcast %cst_307 : f32 to vector<8x128xf32>
    %516 = arith.mulf %515, %514 : vector<8x128xf32>
    %517 = math.tanh %516 : vector<8x128xf32>
    %cst_308 = arith.constant 5.000000e-01 : f32
    %518 = vector.broadcast %cst_308 : f32 to vector<8x128xf32>
    %519 = arith.mulf %518, %517 : vector<8x128xf32>
    %cst_309 = arith.constant 5.000000e-01 : f32
    %520 = vector.broadcast %cst_309 : f32 to vector<8x128xf32>
    %521 = arith.addf %519, %520 : vector<8x128xf32>
    %522 = vector.extract_strided_slice %505 {offsets = [0, 256], sizes = [8, 128], strides = [1, 1]} : vector<8x512xf32> to vector<8x128xf32>
    %523 = math.tanh %522 : vector<8x128xf32>
    %524 = vector.extract_strided_slice %505 {offsets = [0, 384], sizes = [8, 128], strides = [1, 1]} : vector<8x512xf32> to vector<8x128xf32>
    %cst_310 = arith.constant 5.000000e-01 : f32
    %525 = vector.broadcast %cst_310 : f32 to vector<8x128xf32>
    %526 = arith.mulf %525, %524 : vector<8x128xf32>
    %527 = math.tanh %526 : vector<8x128xf32>
    %cst_311 = arith.constant 5.000000e-01 : f32
    %528 = vector.broadcast %cst_311 : f32 to vector<8x128xf32>
    %529 = arith.mulf %528, %527 : vector<8x128xf32>
    %cst_312 = arith.constant 5.000000e-01 : f32
    %530 = vector.broadcast %cst_312 : f32 to vector<8x128xf32>
    %531 = arith.addf %529, %530 : vector<8x128xf32>
    %c0_313 = arith.constant 0 : index
    %c0_314 = arith.constant 0 : index
    %c0_315 = arith.constant 0 : index
    %532 = vector.load %arg9[%c0_313, %c0_314, %c0_315] : memref<2x8x128xf32, #tpu.memory_space<vmem>>, vector<1x8x128xf32>
    %533 = vector.shape_cast %532 : vector<1x8x128xf32> to vector<8x128xf32>
    %534 = arith.mulf %521, %533 : vector<8x128xf32>
    %535 = arith.mulf %513, %523 : vector<8x128xf32>
    %536 = arith.addf %534, %535 : vector<8x128xf32>
    %537 = math.tanh %536 : vector<8x128xf32>
    %538 = arith.mulf %531, %537 : vector<8x128xf32>
    %c0_316 = arith.constant 0 : index
    %c0_317 = arith.constant 0 : index
    %c0_318 = arith.constant 0 : index
    %539 = vector.load %arg9[%c0_316, %c0_317, %c0_318] : memref<2x8x128xf32, #tpu.memory_space<vmem>>, vector<1x8x128xf32>
    %540 = vector.shape_cast %539 : vector<1x8x128xf32> to vector<8x128xf32>
    %541 = vector.shape_cast %536 : vector<8x128xf32> to vector<1x8x128xf32>
    tpu.vector_store %arg9[%c0_316, %c0_317, %c0_318], %541 {strides = array<i32>} : memref<2x8x128xf32, #tpu.memory_space<vmem>>, vector<1x8x128xf32>,
    %c0_319 = arith.constant 0 : index
    %c0_320 = arith.constant 0 : index
    %c0_321 = arith.constant 0 : index
    %542 = vector.load %arg8[%c0_319, %c0_320, %c0_321] : memref<2x8x128xf32, #tpu.memory_space<vmem>>, vector<1x8x128xf32>
    %543 = vector.shape_cast %542 : vector<1x8x128xf32> to vector<8x128xf32>
    %544 = vector.shape_cast %538 : vector<8x128xf32> to vector<1x8x128xf32>
    tpu.vector_store %arg8[%c0_319, %c0_320, %c0_321], %544 {strides = array<i32>} : memref<2x8x128xf32, #tpu.memory_space<vmem>>, vector<1x8x128xf32>,
    %c1_322 = arith.constant 1 : index
    %c0_323 = arith.constant 0 : index
    %c0_324 = arith.constant 0 : index
    %545 = vector.load %arg2[%c1_322, %c0_323, %c0_324] : memref<2x128x512xf32, #tpu.memory_space<vmem>>, vector<1x128x512xf32>
    %546 = vector.shape_cast %545 : vector<1x128x512xf32> to vector<128x512xf32>
    %cst_325 = arith.constant dense<0.000000e+00> : vector<8x512xf32>
    %547 = tpu.matmul %538, %546, %cst_325 {dimension_numbers = #tpu.dot_dimension_numbers<[1], [0], [0], [1], [0, 0, 1, 1], [], []>} : vector<8x128xf32>, vector<128x512xf32>, vector<8x512xf32> -> vector<8x512xf32>
    %c1_326 = arith.constant 1 : index
    %c0_327 = arith.constant 0 : index
    %c0_328 = arith.constant 0 : index
    %548 = vector.load %arg8[%c1_326, %c0_327, %c0_328] : memref<2x8x128xf32, #tpu.memory_space<vmem>>, vector<1x8x128xf32>
    %549 = vector.shape_cast %548 : vector<1x8x128xf32> to vector<8x128xf32>
    %c1_329 = arith.constant 1 : index
    %c0_330 = arith.constant 0 : index
    %c0_331 = arith.constant 0 : index
    %550 = vector.load %arg3[%c1_329, %c0_330, %c0_331] : memref<2x128x512xf32, #tpu.memory_space<vmem>>, vector<1x128x512xf32>
    %551 = vector.shape_cast %550 : vector<1x128x512xf32> to vector<128x512xf32>
    %cst_332 = arith.constant dense<0.000000e+00> : vector<8x512xf32>
    %552 = tpu.matmul %549, %551, %cst_332 {dimension_numbers = #tpu.dot_dimension_numbers<[1], [0], [0], [1], [0, 0, 1, 1], [], []>} : vector<8x128xf32>, vector<128x512xf32>, vector<8x512xf32> -> vector<8x512xf32>
    %553 = arith.addf %547, %552 : vector<8x512xf32>
    %c1_333 = arith.constant 1 : index
    %c0_334 = arith.constant 0 : index
    %c0_335 = arith.constant 0 : index
    %554 = vector.load %arg4[%c1_333, %c0_334, %c0_335] : memref<2x1x512xf32, #tpu.memory_space<vmem>>, vector<1x1x512xf32>
    %555 = vector.shape_cast %554 : vector<1x1x512xf32> to vector<1x512xf32>
    %556 = vector.broadcast %555 : vector<1x512xf32> to vector<8x512xf32>
    %557 = arith.addf %553, %556 : vector<8x512xf32>
    %558 = vector.extract_strided_slice %557 {offsets = [0, 0], sizes = [8, 128], strides = [1, 1]} : vector<8x512xf32> to vector<8x128xf32>
    %cst_336 = arith.constant 5.000000e-01 : f32
    %559 = vector.broadcast %cst_336 : f32 to vector<8x128xf32>
    %560 = arith.mulf %559, %558 : vector<8x128xf32>
    %561 = math.tanh %560 : vector<8x128xf32>
    %cst_337 = arith.constant 5.000000e-01 : f32
    %562 = vector.broadcast %cst_337 : f32 to vector<8x128xf32>
    %563 = arith.mulf %562, %561 : vector<8x128xf32>
    %cst_338 = arith.constant 5.000000e-01 : f32
    %564 = vector.broadcast %cst_338 : f32 to vector<8x128xf32>
    %565 = arith.addf %563, %564 : vector<8x128xf32>
    %566 = vector.extract_strided_slice %557 {offsets = [0, 128], sizes = [8, 128], strides = [1, 1]} : vector<8x512xf32> to vector<8x128xf32>
    %cst_339 = arith.constant 5.000000e-01 : f32
    %567 = vector.broadcast %cst_339 : f32 to vector<8x128xf32>
    %568 = arith.mulf %567, %566 : vector<8x128xf32>
    %569 = math.tanh %568 : vector<8x128xf32>
    %cst_340 = arith.constant 5.000000e-01 : f32
    %570 = vector.broadcast %cst_340 : f32 to vector<8x128xf32>
    %571 = arith.mulf %570, %569 : vector<8x128xf32>
    %cst_341 = arith.constant 5.000000e-01 : f32
    %572 = vector.broadcast %cst_341 : f32 to vector<8x128xf32>
    %573 = arith.addf %571, %572 : vector<8x128xf32>
    %574 = vector.extract_strided_slice %557 {offsets = [0, 256], sizes = [8, 128], strides = [1, 1]} : vector<8x512xf32> to vector<8x128xf32>
    %575 = math.tanh %574 : vector<8x128xf32>
    %576 = vector.extract_strided_slice %557 {offsets = [0, 384], sizes = [8, 128], strides = [1, 1]} : vector<8x512xf32> to vector<8x128xf32>
    %cst_342 = arith.constant 5.000000e-01 : f32
    %577 = vector.broadcast %cst_342 : f32 to vector<8x128xf32>
    %578 = arith.mulf %577, %576 : vector<8x128xf32>
    %579 = math.tanh %578 : vector<8x128xf32>
    %cst_343 = arith.constant 5.000000e-01 : f32
    %580 = vector.broadcast %cst_343 : f32 to vector<8x128xf32>
    %581 = arith.mulf %580, %579 : vector<8x128xf32>
    %cst_344 = arith.constant 5.000000e-01 : f32
    %582 = vector.broadcast %cst_344 : f32 to vector<8x128xf32>
    %583 = arith.addf %581, %582 : vector<8x128xf32>
    %c1_345 = arith.constant 1 : index
    %c0_346 = arith.constant 0 : index
    %c0_347 = arith.constant 0 : index
    %584 = vector.load %arg9[%c1_345, %c0_346, %c0_347] : memref<2x8x128xf32, #tpu.memory_space<vmem>>, vector<1x8x128xf32>
    %585 = vector.shape_cast %584 : vector<1x8x128xf32> to vector<8x128xf32>
    %586 = arith.mulf %573, %585 : vector<8x128xf32>
    %587 = arith.mulf %565, %575 : vector<8x128xf32>
    %588 = arith.addf %586, %587 : vector<8x128xf32>
    %589 = math.tanh %588 : vector<8x128xf32>
    %590 = arith.mulf %583, %589 : vector<8x128xf32>
    %c1_348 = arith.constant 1 : index
    %c0_349 = arith.constant 0 : index
    %c0_350 = arith.constant 0 : index
    %591 = vector.load %arg9[%c1_348, %c0_349, %c0_350] : memref<2x8x128xf32, #tpu.memory_space<vmem>>, vector<1x8x128xf32>
    %592 = vector.shape_cast %591 : vector<1x8x128xf32> to vector<8x128xf32>
    %593 = vector.shape_cast %588 : vector<8x128xf32> to vector<1x8x128xf32>
    tpu.vector_store %arg9[%c1_348, %c0_349, %c0_350], %593 {strides = array<i32>} : memref<2x8x128xf32, #tpu.memory_space<vmem>>, vector<1x8x128xf32>,
    %c1_351 = arith.constant 1 : index
    %c0_352 = arith.constant 0 : index
    %c0_353 = arith.constant 0 : index
    %594 = vector.load %arg8[%c1_351, %c0_352, %c0_353] : memref<2x8x128xf32, #tpu.memory_space<vmem>>, vector<1x8x128xf32>
    %595 = vector.shape_cast %594 : vector<1x8x128xf32> to vector<8x128xf32>
    %596 = vector.shape_cast %590 : vector<8x128xf32> to vector<1x8x128xf32>
    tpu.vector_store %arg8[%c1_351, %c0_352, %c0_353], %596 {strides = array<i32>} : memref<2x8x128xf32, #tpu.memory_space<vmem>>, vector<1x8x128xf32>,
    %c6 = arith.constant 6 : index
    %c0_354 = arith.constant 0 : index
    %c0_355 = arith.constant 0 : index
    %597 = vector.load %arg1[%c6, %c0_354, %c0_355] : memref<8x8x512xf32, #tpu.memory_space<vmem>>, vector<1x8x512xf32>
    %598 = vector.shape_cast %597 : vector<1x8x512xf32> to vector<8x512xf32>
    %c0_356 = arith.constant 0 : index
    %c0_357 = arith.constant 0 : index
    %c0_358 = arith.constant 0 : index
    %599 = vector.load %arg8[%c0_356, %c0_357, %c0_358] : memref<2x8x128xf32, #tpu.memory_space<vmem>>, vector<1x8x128xf32>
    %600 = vector.shape_cast %599 : vector<1x8x128xf32> to vector<8x128xf32>
    %c0_359 = arith.constant 0 : index
    %c0_360 = arith.constant 0 : index
    %c0_361 = arith.constant 0 : index
    %601 = vector.load %arg3[%c0_359, %c0_360, %c0_361] : memref<2x128x512xf32, #tpu.memory_space<vmem>>, vector<1x128x512xf32>
    %602 = vector.shape_cast %601 : vector<1x128x512xf32> to vector<128x512xf32>
    %cst_362 = arith.constant dense<0.000000e+00> : vector<8x512xf32>
    %603 = tpu.matmul %600, %602, %cst_362 {dimension_numbers = #tpu.dot_dimension_numbers<[1], [0], [0], [1], [0, 0, 1, 1], [], []>} : vector<8x128xf32>, vector<128x512xf32>, vector<8x512xf32> -> vector<8x512xf32>
    %604 = arith.addf %598, %603 : vector<8x512xf32>
    %605 = vector.extract_strided_slice %604 {offsets = [0, 0], sizes = [8, 128], strides = [1, 1]} : vector<8x512xf32> to vector<8x128xf32>
    %cst_363 = arith.constant 5.000000e-01 : f32
    %606 = vector.broadcast %cst_363 : f32 to vector<8x128xf32>
    %607 = arith.mulf %606, %605 : vector<8x128xf32>
    %608 = math.tanh %607 : vector<8x128xf32>
    %cst_364 = arith.constant 5.000000e-01 : f32
    %609 = vector.broadcast %cst_364 : f32 to vector<8x128xf32>
    %610 = arith.mulf %609, %608 : vector<8x128xf32>
    %cst_365 = arith.constant 5.000000e-01 : f32
    %611 = vector.broadcast %cst_365 : f32 to vector<8x128xf32>
    %612 = arith.addf %610, %611 : vector<8x128xf32>
    %613 = vector.extract_strided_slice %604 {offsets = [0, 128], sizes = [8, 128], strides = [1, 1]} : vector<8x512xf32> to vector<8x128xf32>
    %cst_366 = arith.constant 5.000000e-01 : f32
    %614 = vector.broadcast %cst_366 : f32 to vector<8x128xf32>
    %615 = arith.mulf %614, %613 : vector<8x128xf32>
    %616 = math.tanh %615 : vector<8x128xf32>
    %cst_367 = arith.constant 5.000000e-01 : f32
    %617 = vector.broadcast %cst_367 : f32 to vector<8x128xf32>
    %618 = arith.mulf %617, %616 : vector<8x128xf32>
    %cst_368 = arith.constant 5.000000e-01 : f32
    %619 = vector.broadcast %cst_368 : f32 to vector<8x128xf32>
    %620 = arith.addf %618, %619 : vector<8x128xf32>
    %621 = vector.extract_strided_slice %604 {offsets = [0, 256], sizes = [8, 128], strides = [1, 1]} : vector<8x512xf32> to vector<8x128xf32>
    %622 = math.tanh %621 : vector<8x128xf32>
    %623 = vector.extract_strided_slice %604 {offsets = [0, 384], sizes = [8, 128], strides = [1, 1]} : vector<8x512xf32> to vector<8x128xf32>
    %cst_369 = arith.constant 5.000000e-01 : f32
    %624 = vector.broadcast %cst_369 : f32 to vector<8x128xf32>
    %625 = arith.mulf %624, %623 : vector<8x128xf32>
    %626 = math.tanh %625 : vector<8x128xf32>
    %cst_370 = arith.constant 5.000000e-01 : f32
    %627 = vector.broadcast %cst_370 : f32 to vector<8x128xf32>
    %628 = arith.mulf %627, %626 : vector<8x128xf32>
    %cst_371 = arith.constant 5.000000e-01 : f32
    %629 = vector.broadcast %cst_371 : f32 to vector<8x128xf32>
    %630 = arith.addf %628, %629 : vector<8x128xf32>
    %c0_372 = arith.constant 0 : index
    %c0_373 = arith.constant 0 : index
    %c0_374 = arith.constant 0 : index
    %631 = vector.load %arg9[%c0_372, %c0_373, %c0_374] : memref<2x8x128xf32, #tpu.memory_space<vmem>>, vector<1x8x128xf32>
    %632 = vector.shape_cast %631 : vector<1x8x128xf32> to vector<8x128xf32>
    %633 = arith.mulf %620, %632 : vector<8x128xf32>
    %634 = arith.mulf %612, %622 : vector<8x128xf32>
    %635 = arith.addf %633, %634 : vector<8x128xf32>
    %636 = math.tanh %635 : vector<8x128xf32>
    %637 = arith.mulf %630, %636 : vector<8x128xf32>
    %c0_375 = arith.constant 0 : index
    %c0_376 = arith.constant 0 : index
    %c0_377 = arith.constant 0 : index
    %638 = vector.load %arg9[%c0_375, %c0_376, %c0_377] : memref<2x8x128xf32, #tpu.memory_space<vmem>>, vector<1x8x128xf32>
    %639 = vector.shape_cast %638 : vector<1x8x128xf32> to vector<8x128xf32>
    %640 = vector.shape_cast %635 : vector<8x128xf32> to vector<1x8x128xf32>
    tpu.vector_store %arg9[%c0_375, %c0_376, %c0_377], %640 {strides = array<i32>} : memref<2x8x128xf32, #tpu.memory_space<vmem>>, vector<1x8x128xf32>,
    %c0_378 = arith.constant 0 : index
    %c0_379 = arith.constant 0 : index
    %c0_380 = arith.constant 0 : index
    %641 = vector.load %arg8[%c0_378, %c0_379, %c0_380] : memref<2x8x128xf32, #tpu.memory_space<vmem>>, vector<1x8x128xf32>
    %642 = vector.shape_cast %641 : vector<1x8x128xf32> to vector<8x128xf32>
    %643 = vector.shape_cast %637 : vector<8x128xf32> to vector<1x8x128xf32>
    tpu.vector_store %arg8[%c0_378, %c0_379, %c0_380], %643 {strides = array<i32>} : memref<2x8x128xf32, #tpu.memory_space<vmem>>, vector<1x8x128xf32>,
    %c1_381 = arith.constant 1 : index
    %c0_382 = arith.constant 0 : index
    %c0_383 = arith.constant 0 : index
    %644 = vector.load %arg2[%c1_381, %c0_382, %c0_383] : memref<2x128x512xf32, #tpu.memory_space<vmem>>, vector<1x128x512xf32>
    %645 = vector.shape_cast %644 : vector<1x128x512xf32> to vector<128x512xf32>
    %cst_384 = arith.constant dense<0.000000e+00> : vector<8x512xf32>
    %646 = tpu.matmul %637, %645, %cst_384 {dimension_numbers = #tpu.dot_dimension_numbers<[1], [0], [0], [1], [0, 0, 1, 1], [], []>} : vector<8x128xf32>, vector<128x512xf32>, vector<8x512xf32> -> vector<8x512xf32>
    %c1_385 = arith.constant 1 : index
    %c0_386 = arith.constant 0 : index
    %c0_387 = arith.constant 0 : index
    %647 = vector.load %arg8[%c1_385, %c0_386, %c0_387] : memref<2x8x128xf32, #tpu.memory_space<vmem>>, vector<1x8x128xf32>
    %648 = vector.shape_cast %647 : vector<1x8x128xf32> to vector<8x128xf32>
    %c1_388 = arith.constant 1 : index
    %c0_389 = arith.constant 0 : index
    %c0_390 = arith.constant 0 : index
    %649 = vector.load %arg3[%c1_388, %c0_389, %c0_390] : memref<2x128x512xf32, #tpu.memory_space<vmem>>, vector<1x128x512xf32>
    %650 = vector.shape_cast %649 : vector<1x128x512xf32> to vector<128x512xf32>
    %cst_391 = arith.constant dense<0.000000e+00> : vector<8x512xf32>
    %651 = tpu.matmul %648, %650, %cst_391 {dimension_numbers = #tpu.dot_dimension_numbers<[1], [0], [0], [1], [0, 0, 1, 1], [], []>} : vector<8x128xf32>, vector<128x512xf32>, vector<8x512xf32> -> vector<8x512xf32>
    %652 = arith.addf %646, %651 : vector<8x512xf32>
    %c1_392 = arith.constant 1 : index
    %c0_393 = arith.constant 0 : index
    %c0_394 = arith.constant 0 : index
    %653 = vector.load %arg4[%c1_392, %c0_393, %c0_394] : memref<2x1x512xf32, #tpu.memory_space<vmem>>, vector<1x1x512xf32>
    %654 = vector.shape_cast %653 : vector<1x1x512xf32> to vector<1x512xf32>
    %655 = vector.broadcast %654 : vector<1x512xf32> to vector<8x512xf32>
    %656 = arith.addf %652, %655 : vector<8x512xf32>
    %657 = vector.extract_strided_slice %656 {offsets = [0, 0], sizes = [8, 128], strides = [1, 1]} : vector<8x512xf32> to vector<8x128xf32>
    %cst_395 = arith.constant 5.000000e-01 : f32
    %658 = vector.broadcast %cst_395 : f32 to vector<8x128xf32>
    %659 = arith.mulf %658, %657 : vector<8x128xf32>
    %660 = math.tanh %659 : vector<8x128xf32>
    %cst_396 = arith.constant 5.000000e-01 : f32
    %661 = vector.broadcast %cst_396 : f32 to vector<8x128xf32>
    %662 = arith.mulf %661, %660 : vector<8x128xf32>
    %cst_397 = arith.constant 5.000000e-01 : f32
    %663 = vector.broadcast %cst_397 : f32 to vector<8x128xf32>
    %664 = arith.addf %662, %663 : vector<8x128xf32>
    %665 = vector.extract_strided_slice %656 {offsets = [0, 128], sizes = [8, 128], strides = [1, 1]} : vector<8x512xf32> to vector<8x128xf32>
    %cst_398 = arith.constant 5.000000e-01 : f32
    %666 = vector.broadcast %cst_398 : f32 to vector<8x128xf32>
    %667 = arith.mulf %666, %665 : vector<8x128xf32>
    %668 = math.tanh %667 : vector<8x128xf32>
    %cst_399 = arith.constant 5.000000e-01 : f32
    %669 = vector.broadcast %cst_399 : f32 to vector<8x128xf32>
    %670 = arith.mulf %669, %668 : vector<8x128xf32>
    %cst_400 = arith.constant 5.000000e-01 : f32
    %671 = vector.broadcast %cst_400 : f32 to vector<8x128xf32>
    %672 = arith.addf %670, %671 : vector<8x128xf32>
    %673 = vector.extract_strided_slice %656 {offsets = [0, 256], sizes = [8, 128], strides = [1, 1]} : vector<8x512xf32> to vector<8x128xf32>
    %674 = math.tanh %673 : vector<8x128xf32>
    %675 = vector.extract_strided_slice %656 {offsets = [0, 384], sizes = [8, 128], strides = [1, 1]} : vector<8x512xf32> to vector<8x128xf32>
    %cst_401 = arith.constant 5.000000e-01 : f32
    %676 = vector.broadcast %cst_401 : f32 to vector<8x128xf32>
    %677 = arith.mulf %676, %675 : vector<8x128xf32>
    %678 = math.tanh %677 : vector<8x128xf32>
    %cst_402 = arith.constant 5.000000e-01 : f32
    %679 = vector.broadcast %cst_402 : f32 to vector<8x128xf32>
    %680 = arith.mulf %679, %678 : vector<8x128xf32>
    %cst_403 = arith.constant 5.000000e-01 : f32
    %681 = vector.broadcast %cst_403 : f32 to vector<8x128xf32>
    %682 = arith.addf %680, %681 : vector<8x128xf32>
    %c1_404 = arith.constant 1 : index
    %c0_405 = arith.constant 0 : index
    %c0_406 = arith.constant 0 : index
    %683 = vector.load %arg9[%c1_404, %c0_405, %c0_406] : memref<2x8x128xf32, #tpu.memory_space<vmem>>, vector<1x8x128xf32>
    %684 = vector.shape_cast %683 : vector<1x8x128xf32> to vector<8x128xf32>
    %685 = arith.mulf %672, %684 : vector<8x128xf32>
    %686 = arith.mulf %664, %674 : vector<8x128xf32>
    %687 = arith.addf %685, %686 : vector<8x128xf32>
    %688 = math.tanh %687 : vector<8x128xf32>
    %689 = arith.mulf %682, %688 : vector<8x128xf32>
    %c1_407 = arith.constant 1 : index
    %c0_408 = arith.constant 0 : index
    %c0_409 = arith.constant 0 : index
    %690 = vector.load %arg9[%c1_407, %c0_408, %c0_409] : memref<2x8x128xf32, #tpu.memory_space<vmem>>, vector<1x8x128xf32>
    %691 = vector.shape_cast %690 : vector<1x8x128xf32> to vector<8x128xf32>
    %692 = vector.shape_cast %687 : vector<8x128xf32> to vector<1x8x128xf32>
    tpu.vector_store %arg9[%c1_407, %c0_408, %c0_409], %692 {strides = array<i32>} : memref<2x8x128xf32, #tpu.memory_space<vmem>>, vector<1x8x128xf32>,
    %c1_410 = arith.constant 1 : index
    %c0_411 = arith.constant 0 : index
    %c0_412 = arith.constant 0 : index
    %693 = vector.load %arg8[%c1_410, %c0_411, %c0_412] : memref<2x8x128xf32, #tpu.memory_space<vmem>>, vector<1x8x128xf32>
    %694 = vector.shape_cast %693 : vector<1x8x128xf32> to vector<8x128xf32>
    %695 = vector.shape_cast %689 : vector<8x128xf32> to vector<1x8x128xf32>
    tpu.vector_store %arg8[%c1_410, %c0_411, %c0_412], %695 {strides = array<i32>} : memref<2x8x128xf32, #tpu.memory_space<vmem>>, vector<1x8x128xf32>,
    %c7 = arith.constant 7 : index
    %c0_413 = arith.constant 0 : index
    %c0_414 = arith.constant 0 : index
    %696 = vector.load %arg1[%c7, %c0_413, %c0_414] : memref<8x8x512xf32, #tpu.memory_space<vmem>>, vector<1x8x512xf32>
    %697 = vector.shape_cast %696 : vector<1x8x512xf32> to vector<8x512xf32>
    %c0_415 = arith.constant 0 : index
    %c0_416 = arith.constant 0 : index
    %c0_417 = arith.constant 0 : index
    %698 = vector.load %arg8[%c0_415, %c0_416, %c0_417] : memref<2x8x128xf32, #tpu.memory_space<vmem>>, vector<1x8x128xf32>
    %699 = vector.shape_cast %698 : vector<1x8x128xf32> to vector<8x128xf32>
    %c0_418 = arith.constant 0 : index
    %c0_419 = arith.constant 0 : index
    %c0_420 = arith.constant 0 : index
    %700 = vector.load %arg3[%c0_418, %c0_419, %c0_420] : memref<2x128x512xf32, #tpu.memory_space<vmem>>, vector<1x128x512xf32>
    %701 = vector.shape_cast %700 : vector<1x128x512xf32> to vector<128x512xf32>
    %cst_421 = arith.constant dense<0.000000e+00> : vector<8x512xf32>
    %702 = tpu.matmul %699, %701, %cst_421 {dimension_numbers = #tpu.dot_dimension_numbers<[1], [0], [0], [1], [0, 0, 1, 1], [], []>} : vector<8x128xf32>, vector<128x512xf32>, vector<8x512xf32> -> vector<8x512xf32>
    %703 = arith.addf %697, %702 : vector<8x512xf32>
    %704 = vector.extract_strided_slice %703 {offsets = [0, 0], sizes = [8, 128], strides = [1, 1]} : vector<8x512xf32> to vector<8x128xf32>
    %cst_422 = arith.constant 5.000000e-01 : f32
    %705 = vector.broadcast %cst_422 : f32 to vector<8x128xf32>
    %706 = arith.mulf %705, %704 : vector<8x128xf32>
    %707 = math.tanh %706 : vector<8x128xf32>
    %cst_423 = arith.constant 5.000000e-01 : f32
    %708 = vector.broadcast %cst_423 : f32 to vector<8x128xf32>
    %709 = arith.mulf %708, %707 : vector<8x128xf32>
    %cst_424 = arith.constant 5.000000e-01 : f32
    %710 = vector.broadcast %cst_424 : f32 to vector<8x128xf32>
    %711 = arith.addf %709, %710 : vector<8x128xf32>
    %712 = vector.extract_strided_slice %703 {offsets = [0, 128], sizes = [8, 128], strides = [1, 1]} : vector<8x512xf32> to vector<8x128xf32>
    %cst_425 = arith.constant 5.000000e-01 : f32
    %713 = vector.broadcast %cst_425 : f32 to vector<8x128xf32>
    %714 = arith.mulf %713, %712 : vector<8x128xf32>
    %715 = math.tanh %714 : vector<8x128xf32>
    %cst_426 = arith.constant 5.000000e-01 : f32
    %716 = vector.broadcast %cst_426 : f32 to vector<8x128xf32>
    %717 = arith.mulf %716, %715 : vector<8x128xf32>
    %cst_427 = arith.constant 5.000000e-01 : f32
    %718 = vector.broadcast %cst_427 : f32 to vector<8x128xf32>
    %719 = arith.addf %717, %718 : vector<8x128xf32>
    %720 = vector.extract_strided_slice %703 {offsets = [0, 256], sizes = [8, 128], strides = [1, 1]} : vector<8x512xf32> to vector<8x128xf32>
    %721 = math.tanh %720 : vector<8x128xf32>
    %722 = vector.extract_strided_slice %703 {offsets = [0, 384], sizes = [8, 128], strides = [1, 1]} : vector<8x512xf32> to vector<8x128xf32>
    %cst_428 = arith.constant 5.000000e-01 : f32
    %723 = vector.broadcast %cst_428 : f32 to vector<8x128xf32>
    %724 = arith.mulf %723, %722 : vector<8x128xf32>
    %725 = math.tanh %724 : vector<8x128xf32>
    %cst_429 = arith.constant 5.000000e-01 : f32
    %726 = vector.broadcast %cst_429 : f32 to vector<8x128xf32>
    %727 = arith.mulf %726, %725 : vector<8x128xf32>
    %cst_430 = arith.constant 5.000000e-01 : f32
    %728 = vector.broadcast %cst_430 : f32 to vector<8x128xf32>
    %729 = arith.addf %727, %728 : vector<8x128xf32>
    %c0_431 = arith.constant 0 : index
    %c0_432 = arith.constant 0 : index
    %c0_433 = arith.constant 0 : index
    %730 = vector.load %arg9[%c0_431, %c0_432, %c0_433] : memref<2x8x128xf32, #tpu.memory_space<vmem>>, vector<1x8x128xf32>
    %731 = vector.shape_cast %730 : vector<1x8x128xf32> to vector<8x128xf32>
    %732 = arith.mulf %719, %731 : vector<8x128xf32>
    %733 = arith.mulf %711, %721 : vector<8x128xf32>
    %734 = arith.addf %732, %733 : vector<8x128xf32>
    %735 = math.tanh %734 : vector<8x128xf32>
    %736 = arith.mulf %729, %735 : vector<8x128xf32>
    %c0_434 = arith.constant 0 : index
    %c0_435 = arith.constant 0 : index
    %c0_436 = arith.constant 0 : index
    %737 = vector.load %arg9[%c0_434, %c0_435, %c0_436] : memref<2x8x128xf32, #tpu.memory_space<vmem>>, vector<1x8x128xf32>
    %738 = vector.shape_cast %737 : vector<1x8x128xf32> to vector<8x128xf32>
    %739 = vector.shape_cast %734 : vector<8x128xf32> to vector<1x8x128xf32>
    tpu.vector_store %arg9[%c0_434, %c0_435, %c0_436], %739 {strides = array<i32>} : memref<2x8x128xf32, #tpu.memory_space<vmem>>, vector<1x8x128xf32>,
    %c0_437 = arith.constant 0 : index
    %c0_438 = arith.constant 0 : index
    %c0_439 = arith.constant 0 : index
    %740 = vector.load %arg8[%c0_437, %c0_438, %c0_439] : memref<2x8x128xf32, #tpu.memory_space<vmem>>, vector<1x8x128xf32>
    %741 = vector.shape_cast %740 : vector<1x8x128xf32> to vector<8x128xf32>
    %742 = vector.shape_cast %736 : vector<8x128xf32> to vector<1x8x128xf32>
    tpu.vector_store %arg8[%c0_437, %c0_438, %c0_439], %742 {strides = array<i32>} : memref<2x8x128xf32, #tpu.memory_space<vmem>>, vector<1x8x128xf32>,
    %c1_440 = arith.constant 1 : index
    %c0_441 = arith.constant 0 : index
    %c0_442 = arith.constant 0 : index
    %743 = vector.load %arg2[%c1_440, %c0_441, %c0_442] : memref<2x128x512xf32, #tpu.memory_space<vmem>>, vector<1x128x512xf32>
    %744 = vector.shape_cast %743 : vector<1x128x512xf32> to vector<128x512xf32>
    %cst_443 = arith.constant dense<0.000000e+00> : vector<8x512xf32>
    %745 = tpu.matmul %736, %744, %cst_443 {dimension_numbers = #tpu.dot_dimension_numbers<[1], [0], [0], [1], [0, 0, 1, 1], [], []>} : vector<8x128xf32>, vector<128x512xf32>, vector<8x512xf32> -> vector<8x512xf32>
    %c1_444 = arith.constant 1 : index
    %c0_445 = arith.constant 0 : index
    %c0_446 = arith.constant 0 : index
    %746 = vector.load %arg8[%c1_444, %c0_445, %c0_446] : memref<2x8x128xf32, #tpu.memory_space<vmem>>, vector<1x8x128xf32>
    %747 = vector.shape_cast %746 : vector<1x8x128xf32> to vector<8x128xf32>
    %c1_447 = arith.constant 1 : index
    %c0_448 = arith.constant 0 : index
    %c0_449 = arith.constant 0 : index
    %748 = vector.load %arg3[%c1_447, %c0_448, %c0_449] : memref<2x128x512xf32, #tpu.memory_space<vmem>>, vector<1x128x512xf32>
    %749 = vector.shape_cast %748 : vector<1x128x512xf32> to vector<128x512xf32>
    %cst_450 = arith.constant dense<0.000000e+00> : vector<8x512xf32>
    %750 = tpu.matmul %747, %749, %cst_450 {dimension_numbers = #tpu.dot_dimension_numbers<[1], [0], [0], [1], [0, 0, 1, 1], [], []>} : vector<8x128xf32>, vector<128x512xf32>, vector<8x512xf32> -> vector<8x512xf32>
    %751 = arith.addf %745, %750 : vector<8x512xf32>
    %c1_451 = arith.constant 1 : index
    %c0_452 = arith.constant 0 : index
    %c0_453 = arith.constant 0 : index
    %752 = vector.load %arg4[%c1_451, %c0_452, %c0_453] : memref<2x1x512xf32, #tpu.memory_space<vmem>>, vector<1x1x512xf32>
    %753 = vector.shape_cast %752 : vector<1x1x512xf32> to vector<1x512xf32>
    %754 = vector.broadcast %753 : vector<1x512xf32> to vector<8x512xf32>
    %755 = arith.addf %751, %754 : vector<8x512xf32>
    %756 = vector.extract_strided_slice %755 {offsets = [0, 0], sizes = [8, 128], strides = [1, 1]} : vector<8x512xf32> to vector<8x128xf32>
    %cst_454 = arith.constant 5.000000e-01 : f32
    %757 = vector.broadcast %cst_454 : f32 to vector<8x128xf32>
    %758 = arith.mulf %757, %756 : vector<8x128xf32>
    %759 = math.tanh %758 : vector<8x128xf32>
    %cst_455 = arith.constant 5.000000e-01 : f32
    %760 = vector.broadcast %cst_455 : f32 to vector<8x128xf32>
    %761 = arith.mulf %760, %759 : vector<8x128xf32>
    %cst_456 = arith.constant 5.000000e-01 : f32
    %762 = vector.broadcast %cst_456 : f32 to vector<8x128xf32>
    %763 = arith.addf %761, %762 : vector<8x128xf32>
    %764 = vector.extract_strided_slice %755 {offsets = [0, 128], sizes = [8, 128], strides = [1, 1]} : vector<8x512xf32> to vector<8x128xf32>
    %cst_457 = arith.constant 5.000000e-01 : f32
    %765 = vector.broadcast %cst_457 : f32 to vector<8x128xf32>
    %766 = arith.mulf %765, %764 : vector<8x128xf32>
    %767 = math.tanh %766 : vector<8x128xf32>
    %cst_458 = arith.constant 5.000000e-01 : f32
    %768 = vector.broadcast %cst_458 : f32 to vector<8x128xf32>
    %769 = arith.mulf %768, %767 : vector<8x128xf32>
    %cst_459 = arith.constant 5.000000e-01 : f32
    %770 = vector.broadcast %cst_459 : f32 to vector<8x128xf32>
    %771 = arith.addf %769, %770 : vector<8x128xf32>
    %772 = vector.extract_strided_slice %755 {offsets = [0, 256], sizes = [8, 128], strides = [1, 1]} : vector<8x512xf32> to vector<8x128xf32>
    %773 = math.tanh %772 : vector<8x128xf32>
    %774 = vector.extract_strided_slice %755 {offsets = [0, 384], sizes = [8, 128], strides = [1, 1]} : vector<8x512xf32> to vector<8x128xf32>
    %cst_460 = arith.constant 5.000000e-01 : f32
    %775 = vector.broadcast %cst_460 : f32 to vector<8x128xf32>
    %776 = arith.mulf %775, %774 : vector<8x128xf32>
    %777 = math.tanh %776 : vector<8x128xf32>
    %cst_461 = arith.constant 5.000000e-01 : f32
    %778 = vector.broadcast %cst_461 : f32 to vector<8x128xf32>
    %779 = arith.mulf %778, %777 : vector<8x128xf32>
    %cst_462 = arith.constant 5.000000e-01 : f32
    %780 = vector.broadcast %cst_462 : f32 to vector<8x128xf32>
    %781 = arith.addf %779, %780 : vector<8x128xf32>
    %c1_463 = arith.constant 1 : index
    %c0_464 = arith.constant 0 : index
    %c0_465 = arith.constant 0 : index
    %782 = vector.load %arg9[%c1_463, %c0_464, %c0_465] : memref<2x8x128xf32, #tpu.memory_space<vmem>>, vector<1x8x128xf32>
    %783 = vector.shape_cast %782 : vector<1x8x128xf32> to vector<8x128xf32>
    %784 = arith.mulf %771, %783 : vector<8x128xf32>
    %785 = arith.mulf %763, %773 : vector<8x128xf32>
    %786 = arith.addf %784, %785 : vector<8x128xf32>
    %787 = math.tanh %786 : vector<8x128xf32>
    %788 = arith.mulf %781, %787 : vector<8x128xf32>
    %c1_466 = arith.constant 1 : index
    %c0_467 = arith.constant 0 : index
    %c0_468 = arith.constant 0 : index
    %789 = vector.load %arg9[%c1_466, %c0_467, %c0_468] : memref<2x8x128xf32, #tpu.memory_space<vmem>>, vector<1x8x128xf32>
    %790 = vector.shape_cast %789 : vector<1x8x128xf32> to vector<8x128xf32>
    %791 = vector.shape_cast %786 : vector<8x128xf32> to vector<1x8x128xf32>
    tpu.vector_store %arg9[%c1_466, %c0_467, %c0_468], %791 {strides = array<i32>} : memref<2x8x128xf32, #tpu.memory_space<vmem>>, vector<1x8x128xf32>,
    %c1_469 = arith.constant 1 : index
    %c0_470 = arith.constant 0 : index
    %c0_471 = arith.constant 0 : index
    %792 = vector.load %arg8[%c1_469, %c0_470, %c0_471] : memref<2x8x128xf32, #tpu.memory_space<vmem>>, vector<1x8x128xf32>
    %793 = vector.shape_cast %792 : vector<1x8x128xf32> to vector<8x128xf32>
    %794 = vector.shape_cast %788 : vector<8x128xf32> to vector<1x8x128xf32>
    tpu.vector_store %arg8[%c1_469, %c0_470, %c0_471], %794 {strides = array<i32>} : memref<2x8x128xf32, #tpu.memory_space<vmem>>, vector<1x8x128xf32>,
    %c0_i32_472 = arith.constant 0 : i32
    %795 = arith.cmpi eq, %arg0, %c0_i32_472 : i32
    %796 = arith.extui %795 : i1 to i32
    %c0_i32_473 = arith.constant 0 : i32
    %797 = arith.cmpi ne, %796, %c0_i32_473 : i32
    scf.if %797 {
      %c1_474 = arith.constant 1 : index
      %c0_475 = arith.constant 0 : index
      %c0_476 = arith.constant 0 : index
      %798 = vector.load %arg8[%c1_474, %c0_475, %c0_476] : memref<2x8x128xf32, #tpu.memory_space<vmem>>, vector<1x8x128xf32>
      %799 = vector.shape_cast %798 : vector<1x8x128xf32> to vector<8x128xf32>
      %c0_477 = arith.constant 0 : index
      %c0_478 = arith.constant 0 : index
      %800 = vector.load %arg5[%c0_477, %c0_478] : memref<128x4xf32, #tpu.memory_space<vmem>>, vector<128x4xf32>
      %cst_479 = arith.constant dense<0.000000e+00> : vector<8x4xf32>
      %801 = tpu.matmul %799, %800, %cst_479 {dimension_numbers = #tpu.dot_dimension_numbers<[1], [0], [0], [1], [0, 0, 1, 1], [], []>} : vector<8x128xf32>, vector<128x4xf32>, vector<8x4xf32> -> vector<8x4xf32>
      %c0_480 = arith.constant 0 : index
      %c0_481 = arith.constant 0 : index
      %802 = vector.load %arg6[%c0_480, %c0_481] : memref<1x4xf32, #tpu.memory_space<vmem>>, vector<1x4xf32>
      %803 = vector.broadcast %802 : vector<1x4xf32> to vector<8x4xf32>
      %804 = arith.addf %801, %803 : vector<8x4xf32>
      %c0_482 = arith.constant 0 : index
      %c0_483 = arith.constant 0 : index
      %805 = vector.load %arg7[%c0_482, %c0_483] : memref<8x4xf32, #tpu.memory_space<vmem>>, vector<8x4xf32>
      tpu.vector_store %arg7[%c0_482, %c0_483], %804 {strides = array<i32>} : memref<8x4xf32, #tpu.memory_space<vmem>>, vector<8x4xf32>,
    } else {
    }
    return
  }
  func.func @transform_0(%arg0: i32) -> (i32, i32, i32) {
    %c0_i32 = arith.constant 0 : i32
    %c0_i32_0 = arith.constant 0 : i32
    %c0_i32_1 = arith.constant 0 : i32
    return %arg0, %c0_i32, %c0_i32_0 : i32, i32, i32
  }
  func.func @transform_1(%arg0: i32) -> (i32, i32, i32) {
    %c0_i32 = arith.constant 0 : i32
    %c0_i32_0 = arith.constant 0 : i32
    %c0_i32_1 = arith.constant 0 : i32
    %c0_i32_2 = arith.constant 0 : i32
    return %c0_i32, %c0_i32_0, %c0_i32_1 : i32, i32, i32
  }
  func.func @transform_2(%arg0: i32) -> (i32, i32, i32) {
    %c0_i32 = arith.constant 0 : i32
    %c0_i32_0 = arith.constant 0 : i32
    %c0_i32_1 = arith.constant 0 : i32
    %c0_i32_2 = arith.constant 0 : i32
    return %c0_i32, %c0_i32_0, %c0_i32_1 : i32, i32, i32
  }
  func.func @transform_3(%arg0: i32) -> (i32, i32, i32) {
    %c0_i32 = arith.constant 0 : i32
    %c0_i32_0 = arith.constant 0 : i32
    %c0_i32_1 = arith.constant 0 : i32
    %c0_i32_2 = arith.constant 0 : i32
    return %c0_i32, %c0_i32_0, %c0_i32_1 : i32, i32, i32
  }
  func.func @transform_4(%arg0: i32) -> (i32, i32) {
    %c0_i32 = arith.constant 0 : i32
    %c0_i32_0 = arith.constant 0 : i32
    %c0_i32_1 = arith.constant 0 : i32
    return %c0_i32, %c0_i32_0 : i32, i32
  }
  func.func @transform_5(%arg0: i32) -> (i32, i32) {
    %c0_i32 = arith.constant 0 : i32
    %c0_i32_0 = arith.constant 0 : i32
    %c0_i32_1 = arith.constant 0 : i32
    return %c0_i32, %c0_i32_0 : i32, i32
  }
  func.func @transform_6(%arg0: i32) -> (i32, i32) {
    %c0_i32 = arith.constant 0 : i32
    %c0_i32_0 = arith.constant 0 : i32
    %c0_i32_1 = arith.constant 0 : i32
    return %c0_i32, %c0_i32_0 : i32, i32
  }
}

</mosaic_0001>

<llo_original>
// kernel: lstm_model_forward.2
$region0: #{lstm_model_forward.2}
  #allocation0 [shape = 'u32[]', space=smem, size = 0x4, offset = 0x4, fixed_abs, tag = 'smem constant byte address 0x4 - core index']
  #allocation1 [shape = 'u32[72,128]{1,0:T(1,128)}', space=vmem, size = 0x9000, scoped, tag = 'internal scratch']
  %s0 = inlined_call_operand.vmem [shape: f32[64,8], index: 0, kind: input, shape index: {}]
  %s1 = inlined_call_operand.vmem [shape: f32[8,512], index: 1, kind: input, shape index: {}]
  %s2 = inlined_call_operand.vmem [shape: f32[1,512], index: 2, kind: input, shape index: {}]
  %s3 = inlined_call_operand.vmem [shape: f32[64,512], index: 3, kind: output, shape index: {}]
  %s4 = sld [smem:[#allocation0]]
  $region22: #{lstm_model_forward.2} parent=0
    _
  %s6 = ssub.s32 1, %s4
  %s7 = scalar_select 0, %s6, %s4
  // Predicated region
  $region2: #{lstm_model_forward.2} parent=0 // pred_check
    _
  $region3: #{lstm_model_forward.2} parent=0 // pred_check_branch
    %9 = sbr.rel (0) target = $region5
  $region4: #{lstm_model_forward.2} parent=0 // pred_region
    _
  $region5: #{lstm_model_forward.2} parent=0 // pred_fallthru
    _
  // Predicated region
  $region6: #{lstm_model_forward.2} parent=0 // pred_check
    _
  $region7: #{lstm_model_forward.2} parent=0 // pred_check_branch
    %11 = sbr.rel (0) target = $region9
  $region8: #{lstm_model_forward.2} parent=0 // pred_region
    _
  $region9: #{lstm_model_forward.2} parent=0 // pred_fallthru
    _
  // Predicated region
  $region10: #{lstm_model_forward.2} parent=0 // pred_check
    _
  $region11: #{lstm_model_forward.2} parent=0 // pred_check_branch
    %13 = sbr.rel (0) target = $region13
  $region12: #{lstm_model_forward.2} parent=0 // pred_region
    _
  $region13: #{lstm_model_forward.2} parent=0 // pred_fallthru
    _
  %v14 = vld [vmem:[%s0] sm:$0xff]
  %v15 = vld [vmem:[%s0 + $0x8] sm:$0xff]
  %v16 = vld [vmem:[%s0 + $0x10] sm:$0xff]
  %v17 = vld [vmem:[%s0 + $0x18] sm:$0xff]
  %v18 = vld [vmem:[%s0 + $0x20] sm:$0xff]
  %v19 = vld [vmem:[%s0 + $0x28] sm:$0xff]
  %v20 = vld [vmem:[%s0 + $0x30] sm:$0xff]
  %v21 = vld [vmem:[%s0 + $0x38] sm:$0xff]
  %v22 = vld [vmem:[%s1] sm:$0xff]
  %v23 = vld [vmem:[%s1 + $0x8] sm:$0xff]
  %v24 = vld [vmem:[%s1 + $0x10] sm:$0xff]
  %v25 = vld [vmem:[%s1 + $0x18] sm:$0xff]
  %v26 = vld [vmem:[%s2] sm:$0xf]
  %v28 = vperm.slane %v26, 0
  %v29 = vperm.slane %v26, 1
  %v30 = vperm.slane %v26, 2
  %v31 = vperm.slane %v26, 3
  %vm36 = vcmask 64512
  %v38 = vsel %vm36, %v14, 0
  %v41 = vsel %vm36, %v15, 0
  %v44 = vsel %vm36, %v16, 0
  %v47 = vsel %vm36, %v17, 0
  %v50 = vsel %vm36, %v18, 0
  %v53 = vsel %vm36, %v19, 0
  %v56 = vsel %vm36, %v20, 0
  %v59 = vsel %vm36, %v21, 0
  %61 = vmatpush.msra.mxu0 0.0
  %62 = vmatpush.msra.mxu0 0.0
  %63 = vmatpush.msra.mxu0 0.0
  %64 = vmatpush.msra.mxu0 0.0
  %65 = vmatpush.msra.mxu0 0.0
  %66 = vmatpush.msra.mxu0 0.0
  %67 = vmatpush.msra.mxu0 0.0
  %68 = vmatpush.msra.mxu0 0.0
  %69 = vmatpush.msra.mxu0 0.0
  %70 = vmatpush.msra.mxu0 0.0
  %71 = vmatpush.msra.mxu0 0.0
  %72 = vmatpush.msra.mxu0 0.0
  %73 = vmatpush.msra.mxu0 0.0
  %74 = vmatpush.msra.mxu0 0.0
  %75 = vmatpush.msra.mxu0 0.0
  %76 = vmatpush.msra.mxu0 %v22
  %77 = vmatmul.f32.gmra.mxu0 %v38
  %v78 = vpop.f32.mrf.mxu0
  %v79 = vadd.f32 %v28, %v78
  %80 = vmatmul.f32.gmra.mxu0 %v41
  %v81 = vpop.f32.mrf.mxu0
  %v82 = vadd.f32 %v28, %v81
  %83 = vmatmul.f32.gmra.mxu0 %v44
  %v84 = vpop.f32.mrf.mxu0
  %v85 = vadd.f32 %v28, %v84
  %86 = vmatmul.f32.gmra.mxu0 %v47
  %v87 = vpop.f32.mrf.mxu0
  %v88 = vadd.f32 %v28, %v87
  %89 = vmatmul.f32.gmra.mxu0 %v50
  %v90 = vpop.f32.mrf.mxu0
  %v91 = vadd.f32 %v28, %v90
  %92 = vmatmul.f32.gmra.mxu0 %v53
  %v93 = vpop.f32.mrf.mxu0
  %v94 = vadd.f32 %v28, %v93
  %95 = vmatmul.f32.gmra.mxu0 %v56
  %v96 = vpop.f32.mrf.mxu0
  %v97 = vadd.f32 %v28, %v96
  %98 = vmatmul.f32.gmra.mxu0 %v59
  %v99 = vpop.f32.mrf.mxu0
  %v100 = vadd.f32 %v28, %v99
  %101 = vdwg.mxu0
  %102 = vmatpush.msra.mxu0 0.0
  %103 = vmatpush.msra.mxu0 0.0
  %104 = vmatpush.msra.mxu0 0.0
  %105 = vmatpush.msra.mxu0 0.0
  %106 = vmatpush.msra.mxu0 0.0
  %107 = vmatpush.msra.mxu0 0.0
  %108 = vmatpush.msra.mxu0 0.0
  %109 = vmatpush.msra.mxu0 0.0
  %110 = vmatpush.msra.mxu0 0.0
  %111 = vmatpush.msra.mxu0 0.0
  %112 = vmatpush.msra.mxu0 0.0
  %113 = vmatpush.msra.mxu0 0.0
  %114 = vmatpush.msra.mxu0 0.0
  %115 = vmatpush.msra.mxu0 0.0
  %116 = vmatpush.msra.mxu0 0.0
  %117 = vmatpush.msra.mxu0 %v23
  %118 = vmatmul.f32.gmra.mxu0 %v38
  %v119 = vpop.f32.mrf.mxu0
  %v120 = vadd.f32 %v29, %v119
  %121 = vmatmul.f32.gmra.mxu0 %v41
  %v122 = vpop.f32.mrf.mxu0
  %v123 = vadd.f32 %v29, %v122
  %124 = vmatmul.f32.gmra.mxu0 %v44
  %v125 = vpop.f32.mrf.mxu0
  %v126 = vadd.f32 %v29, %v125
  %127 = vmatmul.f32.gmra.mxu0 %v47
  %v128 = vpop.f32.mrf.mxu0
  %v129 = vadd.f32 %v29, %v128
  %130 = vmatmul.f32.gmra.mxu0 %v50
  %v131 = vpop.f32.mrf.mxu0
  %v132 = vadd.f32 %v29, %v131
  %133 = vmatmul.f32.gmra.mxu0 %v53
  %v134 = vpop.f32.mrf.mxu0
  %v135 = vadd.f32 %v29, %v134
  %136 = vmatmul.f32.gmra.mxu0 %v56
  %v137 = vpop.f32.mrf.mxu0
  %v138 = vadd.f32 %v29, %v137
  %139 = vmatmul.f32.gmra.mxu0 %v59
  %v140 = vpop.f32.mrf.mxu0
  %v141 = vadd.f32 %v29, %v140
  %142 = vdwg.mxu0
  %143 = vmatpush.msra.mxu0 0.0
  %144 = vmatpush.msra.mxu0 0.0
  %145 = vmatpush.msra.mxu0 0.0
  %146 = vmatpush.msra.mxu0 0.0
  %147 = vmatpush.msra.mxu0 0.0
  %148 = vmatpush.msra.mxu0 0.0
  %149 = vmatpush.msra.mxu0 0.0
  %150 = vmatpush.msra.mxu0 0.0
  %151 = vmatpush.msra.mxu0 0.0
  %152 = vmatpush.msra.mxu0 0.0
  %153 = vmatpush.msra.mxu0 0.0
  %154 = vmatpush.msra.mxu0 0.0
  %155 = vmatpush.msra.mxu0 0.0
  %156 = vmatpush.msra.mxu0 0.0
  %157 = vmatpush.msra.mxu0 0.0
  %158 = vmatpush.msra.mxu0 %v24
  %159 = vmatmul.f32.gmra.mxu0 %v38
  %v160 = vpop.f32.mrf.mxu0
  %v161 = vadd.f32 %v30, %v160
  %162 = vmatmul.f32.gmra.mxu0 %v41
  %v163 = vpop.f32.mrf.mxu0
  %v164 = vadd.f32 %v30, %v163
  %165 = vmatmul.f32.gmra.mxu0 %v44
  %v166 = vpop.f32.mrf.mxu0
  %v167 = vadd.f32 %v30, %v166
  %168 = vmatmul.f32.gmra.mxu0 %v47
  %v169 = vpop.f32.mrf.mxu0
  %v170 = vadd.f32 %v30, %v169
  %171 = vmatmul.f32.gmra.mxu0 %v50
  %v172 = vpop.f32.mrf.mxu0
  %v173 = vadd.f32 %v30, %v172
  %174 = vmatmul.f32.gmra.mxu0 %v53
  %v175 = vpop.f32.mrf.mxu0
  %v176 = vadd.f32 %v30, %v175
  %177 = vmatmul.f32.gmra.mxu0 %v56
  %v178 = vpop.f32.mrf.mxu0
  %v179 = vadd.f32 %v30, %v178
  %180 = vmatmul.f32.gmra.mxu0 %v59
  %v181 = vpop.f32.mrf.mxu0
  %v182 = vadd.f32 %v30, %v181
  %183 = vdwg.mxu0
  %184 = vmatpush.msra.mxu0 0.0
  %185 = vmatpush.msra.mxu0 0.0
  %186 = vmatpush.msra.mxu0 0.0
  %187 = vmatpush.msra.mxu0 0.0
  %188 = vmatpush.msra.mxu0 0.0
  %189 = vmatpush.msra.mxu0 0.0
  %190 = vmatpush.msra.mxu0 0.0
  %191 = vmatpush.msra.mxu0 0.0
  %192 = vmatpush.msra.mxu0 0.0
  %193 = vmatpush.msra.mxu0 0.0
  %194 = vmatpush.msra.mxu0 0.0
  %195 = vmatpush.msra.mxu0 0.0
  %196 = vmatpush.msra.mxu0 0.0
  %197 = vmatpush.msra.mxu0 0.0
  %198 = vmatpush.msra.mxu0 0.0
  %199 = vmatpush.msra.mxu0 %v25
  %200 = vmatmul.f32.gmra.mxu0 %v38
  %v201 = vpop.f32.mrf.mxu0
  %v202 = vadd.f32 %v31, %v201
  %203 = vmatmul.f32.gmra.mxu0 %v41
  %v204 = vpop.f32.mrf.mxu0
  %v205 = vadd.f32 %v31, %v204
  %206 = vmatmul.f32.gmra.mxu0 %v44
  %v207 = vpop.f32.mrf.mxu0
  %v208 = vadd.f32 %v31, %v207
  %209 = vmatmul.f32.gmra.mxu0 %v47
  %v210 = vpop.f32.mrf.mxu0
  %v211 = vadd.f32 %v31, %v210
  %212 = vmatmul.f32.gmra.mxu0 %v50
  %v213 = vpop.f32.mrf.mxu0
  %v214 = vadd.f32 %v31, %v213
  %215 = vmatmul.f32.gmra.mxu0 %v53
  %v216 = vpop.f32.mrf.mxu0
  %v217 = vadd.f32 %v31, %v216
  %218 = vmatmul.f32.gmra.mxu0 %v56
  %v219 = vpop.f32.mrf.mxu0
  %v220 = vadd.f32 %v31, %v219
  %221 = vmatmul.f32.gmra.mxu0 %v59
  %v222 = vpop.f32.mrf.mxu0
  %v223 = vadd.f32 %v31, %v222
  %224 = vdwg.mxu0
  %225 = vst [vmem:[%s3] sm:$0xff] %v79
  %226 = vst [vmem:[%s3 + $0x8] sm:$0xff] %v120
  %227 = vst [vmem:[%s3 + $0x10] sm:$0xff] %v161
  %228 = vst [vmem:[%s3 + $0x18] sm:$0xff] %v202
  %229 = vst [vmem:[%s3 + $0x20] sm:$0xff] %v82
  %230 = vst [vmem:[%s3 + $0x28] sm:$0xff] %v123
  %231 = vst [vmem:[%s3 + $0x30] sm:$0xff] %v164
  %232 = vst [vmem:[%s3 + $0x38] sm:$0xff] %v205
  %233 = vst [vmem:[%s3 + $0x40] sm:$0xff] %v85
  %234 = vst [vmem:[%s3 + $0x48] sm:$0xff] %v126
  %235 = vst [vmem:[%s3 + $0x50] sm:$0xff] %v167
  %236 = vst [vmem:[%s3 + $0x58] sm:$0xff] %v208
  %237 = vst [vmem:[%s3 + $0x60] sm:$0xff] %v88
  %238 = vst [vmem:[%s3 + $0x68] sm:$0xff] %v129
  %239 = vst [vmem:[%s3 + $0x70] sm:$0xff] %v170
  %240 = vst [vmem:[%s3 + $0x78] sm:$0xff] %v211
  %241 = vst [vmem:[%s3 + $0x80] sm:$0xff] %v91
  %242 = vst [vmem:[%s3 + $0x88] sm:$0xff] %v132
  %243 = vst [vmem:[%s3 + $0x90] sm:$0xff] %v173
  %244 = vst [vmem:[%s3 + $0x98] sm:$0xff] %v214
  %245 = vst [vmem:[%s3 + $0xa0] sm:$0xff] %v94
  %246 = vst [vmem:[%s3 + $0xa8] sm:$0xff] %v135
  %247 = vst [vmem:[%s3 + $0xb0] sm:$0xff] %v176
  %248 = vst [vmem:[%s3 + $0xb8] sm:$0xff] %v217
  %249 = vst [vmem:[%s3 + $0xc0] sm:$0xff] %v97
  %250 = vst [vmem:[%s3 + $0xc8] sm:$0xff] %v138
  %251 = vst [vmem:[%s3 + $0xd0] sm:$0xff] %v179
  %252 = vst [vmem:[%s3 + $0xd8] sm:$0xff] %v220
  %253 = vst [vmem:[%s3 + $0xe0] sm:$0xff] %v100
  %254 = vst [vmem:[%s3 + $0xe8] sm:$0xff] %v141
  %255 = vst [vmem:[%s3 + $0xf0] sm:$0xff] %v182
  %256 = vst [vmem:[%s3 + $0xf8] sm:$0xff] %v223
  // Predicated region
  $region14: #{lstm_model_forward.2} parent=0 // pred_check
    _
  $region15: #{lstm_model_forward.2} parent=0 // pred_check_branch
    %258 = sbr.rel (0) target = $region17
  $region16: #{lstm_model_forward.2} parent=0 // pred_region
    _
  $region17: #{lstm_model_forward.2} parent=0 // pred_fallthru
    _
  // Predicated region
  $region18: #{lstm_model_forward.2} parent=0 // pred_check
    _
  $region19: #{lstm_model_forward.2} parent=0 // pred_check_branch
    %260 = sbr.rel (0) target = $region21
  $region20: #{lstm_model_forward.2} parent=0 // pred_region
    _
  $region21: #{lstm_model_forward.2} parent=0 // pred_fallthru
    _

// kernel: lstm_model_forward.3
$region0: #{lstm_model_forward.3}
  #allocation0 [shape = 'u32[]', space=smem, size = 0x4, offset = 0x4, fixed_abs, tag = 'smem constant byte address 0x4 - core index']
  #allocation1 [shape = 'u32[72,128]{1,0:T(1,128)}', space=vmem, size = 0x9000, scoped, tag = 'internal scratch']
  #allocation2 [shape = 'f32[2,8,128]{2,1,0:T(8,128)}', space=vmem, size = 0x2000, scoped, tag = 'scratch operand']
  #allocation3 [shape = 'f32[2,8,128]{2,1,0:T(8,128)}', space=vmem, size = 0x2000, scoped, tag = 'scratch operand']
  %s0 = inlined_call_operand.vmem [shape: f32[8,8,512], index: 0, kind: input, shape index: {}]
  %s1 = inlined_call_operand.vmem [shape: f32[2,128,512], index: 1, kind: input, shape index: {}]
  %s2 = inlined_call_operand.vmem [shape: f32[2,128,512], index: 2, kind: input, shape index: {}]
  %s3 = inlined_call_operand.vmem [shape: f32[2,1,512], index: 3, kind: input, shape index: {}]
  %s4 = inlined_call_operand.vmem [shape: f32[128,4], index: 4, kind: input, shape index: {}]
  %s5 = inlined_call_operand.vmem [shape: f32[1,4], index: 5, kind: input, shape index: {}]
  %s6 = inlined_call_operand.vmem [shape: f32[8,4], index: 6, kind: output, shape index: {}]
  %s7 = sld [smem:[#allocation0]]
  $region42: #{lstm_model_forward.3} parent=0
    _
  %s9 = ssub.s32 1, %s7
  %s10 = scalar_select 0, %s9, %s7
  // Predicated region
  $region2: #{lstm_model_forward.3} parent=0 // pred_check
    _
  $region3: #{lstm_model_forward.3} parent=0 // pred_check_branch
    %12 = sbr.rel (0) target = $region5
  $region4: #{lstm_model_forward.3} parent=0 // pred_region
    _
  $region5: #{lstm_model_forward.3} parent=0 // pred_fallthru
    _
  // Predicated region
  $region6: #{lstm_model_forward.3} parent=0 // pred_check
    _
  $region7: #{lstm_model_forward.3} parent=0 // pred_check_branch
    %14 = sbr.rel (0) target = $region9
  $region8: #{lstm_model_forward.3} parent=0 // pred_region
    _
  $region9: #{lstm_model_forward.3} parent=0 // pred_fallthru
    _
  // Predicated region
  $region10: #{lstm_model_forward.3} parent=0 // pred_check
    _
  $region11: #{lstm_model_forward.3} parent=0 // pred_check_branch
    %16 = sbr.rel (0) target = $region13
  $region12: #{lstm_model_forward.3} parent=0 // pred_region
    _
  $region13: #{lstm_model_forward.3} parent=0 // pred_fallthru
    _
  // Predicated region
  $region14: #{lstm_model_forward.3} parent=0 // pred_check
    _
  $region15: #{lstm_model_forward.3} parent=0 // pred_check_branch
    %18 = sbr.rel (0) target = $region17
  $region16: #{lstm_model_forward.3} parent=0 // pred_region
    _
  $region17: #{lstm_model_forward.3} parent=0 // pred_fallthru
    _
  // Predicated region
  $region18: #{lstm_model_forward.3} parent=0 // pred_check
    _
  $region19: #{lstm_model_forward.3} parent=0 // pred_check_branch
    %20 = sbr.rel (0) target = $region21
  $region20: #{lstm_model_forward.3} parent=0 // pred_region
    _
  $region21: #{lstm_model_forward.3} parent=0 // pred_fallthru
    _
  // Predicated region
  $region22: #{lstm_model_forward.3} parent=0 // pred_check
    _
  $region23: #{lstm_model_forward.3} parent=0 // pred_check_branch
    %22 = sbr.rel (0) target = $region25
  $region24: #{lstm_model_forward.3} parent=0 // pred_region
    _
  $region25: #{lstm_model_forward.3} parent=0 // pred_fallthru
    _
  %p23 = scmp.eq.s32.totalorder 0, 0
  // Predicated region
  $region26: #{lstm_model_forward.3} parent=0 // pred_check
    %p24 = pneg %p23
  $region27: #{lstm_model_forward.3} parent=0 // pred_check_branch
    %26 = sbr.rel (%p24) target = $region29
  $region28: #{lstm_model_forward.3} parent=0 // pred_region
    %27 = vst [vmem:[#allocation2] sm:$0xff] 0.0
    %28 = vst [vmem:[#allocation2 + $0x8] sm:$0xff] 0.0
    %29 = vst [vmem:[#allocation3] sm:$0xff] 0.0
    %30 = vst [vmem:[#allocation3 + $0x8] sm:$0xff] 0.0
  $region29: #{lstm_model_forward.3} parent=0 // pred_fallthru
    _
  %v31 = vld [vmem:[%s0] sm:$0xff]
  %v32 = vld [vmem:[%s0 + $0x8] sm:$0xff]
  %v33 = vld [vmem:[%s0 + $0x10] sm:$0xff]
  %v34 = vld [vmem:[%s0 + $0x18] sm:$0xff]
  %v35 = vld [vmem:[#allocation2] sm:$0xff]
  %v36 = vld [vmem:[%s2] sm:$0xff]
  %v37 = vld [vmem:[%s2 + $0x8] sm:$0xff]
  %v38 = vld [vmem:[%s2 + $0x10] sm:$0xff]
  %v39 = vld [vmem:[%s2 + $0x18] sm:$0xff]
  %v40 = vld [vmem:[%s2 + $0x20] sm:$0xff]
  %v41 = vld [vmem:[%s2 + $0x28] sm:$0xff]
  %v42 = vld [vmem:[%s2 + $0x30] sm:$0xff]
  %v43 = vld [vmem:[%s2 + $0x38] sm:$0xff]
  %v44 = vld [vmem:[%s2 + $0x40] sm:$0xff]
  %v45 = vld [vmem:[%s2 + $0x48] sm:$0xff]
  %v46 = vld [vmem:[%s2 + $0x50] sm:$0xff]
  %v47 = vld [vmem:[%s2 + $0x58] sm:$0xff]
  %v48 = vld [vmem:[%s2 + $0x60] sm:$0xff]
  %v49 = vld [vmem:[%s2 + $0x68] sm:$0xff]
  %v50 = vld [vmem:[%s2 + $0x70] sm:$0xff]
  %v51 = vld [vmem:[%s2 + $0x78] sm:$0xff]
  %v52 = vld [vmem:[%s2 + $0x80] sm:$0xff]
  %v53 = vld [vmem:[%s2 + $0x88] sm:$0xff]
  %v54 = vld [vmem:[%s2 + $0x90] sm:$0xff]
  %v55 = vld [vmem:[%s2 + $0x98] sm:$0xff]
  %v56 = vld [vmem:[%s2 + $0xa0] sm:$0xff]
  %v57 = vld [vmem:[%s2 + $0xa8] sm:$0xff]
  %v58 = vld [vmem:[%s2 + $0xb0] sm:$0xff]
  %v59 = vld [vmem:[%s2 + $0xb8] sm:$0xff]
  %v60 = vld [vmem:[%s2 + $0xc0] sm:$0xff]
  %v61 = vld [vmem:[%s2 + $0xc8] sm:$0xff]
  %v62 = vld [vmem:[%s2 + $0xd0] sm:$0xff]
  %v63 = vld [vmem:[%s2 + $0xd8] sm:$0xff]
  %v64 = vld [vmem:[%s2 + $0xe0] sm:$0xff]
  %v65 = vld [vmem:[%s2 + $0xe8] sm:$0xff]
  %v66 = vld [vmem:[%s2 + $0xf0] sm:$0xff]
  %v67 = vld [vmem:[%s2 + $0xf8] sm:$0xff]
  %v68 = vld [vmem:[%s2 + $0x100] sm:$0xff]
  %v69 = vld [vmem:[%s2 + $0x108] sm:$0xff]
  %v70 = vld [vmem:[%s2 + $0x110] sm:$0xff]
  %v71 = vld [vmem:[%s2 + $0x118] sm:$0xff]
  %v72 = vld [vmem:[%s2 + $0x120] sm:$0xff]
  %v73 = vld [vmem:[%s2 + $0x128] sm:$0xff]
  %v74 = vld [vmem:[%s2 + $0x130] sm:$0xff]
  %v75 = vld [vmem:[%s2 + $0x138] sm:$0xff]
  %v76 = vld [vmem:[%s2 + $0x140] sm:$0xff]
  %v77 = vld [vmem:[%s2 + $0x148] sm:$0xff]
  %v78 = vld [vmem:[%s2 + $0x150] sm:$0xff]
  %v79 = vld [vmem:[%s2 + $0x158] sm:$0xff]
  %v80 = vld [vmem:[%s2 + $0x160] sm:$0xff]
  %v81 = vld [vmem:[%s2 + $0x168] sm:$0xff]
  %v82 = vld [vmem:[%s2 + $0x170] sm:$0xff]
  %v83 = vld [vmem:[%s2 + $0x178] sm:$0xff]
  %v84 = vld [vmem:[%s2 + $0x180] sm:$0xff]
  %v85 = vld [vmem:[%s2 + $0x188] sm:$0xff]
  %v86 = vld [vmem:[%s2 + $0x190] sm:$0xff]
  %v87 = vld [vmem:[%s2 + $0x198] sm:$0xff]
  %v88 = vld [vmem:[%s2 + $0x1a0] sm:$0xff]
  %v89 = vld [vmem:[%s2 + $0x1a8] sm:$0xff]
  %v90 = vld [vmem:[%s2 + $0x1b0] sm:$0xff]
  %v91 = vld [vmem:[%s2 + $0x1b8] sm:$0xff]
  %v92 = vld [vmem:[%s2 + $0x1c0] sm:$0xff]
  %v93 = vld [vmem:[%s2 + $0x1c8] sm:$0xff]
  %v94 = vld [vmem:[%s2 + $0x1d0] sm:$0xff]
  %v95 = vld [vmem:[%s2 + $0x1d8] sm:$0xff]
  %v96 = vld [vmem:[%s2 + $0x1e0] sm:$0xff]
  %v97 = vld [vmem:[%s2 + $0x1e8] sm:$0xff]
  %v98 = vld [vmem:[%s2 + $0x1f0] sm:$0xff]
  %v99 = vld [vmem:[%s2 + $0x1f8] sm:$0xff]
  %100 = vmatpush.msra.mxu0 %v96
  %101 = vmatpush.msra.mxu0 %v92
  %102 = vmatpush.msra.mxu0 %v88
  %103 = vmatpush.msra.mxu0 %v84
  %104 = vmatpush.msra.mxu0 %v80
  %105 = vmatpush.msra.mxu0 %v76
  %106 = vmatpush.msra.mxu0 %v72
  %107 = vmatpush.msra.mxu0 %v68
  %108 = vmatpush.msra.mxu0 %v64
  %109 = vmatpush.msra.mxu0 %v60
  %110 = vmatpush.msra.mxu0 %v56
  %111 = vmatpush.msra.mxu0 %v52
  %112 = vmatpush.msra.mxu0 %v48
  %113 = vmatpush.msra.mxu0 %v44
  %114 = vmatpush.msra.mxu0 %v40
  %115 = vmatpush.msra.mxu0 %v36
  %116 = vmatmul.f32.gmra.mxu0 %v35
  %v117 = vpop.f32.mrf.mxu0
  %v118 = vadd.f32 0.0, %v117
  %119 = vdwg.mxu0
  %120 = vmatpush.msra.mxu0 %v97
  %121 = vmatpush.msra.mxu0 %v93
  %122 = vmatpush.msra.mxu0 %v89
  %123 = vmatpush.msra.mxu0 %v85
  %124 = vmatpush.msra.mxu0 %v81
  %125 = vmatpush.msra.mxu0 %v77
  %126 = vmatpush.msra.mxu0 %v73
  %127 = vmatpush.msra.mxu0 %v69
  %128 = vmatpush.msra.mxu0 %v65
  %129 = vmatpush.msra.mxu0 %v61
  %130 = vmatpush.msra.mxu0 %v57
  %131 = vmatpush.msra.mxu0 %v53
  %132 = vmatpush.msra.mxu0 %v49
  %133 = vmatpush.msra.mxu0 %v45
  %134 = vmatpush.msra.mxu0 %v41
  %135 = vmatpush.msra.mxu0 %v37
  %136 = vmatmul.f32.gmra.mxu0 %v35
  %v137 = vpop.f32.mrf.mxu0
  %v138 = vadd.f32 0.0, %v137
  %139 = vdwg.mxu0
  %140 = vmatpush.msra.mxu0 %v98
  %141 = vmatpush.msra.mxu0 %v94
  %142 = vmatpush.msra.mxu0 %v90
  %143 = vmatpush.msra.mxu0 %v86
  %144 = vmatpush.msra.mxu0 %v82
  %145 = vmatpush.msra.mxu0 %v78
  %146 = vmatpush.msra.mxu0 %v74
  %147 = vmatpush.msra.mxu0 %v70
  %148 = vmatpush.msra.mxu0 %v66
  %149 = vmatpush.msra.mxu0 %v62
  %150 = vmatpush.msra.mxu0 %v58
  %151 = vmatpush.msra.mxu0 %v54
  %152 = vmatpush.msra.mxu0 %v50
  %153 = vmatpush.msra.mxu0 %v46
  %154 = vmatpush.msra.mxu0 %v42
  %155 = vmatpush.msra.mxu0 %v38
  %156 = vmatmul.f32.gmra.mxu0 %v35
  %v157 = vpop.f32.mrf.mxu0
  %v158 = vadd.f32 0.0, %v157
  %159 = vdwg.mxu0
  %160 = vmatpush.msra.mxu0 %v99
  %161 = vmatpush.msra.mxu0 %v95
  %162 = vmatpush.msra.mxu0 %v91
  %163 = vmatpush.msra.mxu0 %v87
  %164 = vmatpush.msra.mxu0 %v83
  %165 = vmatpush.msra.mxu0 %v79
  %166 = vmatpush.msra.mxu0 %v75
  %167 = vmatpush.msra.mxu0 %v71
  %168 = vmatpush.msra.mxu0 %v67
  %169 = vmatpush.msra.mxu0 %v63
  %170 = vmatpush.msra.mxu0 %v59
  %171 = vmatpush.msra.mxu0 %v55
  %172 = vmatpush.msra.mxu0 %v51
  %173 = vmatpush.msra.mxu0 %v47
  %174 = vmatpush.msra.mxu0 %v43
  %175 = vmatpush.msra.mxu0 %v39
  %176 = vmatmul.f32.gmra.mxu0 %v35
  %v177 = vpop.f32.mrf.mxu0
  %v178 = vadd.f32 0.0, %v177
  %179 = vdwg.mxu0
  %v180 = vadd.f32 %v31, %v118
  %v181 = vadd.f32 %v32, %v138
  %v182 = vadd.f32 %v33, %v158
  %v183 = vadd.f32 %v34, %v178
  %v184 = vmul.f32 %v180, 0.5
  %v185 = vtanh.pop %v184
  %v186 = vmul.f32 %v185, 0.5
  %v187 = vadd.f32 %v186, 0.5
  %v188 = vmul.f32 %v181, 0.5
  %v189 = vtanh.pop %v188
  %v190 = vmul.f32 %v189, 0.5
  %v191 = vadd.f32 %v190, 0.5
  %v192 = vtanh.pop %v182
  %v193 = vmul.f32 %v183, 0.5
  %v194 = vtanh.pop %v193
  %v195 = vmul.f32 %v194, 0.5
  %v196 = vadd.f32 %v195, 0.5
  %v197 = vld [vmem:[#allocation3] sm:$0xff]
  %v198 = vmul.f32 %v191, %v197
  %v199 = vmul.f32 %v187, %v192
  %v200 = vadd.f32 %v198, %v199
  %v201 = vtanh.pop %v200
  %v202 = vmul.f32 %v196, %v201
  %203 = vst [vmem:[#allocation3] sm:$0xff] %v200
  %204 = vst [vmem:[#allocation2] sm:$0xff] %v202
  %s205 = scalar_lea.vmem %s1, 512
  %v206 = vld [vmem:[%s205] sm:$0xff]
  %v207 = vld [vmem:[%s205 + $0x8] sm:$0xff]
  %v208 = vld [vmem:[%s205 + $0x10] sm:$0xff]
  %v209 = vld [vmem:[%s205 + $0x18] sm:$0xff]
  %v210 = vld [vmem:[%s205 + $0x20] sm:$0xff]
  %v211 = vld [vmem:[%s205 + $0x28] sm:$0xff]
  %v212 = vld [vmem:[%s205 + $0x30] sm:$0xff]
  %v213 = vld [vmem:[%s205 + $0x38] sm:$0xff]
  %v214 = vld [vmem:[%s205 + $0x40] sm:$0xff]
  %v215 = vld [vmem:[%s205 + $0x48] sm:$0xff]
  %v216 = vld [vmem:[%s205 + $0x50] sm:$0xff]
  %v217 = vld [vmem:[%s205 + $0x58] sm:$0xff]
  %v218 = vld [vmem:[%s205 + $0x60] sm:$0xff]
  %v219 = vld [vmem:[%s205 + $0x68] sm:$0xff]
  %v220 = vld [vmem:[%s205 + $0x70] sm:$0xff]
  %v221 = vld [vmem:[%s205 + $0x78] sm:$0xff]
  %v222 = vld [vmem:[%s205 + $0x80] sm:$0xff]
  %v223 = vld [vmem:[%s205 + $0x88] sm:$0xff]
  %v224 = vld [vmem:[%s205 + $0x90] sm:$0xff]
  %v225 = vld [vmem:[%s205 + $0x98] sm:$0xff]
  %v226 = vld [vmem:[%s205 + $0xa0] sm:$0xff]
  %v227 = vld [vmem:[%s205 + $0xa8] sm:$0xff]
  %v228 = vld [vmem:[%s205 + $0xb0] sm:$0xff]
  %v229 = vld [vmem:[%s205 + $0xb8] sm:$0xff]
  %v230 = vld [vmem:[%s205 + $0xc0] sm:$0xff]
  %v231 = vld [vmem:[%s205 + $0xc8] sm:$0xff]
  %v232 = vld [vmem:[%s205 + $0xd0] sm:$0xff]
  %v233 = vld [vmem:[%s205 + $0xd8] sm:$0xff]
  %v234 = vld [vmem:[%s205 + $0xe0] sm:$0xff]
  %v235 = vld [vmem:[%s205 + $0xe8] sm:$0xff]
  %v236 = vld [vmem:[%s205 + $0xf0] sm:$0xff]
  %v237 = vld [vmem:[%s205 + $0xf8] sm:$0xff]
  %v238 = vld [vmem:[%s205 + $0x100] sm:$0xff]
  %v239 = vld [vmem:[%s205 + $0x108] sm:$0xff]
  %v240 = vld [vmem:[%s205 + $0x110] sm:$0xff]
  %v241 = vld [vmem:[%s205 + $0x118] sm:$0xff]
  %v242 = vld [vmem:[%s205 + $0x120] sm:$0xff]
  %v243 = vld [vmem:[%s205 + $0x128] sm:$0xff]
  %v244 = vld [vmem:[%s205 + $0x130] sm:$0xff]
  %v245 = vld [vmem:[%s205 + $0x138] sm:$0xff]
  %v246 = vld [vmem:[%s205 + $0x140] sm:$0xff]
  %v247 = vld [vmem:[%s205 + $0x148] sm:$0xff]
  %v248 = vld [vmem:[%s205 + $0x150] sm:$0xff]
  %v249 = vld [vmem:[%s205 + $0x158] sm:$0xff]
  %v250 = vld [vmem:[%s205 + $0x160] sm:$0xff]
  %v251 = vld [vmem:[%s205 + $0x168] sm:$0xff]
  %v252 = vld [vmem:[%s205 + $0x170] sm:$0xff]
  %v253 = vld [vmem:[%s205 + $0x178] sm:$0xff]
  %v254 = vld [vmem:[%s205 + $0x180] sm:$0xff]
  %v255 = vld [vmem:[%s205 + $0x188] sm:$0xff]
  %v256 = vld [vmem:[%s205 + $0x190] sm:$0xff]
  %v257 = vld [vmem:[%s205 + $0x198] sm:$0xff]
  %v258 = vld [vmem:[%s205 + $0x1a0] sm:$0xff]
  %v259 = vld [vmem:[%s205 + $0x1a8] sm:$0xff]
  %v260 = vld [vmem:[%s205 + $0x1b0] sm:$0xff]
  %v261 = vld [vmem:[%s205 + $0x1b8] sm:$0xff]
  %v262 = vld [vmem:[%s205 + $0x1c0] sm:$0xff]
  %v263 = vld [vmem:[%s205 + $0x1c8] sm:$0xff]
  %v264 = vld [vmem:[%s205 + $0x1d0] sm:$0xff]
  %v265 = vld [vmem:[%s205 + $0x1d8] sm:$0xff]
  %v266 = vld [vmem:[%s205 + $0x1e0] sm:$0xff]
  %v267 = vld [vmem:[%s205 + $0x1e8] sm:$0xff]
  %v268 = vld [vmem:[%s205 + $0x1f0] sm:$0xff]
  %v269 = vld [vmem:[%s205 + $0x1f8] sm:$0xff]
  %s270 = scalar_lea.vmem [#allocation2], 8
  %v271 = vld [vmem:[%s270] sm:$0xff]
  %s272 = scalar_lea.vmem %s2, 512
  %v273 = vld [vmem:[%s272] sm:$0xff]
  %v274 = vld [vmem:[%s272 + $0x8] sm:$0xff]
  %v275 = vld [vmem:[%s272 + $0x10] sm:$0xff]
  %v276 = vld [vmem:[%s272 + $0x18] sm:$0xff]
  %v277 = vld [vmem:[%s272 + $0x20] sm:$0xff]
  %v278 = vld [vmem:[%s272 + $0x28] sm:$0xff]
  %v279 = vld [vmem:[%s272 + $0x30] sm:$0xff]
  %v280 = vld [vmem:[%s272 + $0x38] sm:$0xff]
  %v281 = vld [vmem:[%s272 + $0x40] sm:$0xff]
  %v282 = vld [vmem:[%s272 + $0x48] sm:$0xff]
  %v283 = vld [vmem:[%s272 + $0x50] sm:$0xff]
  %v284 = vld [vmem:[%s272 + $0x58] sm:$0xff]
  %v285 = vld [vmem:[%s272 + $0x60] sm:$0xff]
  %v286 = vld [vmem:[%s272 + $0x68] sm:$0xff]
  %v287 = vld [vmem:[%s272 + $0x70] sm:$0xff]
  %v288 = vld [vmem:[%s272 + $0x78] sm:$0xff]
  %v289 = vld [vmem:[%s272 + $0x80] sm:$0xff]
  %v290 = vld [vmem:[%s272 + $0x88] sm:$0xff]
  %v291 = vld [vmem:[%s272 + $0x90] sm:$0xff]
  %v292 = vld [vmem:[%s272 + $0x98] sm:$0xff]
  %v293 = vld [vmem:[%s272 + $0xa0] sm:$0xff]
  %v294 = vld [vmem:[%s272 + $0xa8] sm:$0xff]
  %v295 = vld [vmem:[%s272 + $0xb0] sm:$0xff]
  %v296 = vld [vmem:[%s272 + $0xb8] sm:$0xff]
  %v297 = vld [vmem:[%s272 + $0xc0] sm:$0xff]
  %v298 = vld [vmem:[%s272 + $0xc8] sm:$0xff]
  %v299 = vld [vmem:[%s272 + $0xd0] sm:$0xff]
  %v300 = vld [vmem:[%s272 + $0xd8] sm:$0xff]
  %v301 = vld [vmem:[%s272 + $0xe0] sm:$0xff]
  %v302 = vld [vmem:[%s272 + $0xe8] sm:$0xff]
  %v303 = vld [vmem:[%s272 + $0xf0] sm:$0xff]
  %v304 = vld [vmem:[%s272 + $0xf8] sm:$0xff]
  %v305 = vld [vmem:[%s272 + $0x100] sm:$0xff]
  %v306 = vld [vmem:[%s272 + $0x108] sm:$0xff]
  %v307 = vld [vmem:[%s272 + $0x110] sm:$0xff]
  %v308 = vld [vmem:[%s272 + $0x118] sm:$0xff]
  %v309 = vld [vmem:[%s272 + $0x120] sm:$0xff]
  %v310 = vld [vmem:[%s272 + $0x128] sm:$0xff]
  %v311 = vld [vmem:[%s272 + $0x130] sm:$0xff]
  %v312 = vld [vmem:[%s272 + $0x138] sm:$0xff]
  %v313 = vld [vmem:[%s272 + $0x140] sm:$0xff]
  %v314 = vld [vmem:[%s272 + $0x148] sm:$0xff]
  %v315 = vld [vmem:[%s272 + $0x150] sm:$0xff]
  %v316 = vld [vmem:[%s272 + $0x158] sm:$0xff]
  %v317 = vld [vmem:[%s272 + $0x160] sm:$0xff]
  %v318 = vld [vmem:[%s272 + $0x168] sm:$0xff]
  %v319 = vld [vmem:[%s272 + $0x170] sm:$0xff]
  %v320 = vld [vmem:[%s272 + $0x178] sm:$0xff]
  %v321 = vld [vmem:[%s272 + $0x180] sm:$0xff]
  %v322 = vld [vmem:[%s272 + $0x188] sm:$0xff]
  %v323 = vld [vmem:[%s272 + $0x190] sm:$0xff]
  %v324 = vld [vmem:[%s272 + $0x198] sm:$0xff]
  %v325 = vld [vmem:[%s272 + $0x1a0] sm:$0xff]
  %v326 = vld [vmem:[%s272 + $0x1a8] sm:$0xff]
  %v327 = vld [vmem:[%s272 + $0x1b0] sm:$0xff]
  %v328 = vld [vmem:[%s272 + $0x1b8] sm:$0xff]
  %v329 = vld [vmem:[%s272 + $0x1c0] sm:$0xff]
  %v330 = vld [vmem:[%s272 + $0x1c8] sm:$0xff]
  %v331 = vld [vmem:[%s272 + $0x1d0] sm:$0xff]
  %v332 = vld [vmem:[%s272 + $0x1d8] sm:$0xff]
  %v333 = vld [vmem:[%s272 + $0x1e0] sm:$0xff]
  %v334 = vld [vmem:[%s272 + $0x1e8] sm:$0xff]
  %v335 = vld [vmem:[%s272 + $0x1f0] sm:$0xff]
  %v336 = vld [vmem:[%s272 + $0x1f8] sm:$0xff]
  %337 = vmatpush.msra.mxu0 %v333
  %338 = vmatpush.msra.mxu0 %v329
  %339 = vmatpush.msra.mxu0 %v325
  %340 = vmatpush.msra.mxu0 %v321
  %341 = vmatpush.msra.mxu0 %v317
  %342 = vmatpush.msra.mxu0 %v313
  %343 = vmatpush.msra.mxu0 %v309
  %344 = vmatpush.msra.mxu0 %v305
  %345 = vmatpush.msra.mxu0 %v301
  %346 = vmatpush.msra.mxu0 %v297
  %347 = vmatpush.msra.mxu0 %v293
  %348 = vmatpush.msra.mxu0 %v289
  %349 = vmatpush.msra.mxu0 %v285
  %350 = vmatpush.msra.mxu0 %v281
  %351 = vmatpush.msra.mxu0 %v277
  %352 = vmatpush.msra.mxu0 %v273
  %353 = vmatmul.f32.gmra.mxu0 %v271
  %v354 = vpop.f32.mrf.mxu0
  %v355 = vadd.f32 0.0, %v354
  %356 = vdwg.mxu0
  %357 = vmatpush.msra.mxu0 %v334
  %358 = vmatpush.msra.mxu0 %v330
  %359 = vmatpush.msra.mxu0 %v326
  %360 = vmatpush.msra.mxu0 %v322
  %361 = vmatpush.msra.mxu0 %v318
  %362 = vmatpush.msra.mxu0 %v314
  %363 = vmatpush.msra.mxu0 %v310
  %364 = vmatpush.msra.mxu0 %v306
  %365 = vmatpush.msra.mxu0 %v302
  %366 = vmatpush.msra.mxu0 %v298
  %367 = vmatpush.msra.mxu0 %v294
  %368 = vmatpush.msra.mxu0 %v290
  %369 = vmatpush.msra.mxu0 %v286
  %370 = vmatpush.msra.mxu0 %v282
  %371 = vmatpush.msra.mxu0 %v278
  %372 = vmatpush.msra.mxu0 %v274
  %373 = vmatmul.f32.gmra.mxu0 %v271
  %v374 = vpop.f32.mrf.mxu0
  %v375 = vadd.f32 0.0, %v374
  %376 = vdwg.mxu0
  %377 = vmatpush.msra.mxu0 %v335
  %378 = vmatpush.msra.mxu0 %v331
  %379 = vmatpush.msra.mxu0 %v327
  %380 = vmatpush.msra.mxu0 %v323
  %381 = vmatpush.msra.mxu0 %v319
  %382 = vmatpush.msra.mxu0 %v315
  %383 = vmatpush.msra.mxu0 %v311
  %384 = vmatpush.msra.mxu0 %v307
  %385 = vmatpush.msra.mxu0 %v303
  %386 = vmatpush.msra.mxu0 %v299
  %387 = vmatpush.msra.mxu0 %v295
  %388 = vmatpush.msra.mxu0 %v291
  %389 = vmatpush.msra.mxu0 %v287
  %390 = vmatpush.msra.mxu0 %v283
  %391 = vmatpush.msra.mxu0 %v279
  %392 = vmatpush.msra.mxu0 %v275
  %393 = vmatmul.f32.gmra.mxu0 %v271
  %v394 = vpop.f32.mrf.mxu0
  %v395 = vadd.f32 0.0, %v394
  %396 = vdwg.mxu0
  %397 = vmatpush.msra.mxu0 %v336
  %398 = vmatpush.msra.mxu0 %v332
  %399 = vmatpush.msra.mxu0 %v328
  %400 = vmatpush.msra.mxu0 %v324
  %401 = vmatpush.msra.mxu0 %v320
  %402 = vmatpush.msra.mxu0 %v316
  %403 = vmatpush.msra.mxu0 %v312
  %404 = vmatpush.msra.mxu0 %v308
  %405 = vmatpush.msra.mxu0 %v304
  %406 = vmatpush.msra.mxu0 %v300
  %407 = vmatpush.msra.mxu0 %v296
  %408 = vmatpush.msra.mxu0 %v292
  %409 = vmatpush.msra.mxu0 %v288
  %410 = vmatpush.msra.mxu0 %v284
  %411 = vmatpush.msra.mxu0 %v280
  %412 = vmatpush.msra.mxu0 %v276
  %413 = vmatmul.f32.gmra.mxu0 %v271
  %v414 = vpop.f32.mrf.mxu0
  %v415 = vadd.f32 0.0, %v414
  %416 = vdwg.mxu0
  %417 = vmatpush.msra.mxu0 %v266
  %418 = vmatpush.msra.mxu0 %v262
  %419 = vmatpush.msra.mxu0 %v258
  %420 = vmatpush.msra.mxu0 %v254
  %421 = vmatpush.msra.mxu0 %v250
  %422 = vmatpush.msra.mxu0 %v246
  %423 = vmatpush.msra.mxu0 %v242
  %424 = vmatpush.msra.mxu0 %v238
  %425 = vmatpush.msra.mxu0 %v234
  %426 = vmatpush.msra.mxu0 %v230
  %427 = vmatpush.msra.mxu0 %v226
  %428 = vmatpush.msra.mxu0 %v222
  %429 = vmatpush.msra.mxu0 %v218
  %430 = vmatpush.msra.mxu0 %v214
  %431 = vmatpush.msra.mxu0 %v210
  %432 = vmatpush.msra.mxu0 %v206
  %433 = vmatmul.f32.gmra.mxu0 %v202
  %v434 = vpop.f32.mrf.mxu0
  %v435 = vadd.f32 %v355, %v434
  %436 = vdwg.mxu0
  %437 = vmatpush.msra.mxu0 %v267
  %438 = vmatpush.msra.mxu0 %v263
  %439 = vmatpush.msra.mxu0 %v259
  %440 = vmatpush.msra.mxu0 %v255
  %441 = vmatpush.msra.mxu0 %v251
  %442 = vmatpush.msra.mxu0 %v247
  %443 = vmatpush.msra.mxu0 %v243
  %444 = vmatpush.msra.mxu0 %v239
  %445 = vmatpush.msra.mxu0 %v235
  %446 = vmatpush.msra.mxu0 %v231
  %447 = vmatpush.msra.mxu0 %v227
  %448 = vmatpush.msra.mxu0 %v223
  %449 = vmatpush.msra.mxu0 %v219
  %450 = vmatpush.msra.mxu0 %v215
  %451 = vmatpush.msra.mxu0 %v211
  %452 = vmatpush.msra.mxu0 %v207
  %453 = vmatmul.f32.gmra.mxu0 %v202
  %v454 = vpop.f32.mrf.mxu0
  %v455 = vadd.f32 %v375, %v454
  %456 = vdwg.mxu0
  %457 = vmatpush.msra.mxu0 %v268
  %458 = vmatpush.msra.mxu0 %v264
  %459 = vmatpush.msra.mxu0 %v260
  %460 = vmatpush.msra.mxu0 %v256
  %461 = vmatpush.msra.mxu0 %v252
  %462 = vmatpush.msra.mxu0 %v248
  %463 = vmatpush.msra.mxu0 %v244
  %464 = vmatpush.msra.mxu0 %v240
  %465 = vmatpush.msra.mxu0 %v236
  %466 = vmatpush.msra.mxu0 %v232
  %467 = vmatpush.msra.mxu0 %v228
  %468 = vmatpush.msra.mxu0 %v224
  %469 = vmatpush.msra.mxu0 %v220
  %470 = vmatpush.msra.mxu0 %v216
  %471 = vmatpush.msra.mxu0 %v212
  %472 = vmatpush.msra.mxu0 %v208
  %473 = vmatmul.f32.gmra.mxu0 %v202
  %v474 = vpop.f32.mrf.mxu0
  %v475 = vadd.f32 %v395, %v474
  %476 = vdwg.mxu0
  %477 = vmatpush.msra.mxu0 %v269
  %478 = vmatpush.msra.mxu0 %v265
  %479 = vmatpush.msra.mxu0 %v261
  %480 = vmatpush.msra.mxu0 %v257
  %481 = vmatpush.msra.mxu0 %v253
  %482 = vmatpush.msra.mxu0 %v249
  %483 = vmatpush.msra.mxu0 %v245
  %484 = vmatpush.msra.mxu0 %v241
  %485 = vmatpush.msra.mxu0 %v237
  %486 = vmatpush.msra.mxu0 %v233
  %487 = vmatpush.msra.mxu0 %v229
  %488 = vmatpush.msra.mxu0 %v225
  %489 = vmatpush.msra.mxu0 %v221
  %490 = vmatpush.msra.mxu0 %v217
  %491 = vmatpush.msra.mxu0 %v213
  %492 = vmatpush.msra.mxu0 %v209
  %493 = vmatmul.f32.gmra.mxu0 %v202
  %v494 = vpop.f32.mrf.mxu0
  %v495 = vadd.f32 %v415, %v494
  %496 = vdwg.mxu0
  %s497 = scalar_lea.vmem %s3, 4
  %v498 = vld [vmem:[%s497] sm:$0xf]
  %v500 = vperm.slane %v498, 0
  %v501 = vperm.slane %v498, 1
  %v502 = vperm.slane %v498, 2
  %v503 = vperm.slane %v498, 3
  %v508 = vadd.f32 %v435, %v500
  %v509 = vadd.f32 %v455, %v501
  %v510 = vadd.f32 %v475, %v502
  %v511 = vadd.f32 %v495, %v503
  %v512 = vmul.f32 %v508, 0.5
  %v513 = vtanh.pop %v512
  %v514 = vmul.f32 %v513, 0.5
  %v515 = vadd.f32 %v514, 0.5
  %v516 = vmul.f32 %v509, 0.5
  %v517 = vtanh.pop %v516
  %v518 = vmul.f32 %v517, 0.5
  %v519 = vadd.f32 %v518, 0.5
  %v520 = vtanh.pop %v510
  %v521 = vmul.f32 %v511, 0.5
  %v522 = vtanh.pop %v521
  %v523 = vmul.f32 %v522, 0.5
  %v524 = vadd.f32 %v523, 0.5
  %s525 = scalar_lea.vmem [#allocation3], 8
  %v526 = vld [vmem:[%s525] sm:$0xff]
  %v527 = vmul.f32 %v519, %v526
  %v528 = vmul.f32 %v515, %v520
  %v529 = vadd.f32 %v527, %v528
  %v530 = vtanh.pop %v529
  %v531 = vmul.f32 %v524, %v530
  %532 = vst [vmem:[%s525] sm:$0xff] %v529
  %533 = vst [vmem:[%s270] sm:$0xff] %v531
  %s534 = scalar_lea.vmem %s0, 32
  %v535 = vld [vmem:[%s534] sm:$0xff]
  %v536 = vld [vmem:[%s534 + $0x8] sm:$0xff]
  %v537 = vld [vmem:[%s534 + $0x10] sm:$0xff]
  %v538 = vld [vmem:[%s534 + $0x18] sm:$0xff]
  %v539 = vld [vmem:[#allocation2] sm:$0xff]
  %v540 = vld [vmem:[%s2] sm:$0xff]
  %v541 = vld [vmem:[%s2 + $0x8] sm:$0xff]
  %v542 = vld [vmem:[%s2 + $0x10] sm:$0xff]
  %v543 = vld [vmem:[%s2 + $0x18] sm:$0xff]
  %v544 = vld [vmem:[%s2 + $0x20] sm:$0xff]
  %v545 = vld [vmem:[%s2 + $0x28] sm:$0xff]
  %v546 = vld [vmem:[%s2 + $0x30] sm:$0xff]
  %v547 = vld [vmem:[%s2 + $0x38] sm:$0xff]
  %v548 = vld [vmem:[%s2 + $0x40] sm:$0xff]
  %v549 = vld [vmem:[%s2 + $0x48] sm:$0xff]
  %v550 = vld [vmem:[%s2 + $0x50] sm:$0xff]
  %v551 = vld [vmem:[%s2 + $0x58] sm:$0xff]
  %v552 = vld [vmem:[%s2 + $0x60] sm:$0xff]
  %v553 = vld [vmem:[%s2 + $0x68] sm:$0xff]
  %v554 = vld [vmem:[%s2 + $0x70] sm:$0xff]
  %v555 = vld [vmem:[%s2 + $0x78] sm:$0xff]
  %v556 = vld [vmem:[%s2 + $0x80] sm:$0xff]
  %v557 = vld [vmem:[%s2 + $0x88] sm:$0xff]
  %v558 = vld [vmem:[%s2 + $0x90] sm:$0xff]
  %v559 = vld [vmem:[%s2 + $0x98] sm:$0xff]
  %v560 = vld [vmem:[%s2 + $0xa0] sm:$0xff]
  %v561 = vld [vmem:[%s2 + $0xa8] sm:$0xff]
  %v562 = vld [vmem:[%s2 + $0xb0] sm:$0xff]
  %v563 = vld [vmem:[%s2 + $0xb8] sm:$0xff]
  %v564 = vld [vmem:[%s2 + $0xc0] sm:$0xff]
  %v565 = vld [vmem:[%s2 + $0xc8] sm:$0xff]
  %v566 = vld [vmem:[%s2 + $0xd0] sm:$0xff]
  %v567 = vld [vmem:[%s2 + $0xd8] sm:$0xff]
  %v568 = vld [vmem:[%s2 + $0xe0] sm:$0xff]
  %v569 = vld [vmem:[%s2 + $0xe8] sm:$0xff]
  %v570 = vld [vmem:[%s2 + $0xf0] sm:$0xff]
  %v571 = vld [vmem:[%s2 + $0xf8] sm:$0xff]
  %v572 = vld [vmem:[%s2 + $0x100] sm:$0xff]
  %v573 = vld [vmem:[%s2 + $0x108] sm:$0xff]
  %v574 = vld [vmem:[%s2 + $0x110] sm:$0xff]
  %v575 = vld [vmem:[%s2 + $0x118] sm:$0xff]
  %v576 = vld [vmem:[%s2 + $0x120] sm:$0xff]
  %v577 = vld [vmem:[%s2 + $0x128] sm:$0xff]
  %v578 = vld [vmem:[%s2 + $0x130] sm:$0xff]
  %v579 = vld [vmem:[%s2 + $0x138] sm:$0xff]
  %v580 = vld [vmem:[%s2 + $0x140] sm:$0xff]
  %v581 = vld [vmem:[%s2 + $0x148] sm:$0xff]
  %v582 = vld [vmem:[%s2 + $0x150] sm:$0xff]
  %v583 = vld [vmem:[%s2 + $0x158] sm:$0xff]
  %v584 = vld [vmem:[%s2 + $0x160] sm:$0xff]
  %v585 = vld [vmem:[%s2 + $0x168] sm:$0xff]
  %v586 = vld [vmem:[%s2 + $0x170] sm:$0xff]
  %v587 = vld [vmem:[%s2 + $0x178] sm:$0xff]
  %v588 = vld [vmem:[%s2 + $0x180] sm:$0xff]
  %v589 = vld [vmem:[%s2 + $0x188] sm:$0xff]
  %v590 = vld [vmem:[%s2 + $0x190] sm:$0xff]
  %v591 = vld [vmem:[%s2 + $0x198] sm:$0xff]
  %v592 = vld [vmem:[%s2 + $0x1a0] sm:$0xff]
  %v593 = vld [vmem:[%s2 + $0x1a8] sm:$0xff]
  %v594 = vld [vmem:[%s2 + $0x1b0] sm:$0xff]
  %v595 = vld [vmem:[%s2 + $0x1b8] sm:$0xff]
  %v596 = vld [vmem:[%s2 + $0x1c0] sm:$0xff]
  %v597 = vld [vmem:[%s2 + $0x1c8] sm:$0xff]
  %v598 = vld [vmem:[%s2 + $0x1d0] sm:$0xff]
  %v599 = vld [vmem:[%s2 + $0x1d8] sm:$0xff]
  %v600 = vld [vmem:[%s2 + $0x1e0] sm:$0xff]
  %v601 = vld [vmem:[%s2 + $0x1e8] sm:$0xff]
  %v602 = vld [vmem:[%s2 + $0x1f0] sm:$0xff]
  %v603 = vld [vmem:[%s2 + $0x1f8] sm:$0xff]
  %604 = vmatpush.msra.mxu0 %v600
  %605 = vmatpush.msra.mxu0 %v596
  %606 = vmatpush.msra.mxu0 %v592
  %607 = vmatpush.msra.mxu0 %v588
  %608 = vmatpush.msra.mxu0 %v584
  %609 = vmatpush.msra.mxu0 %v580
  %610 = vmatpush.msra.mxu0 %v576
  %611 = vmatpush.msra.mxu0 %v572
  %612 = vmatpush.msra.mxu0 %v568
  %613 = vmatpush.msra.mxu0 %v564
  %614 = vmatpush.msra.mxu0 %v560
  %615 = vmatpush.msra.mxu0 %v556
  %616 = vmatpush.msra.mxu0 %v552
  %617 = vmatpush.msra.mxu0 %v548
  %618 = vmatpush.msra.mxu0 %v544
  %619 = vmatpush.msra.mxu0 %v540
  %620 = vmatmul.f32.gmra.mxu0 %v539
  %v621 = vpop.f32.mrf.mxu0
  %v622 = vadd.f32 0.0, %v621
  %623 = vdwg.mxu0
  %624 = vmatpush.msra.mxu0 %v601
  %625 = vmatpush.msra.mxu0 %v597
  %626 = vmatpush.msra.mxu0 %v593
  %627 = vmatpush.msra.mxu0 %v589
  %628 = vmatpush.msra.mxu0 %v585
  %629 = vmatpush.msra.mxu0 %v581
  %630 = vmatpush.msra.mxu0 %v577
  %631 = vmatpush.msra.mxu0 %v573
  %632 = vmatpush.msra.mxu0 %v569
  %633 = vmatpush.msra.mxu0 %v565
  %634 = vmatpush.msra.mxu0 %v561
  %635 = vmatpush.msra.mxu0 %v557
  %636 = vmatpush.msra.mxu0 %v553
  %637 = vmatpush.msra.mxu0 %v549
  %638 = vmatpush.msra.mxu0 %v545
  %639 = vmatpush.msra.mxu0 %v541
  %640 = vmatmul.f32.gmra.mxu0 %v539
  %v641 = vpop.f32.mrf.mxu0
  %v642 = vadd.f32 0.0, %v641
  %643 = vdwg.mxu0
  %644 = vmatpush.msra.mxu0 %v602
  %645 = vmatpush.msra.mxu0 %v598
  %646 = vmatpush.msra.mxu0 %v594
  %647 = vmatpush.msra.mxu0 %v590
  %648 = vmatpush.msra.mxu0 %v586
  %649 = vmatpush.msra.mxu0 %v582
  %650 = vmatpush.msra.mxu0 %v578
  %651 = vmatpush.msra.mxu0 %v574
  %652 = vmatpush.msra.mxu0 %v570
  %653 = vmatpush.msra.mxu0 %v566
  %654 = vmatpush.msra.mxu0 %v562
  %655 = vmatpush.msra.mxu0 %v558
  %656 = vmatpush.msra.mxu0 %v554
  %657 = vmatpush.msra.mxu0 %v550
  %658 = vmatpush.msra.mxu0 %v546
  %659 = vmatpush.msra.mxu0 %v542
  %660 = vmatmul.f32.gmra.mxu0 %v539
  %v661 = vpop.f32.mrf.mxu0
  %v662 = vadd.f32 0.0, %v661
  %663 = vdwg.mxu0
  %664 = vmatpush.msra.mxu0 %v603
  %665 = vmatpush.msra.mxu0 %v599
  %666 = vmatpush.msra.mxu0 %v595
  %667 = vmatpush.msra.mxu0 %v591
  %668 = vmatpush.msra.mxu0 %v587
  %669 = vmatpush.msra.mxu0 %v583
  %670 = vmatpush.msra.mxu0 %v579
  %671 = vmatpush.msra.mxu0 %v575
  %672 = vmatpush.msra.mxu0 %v571
  %673 = vmatpush.msra.mxu0 %v567
  %674 = vmatpush.msra.mxu0 %v563
  %675 = vmatpush.msra.mxu0 %v559
  %676 = vmatpush.msra.mxu0 %v555
  %677 = vmatpush.msra.mxu0 %v551
  %678 = vmatpush.msra.mxu0 %v547
  %679 = vmatpush.msra.mxu0 %v543
  %680 = vmatmul.f32.gmra.mxu0 %v539
  %v681 = vpop.f32.mrf.mxu0
  %v682 = vadd.f32 0.0, %v681
  %683 = vdwg.mxu0
  %v684 = vadd.f32 %v535, %v622
  %v685 = vadd.f32 %v536, %v642
  %v686 = vadd.f32 %v537, %v662
  %v687 = vadd.f32 %v538, %v682
  %v688 = vmul.f32 %v684, 0.5
  %v689 = vtanh.pop %v688
  %v690 = vmul.f32 %v689, 0.5
  %v691 = vadd.f32 %v690, 0.5
  %v692 = vmul.f32 %v685, 0.5
  %v693 = vtanh.pop %v692
  %v694 = vmul.f32 %v693, 0.5
  %v695 = vadd.f32 %v694, 0.5
  %v696 = vtanh.pop %v686
  %v697 = vmul.f32 %v687, 0.5
  %v698 = vtanh.pop %v697
  %v699 = vmul.f32 %v698, 0.5
  %v700 = vadd.f32 %v699, 0.5
  %v701 = vld [vmem:[#allocation3] sm:$0xff]
  %v702 = vmul.f32 %v695, %v701
  %v703 = vmul.f32 %v691, %v696
  %v704 = vadd.f32 %v702, %v703
  %v705 = vtanh.pop %v704
  %v706 = vmul.f32 %v700, %v705
  %707 = vst [vmem:[#allocation3] sm:$0xff] %v704
  %708 = vst [vmem:[#allocation2] sm:$0xff] %v706
  %v709 = vld [vmem:[%s205] sm:$0xff]
  %v710 = vld [vmem:[%s205 + $0x8] sm:$0xff]
  %v711 = vld [vmem:[%s205 + $0x10] sm:$0xff]
  %v712 = vld [vmem:[%s205 + $0x18] sm:$0xff]
  %v713 = vld [vmem:[%s205 + $0x20] sm:$0xff]
  %v714 = vld [vmem:[%s205 + $0x28] sm:$0xff]
  %v715 = vld [vmem:[%s205 + $0x30] sm:$0xff]
  %v716 = vld [vmem:[%s205 + $0x38] sm:$0xff]
  %v717 = vld [vmem:[%s205 + $0x40] sm:$0xff]
  %v718 = vld [vmem:[%s205 + $0x48] sm:$0xff]
  %v719 = vld [vmem:[%s205 + $0x50] sm:$0xff]
  %v720 = vld [vmem:[%s205 + $0x58] sm:$0xff]
  %v721 = vld [vmem:[%s205 + $0x60] sm:$0xff]
  %v722 = vld [vmem:[%s205 + $0x68] sm:$0xff]
  %v723 = vld [vmem:[%s205 + $0x70] sm:$0xff]
  %v724 = vld [vmem:[%s205 + $0x78] sm:$0xff]
  %v725 = vld [vmem:[%s205 + $0x80] sm:$0xff]
  %v726 = vld [vmem:[%s205 + $0x88] sm:$0xff]
  %v727 = vld [vmem:[%s205 + $0x90] sm:$0xff]
  %v728 = vld [vmem:[%s205 + $0x98] sm:$0xff]
  %v729 = vld [vmem:[%s205 + $0xa0] sm:$0xff]
  %v730 = vld [vmem:[%s205 + $0xa8] sm:$0xff]
  %v731 = vld [vmem:[%s205 + $0xb0] sm:$0xff]
  %v732 = vld [vmem:[%s205 + $0xb8] sm:$0xff]
  %v733 = vld [vmem:[%s205 + $0xc0] sm:$0xff]
  %v734 = vld [vmem:[%s205 + $0xc8] sm:$0xff]
  %v735 = vld [vmem:[%s205 + $0xd0] sm:$0xff]
  %v736 = vld [vmem:[%s205 + $0xd8] sm:$0xff]
  %v737 = vld [vmem:[%s205 + $0xe0] sm:$0xff]
  %v738 = vld [vmem:[%s205 + $0xe8] sm:$0xff]
  %v739 = vld [vmem:[%s205 + $0xf0] sm:$0xff]
  %v740 = vld [vmem:[%s205 + $0xf8] sm:$0xff]
  %v741 = vld [vmem:[%s205 + $0x100] sm:$0xff]
  %v742 = vld [vmem:[%s205 + $0x108] sm:$0xff]
  %v743 = vld [vmem:[%s205 + $0x110] sm:$0xff]
  %v744 = vld [vmem:[%s205 + $0x118] sm:$0xff]
  %v745 = vld [vmem:[%s205 + $0x120] sm:$0xff]
  %v746 = vld [vmem:[%s205 + $0x128] sm:$0xff]
  %v747 = vld [vmem:[%s205 + $0x130] sm:$0xff]
  %v748 = vld [vmem:[%s205 + $0x138] sm:$0xff]
  %v749 = vld [vmem:[%s205 + $0x140] sm:$0xff]
  %v750 = vld [vmem:[%s205 + $0x148] sm:$0xff]
  %v751 = vld [vmem:[%s205 + $0x150] sm:$0xff]
  %v752 = vld [vmem:[%s205 + $0x158] sm:$0xff]
  %v753 = vld [vmem:[%s205 + $0x160] sm:$0xff]
  %v754 = vld [vmem:[%s205 + $0x168] sm:$0xff]
  %v755 = vld [vmem:[%s205 + $0x170] sm:$0xff]
  %v756 = vld [vmem:[%s205 + $0x178] sm:$0xff]
  %v757 = vld [vmem:[%s205 + $0x180] sm:$0xff]
  %v758 = vld [vmem:[%s205 + $0x188] sm:$0xff]
  %v759 = vld [vmem:[%s205 + $0x190] sm:$0xff]
  %v760 = vld [vmem:[%s205 + $0x198] sm:$0xff]
  %v761 = vld [vmem:[%s205 + $0x1a0] sm:$0xff]
  %v762 = vld [vmem:[%s205 + $0x1a8] sm:$0xff]
  %v763 = vld [vmem:[%s205 + $0x1b0] sm:$0xff]
  %v764 = vld [vmem:[%s205 + $0x1b8] sm:$0xff]
  %v765 = vld [vmem:[%s205 + $0x1c0] sm:$0xff]
  %v766 = vld [vmem:[%s205 + $0x1c8] sm:$0xff]
  %v767 = vld [vmem:[%s205 + $0x1d0] sm:$0xff]
  %v768 = vld [vmem:[%s205 + $0x1d8] sm:$0xff]
  %v769 = vld [vmem:[%s205 + $0x1e0] sm:$0xff]
  %v770 = vld [vmem:[%s205 + $0x1e8] sm:$0xff]
  %v771 = vld [vmem:[%s205 + $0x1f0] sm:$0xff]
  %v772 = vld [vmem:[%s205 + $0x1f8] sm:$0xff]
  %v773 = vld [vmem:[%s270] sm:$0xff]
  %v774 = vld [vmem:[%s272] sm:$0xff]
  %v775 = vld [vmem:[%s272 + $0x8] sm:$0xff]
  %v776 = vld [vmem:[%s272 + $0x10] sm:$0xff]
  %v777 = vld [vmem:[%s272 + $0x18] sm:$0xff]
  %v778 = vld [vmem:[%s272 + $0x20] sm:$0xff]
  %v779 = vld [vmem:[%s272 + $0x28] sm:$0xff]
  %v780 = vld [vmem:[%s272 + $0x30] sm:$0xff]
  %v781 = vld [vmem:[%s272 + $0x38] sm:$0xff]
  %v782 = vld [vmem:[%s272 + $0x40] sm:$0xff]
  %v783 = vld [vmem:[%s272 + $0x48] sm:$0xff]
  %v784 = vld [vmem:[%s272 + $0x50] sm:$0xff]
  %v785 = vld [vmem:[%s272 + $0x58] sm:$0xff]
  %v786 = vld [vmem:[%s272 + $0x60] sm:$0xff]
  %v787 = vld [vmem:[%s272 + $0x68] sm:$0xff]
  %v788 = vld [vmem:[%s272 + $0x70] sm:$0xff]
  %v789 = vld [vmem:[%s272 + $0x78] sm:$0xff]
  %v790 = vld [vmem:[%s272 + $0x80] sm:$0xff]
  %v791 = vld [vmem:[%s272 + $0x88] sm:$0xff]
  %v792 = vld [vmem:[%s272 + $0x90] sm:$0xff]
  %v793 = vld [vmem:[%s272 + $0x98] sm:$0xff]
  %v794 = vld [vmem:[%s272 + $0xa0] sm:$0xff]
  %v795 = vld [vmem:[%s272 + $0xa8] sm:$0xff]
  %v796 = vld [vmem:[%s272 + $0xb0] sm:$0xff]
  %v797 = vld [vmem:[%s272 + $0xb8] sm:$0xff]
  %v798 = vld [vmem:[%s272 + $0xc0] sm:$0xff]
  %v799 = vld [vmem:[%s272 + $0xc8] sm:$0xff]
  %v800 = vld [vmem:[%s272 + $0xd0] sm:$0xff]
  %v801 = vld [vmem:[%s272 + $0xd8] sm:$0xff]
  %v802 = vld [vmem:[%s272 + $0xe0] sm:$0xff]
  %v803 = vld [vmem:[%s272 + $0xe8] sm:$0xff]
  %v804 = vld [vmem:[%s272 + $0xf0] sm:$0xff]
  %v805 = vld [vmem:[%s272 + $0xf8] sm:$0xff]
  %v806 = vld [vmem:[%s272 + $0x100] sm:$0xff]
  %v807 = vld [vmem:[%s272 + $0x108] sm:$0xff]
  %v808 = vld [vmem:[%s272 + $0x110] sm:$0xff]
  %v809 = vld [vmem:[%s272 + $0x118] sm:$0xff]
  %v810 = vld [vmem:[%s272 + $0x120] sm:$0xff]
  %v811 = vld [vmem:[%s272 + $0x128] sm:$0xff]
  %v812 = vld [vmem:[%s272 + $0x130] sm:$0xff]
  %v813 = vld [vmem:[%s272 + $0x138] sm:$0xff]
  %v814 = vld [vmem:[%s272 + $0x140] sm:$0xff]
  %v815 = vld [vmem:[%s272 + $0x148] sm:$0xff]
  %v816 = vld [vmem:[%s272 + $0x150] sm:$0xff]
  %v817 = vld [vmem:[%s272 + $0x158] sm:$0xff]
  %v818 = vld [vmem:[%s272 + $0x160] sm:$0xff]
  %v819 = vld [vmem:[%s272 + $0x168] sm:$0xff]
  %v820 = vld [vmem:[%s272 + $0x170] sm:$0xff]
  %v821 = vld [vmem:[%s272 + $0x178] sm:$0xff]
  %v822 = vld [vmem:[%s272 + $0x180] sm:$0xff]
  %v823 = vld [vmem:[%s272 + $0x188] sm:$0xff]
  %v824 = vld [vmem:[%s272 + $0x190] sm:$0xff]
  %v825 = vld [vmem:[%s272 + $0x198] sm:$0xff]
  %v826 = vld [vmem:[%s272 + $0x1a0] sm:$0xff]
  %v827 = vld [vmem:[%s272 + $0x1a8] sm:$0xff]
  %v828 = vld [vmem:[%s272 + $0x1b0] sm:$0xff]
  %v829 = vld [vmem:[%s272 + $0x1b8] sm:$0xff]
  %v830 = vld [vmem:[%s272 + $0x1c0] sm:$0xff]
  %v831 = vld [vmem:[%s272 + $0x1c8] sm:$0xff]
  %v832 = vld [vmem:[%s272 + $0x1d0] sm:$0xff]
  %v833 = vld [vmem:[%s272 + $0x1d8] sm:$0xff]
  %v834 = vld [vmem:[%s272 + $0x1e0] sm:$0xff]
  %v835 = vld [vmem:[%s272 + $0x1e8] sm:$0xff]
  %v836 = vld [vmem:[%s272 + $0x1f0] sm:$0xff]
  %v837 = vld [vmem:[%s272 + $0x1f8] sm:$0xff]
  %838 = vmatpush.msra.mxu0 %v834
  %839 = vmatpush.msra.mxu0 %v830
  %840 = vmatpush.msra.mxu0 %v826
  %841 = vmatpush.msra.mxu0 %v822
  %842 = vmatpush.msra.mxu0 %v818
  %843 = vmatpush.msra.mxu0 %v814
  %844 = vmatpush.msra.mxu0 %v810
  %845 = vmatpush.msra.mxu0 %v806
  %846 = vmatpush.msra.mxu0 %v802
  %847 = vmatpush.msra.mxu0 %v798
  %848 = vmatpush.msra.mxu0 %v794
  %849 = vmatpush.msra.mxu0 %v790
  %850 = vmatpush.msra.mxu0 %v786
  %851 = vmatpush.msra.mxu0 %v782
  %852 = vmatpush.msra.mxu0 %v778
  %853 = vmatpush.msra.mxu0 %v774
  %854 = vmatmul.f32.gmra.mxu0 %v773
  %v855 = vpop.f32.mrf.mxu0
  %v856 = vadd.f32 0.0, %v855
  %857 = vdwg.mxu0
  %858 = vmatpush.msra.mxu0 %v835
  %859 = vmatpush.msra.mxu0 %v831
  %860 = vmatpush.msra.mxu0 %v827
  %861 = vmatpush.msra.mxu0 %v823
  %862 = vmatpush.msra.mxu0 %v819
  %863 = vmatpush.msra.mxu0 %v815
  %864 = vmatpush.msra.mxu0 %v811
  %865 = vmatpush.msra.mxu0 %v807
  %866 = vmatpush.msra.mxu0 %v803
  %867 = vmatpush.msra.mxu0 %v799
  %868 = vmatpush.msra.mxu0 %v795
  %869 = vmatpush.msra.mxu0 %v791
  %870 = vmatpush.msra.mxu0 %v787
  %871 = vmatpush.msra.mxu0 %v783
  %872 = vmatpush.msra.mxu0 %v779
  %873 = vmatpush.msra.mxu0 %v775
  %874 = vmatmul.f32.gmra.mxu0 %v773
  %v875 = vpop.f32.mrf.mxu0
  %v876 = vadd.f32 0.0, %v875
  %877 = vdwg.mxu0
  %878 = vmatpush.msra.mxu0 %v836
  %879 = vmatpush.msra.mxu0 %v832
  %880 = vmatpush.msra.mxu0 %v828
  %881 = vmatpush.msra.mxu0 %v824
  %882 = vmatpush.msra.mxu0 %v820
  %883 = vmatpush.msra.mxu0 %v816
  %884 = vmatpush.msra.mxu0 %v812
  %885 = vmatpush.msra.mxu0 %v808
  %886 = vmatpush.msra.mxu0 %v804
  %887 = vmatpush.msra.mxu0 %v800
  %888 = vmatpush.msra.mxu0 %v796
  %889 = vmatpush.msra.mxu0 %v792
  %890 = vmatpush.msra.mxu0 %v788
  %891 = vmatpush.msra.mxu0 %v784
  %892 = vmatpush.msra.mxu0 %v780
  %893 = vmatpush.msra.mxu0 %v776
  %894 = vmatmul.f32.gmra.mxu0 %v773
  %v895 = vpop.f32.mrf.mxu0
  %v896 = vadd.f32 0.0, %v895
  %897 = vdwg.mxu0
  %898 = vmatpush.msra.mxu0 %v837
  %899 = vmatpush.msra.mxu0 %v833
  %900 = vmatpush.msra.mxu0 %v829
  %901 = vmatpush.msra.mxu0 %v825
  %902 = vmatpush.msra.mxu0 %v821
  %903 = vmatpush.msra.mxu0 %v817
  %904 = vmatpush.msra.mxu0 %v813
  %905 = vmatpush.msra.mxu0 %v809
  %906 = vmatpush.msra.mxu0 %v805
  %907 = vmatpush.msra.mxu0 %v801
  %908 = vmatpush.msra.mxu0 %v797
  %909 = vmatpush.msra.mxu0 %v793
  %910 = vmatpush.msra.mxu0 %v789
  %911 = vmatpush.msra.mxu0 %v785
  %912 = vmatpush.msra.mxu0 %v781
  %913 = vmatpush.msra.mxu0 %v777
  %914 = vmatmul.f32.gmra.mxu0 %v773
  %v915 = vpop.f32.mrf.mxu0
  %v916 = vadd.f32 0.0, %v915
  %917 = vdwg.mxu0
  %918 = vmatpush.msra.mxu0 %v769
  %919 = vmatpush.msra.mxu0 %v765
  %920 = vmatpush.msra.mxu0 %v761
  %921 = vmatpush.msra.mxu0 %v757
  %922 = vmatpush.msra.mxu0 %v753
  %923 = vmatpush.msra.mxu0 %v749
  %924 = vmatpush.msra.mxu0 %v745
  %925 = vmatpush.msra.mxu0 %v741
  %926 = vmatpush.msra.mxu0 %v737
  %927 = vmatpush.msra.mxu0 %v733
  %928 = vmatpush.msra.mxu0 %v729
  %929 = vmatpush.msra.mxu0 %v725
  %930 = vmatpush.msra.mxu0 %v721
  %931 = vmatpush.msra.mxu0 %v717
  %932 = vmatpush.msra.mxu0 %v713
  %933 = vmatpush.msra.mxu0 %v709
  %934 = vmatmul.f32.gmra.mxu0 %v706
  %v935 = vpop.f32.mrf.mxu0
  %v936 = vadd.f32 %v856, %v935
  %937 = vdwg.mxu0
  %938 = vmatpush.msra.mxu0 %v770
  %939 = vmatpush.msra.mxu0 %v766
  %940 = vmatpush.msra.mxu0 %v762
  %941 = vmatpush.msra.mxu0 %v758
  %942 = vmatpush.msra.mxu0 %v754
  %943 = vmatpush.msra.mxu0 %v750
  %944 = vmatpush.msra.mxu0 %v746
  %945 = vmatpush.msra.mxu0 %v742
  %946 = vmatpush.msra.mxu0 %v738
  %947 = vmatpush.msra.mxu0 %v734
  %948 = vmatpush.msra.mxu0 %v730
  %949 = vmatpush.msra.mxu0 %v726
  %950 = vmatpush.msra.mxu0 %v722
  %951 = vmatpush.msra.mxu0 %v718
  %952 = vmatpush.msra.mxu0 %v714
  %953 = vmatpush.msra.mxu0 %v710
  %954 = vmatmul.f32.gmra.mxu0 %v706
  %v955 = vpop.f32.mrf.mxu0
  %v956 = vadd.f32 %v876, %v955
  %957 = vdwg.mxu0
  %958 = vmatpush.msra.mxu0 %v771
  %959 = vmatpush.msra.mxu0 %v767
  %960 = vmatpush.msra.mxu0 %v763
  %961 = vmatpush.msra.mxu0 %v759
  %962 = vmatpush.msra.mxu0 %v755
  %963 = vmatpush.msra.mxu0 %v751
  %964 = vmatpush.msra.mxu0 %v747
  %965 = vmatpush.msra.mxu0 %v743
  %966 = vmatpush.msra.mxu0 %v739
  %967 = vmatpush.msra.mxu0 %v735
  %968 = vmatpush.msra.mxu0 %v731
  %969 = vmatpush.msra.mxu0 %v727
  %970 = vmatpush.msra.mxu0 %v723
  %971 = vmatpush.msra.mxu0 %v719
  %972 = vmatpush.msra.mxu0 %v715
  %973 = vmatpush.msra.mxu0 %v711
  %974 = vmatmul.f32.gmra.mxu0 %v706
  %v975 = vpop.f32.mrf.mxu0
  %v976 = vadd.f32 %v896, %v975
  %977 = vdwg.mxu0
  %978 = vmatpush.msra.mxu0 %v772
  %979 = vmatpush.msra.mxu0 %v768
  %980 = vmatpush.msra.mxu0 %v764
  %981 = vmatpush.msra.mxu0 %v760
  %982 = vmatpush.msra.mxu0 %v756
  %983 = vmatpush.msra.mxu0 %v752
  %984 = vmatpush.msra.mxu0 %v748
  %985 = vmatpush.msra.mxu0 %v744
  %986 = vmatpush.msra.mxu0 %v740
  %987 = vmatpush.msra.mxu0 %v736
  %988 = vmatpush.msra.mxu0 %v732
  %989 = vmatpush.msra.mxu0 %v728
  %990 = vmatpush.msra.mxu0 %v724
  %991 = vmatpush.msra.mxu0 %v720
  %992 = vmatpush.msra.mxu0 %v716
  %993 = vmatpush.msra.mxu0 %v712
  %994 = vmatmul.f32.gmra.mxu0 %v706
  %v995 = vpop.f32.mrf.mxu0
  %v996 = vadd.f32 %v916, %v995
  %997 = vdwg.mxu0
  %v998 = vld [vmem:[%s497] sm:$0xf]
  %v1000 = vperm.slane %v998, 0
  %v1001 = vperm.slane %v998, 1
  %v1002 = vperm.slane %v998, 2
  %v1003 = vperm.slane %v998, 3
  %v1008 = vadd.f32 %v936, %v1000
  %v1009 = vadd.f32 %v956, %v1001
  %v1010 = vadd.f32 %v976, %v1002
  %v1011 = vadd.f32 %v996, %v1003
  %v1012 = vmul.f32 %v1008, 0.5
  %v1013 = vtanh.pop %v1012
  %v1014 = vmul.f32 %v1013, 0.5
  %v1015 = vadd.f32 %v1014, 0.5
  %v1016 = vmul.f32 %v1009, 0.5
  %v1017 = vtanh.pop %v1016
  %v1018 = vmul.f32 %v1017, 0.5
  %v1019 = vadd.f32 %v1018, 0.5
  %v1020 = vtanh.pop %v1010
  %v1021 = vmul.f32 %v1011, 0.5
  %v1022 = vtanh.pop %v1021
  %v1023 = vmul.f32 %v1022, 0.5
  %v1024 = vadd.f32 %v1023, 0.5
  %v1025 = vld [vmem:[%s525] sm:$0xff]
  %v1026 = vmul.f32 %v1019, %v1025
  %v1027 = vmul.f32 %v1015, %v1020
  %v1028 = vadd.f32 %v1026, %v1027
  %v1029 = vtanh.pop %v1028
  %v1030 = vmul.f32 %v1024, %v1029
  %1031 = vst [vmem:[%s525] sm:$0xff] %v1028
  %1032 = vst [vmem:[%s270] sm:$0xff] %v1030
  %s1033 = scalar_lea.vmem %s0, 64
  %v1034 = vld [vmem:[%s1033] sm:$0xff]
  %v1035 = vld [vmem:[%s1033 + $0x8] sm:$0xff]
  %v1036 = vld [vmem:[%s1033 + $0x10] sm:$0xff]
  %v1037 = vld [vmem:[%s1033 + $0x18] sm:$0xff]
  %v1038 = vld [vmem:[#allocation2] sm:$0xff]
  %v1039 = vld [vmem:[%s2] sm:$0xff]
  %v1040 = vld [vmem:[%s2 + $0x8] sm:$0xff]
  %v1041 = vld [vmem:[%s2 + $0x10] sm:$0xff]
  %v1042 = vld [vmem:[%s2 + $0x18] sm:$0xff]
  %v1043 = vld [vmem:[%s2 + $0x20] sm:$0xff]
  %v1044 = vld [vmem:[%s2 + $0x28] sm:$0xff]
  %v1045 = vld [vmem:[%s2 + $0x30] sm:$0xff]
  %v1046 = vld [vmem:[%s2 + $0x38] sm:$0xff]
  %v1047 = vld [vmem:[%s2 + $0x40] sm:$0xff]
  %v1048 = vld [vmem:[%s2 + $0x48] sm:$0xff]
  %v1049 = vld [vmem:[%s2 + $0x50] sm:$0xff]
  %v1050 = vld [vmem:[%s2 + $0x58] sm:$0xff]
  %v1051 = vld [vmem:[%s2 + $0x60] sm:$0xff]
  %v1052 = vld [vmem:[%s2 + $0x68] sm:$0xff]
  %v1053 = vld [vmem:[%s2 + $0x70] sm:$0xff]
  %v1054 = vld [vmem:[%s2 + $0x78] sm:$0xff]
  %v1055 = vld [vmem:[%s2 + $0x80] sm:$0xff]
  %v1056 = vld [vmem:[%s2 + $0x88] sm:$0xff]
  %v1057 = vld [vmem:[%s2 + $0x90] sm:$0xff]
  %v1058 = vld [vmem:[%s2 + $0x98] sm:$0xff]
  %v1059 = vld [vmem:[%s2 + $0xa0] sm:$0xff]
  %v1060 = vld [vmem:[%s2 + $0xa8] sm:$0xff]
  %v1061 = vld [vmem:[%s2 + $0xb0] sm:$0xff]
  %v1062 = vld [vmem:[%s2 + $0xb8] sm:$0xff]
  %v1063 = vld [vmem:[%s2 + $0xc0] sm:$0xff]
  %v1064 = vld [vmem:[%s2 + $0xc8] sm:$0xff]
  %v1065 = vld [vmem:[%s2 + $0xd0] sm:$0xff]
  %v1066 = vld [vmem:[%s2 + $0xd8] sm:$0xff]
  %v1067 = vld [vmem:[%s2 + $0xe0] sm:$0xff]
  %v1068 = vld [vmem:[%s2 + $0xe8] sm:$0xff]
  %v1069 = vld [vmem:[%s2 + $0xf0] sm:$0xff]
  %v1070 = vld [vmem:[%s2 + $0xf8] sm:$0xff]
  %v1071 = vld [vmem:[%s2 + $0x100] sm:$0xff]
  %v1072 = vld [vmem:[%s2 + $0x108] sm:$0xff]
  %v1073 = vld [vmem:[%s2 + $0x110] sm:$0xff]
  %v1074 = vld [vmem:[%s2 + $0x118] sm:$0xff]
  %v1075 = vld [vmem:[%s2 + $0x120] sm:$0xff]
  %v1076 = vld [vmem:[%s2 + $0x128] sm:$0xff]
  %v1077 = vld [vmem:[%s2 + $0x130] sm:$0xff]
  %v1078 = vld [vmem:[%s2 + $0x138] sm:$0xff]
  %v1079 = vld [vmem:[%s2 + $0x140] sm:$0xff]
  %v1080 = vld [vmem:[%s2 + $0x148] sm:$0xff]
  %v1081 = vld [vmem:[%s2 + $0x150] sm:$0xff]
  %v1082 = vld [vmem:[%s2 + $0x158] sm:$0xff]
  %v1083 = vld [vmem:[%s2 + $0x160] sm:$0xff]
  %v1084 = vld [vmem:[%s2 + $0x168] sm:$0xff]
  %v1085 = vld [vmem:[%s2 + $0x170] sm:$0xff]
  %v1086 = vld [vmem:[%s2 + $0x178] sm:$0xff]
  %v1087 = vld [vmem:[%s2 + $0x180] sm:$0xff]
  %v1088 = vld [vmem:[%s2 + $0x188] sm:$0xff]
  %v1089 = vld [vmem:[%s2 + $0x190] sm:$0xff]
  %v1090 = vld [vmem:[%s2 + $0x198] sm:$0xff]
  %v1091 = vld [vmem:[%s2 + $0x1a0] sm:$0xff]
  %v1092 = vld [vmem:[%s2 + $0x1a8] sm:$0xff]
  %v1093 = vld [vmem:[%s2 + $0x1b0] sm:$0xff]
  %v1094 = vld [vmem:[%s2 + $0x1b8] sm:$0xff]
  %v1095 = vld [vmem:[%s2 + $0x1c0] sm:$0xff]
  %v1096 = vld [vmem:[%s2 + $0x1c8] sm:$0xff]
  %v1097 = vld [vmem:[%s2 + $0x1d0] sm:$0xff]
  %v1098 = vld [vmem:[%s2 + $0x1d8] sm:$0xff]
  %v1099 = vld [vmem:[%s2 + $0x1e0] sm:$0xff]
  %v1100 = vld [vmem:[%s2 + $0x1e8] sm:$0xff]
  %v1101 = vld [vmem:[%s2 + $0x1f0] sm:$0xff]
  %v1102 = vld [vmem:[%s2 + $0x1f8] sm:$0xff]
  %1103 = vmatpush.msra.mxu0 %v1099
  %1104 = vmatpush.msra.mxu0 %v1095
  %1105 = vmatpush.msra.mxu0 %v1091
  %1106 = vmatpush.msra.mxu0 %v1087
  %1107 = vmatpush.msra.mxu0 %v1083
  %1108 = vmatpush.msra.mxu0 %v1079
  %1109 = vmatpush.msra.mxu0 %v1075
  %1110 = vmatpush.msra.mxu0 %v1071
  %1111 = vmatpush.msra.mxu0 %v1067
  %1112 = vmatpush.msra.mxu0 %v1063
  %1113 = vmatpush.msra.mxu0 %v1059
  %1114 = vmatpush.msra.mxu0 %v1055
  %1115 = vmatpush.msra.mxu0 %v1051
  %1116 = vmatpush.msra.mxu0 %v1047
  %1117 = vmatpush.msra.mxu0 %v1043
  %1118 = vmatpush.msra.mxu0 %v1039
  %1119 = vmatmul.f32.gmra.mxu0 %v1038
  %v1120 = vpop.f32.mrf.mxu0
  %v1121 = vadd.f32 0.0, %v1120
  %1122 = vdwg.mxu0
  %1123 = vmatpush.msra.mxu0 %v1100
  %1124 = vmatpush.msra.mxu0 %v1096
  %1125 = vmatpush.msra.mxu0 %v1092
  %1126 = vmatpush.msra.mxu0 %v1088
  %1127 = vmatpush.msra.mxu0 %v1084
  %1128 = vmatpush.msra.mxu0 %v1080
  %1129 = vmatpush.msra.mxu0 %v1076
  %1130 = vmatpush.msra.mxu0 %v1072
  %1131 = vmatpush.msra.mxu0 %v1068
  %1132 = vmatpush.msra.mxu0 %v1064
  %1133 = vmatpush.msra.mxu0 %v1060
  %1134 = vmatpush.msra.mxu0 %v1056
  %1135 = vmatpush.msra.mxu0 %v1052
  %1136 = vmatpush.msra.mxu0 %v1048
  %1137 = vmatpush.msra.mxu0 %v1044
  %1138 = vmatpush.msra.mxu0 %v1040
  %1139 = vmatmul.f32.gmra.mxu0 %v1038
  %v1140 = vpop.f32.mrf.mxu0
  %v1141 = vadd.f32 0.0, %v1140
  %1142 = vdwg.mxu0
  %1143 = vmatpush.msra.mxu0 %v1101
  %1144 = vmatpush.msra.mxu0 %v1097
  %1145 = vmatpush.msra.mxu0 %v1093
  %1146 = vmatpush.msra.mxu0 %v1089
  %1147 = vmatpush.msra.mxu0 %v1085
  %1148 = vmatpush.msra.mxu0 %v1081
  %1149 = vmatpush.msra.mxu0 %v1077
  %1150 = vmatpush.msra.mxu0 %v1073
  %1151 = vmatpush.msra.mxu0 %v1069
  %1152 = vmatpush.msra.mxu0 %v1065
  %1153 = vmatpush.msra.mxu0 %v1061
  %1154 = vmatpush.msra.mxu0 %v1057
  %1155 = vmatpush.msra.mxu0 %v1053
  %1156 = vmatpush.msra.mxu0 %v1049
  %1157 = vmatpush.msra.mxu0 %v1045
  %1158 = vmatpush.msra.mxu0 %v1041
  %1159 = vmatmul.f32.gmra.mxu0 %v1038
  %v1160 = vpop.f32.mrf.mxu0
  %v1161 = vadd.f32 0.0, %v1160
  %1162 = vdwg.mxu0
  %1163 = vmatpush.msra.mxu0 %v1102
  %1164 = vmatpush.msra.mxu0 %v1098
  %1165 = vmatpush.msra.mxu0 %v1094
  %1166 = vmatpush.msra.mxu0 %v1090
  %1167 = vmatpush.msra.mxu0 %v1086
  %1168 = vmatpush.msra.mxu0 %v1082
  %1169 = vmatpush.msra.mxu0 %v1078
  %1170 = vmatpush.msra.mxu0 %v1074
  %1171 = vmatpush.msra.mxu0 %v1070
  %1172 = vmatpush.msra.mxu0 %v1066
  %1173 = vmatpush.msra.mxu0 %v1062
  %1174 = vmatpush.msra.mxu0 %v1058
  %1175 = vmatpush.msra.mxu0 %v1054
  %1176 = vmatpush.msra.mxu0 %v1050
  %1177 = vmatpush.msra.mxu0 %v1046
  %1178 = vmatpush.msra.mxu0 %v1042
  %1179 = vmatmul.f32.gmra.mxu0 %v1038
  %v1180 = vpop.f32.mrf.mxu0
  %v1181 = vadd.f32 0.0, %v1180
  %1182 = vdwg.mxu0
  %v1183 = vadd.f32 %v1034, %v1121
  %v1184 = vadd.f32 %v1035, %v1141
  %v1185 = vadd.f32 %v1036, %v1161
  %v1186 = vadd.f32 %v1037, %v1181
  %v1187 = vmul.f32 %v1183, 0.5
  %v1188 = vtanh.pop %v1187
  %v1189 = vmul.f32 %v1188, 0.5
  %v1190 = vadd.f32 %v1189, 0.5
  %v1191 = vmul.f32 %v1184, 0.5
  %v1192 = vtanh.pop %v1191
  %v1193 = vmul.f32 %v1192, 0.5
  %v1194 = vadd.f32 %v1193, 0.5
  %v1195 = vtanh.pop %v1185
  %v1196 = vmul.f32 %v1186, 0.5
  %v1197 = vtanh.pop %v1196
  %v1198 = vmul.f32 %v1197, 0.5
  %v1199 = vadd.f32 %v1198, 0.5
  %v1200 = vld [vmem:[#allocation3] sm:$0xff]
  %v1201 = vmul.f32 %v1194, %v1200
  %v1202 = vmul.f32 %v1190, %v1195
  %v1203 = vadd.f32 %v1201, %v1202
  %v1204 = vtanh.pop %v1203
  %v1205 = vmul.f32 %v1199, %v1204
  %1206 = vst [vmem:[#allocation3] sm:$0xff] %v1203
  %1207 = vst [vmem:[#allocation2] sm:$0xff] %v1205
  %v1208 = vld [vmem:[%s205] sm:$0xff]
  %v1209 = vld [vmem:[%s205 + $0x8] sm:$0xff]
  %v1210 = vld [vmem:[%s205 + $0x10] sm:$0xff]
  %v1211 = vld [vmem:[%s205 + $0x18] sm:$0xff]
  %v1212 = vld [vmem:[%s205 + $0x20] sm:$0xff]
  %v1213 = vld [vmem:[%s205 + $0x28] sm:$0xff]
  %v1214 = vld [vmem:[%s205 + $0x30] sm:$0xff]
  %v1215 = vld [vmem:[%s205 + $0x38] sm:$0xff]
  %v1216 = vld [vmem:[%s205 + $0x40] sm:$0xff]
  %v1217 = vld [vmem:[%s205 + $0x48] sm:$0xff]
  %v1218 = vld [vmem:[%s205 + $0x50] sm:$0xff]
  %v1219 = vld [vmem:[%s205 + $0x58] sm:$0xff]
  %v1220 = vld [vmem:[%s205 + $0x60] sm:$0xff]
  %v1221 = vld [vmem:[%s205 + $0x68] sm:$0xff]
  %v1222 = vld [vmem:[%s205 + $0x70] sm:$0xff]
  %v1223 = vld [vmem:[%s205 + $0x78] sm:$0xff]
  %v1224 = vld [vmem:[%s205 + $0x80] sm:$0xff]
  %v1225 = vld [vmem:[%s205 + $0x88] sm:$0xff]
  %v1226 = vld [vmem:[%s205 + $0x90] sm:$0xff]
  %v1227 = vld [vmem:[%s205 + $0x98] sm:$0xff]
  %v1228 = vld [vmem:[%s205 + $0xa0] sm:$0xff]
  %v1229 = vld [vmem:[%s205 + $0xa8] sm:$0xff]
  %v1230 = vld [vmem:[%s205 + $0xb0] sm:$0xff]
  %v1231 = vld [vmem:[%s205 + $0xb8] sm:$0xff]
  %v1232 = vld [vmem:[%s205 + $0xc0] sm:$0xff]
  %v1233 = vld [vmem:[%s205 + $0xc8] sm:$0xff]
  %v1234 = vld [vmem:[%s205 + $0xd0] sm:$0xff]
  %v1235 = vld [vmem:[%s205 + $0xd8] sm:$0xff]
  %v1236 = vld [vmem:[%s205 + $0xe0] sm:$0xff]
  %v1237 = vld [vmem:[%s205 + $0xe8] sm:$0xff]
  %v1238 = vld [vmem:[%s205 + $0xf0] sm:$0xff]
  %v1239 = vld [vmem:[%s205 + $0xf8] sm:$0xff]
  %v1240 = vld [vmem:[%s205 + $0x100] sm:$0xff]
  %v1241 = vld [vmem:[%s205 + $0x108] sm:$0xff]
  %v1242 = vld [vmem:[%s205 + $0x110] sm:$0xff]
  %v1243 = vld [vmem:[%s205 + $0x118] sm:$0xff]
  %v1244 = vld [vmem:[%s205 + $0x120] sm:$0xff]
  %v1245 = vld [vmem:[%s205 + $0x128] sm:$0xff]
  %v1246 = vld [vmem:[%s205 + $0x130] sm:$0xff]
  %v1247 = vld [vmem:[%s205 + $0x138] sm:$0xff]
  %v1248 = vld [vmem:[%s205 + $0x140] sm:$0xff]
  %v1249 = vld [vmem:[%s205 + $0x148] sm:$0xff]
  %v1250 = vld [vmem:[%s205 + $0x150] sm:$0xff]
  %v1251 = vld [vmem:[%s205 + $0x158] sm:$0xff]
  %v1252 = vld [vmem:[%s205 + $0x160] sm:$0xff]
  %v1253 = vld [vmem:[%s205 + $0x168] sm:$0xff]
  %v1254 = vld [vmem:[%s205 + $0x170] sm:$0xff]
  %v1255 = vld [vmem:[%s205 + $0x178] sm:$0xff]
  %v1256 = vld [vmem:[%s205 + $0x180] sm:$0xff]
  %v1257 = vld [vmem:[%s205 + $0x188] sm:$0xff]
  %v1258 = vld [vmem:[%s205 + $0x190] sm:$0xff]
  %v1259 = vld [vmem:[%s205 + $0x198] sm:$0xff]
  %v1260 = vld [vmem:[%s205 + $0x1a0] sm:$0xff]
  %v1261 = vld [vmem:[%s205 + $0x1a8] sm:$0xff]
  %v1262 = vld [vmem:[%s205 + $0x1b0] sm:$0xff]
  %v1263 = vld [vmem:[%s205 + $0x1b8] sm:$0xff]
  %v1264 = vld [vmem:[%s205 + $0x1c0] sm:$0xff]
  %v1265 = vld [vmem:[%s205 + $0x1c8] sm:$0xff]
  %v1266 = vld [vmem:[%s205 + $0x1d0] sm:$0xff]
  %v1267 = vld [vmem:[%s205 + $0x1d8] sm:$0xff]
  %v1268 = vld [vmem:[%s205 + $0x1e0] sm:$0xff]
  %v1269 = vld [vmem:[%s205 + $0x1e8] sm:$0xff]
  %v1270 = vld [vmem:[%s205 + $0x1f0] sm:$0xff]
  %v1271 = vld [vmem:[%s205 + $0x1f8] sm:$0xff]
  %v1272 = vld [vmem:[%s270] sm:$0xff]
  %v1273 = vld [vmem:[%s272] sm:$0xff]
  %v1274 = vld [vmem:[%s272 + $0x8] sm:$0xff]
  %v1275 = vld [vmem:[%s272 + $0x10] sm:$0xff]
  %v1276 = vld [vmem:[%s272 + $0x18] sm:$0xff]
  %v1277 = vld [vmem:[%s272 + $0x20] sm:$0xff]
  %v1278 = vld [vmem:[%s272 + $0x28] sm:$0xff]
  %v1279 = vld [vmem:[%s272 + $0x30] sm:$0xff]
  %v1280 = vld [vmem:[%s272 + $0x38] sm:$0xff]
  %v1281 = vld [vmem:[%s272 + $0x40] sm:$0xff]
  %v1282 = vld [vmem:[%s272 + $0x48] sm:$0xff]
  %v1283 = vld [vmem:[%s272 + $0x50] sm:$0xff]
  %v1284 = vld [vmem:[%s272 + $0x58] sm:$0xff]
  %v1285 = vld [vmem:[%s272 + $0x60] sm:$0xff]
  %v1286 = vld [vmem:[%s272 + $0x68] sm:$0xff]
  %v1287 = vld [vmem:[%s272 + $0x70] sm:$0xff]
  %v1288 = vld [vmem:[%s272 + $0x78] sm:$0xff]
  %v1289 = vld [vmem:[%s272 + $0x80] sm:$0xff]
  %v1290 = vld [vmem:[%s272 + $0x88] sm:$0xff]
  %v1291 = vld [vmem:[%s272 + $0x90] sm:$0xff]
  %v1292 = vld [vmem:[%s272 + $0x98] sm:$0xff]
  %v1293 = vld [vmem:[%s272 + $0xa0] sm:$0xff]
  %v1294 = vld [vmem:[%s272 + $0xa8] sm:$0xff]
  %v1295 = vld [vmem:[%s272 + $0xb0] sm:$0xff]
  %v1296 = vld [vmem:[%s272 + $0xb8] sm:$0xff]
  %v1297 = vld [vmem:[%s272 + $0xc0] sm:$0xff]
  %v1298 = vld [vmem:[%s272 + $0xc8] sm:$0xff]
  %v1299 = vld [vmem:[%s272 + $0xd0] sm:$0xff]
  %v1300 = vld [vmem:[%s272 + $0xd8] sm:$0xff]
  %v1301 = vld [vmem:[%s272 + $0xe0] sm:$0xff]
  %v1302 = vld [vmem:[%s272 + $0xe8] sm:$0xff]
  %v1303 = vld [vmem:[%s272 + $0xf0] sm:$0xff]
  %v1304 = vld [vmem:[%s272 + $0xf8] sm:$0xff]
  %v1305 = vld [vmem:[%s272 + $0x100] sm:$0xff]
  %v1306 = vld [vmem:[%s272 + $0x108] sm:$0xff]
  %v1307 = vld [vmem:[%s272 + $0x110] sm:$0xff]
  %v1308 = vld [vmem:[%s272 + $0x118] sm:$0xff]
  %v1309 = vld [vmem:[%s272 + $0x120] sm:$0xff]
  %v1310 = vld [vmem:[%s272 + $0x128] sm:$0xff]
  %v1311 = vld [vmem:[%s272 + $0x130] sm:$0xff]
  %v1312 = vld [vmem:[%s272 + $0x138] sm:$0xff]
  %v1313 = vld [vmem:[%s272 + $0x140] sm:$0xff]
  %v1314 = vld [vmem:[%s272 + $0x148] sm:$0xff]
  %v1315 = vld [vmem:[%s272 + $0x150] sm:$0xff]
  %v1316 = vld [vmem:[%s272 + $0x158] sm:$0xff]
  %v1317 = vld [vmem:[%s272 + $0x160] sm:$0xff]
  %v1318 = vld [vmem:[%s272 + $0x168] sm:$0xff]
  %v1319 = vld [vmem:[%s272 + $0x170] sm:$0xff]
  %v1320 = vld [vmem:[%s272 + $0x178] sm:$0xff]
  %v1321 = vld [vmem:[%s272 + $0x180] sm:$0xff]
  %v1322 = vld [vmem:[%s272 + $0x188] sm:$0xff]
  %v1323 = vld [vmem:[%s272 + $0x190] sm:$0xff]
  %v1324 = vld [vmem:[%s272 + $0x198] sm:$0xff]
  %v1325 = vld [vmem:[%s272 + $0x1a0] sm:$0xff]
  %v1326 = vld [vmem:[%s272 + $0x1a8] sm:$0xff]
  %v1327 = vld [vmem:[%s272 + $0x1b0] sm:$0xff]
  %v1328 = vld [vmem:[%s272 + $0x1b8] sm:$0xff]
  %v1329 = vld [vmem:[%s272 + $0x1c0] sm:$0xff]
  %v1330 = vld [vmem:[%s272 + $0x1c8] sm:$0xff]
  %v1331 = vld [vmem:[%s272 + $0x1d0] sm:$0xff]
  %v1332 = vld [vmem:[%s272 + $0x1d8] sm:$0xff]
  %v1333 = vld [vmem:[%s272 + $0x1e0] sm:$0xff]
  %v1334 = vld [vmem:[%s272 + $0x1e8] sm:$0xff]
  %v1335 = vld [vmem:[%s272 + $0x1f0] sm:$0xff]
  %v1336 = vld [vmem:[%s272 + $0x1f8] sm:$0xff]
  %1337 = vmatpush.msra.mxu0 %v1333
  %1338 = vmatpush.msra.mxu0 %v1329
  %1339 = vmatpush.msra.mxu0 %v1325
  %1340 = vmatpush.msra.mxu0 %v1321
  %1341 = vmatpush.msra.mxu0 %v1317
  %1342 = vmatpush.msra.mxu0 %v1313
  %1343 = vmatpush.msra.mxu0 %v1309
  %1344 = vmatpush.msra.mxu0 %v1305
  %1345 = vmatpush.msra.mxu0 %v1301
  %1346 = vmatpush.msra.mxu0 %v1297
  %1347 = vmatpush.msra.mxu0 %v1293
  %1348 = vmatpush.msra.mxu0 %v1289
  %1349 = vmatpush.msra.mxu0 %v1285
  %1350 = vmatpush.msra.mxu0 %v1281
  %1351 = vmatpush.msra.mxu0 %v1277
  %1352 = vmatpush.msra.mxu0 %v1273
  %1353 = vmatmul.f32.gmra.mxu0 %v1272
  %v1354 = vpop.f32.mrf.mxu0
  %v1355 = vadd.f32 0.0, %v1354
  %1356 = vdwg.mxu0
  %1357 = vmatpush.msra.mxu0 %v1334
  %1358 = vmatpush.msra.mxu0 %v1330
  %1359 = vmatpush.msra.mxu0 %v1326
  %1360 = vmatpush.msra.mxu0 %v1322
  %1361 = vmatpush.msra.mxu0 %v1318
  %1362 = vmatpush.msra.mxu0 %v1314
  %1363 = vmatpush.msra.mxu0 %v1310
  %1364 = vmatpush.msra.mxu0 %v1306
  %1365 = vmatpush.msra.mxu0 %v1302
  %1366 = vmatpush.msra.mxu0 %v1298
  %1367 = vmatpush.msra.mxu0 %v1294
  %1368 = vmatpush.msra.mxu0 %v1290
  %1369 = vmatpush.msra.mxu0 %v1286
  %1370 = vmatpush.msra.mxu0 %v1282
  %1371 = vmatpush.msra.mxu0 %v1278
  %1372 = vmatpush.msra.mxu0 %v1274
  %1373 = vmatmul.f32.gmra.mxu0 %v1272
  %v1374 = vpop.f32.mrf.mxu0
  %v1375 = vadd.f32 0.0, %v1374
  %1376 = vdwg.mxu0
  %1377 = vmatpush.msra.mxu0 %v1335
  %1378 = vmatpush.msra.mxu0 %v1331
  %1379 = vmatpush.msra.mxu0 %v1327
  %1380 = vmatpush.msra.mxu0 %v1323
  %1381 = vmatpush.msra.mxu0 %v1319
  %1382 = vmatpush.msra.mxu0 %v1315
  %1383 = vmatpush.msra.mxu0 %v1311
  %1384 = vmatpush.msra.mxu0 %v1307
  %1385 = vmatpush.msra.mxu0 %v1303
  %1386 = vmatpush.msra.mxu0 %v1299
  %1387 = vmatpush.msra.mxu0 %v1295
  %1388 = vmatpush.msra.mxu0 %v1291
  %1389 = vmatpush.msra.mxu0 %v1287
  %1390 = vmatpush.msra.mxu0 %v1283
  %1391 = vmatpush.msra.mxu0 %v1279
  %1392 = vmatpush.msra.mxu0 %v1275
  %1393 = vmatmul.f32.gmra.mxu0 %v1272
  %v1394 = vpop.f32.mrf.mxu0
  %v1395 = vadd.f32 0.0, %v1394
  %1396 = vdwg.mxu0
  %1397 = vmatpush.msra.mxu0 %v1336
  %1398 = vmatpush.msra.mxu0 %v1332
  %1399 = vmatpush.msra.mxu0 %v1328
  %1400 = vmatpush.msra.mxu0 %v1324
  %1401 = vmatpush.msra.mxu0 %v1320
  %1402 = vmatpush.msra.mxu0 %v1316
  %1403 = vmatpush.msra.mxu0 %v1312
  %1404 = vmatpush.msra.mxu0 %v1308
  %1405 = vmatpush.msra.mxu0 %v1304
  %1406 = vmatpush.msra.mxu0 %v1300
  %1407 = vmatpush.msra.mxu0 %v1296
  %1408 = vmatpush.msra.mxu0 %v1292
  %1409 = vmatpush.msra.mxu0 %v1288
  %1410 = vmatpush.msra.mxu0 %v1284
  %1411 = vmatpush.msra.mxu0 %v1280
  %1412 = vmatpush.msra.mxu0 %v1276
  %1413 = vmatmul.f32.gmra.mxu0 %v1272
  %v1414 = vpop.f32.mrf.mxu0
  %v1415 = vadd.f32 0.0, %v1414
  %1416 = vdwg.mxu0
  %1417 = vmatpush.msra.mxu0 %v1268
  %1418 = vmatpush.msra.mxu0 %v1264
  %1419 = vmatpush.msra.mxu0 %v1260
  %1420 = vmatpush.msra.mxu0 %v1256
  %1421 = vmatpush.msra.mxu0 %v1252
  %1422 = vmatpush.msra.mxu0 %v1248
  %1423 = vmatpush.msra.mxu0 %v1244
  %1424 = vmatpush.msra.mxu0 %v1240
  %1425 = vmatpush.msra.mxu0 %v1236
  %1426 = vmatpush.msra.mxu0 %v1232
  %1427 = vmatpush.msra.mxu0 %v1228
  %1428 = vmatpush.msra.mxu0 %v1224
  %1429 = vmatpush.msra.mxu0 %v1220
  %1430 = vmatpush.msra.mxu0 %v1216
  %1431 = vmatpush.msra.mxu0 %v1212
  %1432 = vmatpush.msra.mxu0 %v1208
  %1433 = vmatmul.f32.gmra.mxu0 %v1205
  %v1434 = vpop.f32.mrf.mxu0
  %v1435 = vadd.f32 %v1355, %v1434
  %1436 = vdwg.mxu0
  %1437 = vmatpush.msra.mxu0 %v1269
  %1438 = vmatpush.msra.mxu0 %v1265
  %1439 = vmatpush.msra.mxu0 %v1261
  %1440 = vmatpush.msra.mxu0 %v1257
  %1441 = vmatpush.msra.mxu0 %v1253
  %1442 = vmatpush.msra.mxu0 %v1249
  %1443 = vmatpush.msra.mxu0 %v1245
  %1444 = vmatpush.msra.mxu0 %v1241
  %1445 = vmatpush.msra.mxu0 %v1237
  %1446 = vmatpush.msra.mxu0 %v1233
  %1447 = vmatpush.msra.mxu0 %v1229
  %1448 = vmatpush.msra.mxu0 %v1225
  %1449 = vmatpush.msra.mxu0 %v1221
  %1450 = vmatpush.msra.mxu0 %v1217
  %1451 = vmatpush.msra.mxu0 %v1213
  %1452 = vmatpush.msra.mxu0 %v1209
  %1453 = vmatmul.f32.gmra.mxu0 %v1205
  %v1454 = vpop.f32.mrf.mxu0
  %v1455 = vadd.f32 %v1375, %v1454
  %1456 = vdwg.mxu0
  %1457 = vmatpush.msra.mxu0 %v1270
  %1458 = vmatpush.msra.mxu0 %v1266
  %1459 = vmatpush.msra.mxu0 %v1262
  %1460 = vmatpush.msra.mxu0 %v1258
  %1461 = vmatpush.msra.mxu0 %v1254
  %1462 = vmatpush.msra.mxu0 %v1250
  %1463 = vmatpush.msra.mxu0 %v1246
  %1464 = vmatpush.msra.mxu0 %v1242
  %1465 = vmatpush.msra.mxu0 %v1238
  %1466 = vmatpush.msra.mxu0 %v1234
  %1467 = vmatpush.msra.mxu0 %v1230
  %1468 = vmatpush.msra.mxu0 %v1226
  %1469 = vmatpush.msra.mxu0 %v1222
  %1470 = vmatpush.msra.mxu0 %v1218
  %1471 = vmatpush.msra.mxu0 %v1214
  %1472 = vmatpush.msra.mxu0 %v1210
  %1473 = vmatmul.f32.gmra.mxu0 %v1205
  %v1474 = vpop.f32.mrf.mxu0
  %v1475 = vadd.f32 %v1395, %v1474
  %1476 = vdwg.mxu0
  %1477 = vmatpush.msra.mxu0 %v1271
  %1478 = vmatpush.msra.mxu0 %v1267
  %1479 = vmatpush.msra.mxu0 %v1263
  %1480 = vmatpush.msra.mxu0 %v1259
  %1481 = vmatpush.msra.mxu0 %v1255
  %1482 = vmatpush.msra.mxu0 %v1251
  %1483 = vmatpush.msra.mxu0 %v1247
  %1484 = vmatpush.msra.mxu0 %v1243
  %1485 = vmatpush.msra.mxu0 %v1239
  %1486 = vmatpush.msra.mxu0 %v1235
  %1487 = vmatpush.msra.mxu0 %v1231
  %1488 = vmatpush.msra.mxu0 %v1227
  %1489 = vmatpush.msra.mxu0 %v1223
  %1490 = vmatpush.msra.mxu0 %v1219
  %1491 = vmatpush.msra.mxu0 %v1215
  %1492 = vmatpush.msra.mxu0 %v1211
  %1493 = vmatmul.f32.gmra.mxu0 %v1205
  %v1494 = vpop.f32.mrf.mxu0
  %v1495 = vadd.f32 %v1415, %v1494
  %1496 = vdwg.mxu0
  %v1497 = vld [vmem:[%s497] sm:$0xf]
  %v1499 = vperm.slane %v1497, 0
  %v1500 = vperm.slane %v1497, 1
  %v1501 = vperm.slane %v1497, 2
  %v1502 = vperm.slane %v1497, 3
  %v1507 = vadd.f32 %v1435, %v1499
  %v1508 = vadd.f32 %v1455, %v1500
  %v1509 = vadd.f32 %v1475, %v1501
  %v1510 = vadd.f32 %v1495, %v1502
  %v1511 = vmul.f32 %v1507, 0.5
  %v1512 = vtanh.pop %v1511
  %v1513 = vmul.f32 %v1512, 0.5
  %v1514 = vadd.f32 %v1513, 0.5
  %v1515 = vmul.f32 %v1508, 0.5
  %v1516 = vtanh.pop %v1515
  %v1517 = vmul.f32 %v1516, 0.5
  %v1518 = vadd.f32 %v1517, 0.5
  %v1519 = vtanh.pop %v1509
  %v1520 = vmul.f32 %v1510, 0.5
  %v1521 = vtanh.pop %v1520
  %v1522 = vmul.f32 %v1521, 0.5
  %v1523 = vadd.f32 %v1522, 0.5
  %v1524 = vld [vmem:[%s525] sm:$0xff]
  %v1525 = vmul.f32 %v1518, %v1524
  %v1526 = vmul.f32 %v1514, %v1519
  %v1527 = vadd.f32 %v1525, %v1526
  %v1528 = vtanh.pop %v1527
  %v1529 = vmul.f32 %v1523, %v1528
  %1530 = vst [vmem:[%s525] sm:$0xff] %v1527
  %1531 = vst [vmem:[%s270] sm:$0xff] %v1529
  %s1532 = scalar_lea.vmem %s0, 96
  %v1533 = vld [vmem:[%s1532] sm:$0xff]
  %v1534 = vld [vmem:[%s1532 + $0x8] sm:$0xff]
  %v1535 = vld [vmem:[%s1532 + $0x10] sm:$0xff]
  %v1536 = vld [vmem:[%s1532 + $0x18] sm:$0xff]
  %v1537 = vld [vmem:[#allocation2] sm:$0xff]
  %v1538 = vld [vmem:[%s2] sm:$0xff]
  %v1539 = vld [vmem:[%s2 + $0x8] sm:$0xff]
  %v1540 = vld [vmem:[%s2 + $0x10] sm:$0xff]
  %v1541 = vld [vmem:[%s2 + $0x18] sm:$0xff]
  %v1542 = vld [vmem:[%s2 + $0x20] sm:$0xff]
  %v1543 = vld [vmem:[%s2 + $0x28] sm:$0xff]
  %v1544 = vld [vmem:[%s2 + $0x30] sm:$0xff]
  %v1545 = vld [vmem:[%s2 + $0x38] sm:$0xff]
  %v1546 = vld [vmem:[%s2 + $0x40] sm:$0xff]
  %v1547 = vld [vmem:[%s2 + $0x48] sm:$0xff]
  %v1548 = vld [vmem:[%s2 + $0x50] sm:$0xff]
  %v1549 = vld [vmem:[%s2 + $0x58] sm:$0xff]
  %v1550 = vld [vmem:[%s2 + $0x60] sm:$0xff]
  %v1551 = vld [vmem:[%s2 + $0x68] sm:$0xff]
  %v1552 = vld [vmem:[%s2 + $0x70] sm:$0xff]
  %v1553 = vld [vmem:[%s2 + $0x78] sm:$0xff]
  %v1554 = vld [vmem:[%s2 + $0x80] sm:$0xff]
  %v1555 = vld [vmem:[%s2 + $0x88] sm:$0xff]
  %v1556 = vld [vmem:[%s2 + $0x90] sm:$0xff]
  %v1557 = vld [vmem:[%s2 + $0x98] sm:$0xff]
  %v1558 = vld [vmem:[%s2 + $0xa0] sm:$0xff]
  %v1559 = vld [vmem:[%s2 + $0xa8] sm:$0xff]
  %v1560 = vld [vmem:[%s2 + $0xb0] sm:$0xff]
  %v1561 = vld [vmem:[%s2 + $0xb8] sm:$0xff]
  %v1562 = vld [vmem:[%s2 + $0xc0] sm:$0xff]
  %v1563 = vld [vmem:[%s2 + $0xc8] sm:$0xff]
  %v1564 = vld [vmem:[%s2 + $0xd0] sm:$0xff]
  %v1565 = vld [vmem:[%s2 + $0xd8] sm:$0xff]
  %v1566 = vld [vmem:[%s2 + $0xe0] sm:$0xff]
  %v1567 = vld [vmem:[%s2 + $0xe8] sm:$0xff]
  %v1568 = vld [vmem:[%s2 + $0xf0] sm:$0xff]
  %v1569 = vld [vmem:[%s2 + $0xf8] sm:$0xff]
  %v1570 = vld [vmem:[%s2 + $0x100] sm:$0xff]
  %v1571 = vld [vmem:[%s2 + $0x108] sm:$0xff]
  %v1572 = vld [vmem:[%s2 + $0x110] sm:$0xff]
  %v1573 = vld [vmem:[%s2 + $0x118] sm:$0xff]
  %v1574 = vld [vmem:[%s2 + $0x120] sm:$0xff]
  %v1575 = vld [vmem:[%s2 + $0x128] sm:$0xff]
  %v1576 = vld [vmem:[%s2 + $0x130] sm:$0xff]
  %v1577 = vld [vmem:[%s2 + $0x138] sm:$0xff]
  %v1578 = vld [vmem:[%s2 + $0x140] sm:$0xff]
  %v1579 = vld [vmem:[%s2 + $0x148] sm:$0xff]
  %v1580 = vld [vmem:[%s2 + $0x150] sm:$0xff]
  %v1581 = vld [vmem:[%s2 + $0x158] sm:$0xff]
  %v1582 = vld [vmem:[%s2 + $0x160] sm:$0xff]
  %v1583 = vld [vmem:[%s2 + $0x168] sm:$0xff]
  %v1584 = vld [vmem:[%s2 + $0x170] sm:$0xff]
  %v1585 = vld [vmem:[%s2 + $0x178] sm:$0xff]
  %v1586 = vld [vmem:[%s2 + $0x180] sm:$0xff]
  %v1587 = vld [vmem:[%s2 + $0x188] sm:$0xff]
  %v1588 = vld [vmem:[%s2 + $0x190] sm:$0xff]
  %v1589 = vld [vmem:[%s2 + $0x198] sm:$0xff]
  %v1590 = vld [vmem:[%s2 + $0x1a0] sm:$0xff]
  %v1591 = vld [vmem:[%s2 + $0x1a8] sm:$0xff]
  %v1592 = vld [vmem:[%s2 + $0x1b0] sm:$0xff]
  %v1593 = vld [vmem:[%s2 + $0x1b8] sm:$0xff]
  %v1594 = vld [vmem:[%s2 + $0x1c0] sm:$0xff]
  %v1595 = vld [vmem:[%s2 + $0x1c8] sm:$0xff]
  %v1596 = vld [vmem:[%s2 + $0x1d0] sm:$0xff]
  %v1597 = vld [vmem:[%s2 + $0x1d8] sm:$0xff]
  %v1598 = vld [vmem:[%s2 + $0x1e0] sm:$0xff]
  %v1599 = vld [vmem:[%s2 + $0x1e8] sm:$0xff]
  %v1600 = vld [vmem:[%s2 + $0x1f0] sm:$0xff]
  %v1601 = vld [vmem:[%s2 + $0x1f8] sm:$0xff]
  %1602 = vmatpush.msra.mxu0 %v1598
  %1603 = vmatpush.msra.mxu0 %v1594
  %1604 = vmatpush.msra.mxu0 %v1590
  %1605 = vmatpush.msra.mxu0 %v1586
  %1606 = vmatpush.msra.mxu0 %v1582
  %1607 = vmatpush.msra.mxu0 %v1578
  %1608 = vmatpush.msra.mxu0 %v1574
  %1609 = vmatpush.msra.mxu0 %v1570
  %1610 = vmatpush.msra.mxu0 %v1566
  %1611 = vmatpush.msra.mxu0 %v1562
  %1612 = vmatpush.msra.mxu0 %v1558
  %1613 = vmatpush.msra.mxu0 %v1554
  %1614 = vmatpush.msra.mxu0 %v1550
  %1615 = vmatpush.msra.mxu0 %v1546
  %1616 = vmatpush.msra.mxu0 %v1542
  %1617 = vmatpush.msra.mxu0 %v1538
  %1618 = vmatmul.f32.gmra.mxu0 %v1537
  %v1619 = vpop.f32.mrf.mxu0
  %v1620 = vadd.f32 0.0, %v1619
  %1621 = vdwg.mxu0
  %1622 = vmatpush.msra.mxu0 %v1599
  %1623 = vmatpush.msra.mxu0 %v1595
  %1624 = vmatpush.msra.mxu0 %v1591
  %1625 = vmatpush.msra.mxu0 %v1587
  %1626 = vmatpush.msra.mxu0 %v1583
  %1627 = vmatpush.msra.mxu0 %v1579
  %1628 = vmatpush.msra.mxu0 %v1575
  %1629 = vmatpush.msra.mxu0 %v1571
  %1630 = vmatpush.msra.mxu0 %v1567
  %1631 = vmatpush.msra.mxu0 %v1563
  %1632 = vmatpush.msra.mxu0 %v1559
  %1633 = vmatpush.msra.mxu0 %v1555
  %1634 = vmatpush.msra.mxu0 %v1551
  %1635 = vmatpush.msra.mxu0 %v1547
  %1636 = vmatpush.msra.mxu0 %v1543
  %1637 = vmatpush.msra.mxu0 %v1539
  %1638 = vmatmul.f32.gmra.mxu0 %v1537
  %v1639 = vpop.f32.mrf.mxu0
  %v1640 = vadd.f32 0.0, %v1639
  %1641 = vdwg.mxu0
  %1642 = vmatpush.msra.mxu0 %v1600
  %1643 = vmatpush.msra.mxu0 %v1596
  %1644 = vmatpush.msra.mxu0 %v1592
  %1645 = vmatpush.msra.mxu0 %v1588
  %1646 = vmatpush.msra.mxu0 %v1584
  %1647 = vmatpush.msra.mxu0 %v1580
  %1648 = vmatpush.msra.mxu0 %v1576
  %1649 = vmatpush.msra.mxu0 %v1572
  %1650 = vmatpush.msra.mxu0 %v1568
  %1651 = vmatpush.msra.mxu0 %v1564
  %1652 = vmatpush.msra.mxu0 %v1560
  %1653 = vmatpush.msra.mxu0 %v1556
  %1654 = vmatpush.msra.mxu0 %v1552
  %1655 = vmatpush.msra.mxu0 %v1548
  %1656 = vmatpush.msra.mxu0 %v1544
  %1657 = vmatpush.msra.mxu0 %v1540
  %1658 = vmatmul.f32.gmra.mxu0 %v1537
  %v1659 = vpop.f32.mrf.mxu0
  %v1660 = vadd.f32 0.0, %v1659
  %1661 = vdwg.mxu0
  %1662 = vmatpush.msra.mxu0 %v1601
  %1663 = vmatpush.msra.mxu0 %v1597
  %1664 = vmatpush.msra.mxu0 %v1593
  %1665 = vmatpush.msra.mxu0 %v1589
  %1666 = vmatpush.msra.mxu0 %v1585
  %1667 = vmatpush.msra.mxu0 %v1581
  %1668 = vmatpush.msra.mxu0 %v1577
  %1669 = vmatpush.msra.mxu0 %v1573
  %1670 = vmatpush.msra.mxu0 %v1569
  %1671 = vmatpush.msra.mxu0 %v1565
  %1672 = vmatpush.msra.mxu0 %v1561
  %1673 = vmatpush.msra.mxu0 %v1557
  %1674 = vmatpush.msra.mxu0 %v1553
  %1675 = vmatpush.msra.mxu0 %v1549
  %1676 = vmatpush.msra.mxu0 %v1545
  %1677 = vmatpush.msra.mxu0 %v1541
  %1678 = vmatmul.f32.gmra.mxu0 %v1537
  %v1679 = vpop.f32.mrf.mxu0
  %v1680 = vadd.f32 0.0, %v1679
  %1681 = vdwg.mxu0
  %v1682 = vadd.f32 %v1533, %v1620
  %v1683 = vadd.f32 %v1534, %v1640
  %v1684 = vadd.f32 %v1535, %v1660
  %v1685 = vadd.f32 %v1536, %v1680
  %v1686 = vmul.f32 %v1682, 0.5
  %v1687 = vtanh.pop %v1686
  %v1688 = vmul.f32 %v1687, 0.5
  %v1689 = vadd.f32 %v1688, 0.5
  %v1690 = vmul.f32 %v1683, 0.5
  %v1691 = vtanh.pop %v1690
  %v1692 = vmul.f32 %v1691, 0.5
  %v1693 = vadd.f32 %v1692, 0.5
  %v1694 = vtanh.pop %v1684
  %v1695 = vmul.f32 %v1685, 0.5
  %v1696 = vtanh.pop %v1695
  %v1697 = vmul.f32 %v1696, 0.5
  %v1698 = vadd.f32 %v1697, 0.5
  %v1699 = vld [vmem:[#allocation3] sm:$0xff]
  %v1700 = vmul.f32 %v1693, %v1699
  %v1701 = vmul.f32 %v1689, %v1694
  %v1702 = vadd.f32 %v1700, %v1701
  %v1703 = vtanh.pop %v1702
  %v1704 = vmul.f32 %v1698, %v1703
  %1705 = vst [vmem:[#allocation3] sm:$0xff] %v1702
  %1706 = vst [vmem:[#allocation2] sm:$0xff] %v1704
  %v1707 = vld [vmem:[%s205] sm:$0xff]
  %v1708 = vld [vmem:[%s205 + $0x8] sm:$0xff]
  %v1709 = vld [vmem:[%s205 + $0x10] sm:$0xff]
  %v1710 = vld [vmem:[%s205 + $0x18] sm:$0xff]
  %v1711 = vld [vmem:[%s205 + $0x20] sm:$0xff]
  %v1712 = vld [vmem:[%s205 + $0x28] sm:$0xff]
  %v1713 = vld [vmem:[%s205 + $0x30] sm:$0xff]
  %v1714 = vld [vmem:[%s205 + $0x38] sm:$0xff]
  %v1715 = vld [vmem:[%s205 + $0x40] sm:$0xff]
  %v1716 = vld [vmem:[%s205 + $0x48] sm:$0xff]
  %v1717 = vld [vmem:[%s205 + $0x50] sm:$0xff]
  %v1718 = vld [vmem:[%s205 + $0x58] sm:$0xff]
  %v1719 = vld [vmem:[%s205 + $0x60] sm:$0xff]
  %v1720 = vld [vmem:[%s205 + $0x68] sm:$0xff]
  %v1721 = vld [vmem:[%s205 + $0x70] sm:$0xff]
  %v1722 = vld [vmem:[%s205 + $0x78] sm:$0xff]
  %v1723 = vld [vmem:[%s205 + $0x80] sm:$0xff]
  %v1724 = vld [vmem:[%s205 + $0x88] sm:$0xff]
  %v1725 = vld [vmem:[%s205 + $0x90] sm:$0xff]
  %v1726 = vld [vmem:[%s205 + $0x98] sm:$0xff]
  %v1727 = vld [vmem:[%s205 + $0xa0] sm:$0xff]
  %v1728 = vld [vmem:[%s205 + $0xa8] sm:$0xff]
  %v1729 = vld [vmem:[%s205 + $0xb0] sm:$0xff]
  %v1730 = vld [vmem:[%s205 + $0xb8] sm:$0xff]
  %v1731 = vld [vmem:[%s205 + $0xc0] sm:$0xff]
  %v1732 = vld [vmem:[%s205 + $0xc8] sm:$0xff]
  %v1733 = vld [vmem:[%s205 + $0xd0] sm:$0xff]
  %v1734 = vld [vmem:[%s205 + $0xd8] sm:$0xff]
  %v1735 = vld [vmem:[%s205 + $0xe0] sm:$0xff]
  %v1736 = vld [vmem:[%s205 + $0xe8] sm:$0xff]
  %v1737 = vld [vmem:[%s205 + $0xf0] sm:$0xff]
  %v1738 = vld [vmem:[%s205 + $0xf8] sm:$0xff]
  %v1739 = vld [vmem:[%s205 + $0x100] sm:$0xff]
  %v1740 = vld [vmem:[%s205 + $0x108] sm:$0xff]
  %v1741 = vld [vmem:[%s205 + $0x110] sm:$0xff]
  %v1742 = vld [vmem:[%s205 + $0x118] sm:$0xff]
  %v1743 = vld [vmem:[%s205 + $0x120] sm:$0xff]
  %v1744 = vld [vmem:[%s205 + $0x128] sm:$0xff]
  %v1745 = vld [vmem:[%s205 + $0x130] sm:$0xff]
  %v1746 = vld [vmem:[%s205 + $0x138] sm:$0xff]
  %v1747 = vld [vmem:[%s205 + $0x140] sm:$0xff]
  %v1748 = vld [vmem:[%s205 + $0x148] sm:$0xff]
  %v1749 = vld [vmem:[%s205 + $0x150] sm:$0xff]
  %v1750 = vld [vmem:[%s205 + $0x158] sm:$0xff]
  %v1751 = vld [vmem:[%s205 + $0x160] sm:$0xff]
  %v1752 = vld [vmem:[%s205 + $0x168] sm:$0xff]
  %v1753 = vld [vmem:[%s205 + $0x170] sm:$0xff]
  %v1754 = vld [vmem:[%s205 + $0x178] sm:$0xff]
  %v1755 = vld [vmem:[%s205 + $0x180] sm:$0xff]
  %v1756 = vld [vmem:[%s205 + $0x188] sm:$0xff]
  %v1757 = vld [vmem:[%s205 + $0x190] sm:$0xff]
  %v1758 = vld [vmem:[%s205 + $0x198] sm:$0xff]
  %v1759 = vld [vmem:[%s205 + $0x1a0] sm:$0xff]
  %v1760 = vld [vmem:[%s205 + $0x1a8] sm:$0xff]
  %v1761 = vld [vmem:[%s205 + $0x1b0] sm:$0xff]
  %v1762 = vld [vmem:[%s205 + $0x1b8] sm:$0xff]
  %v1763 = vld [vmem:[%s205 + $0x1c0] sm:$0xff]
  %v1764 = vld [vmem:[%s205 + $0x1c8] sm:$0xff]
  %v1765 = vld [vmem:[%s205 + $0x1d0] sm:$0xff]
  %v1766 = vld [vmem:[%s205 + $0x1d8] sm:$0xff]
  %v1767 = vld [vmem:[%s205 + $0x1e0] sm:$0xff]
  %v1768 = vld [vmem:[%s205 + $0x1e8] sm:$0xff]
  %v1769 = vld [vmem:[%s205 + $0x1f0] sm:$0xff]
  %v1770 = vld [vmem:[%s205 + $0x1f8] sm:$0xff]
  %v1771 = vld [vmem:[%s270] sm:$0xff]
  %v1772 = vld [vmem:[%s272] sm:$0xff]
  %v1773 = vld [vmem:[%s272 + $0x8] sm:$0xff]
  %v1774 = vld [vmem:[%s272 + $0x10] sm:$0xff]
  %v1775 = vld [vmem:[%s272 + $0x18] sm:$0xff]
  %v1776 = vld [vmem:[%s272 + $0x20] sm:$0xff]
  %v1777 = vld [vmem:[%s272 + $0x28] sm:$0xff]
  %v1778 = vld [vmem:[%s272 + $0x30] sm:$0xff]
  %v1779 = vld [vmem:[%s272 + $0x38] sm:$0xff]
  %v1780 = vld [vmem:[%s272 + $0x40] sm:$0xff]
  %v1781 = vld [vmem:[%s272 + $0x48] sm:$0xff]
  %v1782 = vld [vmem:[%s272 + $0x50] sm:$0xff]
  %v1783 = vld [vmem:[%s272 + $0x58] sm:$0xff]
  %v1784 = vld [vmem:[%s272 + $0x60] sm:$0xff]
  %v1785 = vld [vmem:[%s272 + $0x68] sm:$0xff]
  %v1786 = vld [vmem:[%s272 + $0x70] sm:$0xff]
  %v1787 = vld [vmem:[%s272 + $0x78] sm:$0xff]
  %v1788 = vld [vmem:[%s272 + $0x80] sm:$0xff]
  %v1789 = vld [vmem:[%s272 + $0x88] sm:$0xff]
  %v1790 = vld [vmem:[%s272 + $0x90] sm:$0xff]
  %v1791 = vld [vmem:[%s272 + $0x98] sm:$0xff]
  %v1792 = vld [vmem:[%s272 + $0xa0] sm:$0xff]
  %v1793 = vld [vmem:[%s272 + $0xa8] sm:$0xff]
  %v1794 = vld [vmem:[%s272 + $0xb0] sm:$0xff]
  %v1795 = vld [vmem:[%s272 + $0xb8] sm:$0xff]
  %v1796 = vld [vmem:[%s272 + $0xc0] sm:$0xff]
  %v1797 = vld [vmem:[%s272 + $0xc8] sm:$0xff]
  %v1798 = vld [vmem:[%s272 + $0xd0] sm:$0xff]
  %v1799 = vld [vmem:[%s272 + $0xd8] sm:$0xff]
  %v1800 = vld [vmem:[%s272 + $0xe0] sm:$0xff]
  %v1801 = vld [vmem:[%s272 + $0xe8] sm:$0xff]
  %v1802 = vld [vmem:[%s272 + $0xf0] sm:$0xff]
  %v1803 = vld [vmem:[%s272 + $0xf8] sm:$0xff]
  %v1804 = vld [vmem:[%s272 + $0x100] sm:$0xff]
  %v1805 = vld [vmem:[%s272 + $0x108] sm:$0xff]
  %v1806 = vld [vmem:[%s272 + $0x110] sm:$0xff]
  %v1807 = vld [vmem:[%s272 + $0x118] sm:$0xff]
  %v1808 = vld [vmem:[%s272 + $0x120] sm:$0xff]
  %v1809 = vld [vmem:[%s272 + $0x128] sm:$0xff]
  %v1810 = vld [vmem:[%s272 + $0x130] sm:$0xff]
  %v1811 = vld [vmem:[%s272 + $0x138] sm:$0xff]
  %v1812 = vld [vmem:[%s272 + $0x140] sm:$0xff]
  %v1813 = vld [vmem:[%s272 + $0x148] sm:$0xff]
  %v1814 = vld [vmem:[%s272 + $0x150] sm:$0xff]
  %v1815 = vld [vmem:[%s272 + $0x158] sm:$0xff]
  %v1816 = vld [vmem:[%s272 + $0x160] sm:$0xff]
  %v1817 = vld [vmem:[%s272 + $0x168] sm:$0xff]
  %v1818 = vld [vmem:[%s272 + $0x170] sm:$0xff]
  %v1819 = vld [vmem:[%s272 + $0x178] sm:$0xff]
  %v1820 = vld [vmem:[%s272 + $0x180] sm:$0xff]
  %v1821 = vld [vmem:[%s272 + $0x188] sm:$0xff]
  %v1822 = vld [vmem:[%s272 + $0x190] sm:$0xff]
  %v1823 = vld [vmem:[%s272 + $0x198] sm:$0xff]
  %v1824 = vld [vmem:[%s272 + $0x1a0] sm:$0xff]
  %v1825 = vld [vmem:[%s272 + $0x1a8] sm:$0xff]
  %v1826 = vld [vmem:[%s272 + $0x1b0] sm:$0xff]
  %v1827 = vld [vmem:[%s272 + $0x1b8] sm:$0xff]
  %v1828 = vld [vmem:[%s272 + $0x1c0] sm:$0xff]
  %v1829 = vld [vmem:[%s272 + $0x1c8] sm:$0xff]
  %v1830 = vld [vmem:[%s272 + $0x1d0] sm:$0xff]
  %v1831 = vld [vmem:[%s272 + $0x1d8] sm:$0xff]
  %v1832 = vld [vmem:[%s272 + $0x1e0] sm:$0xff]
  %v1833 = vld [vmem:[%s272 + $0x1e8] sm:$0xff]
  %v1834 = vld [vmem:[%s272 + $0x1f0] sm:$0xff]
  %v1835 = vld [vmem:[%s272 + $0x1f8] sm:$0xff]
  %1836 = vmatpush.msra.mxu0 %v1832
  %1837 = vmatpush.msra.mxu0 %v1828
  %1838 = vmatpush.msra.mxu0 %v1824
  %1839 = vmatpush.msra.mxu0 %v1820
  %1840 = vmatpush.msra.mxu0 %v1816
  %1841 = vmatpush.msra.mxu0 %v1812
  %1842 = vmatpush.msra.mxu0 %v1808
  %1843 = vmatpush.msra.mxu0 %v1804
  %1844 = vmatpush.msra.mxu0 %v1800
  %1845 = vmatpush.msra.mxu0 %v1796
  %1846 = vmatpush.msra.mxu0 %v1792
  %1847 = vmatpush.msra.mxu0 %v1788
  %1848 = vmatpush.msra.mxu0 %v1784
  %1849 = vmatpush.msra.mxu0 %v1780
  %1850 = vmatpush.msra.mxu0 %v1776
  %1851 = vmatpush.msra.mxu0 %v1772
  %1852 = vmatmul.f32.gmra.mxu0 %v1771
  %v1853 = vpop.f32.mrf.mxu0
  %v1854 = vadd.f32 0.0, %v1853
  %1855 = vdwg.mxu0
  %1856 = vmatpush.msra.mxu0 %v1833
  %1857 = vmatpush.msra.mxu0 %v1829
  %1858 = vmatpush.msra.mxu0 %v1825
  %1859 = vmatpush.msra.mxu0 %v1821
  %1860 = vmatpush.msra.mxu0 %v1817
  %1861 = vmatpush.msra.mxu0 %v1813
  %1862 = vmatpush.msra.mxu0 %v1809
  %1863 = vmatpush.msra.mxu0 %v1805
  %1864 = vmatpush.msra.mxu0 %v1801
  %1865 = vmatpush.msra.mxu0 %v1797
  %1866 = vmatpush.msra.mxu0 %v1793
  %1867 = vmatpush.msra.mxu0 %v1789
  %1868 = vmatpush.msra.mxu0 %v1785
  %1869 = vmatpush.msra.mxu0 %v1781
  %1870 = vmatpush.msra.mxu0 %v1777
  %1871 = vmatpush.msra.mxu0 %v1773
  %1872 = vmatmul.f32.gmra.mxu0 %v1771
  %v1873 = vpop.f32.mrf.mxu0
  %v1874 = vadd.f32 0.0, %v1873
  %1875 = vdwg.mxu0
  %1876 = vmatpush.msra.mxu0 %v1834
  %1877 = vmatpush.msra.mxu0 %v1830
  %1878 = vmatpush.msra.mxu0 %v1826
  %1879 = vmatpush.msra.mxu0 %v1822
  %1880 = vmatpush.msra.mxu0 %v1818
  %1881 = vmatpush.msra.mxu0 %v1814
  %1882 = vmatpush.msra.mxu0 %v1810
  %1883 = vmatpush.msra.mxu0 %v1806
  %1884 = vmatpush.msra.mxu0 %v1802
  %1885 = vmatpush.msra.mxu0 %v1798
  %1886 = vmatpush.msra.mxu0 %v1794
  %1887 = vmatpush.msra.mxu0 %v1790
  %1888 = vmatpush.msra.mxu0 %v1786
  %1889 = vmatpush.msra.mxu0 %v1782
  %1890 = vmatpush.msra.mxu0 %v1778
  %1891 = vmatpush.msra.mxu0 %v1774
  %1892 = vmatmul.f32.gmra.mxu0 %v1771
  %v1893 = vpop.f32.mrf.mxu0
  %v1894 = vadd.f32 0.0, %v1893
  %1895 = vdwg.mxu0
  %1896 = vmatpush.msra.mxu0 %v1835
  %1897 = vmatpush.msra.mxu0 %v1831
  %1898 = vmatpush.msra.mxu0 %v1827
  %1899 = vmatpush.msra.mxu0 %v1823
  %1900 = vmatpush.msra.mxu0 %v1819
  %1901 = vmatpush.msra.mxu0 %v1815
  %1902 = vmatpush.msra.mxu0 %v1811
  %1903 = vmatpush.msra.mxu0 %v1807
  %1904 = vmatpush.msra.mxu0 %v1803
  %1905 = vmatpush.msra.mxu0 %v1799
  %1906 = vmatpush.msra.mxu0 %v1795
  %1907 = vmatpush.msra.mxu0 %v1791
  %1908 = vmatpush.msra.mxu0 %v1787
  %1909 = vmatpush.msra.mxu0 %v1783
  %1910 = vmatpush.msra.mxu0 %v1779
  %1911 = vmatpush.msra.mxu0 %v1775
  %1912 = vmatmul.f32.gmra.mxu0 %v1771
  %v1913 = vpop.f32.mrf.mxu0
  %v1914 = vadd.f32 0.0, %v1913
  %1915 = vdwg.mxu0
  %1916 = vmatpush.msra.mxu0 %v1767
  %1917 = vmatpush.msra.mxu0 %v1763
  %1918 = vmatpush.msra.mxu0 %v1759
  %1919 = vmatpush.msra.mxu0 %v1755
  %1920 = vmatpush.msra.mxu0 %v1751
  %1921 = vmatpush.msra.mxu0 %v1747
  %1922 = vmatpush.msra.mxu0 %v1743
  %1923 = vmatpush.msra.mxu0 %v1739
  %1924 = vmatpush.msra.mxu0 %v1735
  %1925 = vmatpush.msra.mxu0 %v1731
  %1926 = vmatpush.msra.mxu0 %v1727
  %1927 = vmatpush.msra.mxu0 %v1723
  %1928 = vmatpush.msra.mxu0 %v1719
  %1929 = vmatpush.msra.mxu0 %v1715
  %1930 = vmatpush.msra.mxu0 %v1711
  %1931 = vmatpush.msra.mxu0 %v1707
  %1932 = vmatmul.f32.gmra.mxu0 %v1704
  %v1933 = vpop.f32.mrf.mxu0
  %v1934 = vadd.f32 %v1854, %v1933
  %1935 = vdwg.mxu0
  %1936 = vmatpush.msra.mxu0 %v1768
  %1937 = vmatpush.msra.mxu0 %v1764
  %1938 = vmatpush.msra.mxu0 %v1760
  %1939 = vmatpush.msra.mxu0 %v1756
  %1940 = vmatpush.msra.mxu0 %v1752
  %1941 = vmatpush.msra.mxu0 %v1748
  %1942 = vmatpush.msra.mxu0 %v1744
  %1943 = vmatpush.msra.mxu0 %v1740
  %1944 = vmatpush.msra.mxu0 %v1736
  %1945 = vmatpush.msra.mxu0 %v1732
  %1946 = vmatpush.msra.mxu0 %v1728
  %1947 = vmatpush.msra.mxu0 %v1724
  %1948 = vmatpush.msra.mxu0 %v1720
  %1949 = vmatpush.msra.mxu0 %v1716
  %1950 = vmatpush.msra.mxu0 %v1712
  %1951 = vmatpush.msra.mxu0 %v1708
  %1952 = vmatmul.f32.gmra.mxu0 %v1704
  %v1953 = vpop.f32.mrf.mxu0
  %v1954 = vadd.f32 %v1874, %v1953
  %1955 = vdwg.mxu0
  %1956 = vmatpush.msra.mxu0 %v1769
  %1957 = vmatpush.msra.mxu0 %v1765
  %1958 = vmatpush.msra.mxu0 %v1761
  %1959 = vmatpush.msra.mxu0 %v1757
  %1960 = vmatpush.msra.mxu0 %v1753
  %1961 = vmatpush.msra.mxu0 %v1749
  %1962 = vmatpush.msra.mxu0 %v1745
  %1963 = vmatpush.msra.mxu0 %v1741
  %1964 = vmatpush.msra.mxu0 %v1737
  %1965 = vmatpush.msra.mxu0 %v1733
  %1966 = vmatpush.msra.mxu0 %v1729
  %1967 = vmatpush.msra.mxu0 %v1725
  %1968 = vmatpush.msra.mxu0 %v1721
  %1969 = vmatpush.msra.mxu0 %v1717
  %1970 = vmatpush.msra.mxu0 %v1713
  %1971 = vmatpush.msra.mxu0 %v1709
  %1972 = vmatmul.f32.gmra.mxu0 %v1704
  %v1973 = vpop.f32.mrf.mxu0
  %v1974 = vadd.f32 %v1894, %v1973
  %1975 = vdwg.mxu0
  %1976 = vmatpush.msra.mxu0 %v1770
  %1977 = vmatpush.msra.mxu0 %v1766
  %1978 = vmatpush.msra.mxu0 %v1762
  %1979 = vmatpush.msra.mxu0 %v1758
  %1980 = vmatpush.msra.mxu0 %v1754
  %1981 = vmatpush.msra.mxu0 %v1750
  %1982 = vmatpush.msra.mxu0 %v1746
  %1983 = vmatpush.msra.mxu0 %v1742
  %1984 = vmatpush.msra.mxu0 %v1738
  %1985 = vmatpush.msra.mxu0 %v1734
  %1986 = vmatpush.msra.mxu0 %v1730
  %1987 = vmatpush.msra.mxu0 %v1726
  %1988 = vmatpush.msra.mxu0 %v1722
  %1989 = vmatpush.msra.mxu0 %v1718
  %1990 = vmatpush.msra.mxu0 %v1714
  %1991 = vmatpush.msra.mxu0 %v1710
  %1992 = vmatmul.f32.gmra.mxu0 %v1704
  %v1993 = vpop.f32.mrf.mxu0
  %v1994 = vadd.f32 %v1914, %v1993
  %1995 = vdwg.mxu0
  %v1996 = vld [vmem:[%s497] sm:$0xf]
  %v1998 = vperm.slane %v1996, 0
  %v1999 = vperm.slane %v1996, 1
  %v2000 = vperm.slane %v1996, 2
  %v2001 = vperm.slane %v1996, 3
  %v2006 = vadd.f32 %v1934, %v1998
  %v2007 = vadd.f32 %v1954, %v1999
  %v2008 = vadd.f32 %v1974, %v2000
  %v2009 = vadd.f32 %v1994, %v2001
  %v2010 = vmul.f32 %v2006, 0.5
  %v2011 = vtanh.pop %v2010
  %v2012 = vmul.f32 %v2011, 0.5
  %v2013 = vadd.f32 %v2012, 0.5
  %v2014 = vmul.f32 %v2007, 0.5
  %v2015 = vtanh.pop %v2014
  %v2016 = vmul.f32 %v2015, 0.5
  %v2017 = vadd.f32 %v2016, 0.5
  %v2018 = vtanh.pop %v2008
  %v2019 = vmul.f32 %v2009, 0.5
  %v2020 = vtanh.pop %v2019
  %v2021 = vmul.f32 %v2020, 0.5
  %v2022 = vadd.f32 %v2021, 0.5
  %v2023 = vld [vmem:[%s525] sm:$0xff]
  %v2024 = vmul.f32 %v2017, %v2023
  %v2025 = vmul.f32 %v2013, %v2018
  %v2026 = vadd.f32 %v2024, %v2025
  %v2027 = vtanh.pop %v2026
  %v2028 = vmul.f32 %v2022, %v2027
  %2029 = vst [vmem:[%s525] sm:$0xff] %v2026
  %2030 = vst [vmem:[%s270] sm:$0xff] %v2028
  %s2031 = scalar_lea.vmem %s0, 128
  %v2032 = vld [vmem:[%s2031] sm:$0xff]
  %v2033 = vld [vmem:[%s2031 + $0x8] sm:$0xff]
  %v2034 = vld [vmem:[%s2031 + $0x10] sm:$0xff]
  %v2035 = vld [vmem:[%s2031 + $0x18] sm:$0xff]
  %v2036 = vld [vmem:[#allocation2] sm:$0xff]
  %v2037 = vld [vmem:[%s2] sm:$0xff]
  %v2038 = vld [vmem:[%s2 + $0x8] sm:$0xff]
  %v2039 = vld [vmem:[%s2 + $0x10] sm:$0xff]
  %v2040 = vld [vmem:[%s2 + $0x18] sm:$0xff]
  %v2041 = vld [vmem:[%s2 + $0x20] sm:$0xff]
  %v2042 = vld [vmem:[%s2 + $0x28] sm:$0xff]
  %v2043 = vld [vmem:[%s2 + $0x30] sm:$0xff]
  %v2044 = vld [vmem:[%s2 + $0x38] sm:$0xff]
  %v2045 = vld [vmem:[%s2 + $0x40] sm:$0xff]
  %v2046 = vld [vmem:[%s2 + $0x48] sm:$0xff]
  %v2047 = vld [vmem:[%s2 + $0x50] sm:$0xff]
  %v2048 = vld [vmem:[%s2 + $0x58] sm:$0xff]
  %v2049 = vld [vmem:[%s2 + $0x60] sm:$0xff]
  %v2050 = vld [vmem:[%s2 + $0x68] sm:$0xff]
  %v2051 = vld [vmem:[%s2 + $0x70] sm:$0xff]
  %v2052 = vld [vmem:[%s2 + $0x78] sm:$0xff]
  %v2053 = vld [vmem:[%s2 + $0x80] sm:$0xff]
  %v2054 = vld [vmem:[%s2 + $0x88] sm:$0xff]
  %v2055 = vld [vmem:[%s2 + $0x90] sm:$0xff]
  %v2056 = vld [vmem:[%s2 + $0x98] sm:$0xff]
  %v2057 = vld [vmem:[%s2 + $0xa0] sm:$0xff]
  %v2058 = vld [vmem:[%s2 + $0xa8] sm:$0xff]
  %v2059 = vld [vmem:[%s2 + $0xb0] sm:$0xff]
  %v2060 = vld [vmem:[%s2 + $0xb8] sm:$0xff]
  %v2061 = vld [vmem:[%s2 + $0xc0] sm:$0xff]
  %v2062 = vld [vmem:[%s2 + $0xc8] sm:$0xff]
  %v2063 = vld [vmem:[%s2 + $0xd0] sm:$0xff]
  %v2064 = vld [vmem:[%s2 + $0xd8] sm:$0xff]
  %v2065 = vld [vmem:[%s2 + $0xe0] sm:$0xff]
  %v2066 = vld [vmem:[%s2 + $0xe8] sm:$0xff]
  %v2067 = vld [vmem:[%s2 + $0xf0] sm:$0xff]
  %v2068 = vld [vmem:[%s2 + $0xf8] sm:$0xff]
  %v2069 = vld [vmem:[%s2 + $0x100] sm:$0xff]
  %v2070 = vld [vmem:[%s2 + $0x108] sm:$0xff]
  %v2071 = vld [vmem:[%s2 + $0x110] sm:$0xff]
  %v2072 = vld [vmem:[%s2 + $0x118] sm:$0xff]
  %v2073 = vld [vmem:[%s2 + $0x120] sm:$0xff]
  %v2074 = vld [vmem:[%s2 + $0x128] sm:$0xff]
  %v2075 = vld [vmem:[%s2 + $0x130] sm:$0xff]
  %v2076 = vld [vmem:[%s2 + $0x138] sm:$0xff]
  %v2077 = vld [vmem:[%s2 + $0x140] sm:$0xff]
  %v2078 = vld [vmem:[%s2 + $0x148] sm:$0xff]
  %v2079 = vld [vmem:[%s2 + $0x150] sm:$0xff]
  %v2080 = vld [vmem:[%s2 + $0x158] sm:$0xff]
  %v2081 = vld [vmem:[%s2 + $0x160] sm:$0xff]
  %v2082 = vld [vmem:[%s2 + $0x168] sm:$0xff]
  %v2083 = vld [vmem:[%s2 + $0x170] sm:$0xff]
  %v2084 = vld [vmem:[%s2 + $0x178] sm:$0xff]
  %v2085 = vld [vmem:[%s2 + $0x180] sm:$0xff]
  %v2086 = vld [vmem:[%s2 + $0x188] sm:$0xff]
  %v2087 = vld [vmem:[%s2 + $0x190] sm:$0xff]
  %v2088 = vld [vmem:[%s2 + $0x198] sm:$0xff]
  %v2089 = vld [vmem:[%s2 + $0x1a0] sm:$0xff]
  %v2090 = vld [vmem:[%s2 + $0x1a8] sm:$0xff]
  %v2091 = vld [vmem:[%s2 + $0x1b0] sm:$0xff]
  %v2092 = vld [vmem:[%s2 + $0x1b8] sm:$0xff]
  %v2093 = vld [vmem:[%s2 + $0x1c0] sm:$0xff]
  %v2094 = vld [vmem:[%s2 + $0x1c8] sm:$0xff]
  %v2095 = vld [vmem:[%s2 + $0x1d0] sm:$0xff]
  %v2096 = vld [vmem:[%s2 + $0x1d8] sm:$0xff]
  %v2097 = vld [vmem:[%s2 + $0x1e0] sm:$0xff]
  %v2098 = vld [vmem:[%s2 + $0x1e8] sm:$0xff]
  %v2099 = vld [vmem:[%s2 + $0x1f0] sm:$0xff]
  %v2100 = vld [vmem:[%s2 + $0x1f8] sm:$0xff]
  %2101 = vmatpush.msra.mxu0 %v2097
  %2102 = vmatpush.msra.mxu0 %v2093
  %2103 = vmatpush.msra.mxu0 %v2089
  %2104 = vmatpush.msra.mxu0 %v2085
  %2105 = vmatpush.msra.mxu0 %v2081
  %2106 = vmatpush.msra.mxu0 %v2077
  %2107 = vmatpush.msra.mxu0 %v2073
  %2108 = vmatpush.msra.mxu0 %v2069
  %2109 = vmatpush.msra.mxu0 %v2065
  %2110 = vmatpush.msra.mxu0 %v2061
  %2111 = vmatpush.msra.mxu0 %v2057
  %2112 = vmatpush.msra.mxu0 %v2053
  %2113 = vmatpush.msra.mxu0 %v2049
  %2114 = vmatpush.msra.mxu0 %v2045
  %2115 = vmatpush.msra.mxu0 %v2041
  %2116 = vmatpush.msra.mxu0 %v2037
  %2117 = vmatmul.f32.gmra.mxu0 %v2036
  %v2118 = vpop.f32.mrf.mxu0
  %v2119 = vadd.f32 0.0, %v2118
  %2120 = vdwg.mxu0
  %2121 = vmatpush.msra.mxu0 %v2098
  %2122 = vmatpush.msra.mxu0 %v2094
  %2123 = vmatpush.msra.mxu0 %v2090
  %2124 = vmatpush.msra.mxu0 %v2086
  %2125 = vmatpush.msra.mxu0 %v2082
  %2126 = vmatpush.msra.mxu0 %v2078
  %2127 = vmatpush.msra.mxu0 %v2074
  %2128 = vmatpush.msra.mxu0 %v2070
  %2129 = vmatpush.msra.mxu0 %v2066
  %2130 = vmatpush.msra.mxu0 %v2062
  %2131 = vmatpush.msra.mxu0 %v2058
  %2132 = vmatpush.msra.mxu0 %v2054
  %2133 = vmatpush.msra.mxu0 %v2050
  %2134 = vmatpush.msra.mxu0 %v2046
  %2135 = vmatpush.msra.mxu0 %v2042
  %2136 = vmatpush.msra.mxu0 %v2038
  %2137 = vmatmul.f32.gmra.mxu0 %v2036
  %v2138 = vpop.f32.mrf.mxu0
  %v2139 = vadd.f32 0.0, %v2138
  %2140 = vdwg.mxu0
  %2141 = vmatpush.msra.mxu0 %v2099
  %2142 = vmatpush.msra.mxu0 %v2095
  %2143 = vmatpush.msra.mxu0 %v2091
  %2144 = vmatpush.msra.mxu0 %v2087
  %2145 = vmatpush.msra.mxu0 %v2083
  %2146 = vmatpush.msra.mxu0 %v2079
  %2147 = vmatpush.msra.mxu0 %v2075
  %2148 = vmatpush.msra.mxu0 %v2071
  %2149 = vmatpush.msra.mxu0 %v2067
  %2150 = vmatpush.msra.mxu0 %v2063
  %2151 = vmatpush.msra.mxu0 %v2059
  %2152 = vmatpush.msra.mxu0 %v2055
  %2153 = vmatpush.msra.mxu0 %v2051
  %2154 = vmatpush.msra.mxu0 %v2047
  %2155 = vmatpush.msra.mxu0 %v2043
  %2156 = vmatpush.msra.mxu0 %v2039
  %2157 = vmatmul.f32.gmra.mxu0 %v2036
  %v2158 = vpop.f32.mrf.mxu0
  %v2159 = vadd.f32 0.0, %v2158
  %2160 = vdwg.mxu0
  %2161 = vmatpush.msra.mxu0 %v2100
  %2162 = vmatpush.msra.mxu0 %v2096
  %2163 = vmatpush.msra.mxu0 %v2092
  %2164 = vmatpush.msra.mxu0 %v2088
  %2165 = vmatpush.msra.mxu0 %v2084
  %2166 = vmatpush.msra.mxu0 %v2080
  %2167 = vmatpush.msra.mxu0 %v2076
  %2168 = vmatpush.msra.mxu0 %v2072
  %2169 = vmatpush.msra.mxu0 %v2068
  %2170 = vmatpush.msra.mxu0 %v2064
  %2171 = vmatpush.msra.mxu0 %v2060
  %2172 = vmatpush.msra.mxu0 %v2056
  %2173 = vmatpush.msra.mxu0 %v2052
  %2174 = vmatpush.msra.mxu0 %v2048
  %2175 = vmatpush.msra.mxu0 %v2044
  %2176 = vmatpush.msra.mxu0 %v2040
  %2177 = vmatmul.f32.gmra.mxu0 %v2036
  %v2178 = vpop.f32.mrf.mxu0
  %v2179 = vadd.f32 0.0, %v2178
  %2180 = vdwg.mxu0
  %v2181 = vadd.f32 %v2032, %v2119
  %v2182 = vadd.f32 %v2033, %v2139
  %v2183 = vadd.f32 %v2034, %v2159
  %v2184 = vadd.f32 %v2035, %v2179
  %v2185 = vmul.f32 %v2181, 0.5
  %v2186 = vtanh.pop %v2185
  %v2187 = vmul.f32 %v2186, 0.5
  %v2188 = vadd.f32 %v2187, 0.5
  %v2189 = vmul.f32 %v2182, 0.5
  %v2190 = vtanh.pop %v2189
  %v2191 = vmul.f32 %v2190, 0.5
  %v2192 = vadd.f32 %v2191, 0.5
  %v2193 = vtanh.pop %v2183
  %v2194 = vmul.f32 %v2184, 0.5
  %v2195 = vtanh.pop %v2194
  %v2196 = vmul.f32 %v2195, 0.5
  %v2197 = vadd.f32 %v2196, 0.5
  %v2198 = vld [vmem:[#allocation3] sm:$0xff]
  %v2199 = vmul.f32 %v2192, %v2198
  %v2200 = vmul.f32 %v2188, %v2193
  %v2201 = vadd.f32 %v2199, %v2200
  %v2202 = vtanh.pop %v2201
  %v2203 = vmul.f32 %v2197, %v2202
  %2204 = vst [vmem:[#allocation3] sm:$0xff] %v2201
  %2205 = vst [vmem:[#allocation2] sm:$0xff] %v2203
  %v2206 = vld [vmem:[%s205] sm:$0xff]
  %v2207 = vld [vmem:[%s205 + $0x8] sm:$0xff]
  %v2208 = vld [vmem:[%s205 + $0x10] sm:$0xff]
  %v2209 = vld [vmem:[%s205 + $0x18] sm:$0xff]
  %v2210 = vld [vmem:[%s205 + $0x20] sm:$0xff]
  %v2211 = vld [vmem:[%s205 + $0x28] sm:$0xff]
  %v2212 = vld [vmem:[%s205 + $0x30] sm:$0xff]
  %v2213 = vld [vmem:[%s205 + $0x38] sm:$0xff]
  %v2214 = vld [vmem:[%s205 + $0x40] sm:$0xff]
  %v2215 = vld [vmem:[%s205 + $0x48] sm:$0xff]
  %v2216 = vld [vmem:[%s205 + $0x50] sm:$0xff]
  %v2217 = vld [vmem:[%s205 + $0x58] sm:$0xff]
  %v2218 = vld [vmem:[%s205 + $0x60] sm:$0xff]
  %v2219 = vld [vmem:[%s205 + $0x68] sm:$0xff]
  %v2220 = vld [vmem:[%s205 + $0x70] sm:$0xff]
  %v2221 = vld [vmem:[%s205 + $0x78] sm:$0xff]
  %v2222 = vld [vmem:[%s205 + $0x80] sm:$0xff]
  %v2223 = vld [vmem:[%s205 + $0x88] sm:$0xff]
  %v2224 = vld [vmem:[%s205 + $0x90] sm:$0xff]
  %v2225 = vld [vmem:[%s205 + $0x98] sm:$0xff]
  %v2226 = vld [vmem:[%s205 + $0xa0] sm:$0xff]
  %v2227 = vld [vmem:[%s205 + $0xa8] sm:$0xff]
  %v2228 = vld [vmem:[%s205 + $0xb0] sm:$0xff]
  %v2229 = vld [vmem:[%s205 + $0xb8] sm:$0xff]
  %v2230 = vld [vmem:[%s205 + $0xc0] sm:$0xff]
  %v2231 = vld [vmem:[%s205 + $0xc8] sm:$0xff]
  %v2232 = vld [vmem:[%s205 + $0xd0] sm:$0xff]
  %v2233 = vld [vmem:[%s205 + $0xd8] sm:$0xff]
  %v2234 = vld [vmem:[%s205 + $0xe0] sm:$0xff]
  %v2235 = vld [vmem:[%s205 + $0xe8] sm:$0xff]
  %v2236 = vld [vmem:[%s205 + $0xf0] sm:$0xff]
  %v2237 = vld [vmem:[%s205 + $0xf8] sm:$0xff]
  %v2238 = vld [vmem:[%s205 + $0x100] sm:$0xff]
  %v2239 = vld [vmem:[%s205 + $0x108] sm:$0xff]
  %v2240 = vld [vmem:[%s205 + $0x110] sm:$0xff]
  %v2241 = vld [vmem:[%s205 + $0x118] sm:$0xff]
  %v2242 = vld [vmem:[%s205 + $0x120] sm:$0xff]
  %v2243 = vld [vmem:[%s205 + $0x128] sm:$0xff]
  %v2244 = vld [vmem:[%s205 + $0x130] sm:$0xff]
  %v2245 = vld [vmem:[%s205 + $0x138] sm:$0xff]
  %v2246 = vld [vmem:[%s205 + $0x140] sm:$0xff]
  %v2247 = vld [vmem:[%s205 + $0x148] sm:$0xff]
  %v2248 = vld [vmem:[%s205 + $0x150] sm:$0xff]
  %v2249 = vld [vmem:[%s205 + $0x158] sm:$0xff]
  %v2250 = vld [vmem:[%s205 + $0x160] sm:$0xff]
  %v2251 = vld [vmem:[%s205 + $0x168] sm:$0xff]
  %v2252 = vld [vmem:[%s205 + $0x170] sm:$0xff]
  %v2253 = vld [vmem:[%s205 + $0x178] sm:$0xff]
  %v2254 = vld [vmem:[%s205 + $0x180] sm:$0xff]
  %v2255 = vld [vmem:[%s205 + $0x188] sm:$0xff]
  %v2256 = vld [vmem:[%s205 + $0x190] sm:$0xff]
  %v2257 = vld [vmem:[%s205 + $0x198] sm:$0xff]
  %v2258 = vld [vmem:[%s205 + $0x1a0] sm:$0xff]
  %v2259 = vld [vmem:[%s205 + $0x1a8] sm:$0xff]
  %v2260 = vld [vmem:[%s205 + $0x1b0] sm:$0xff]
  %v2261 = vld [vmem:[%s205 + $0x1b8] sm:$0xff]
  %v2262 = vld [vmem:[%s205 + $0x1c0] sm:$0xff]
  %v2263 = vld [vmem:[%s205 + $0x1c8] sm:$0xff]
  %v2264 = vld [vmem:[%s205 + $0x1d0] sm:$0xff]
  %v2265 = vld [vmem:[%s205 + $0x1d8] sm:$0xff]
  %v2266 = vld [vmem:[%s205 + $0x1e0] sm:$0xff]
  %v2267 = vld [vmem:[%s205 + $0x1e8] sm:$0xff]
  %v2268 = vld [vmem:[%s205 + $0x1f0] sm:$0xff]
  %v2269 = vld [vmem:[%s205 + $0x1f8] sm:$0xff]
  %v2270 = vld [vmem:[%s270] sm:$0xff]
  %v2271 = vld [vmem:[%s272] sm:$0xff]
  %v2272 = vld [vmem:[%s272 + $0x8] sm:$0xff]
  %v2273 = vld [vmem:[%s272 + $0x10] sm:$0xff]
  %v2274 = vld [vmem:[%s272 + $0x18] sm:$0xff]
  %v2275 = vld [vmem:[%s272 + $0x20] sm:$0xff]
  %v2276 = vld [vmem:[%s272 + $0x28] sm:$0xff]
  %v2277 = vld [vmem:[%s272 + $0x30] sm:$0xff]
  %v2278 = vld [vmem:[%s272 + $0x38] sm:$0xff]
  %v2279 = vld [vmem:[%s272 + $0x40] sm:$0xff]
  %v2280 = vld [vmem:[%s272 + $0x48] sm:$0xff]
  %v2281 = vld [vmem:[%s272 + $0x50] sm:$0xff]
  %v2282 = vld [vmem:[%s272 + $0x58] sm:$0xff]
  %v2283 = vld [vmem:[%s272 + $0x60] sm:$0xff]
  %v2284 = vld [vmem:[%s272 + $0x68] sm:$0xff]
  %v2285 = vld [vmem:[%s272 + $0x70] sm:$0xff]
  %v2286 = vld [vmem:[%s272 + $0x78] sm:$0xff]
  %v2287 = vld [vmem:[%s272 + $0x80] sm:$0xff]
  %v2288 = vld [vmem:[%s272 + $0x88] sm:$0xff]
  %v2289 = vld [vmem:[%s272 + $0x90] sm:$0xff]
  %v2290 = vld [vmem:[%s272 + $0x98] sm:$0xff]
  %v2291 = vld [vmem:[%s272 + $0xa0] sm:$0xff]
  %v2292 = vld [vmem:[%s272 + $0xa8] sm:$0xff]
  %v2293 = vld [vmem:[%s272 + $0xb0] sm:$0xff]
  %v2294 = vld [vmem:[%s272 + $0xb8] sm:$0xff]
  %v2295 = vld [vmem:[%s272 + $0xc0] sm:$0xff]
  %v2296 = vld [vmem:[%s272 + $0xc8] sm:$0xff]
  %v2297 = vld [vmem:[%s272 + $0xd0] sm:$0xff]
  %v2298 = vld [vmem:[%s272 + $0xd8] sm:$0xff]
  %v2299 = vld [vmem:[%s272 + $0xe0] sm:$0xff]
  %v2300 = vld [vmem:[%s272 + $0xe8] sm:$0xff]
  %v2301 = vld [vmem:[%s272 + $0xf0] sm:$0xff]
  %v2302 = vld [vmem:[%s272 + $0xf8] sm:$0xff]
  %v2303 = vld [vmem:[%s272 + $0x100] sm:$0xff]
  %v2304 = vld [vmem:[%s272 + $0x108] sm:$0xff]
  %v2305 = vld [vmem:[%s272 + $0x110] sm:$0xff]
  %v2306 = vld [vmem:[%s272 + $0x118] sm:$0xff]
  %v2307 = vld [vmem:[%s272 + $0x120] sm:$0xff]
  %v2308 = vld [vmem:[%s272 + $0x128] sm:$0xff]
  %v2309 = vld [vmem:[%s272 + $0x130] sm:$0xff]
  %v2310 = vld [vmem:[%s272 + $0x138] sm:$0xff]
  %v2311 = vld [vmem:[%s272 + $0x140] sm:$0xff]
  %v2312 = vld [vmem:[%s272 + $0x148] sm:$0xff]
  %v2313 = vld [vmem:[%s272 + $0x150] sm:$0xff]
  %v2314 = vld [vmem:[%s272 + $0x158] sm:$0xff]
  %v2315 = vld [vmem:[%s272 + $0x160] sm:$0xff]
  %v2316 = vld [vmem:[%s272 + $0x168] sm:$0xff]
  %v2317 = vld [vmem:[%s272 + $0x170] sm:$0xff]
  %v2318 = vld [vmem:[%s272 + $0x178] sm:$0xff]
  %v2319 = vld [vmem:[%s272 + $0x180] sm:$0xff]
  %v2320 = vld [vmem:[%s272 + $0x188] sm:$0xff]
  %v2321 = vld [vmem:[%s272 + $0x190] sm:$0xff]
  %v2322 = vld [vmem:[%s272 + $0x198] sm:$0xff]
  %v2323 = vld [vmem:[%s272 + $0x1a0] sm:$0xff]
  %v2324 = vld [vmem:[%s272 + $0x1a8] sm:$0xff]
  %v2325 = vld [vmem:[%s272 + $0x1b0] sm:$0xff]
  %v2326 = vld [vmem:[%s272 + $0x1b8] sm:$0xff]
  %v2327 = vld [vmem:[%s272 + $0x1c0] sm:$0xff]
  %v2328 = vld [vmem:[%s272 + $0x1c8] sm:$0xff]
  %v2329 = vld [vmem:[%s272 + $0x1d0] sm:$0xff]
  %v2330 = vld [vmem:[%s272 + $0x1d8] sm:$0xff]
  %v2331 = vld [vmem:[%s272 + $0x1e0] sm:$0xff]
  %v2332 = vld [vmem:[%s272 + $0x1e8] sm:$0xff]
  %v2333 = vld [vmem:[%s272 + $0x1f0] sm:$0xff]
  %v2334 = vld [vmem:[%s272 + $0x1f8] sm:$0xff]
  %2335 = vmatpush.msra.mxu0 %v2331
  %2336 = vmatpush.msra.mxu0 %v2327
  %2337 = vmatpush.msra.mxu0 %v2323
  %2338 = vmatpush.msra.mxu0 %v2319
  %2339 = vmatpush.msra.mxu0 %v2315
  %2340 = vmatpush.msra.mxu0 %v2311
  %2341 = vmatpush.msra.mxu0 %v2307
  %2342 = vmatpush.msra.mxu0 %v2303
  %2343 = vmatpush.msra.mxu0 %v2299
  %2344 = vmatpush.msra.mxu0 %v2295
  %2345 = vmatpush.msra.mxu0 %v2291
  %2346 = vmatpush.msra.mxu0 %v2287
  %2347 = vmatpush.msra.mxu0 %v2283
  %2348 = vmatpush.msra.mxu0 %v2279
  %2349 = vmatpush.msra.mxu0 %v2275
  %2350 = vmatpush.msra.mxu0 %v2271
  %2351 = vmatmul.f32.gmra.mxu0 %v2270
  %v2352 = vpop.f32.mrf.mxu0
  %v2353 = vadd.f32 0.0, %v2352
  %2354 = vdwg.mxu0
  %2355 = vmatpush.msra.mxu0 %v2332
  %2356 = vmatpush.msra.mxu0 %v2328
  %2357 = vmatpush.msra.mxu0 %v2324
  %2358 = vmatpush.msra.mxu0 %v2320
  %2359 = vmatpush.msra.mxu0 %v2316
  %2360 = vmatpush.msra.mxu0 %v2312
  %2361 = vmatpush.msra.mxu0 %v2308
  %2362 = vmatpush.msra.mxu0 %v2304
  %2363 = vmatpush.msra.mxu0 %v2300
  %2364 = vmatpush.msra.mxu0 %v2296
  %2365 = vmatpush.msra.mxu0 %v2292
  %2366 = vmatpush.msra.mxu0 %v2288
  %2367 = vmatpush.msra.mxu0 %v2284
  %2368 = vmatpush.msra.mxu0 %v2280
  %2369 = vmatpush.msra.mxu0 %v2276
  %2370 = vmatpush.msra.mxu0 %v2272
  %2371 = vmatmul.f32.gmra.mxu0 %v2270
  %v2372 = vpop.f32.mrf.mxu0
  %v2373 = vadd.f32 0.0, %v2372
  %2374 = vdwg.mxu0
  %2375 = vmatpush.msra.mxu0 %v2333
  %2376 = vmatpush.msra.mxu0 %v2329
  %2377 = vmatpush.msra.mxu0 %v2325
  %2378 = vmatpush.msra.mxu0 %v2321
  %2379 = vmatpush.msra.mxu0 %v2317
  %2380 = vmatpush.msra.mxu0 %v2313
  %2381 = vmatpush.msra.mxu0 %v2309
  %2382 = vmatpush.msra.mxu0 %v2305
  %2383 = vmatpush.msra.mxu0 %v2301
  %2384 = vmatpush.msra.mxu0 %v2297
  %2385 = vmatpush.msra.mxu0 %v2293
  %2386 = vmatpush.msra.mxu0 %v2289
  %2387 = vmatpush.msra.mxu0 %v2285
  %2388 = vmatpush.msra.mxu0 %v2281
  %2389 = vmatpush.msra.mxu0 %v2277
  %2390 = vmatpush.msra.mxu0 %v2273
  %2391 = vmatmul.f32.gmra.mxu0 %v2270
  %v2392 = vpop.f32.mrf.mxu0
  %v2393 = vadd.f32 0.0, %v2392
  %2394 = vdwg.mxu0
  %2395 = vmatpush.msra.mxu0 %v2334
  %2396 = vmatpush.msra.mxu0 %v2330
  %2397 = vmatpush.msra.mxu0 %v2326
  %2398 = vmatpush.msra.mxu0 %v2322
  %2399 = vmatpush.msra.mxu0 %v2318
  %2400 = vmatpush.msra.mxu0 %v2314
  %2401 = vmatpush.msra.mxu0 %v2310
  %2402 = vmatpush.msra.mxu0 %v2306
  %2403 = vmatpush.msra.mxu0 %v2302
  %2404 = vmatpush.msra.mxu0 %v2298
  %2405 = vmatpush.msra.mxu0 %v2294
  %2406 = vmatpush.msra.mxu0 %v2290
  %2407 = vmatpush.msra.mxu0 %v2286
  %2408 = vmatpush.msra.mxu0 %v2282
  %2409 = vmatpush.msra.mxu0 %v2278
  %2410 = vmatpush.msra.mxu0 %v2274
  %2411 = vmatmul.f32.gmra.mxu0 %v2270
  %v2412 = vpop.f32.mrf.mxu0
  %v2413 = vadd.f32 0.0, %v2412
  %2414 = vdwg.mxu0
  %2415 = vmatpush.msra.mxu0 %v2266
  %2416 = vmatpush.msra.mxu0 %v2262
  %2417 = vmatpush.msra.mxu0 %v2258
  %2418 = vmatpush.msra.mxu0 %v2254
  %2419 = vmatpush.msra.mxu0 %v2250
  %2420 = vmatpush.msra.mxu0 %v2246
  %2421 = vmatpush.msra.mxu0 %v2242
  %2422 = vmatpush.msra.mxu0 %v2238
  %2423 = vmatpush.msra.mxu0 %v2234
  %2424 = vmatpush.msra.mxu0 %v2230
  %2425 = vmatpush.msra.mxu0 %v2226
  %2426 = vmatpush.msra.mxu0 %v2222
  %2427 = vmatpush.msra.mxu0 %v2218
  %2428 = vmatpush.msra.mxu0 %v2214
  %2429 = vmatpush.msra.mxu0 %v2210
  %2430 = vmatpush.msra.mxu0 %v2206
  %2431 = vmatmul.f32.gmra.mxu0 %v2203
  %v2432 = vpop.f32.mrf.mxu0
  %v2433 = vadd.f32 %v2353, %v2432
  %2434 = vdwg.mxu0
  %2435 = vmatpush.msra.mxu0 %v2267
  %2436 = vmatpush.msra.mxu0 %v2263
  %2437 = vmatpush.msra.mxu0 %v2259
  %2438 = vmatpush.msra.mxu0 %v2255
  %2439 = vmatpush.msra.mxu0 %v2251
  %2440 = vmatpush.msra.mxu0 %v2247
  %2441 = vmatpush.msra.mxu0 %v2243
  %2442 = vmatpush.msra.mxu0 %v2239
  %2443 = vmatpush.msra.mxu0 %v2235
  %2444 = vmatpush.msra.mxu0 %v2231
  %2445 = vmatpush.msra.mxu0 %v2227
  %2446 = vmatpush.msra.mxu0 %v2223
  %2447 = vmatpush.msra.mxu0 %v2219
  %2448 = vmatpush.msra.mxu0 %v2215
  %2449 = vmatpush.msra.mxu0 %v2211
  %2450 = vmatpush.msra.mxu0 %v2207
  %2451 = vmatmul.f32.gmra.mxu0 %v2203
  %v2452 = vpop.f32.mrf.mxu0
  %v2453 = vadd.f32 %v2373, %v2452
  %2454 = vdwg.mxu0
  %2455 = vmatpush.msra.mxu0 %v2268
  %2456 = vmatpush.msra.mxu0 %v2264
  %2457 = vmatpush.msra.mxu0 %v2260
  %2458 = vmatpush.msra.mxu0 %v2256
  %2459 = vmatpush.msra.mxu0 %v2252
  %2460 = vmatpush.msra.mxu0 %v2248
  %2461 = vmatpush.msra.mxu0 %v2244
  %2462 = vmatpush.msra.mxu0 %v2240
  %2463 = vmatpush.msra.mxu0 %v2236
  %2464 = vmatpush.msra.mxu0 %v2232
  %2465 = vmatpush.msra.mxu0 %v2228
  %2466 = vmatpush.msra.mxu0 %v2224
  %2467 = vmatpush.msra.mxu0 %v2220
  %2468 = vmatpush.msra.mxu0 %v2216
  %2469 = vmatpush.msra.mxu0 %v2212
  %2470 = vmatpush.msra.mxu0 %v2208
  %2471 = vmatmul.f32.gmra.mxu0 %v2203
  %v2472 = vpop.f32.mrf.mxu0
  %v2473 = vadd.f32 %v2393, %v2472
  %2474 = vdwg.mxu0
  %2475 = vmatpush.msra.mxu0 %v2269
  %2476 = vmatpush.msra.mxu0 %v2265
  %2477 = vmatpush.msra.mxu0 %v2261
  %2478 = vmatpush.msra.mxu0 %v2257
  %2479 = vmatpush.msra.mxu0 %v2253
  %2480 = vmatpush.msra.mxu0 %v2249
  %2481 = vmatpush.msra.mxu0 %v2245
  %2482 = vmatpush.msra.mxu0 %v2241
  %2483 = vmatpush.msra.mxu0 %v2237
  %2484 = vmatpush.msra.mxu0 %v2233
  %2485 = vmatpush.msra.mxu0 %v2229
  %2486 = vmatpush.msra.mxu0 %v2225
  %2487 = vmatpush.msra.mxu0 %v2221
  %2488 = vmatpush.msra.mxu0 %v2217
  %2489 = vmatpush.msra.mxu0 %v2213
  %2490 = vmatpush.msra.mxu0 %v2209
  %2491 = vmatmul.f32.gmra.mxu0 %v2203
  %v2492 = vpop.f32.mrf.mxu0
  %v2493 = vadd.f32 %v2413, %v2492
  %2494 = vdwg.mxu0
  %v2495 = vld [vmem:[%s497] sm:$0xf]
  %v2497 = vperm.slane %v2495, 0
  %v2498 = vperm.slane %v2495, 1
  %v2499 = vperm.slane %v2495, 2
  %v2500 = vperm.slane %v2495, 3
  %v2505 = vadd.f32 %v2433, %v2497
  %v2506 = vadd.f32 %v2453, %v2498
  %v2507 = vadd.f32 %v2473, %v2499
  %v2508 = vadd.f32 %v2493, %v2500
  %v2509 = vmul.f32 %v2505, 0.5
  %v2510 = vtanh.pop %v2509
  %v2511 = vmul.f32 %v2510, 0.5
  %v2512 = vadd.f32 %v2511, 0.5
  %v2513 = vmul.f32 %v2506, 0.5
  %v2514 = vtanh.pop %v2513
  %v2515 = vmul.f32 %v2514, 0.5
  %v2516 = vadd.f32 %v2515, 0.5
  %v2517 = vtanh.pop %v2507
  %v2518 = vmul.f32 %v2508, 0.5
  %v2519 = vtanh.pop %v2518
  %v2520 = vmul.f32 %v2519, 0.5
  %v2521 = vadd.f32 %v2520, 0.5
  %v2522 = vld [vmem:[%s525] sm:$0xff]
  %v2523 = vmul.f32 %v2516, %v2522
  %v2524 = vmul.f32 %v2512, %v2517
  %v2525 = vadd.f32 %v2523, %v2524
  %v2526 = vtanh.pop %v2525
  %v2527 = vmul.f32 %v2521, %v2526
  %2528 = vst [vmem:[%s525] sm:$0xff] %v2525
  %2529 = vst [vmem:[%s270] sm:$0xff] %v2527
  %s2530 = scalar_lea.vmem %s0, 160
  %v2531 = vld [vmem:[%s2530] sm:$0xff]
  %v2532 = vld [vmem:[%s2530 + $0x8] sm:$0xff]
  %v2533 = vld [vmem:[%s2530 + $0x10] sm:$0xff]
  %v2534 = vld [vmem:[%s2530 + $0x18] sm:$0xff]
  %v2535 = vld [vmem:[#allocation2] sm:$0xff]
  %v2536 = vld [vmem:[%s2] sm:$0xff]
  %v2537 = vld [vmem:[%s2 + $0x8] sm:$0xff]
  %v2538 = vld [vmem:[%s2 + $0x10] sm:$0xff]
  %v2539 = vld [vmem:[%s2 + $0x18] sm:$0xff]
  %v2540 = vld [vmem:[%s2 + $0x20] sm:$0xff]
  %v2541 = vld [vmem:[%s2 + $0x28] sm:$0xff]
  %v2542 = vld [vmem:[%s2 + $0x30] sm:$0xff]
  %v2543 = vld [vmem:[%s2 + $0x38] sm:$0xff]
  %v2544 = vld [vmem:[%s2 + $0x40] sm:$0xff]
  %v2545 = vld [vmem:[%s2 + $0x48] sm:$0xff]
  %v2546 = vld [vmem:[%s2 + $0x50] sm:$0xff]
  %v2547 = vld [vmem:[%s2 + $0x58] sm:$0xff]
  %v2548 = vld [vmem:[%s2 + $0x60] sm:$0xff]
  %v2549 = vld [vmem:[%s2 + $0x68] sm:$0xff]
  %v2550 = vld [vmem:[%s2 + $0x70] sm:$0xff]
  %v2551 = vld [vmem:[%s2 + $0x78] sm:$0xff]
  %v2552 = vld [vmem:[%s2 + $0x80] sm:$0xff]
  %v2553 = vld [vmem:[%s2 + $0x88] sm:$0xff]
  %v2554 = vld [vmem:[%s2 + $0x90] sm:$0xff]
  %v2555 = vld [vmem:[%s2 + $0x98] sm:$0xff]
  %v2556 = vld [vmem:[%s2 + $0xa0] sm:$0xff]
  %v2557 = vld [vmem:[%s2 + $0xa8] sm:$0xff]
  %v2558 = vld [vmem:[%s2 + $0xb0] sm:$0xff]
  %v2559 = vld [vmem:[%s2 + $0xb8] sm:$0xff]
  %v2560 = vld [vmem:[%s2 + $0xc0] sm:$0xff]
  %v2561 = vld [vmem:[%s2 + $0xc8] sm:$0xff]
  %v2562 = vld [vmem:[%s2 + $0xd0] sm:$0xff]
  %v2563 = vld [vmem:[%s2 + $0xd8] sm:$0xff]
  %v2564 = vld [vmem:[%s2 + $0xe0] sm:$0xff]
  %v2565 = vld [vmem:[%s2 + $0xe8] sm:$0xff]
  %v2566 = vld [vmem:[%s2 + $0xf0] sm:$0xff]
  %v2567 = vld [vmem:[%s2 + $0xf8] sm:$0xff]
  %v2568 = vld [vmem:[%s2 + $0x100] sm:$0xff]
  %v2569 = vld [vmem:[%s2 + $0x108] sm:$0xff]
  %v2570 = vld [vmem:[%s2 + $0x110] sm:$0xff]
  %v2571 = vld [vmem:[%s2 + $0x118] sm:$0xff]
  %v2572 = vld [vmem:[%s2 + $0x120] sm:$0xff]
  %v2573 = vld [vmem:[%s2 + $0x128] sm:$0xff]
  %v2574 = vld [vmem:[%s2 + $0x130] sm:$0xff]
  %v2575 = vld [vmem:[%s2 + $0x138] sm:$0xff]
  %v2576 = vld [vmem:[%s2 + $0x140] sm:$0xff]
  %v2577 = vld [vmem:[%s2 + $0x148] sm:$0xff]
  %v2578 = vld [vmem:[%s2 + $0x150] sm:$0xff]
  %v2579 = vld [vmem:[%s2 + $0x158] sm:$0xff]
  %v2580 = vld [vmem:[%s2 + $0x160] sm:$0xff]
  %v2581 = vld [vmem:[%s2 + $0x168] sm:$0xff]
  %v2582 = vld [vmem:[%s2 + $0x170] sm:$0xff]
  %v2583 = vld [vmem:[%s2 + $0x178] sm:$0xff]
  %v2584 = vld [vmem:[%s2 + $0x180] sm:$0xff]
  %v2585 = vld [vmem:[%s2 + $0x188] sm:$0xff]
  %v2586 = vld [vmem:[%s2 + $0x190] sm:$0xff]
  %v2587 = vld [vmem:[%s2 + $0x198] sm:$0xff]
  %v2588 = vld [vmem:[%s2 + $0x1a0] sm:$0xff]
  %v2589 = vld [vmem:[%s2 + $0x1a8] sm:$0xff]
  %v2590 = vld [vmem:[%s2 + $0x1b0] sm:$0xff]
  %v2591 = vld [vmem:[%s2 + $0x1b8] sm:$0xff]
  %v2592 = vld [vmem:[%s2 + $0x1c0] sm:$0xff]
  %v2593 = vld [vmem:[%s2 + $0x1c8] sm:$0xff]
  %v2594 = vld [vmem:[%s2 + $0x1d0] sm:$0xff]
  %v2595 = vld [vmem:[%s2 + $0x1d8] sm:$0xff]
  %v2596 = vld [vmem:[%s2 + $0x1e0] sm:$0xff]
  %v2597 = vld [vmem:[%s2 + $0x1e8] sm:$0xff]
  %v2598 = vld [vmem:[%s2 + $0x1f0] sm:$0xff]
  %v2599 = vld [vmem:[%s2 + $0x1f8] sm:$0xff]
  %2600 = vmatpush.msra.mxu0 %v2596
  %2601 = vmatpush.msra.mxu0 %v2592
  %2602 = vmatpush.msra.mxu0 %v2588
  %2603 = vmatpush.msra.mxu0 %v2584
  %2604 = vmatpush.msra.mxu0 %v2580
  %2605 = vmatpush.msra.mxu0 %v2576
  %2606 = vmatpush.msra.mxu0 %v2572
  %2607 = vmatpush.msra.mxu0 %v2568
  %2608 = vmatpush.msra.mxu0 %v2564
  %2609 = vmatpush.msra.mxu0 %v2560
  %2610 = vmatpush.msra.mxu0 %v2556
  %2611 = vmatpush.msra.mxu0 %v2552
  %2612 = vmatpush.msra.mxu0 %v2548
  %2613 = vmatpush.msra.mxu0 %v2544
  %2614 = vmatpush.msra.mxu0 %v2540
  %2615 = vmatpush.msra.mxu0 %v2536
  %2616 = vmatmul.f32.gmra.mxu0 %v2535
  %v2617 = vpop.f32.mrf.mxu0
  %v2618 = vadd.f32 0.0, %v2617
  %2619 = vdwg.mxu0
  %2620 = vmatpush.msra.mxu0 %v2597
  %2621 = vmatpush.msra.mxu0 %v2593
  %2622 = vmatpush.msra.mxu0 %v2589
  %2623 = vmatpush.msra.mxu0 %v2585
  %2624 = vmatpush.msra.mxu0 %v2581
  %2625 = vmatpush.msra.mxu0 %v2577
  %2626 = vmatpush.msra.mxu0 %v2573
  %2627 = vmatpush.msra.mxu0 %v2569
  %2628 = vmatpush.msra.mxu0 %v2565
  %2629 = vmatpush.msra.mxu0 %v2561
  %2630 = vmatpush.msra.mxu0 %v2557
  %2631 = vmatpush.msra.mxu0 %v2553
  %2632 = vmatpush.msra.mxu0 %v2549
  %2633 = vmatpush.msra.mxu0 %v2545
  %2634 = vmatpush.msra.mxu0 %v2541
  %2635 = vmatpush.msra.mxu0 %v2537
  %2636 = vmatmul.f32.gmra.mxu0 %v2535
  %v2637 = vpop.f32.mrf.mxu0
  %v2638 = vadd.f32 0.0, %v2637
  %2639 = vdwg.mxu0
  %2640 = vmatpush.msra.mxu0 %v2598
  %2641 = vmatpush.msra.mxu0 %v2594
  %2642 = vmatpush.msra.mxu0 %v2590
  %2643 = vmatpush.msra.mxu0 %v2586
  %2644 = vmatpush.msra.mxu0 %v2582
  %2645 = vmatpush.msra.mxu0 %v2578
  %2646 = vmatpush.msra.mxu0 %v2574
  %2647 = vmatpush.msra.mxu0 %v2570
  %2648 = vmatpush.msra.mxu0 %v2566
  %2649 = vmatpush.msra.mxu0 %v2562
  %2650 = vmatpush.msra.mxu0 %v2558
  %2651 = vmatpush.msra.mxu0 %v2554
  %2652 = vmatpush.msra.mxu0 %v2550
  %2653 = vmatpush.msra.mxu0 %v2546
  %2654 = vmatpush.msra.mxu0 %v2542
  %2655 = vmatpush.msra.mxu0 %v2538
  %2656 = vmatmul.f32.gmra.mxu0 %v2535
  %v2657 = vpop.f32.mrf.mxu0
  %v2658 = vadd.f32 0.0, %v2657
  %2659 = vdwg.mxu0
  %2660 = vmatpush.msra.mxu0 %v2599
  %2661 = vmatpush.msra.mxu0 %v2595
  %2662 = vmatpush.msra.mxu0 %v2591
  %2663 = vmatpush.msra.mxu0 %v2587
  %2664 = vmatpush.msra.mxu0 %v2583
  %2665 = vmatpush.msra.mxu0 %v2579
  %2666 = vmatpush.msra.mxu0 %v2575
  %2667 = vmatpush.msra.mxu0 %v2571
  %2668 = vmatpush.msra.mxu0 %v2567
  %2669 = vmatpush.msra.mxu0 %v2563
  %2670 = vmatpush.msra.mxu0 %v2559
  %2671 = vmatpush.msra.mxu0 %v2555
  %2672 = vmatpush.msra.mxu0 %v2551
  %2673 = vmatpush.msra.mxu0 %v2547
  %2674 = vmatpush.msra.mxu0 %v2543
  %2675 = vmatpush.msra.mxu0 %v2539
  %2676 = vmatmul.f32.gmra.mxu0 %v2535
  %v2677 = vpop.f32.mrf.mxu0
  %v2678 = vadd.f32 0.0, %v2677
  %2679 = vdwg.mxu0
  %v2680 = vadd.f32 %v2531, %v2618
  %v2681 = vadd.f32 %v2532, %v2638
  %v2682 = vadd.f32 %v2533, %v2658
  %v2683 = vadd.f32 %v2534, %v2678
  %v2684 = vmul.f32 %v2680, 0.5
  %v2685 = vtanh.pop %v2684
  %v2686 = vmul.f32 %v2685, 0.5
  %v2687 = vadd.f32 %v2686, 0.5
  %v2688 = vmul.f32 %v2681, 0.5
  %v2689 = vtanh.pop %v2688
  %v2690 = vmul.f32 %v2689, 0.5
  %v2691 = vadd.f32 %v2690, 0.5
  %v2692 = vtanh.pop %v2682
  %v2693 = vmul.f32 %v2683, 0.5
  %v2694 = vtanh.pop %v2693
  %v2695 = vmul.f32 %v2694, 0.5
  %v2696 = vadd.f32 %v2695, 0.5
  %v2697 = vld [vmem:[#allocation3] sm:$0xff]
  %v2698 = vmul.f32 %v2691, %v2697
  %v2699 = vmul.f32 %v2687, %v2692
  %v2700 = vadd.f32 %v2698, %v2699
  %v2701 = vtanh.pop %v2700
  %v2702 = vmul.f32 %v2696, %v2701
  %2703 = vst [vmem:[#allocation3] sm:$0xff] %v2700
  %2704 = vst [vmem:[#allocation2] sm:$0xff] %v2702
  %v2705 = vld [vmem:[%s205] sm:$0xff]
  %v2706 = vld [vmem:[%s205 + $0x8] sm:$0xff]
  %v2707 = vld [vmem:[%s205 + $0x10] sm:$0xff]
  %v2708 = vld [vmem:[%s205 + $0x18] sm:$0xff]
  %v2709 = vld [vmem:[%s205 + $0x20] sm:$0xff]
  %v2710 = vld [vmem:[%s205 + $0x28] sm:$0xff]
  %v2711 = vld [vmem:[%s205 + $0x30] sm:$0xff]
  %v2712 = vld [vmem:[%s205 + $0x38] sm:$0xff]
  %v2713 = vld [vmem:[%s205 + $0x40] sm:$0xff]
  %v2714 = vld [vmem:[%s205 + $0x48] sm:$0xff]
  %v2715 = vld [vmem:[%s205 + $0x50] sm:$0xff]
  %v2716 = vld [vmem:[%s205 + $0x58] sm:$0xff]
  %v2717 = vld [vmem:[%s205 + $0x60] sm:$0xff]
  %v2718 = vld [vmem:[%s205 + $0x68] sm:$0xff]
  %v2719 = vld [vmem:[%s205 + $0x70] sm:$0xff]
  %v2720 = vld [vmem:[%s205 + $0x78] sm:$0xff]
  %v2721 = vld [vmem:[%s205 + $0x80] sm:$0xff]
  %v2722 = vld [vmem:[%s205 + $0x88] sm:$0xff]
  %v2723 = vld [vmem:[%s205 + $0x90] sm:$0xff]
  %v2724 = vld [vmem:[%s205 + $0x98] sm:$0xff]
  %v2725 = vld [vmem:[%s205 + $0xa0] sm:$0xff]
  %v2726 = vld [vmem:[%s205 + $0xa8] sm:$0xff]
  %v2727 = vld [vmem:[%s205 + $0xb0] sm:$0xff]
  %v2728 = vld [vmem:[%s205 + $0xb8] sm:$0xff]
  %v2729 = vld [vmem:[%s205 + $0xc0] sm:$0xff]
  %v2730 = vld [vmem:[%s205 + $0xc8] sm:$0xff]
  %v2731 = vld [vmem:[%s205 + $0xd0] sm:$0xff]
  %v2732 = vld [vmem:[%s205 + $0xd8] sm:$0xff]
  %v2733 = vld [vmem:[%s205 + $0xe0] sm:$0xff]
  %v2734 = vld [vmem:[%s205 + $0xe8] sm:$0xff]
  %v2735 = vld [vmem:[%s205 + $0xf0] sm:$0xff]
  %v2736 = vld [vmem:[%s205 + $0xf8] sm:$0xff]
  %v2737 = vld [vmem:[%s205 + $0x100] sm:$0xff]
  %v2738 = vld [vmem:[%s205 + $0x108] sm:$0xff]
  %v2739 = vld [vmem:[%s205 + $0x110] sm:$0xff]
  %v2740 = vld [vmem:[%s205 + $0x118] sm:$0xff]
  %v2741 = vld [vmem:[%s205 + $0x120] sm:$0xff]
  %v2742 = vld [vmem:[%s205 + $0x128] sm:$0xff]
  %v2743 = vld [vmem:[%s205 + $0x130] sm:$0xff]
  %v2744 = vld [vmem:[%s205 + $0x138] sm:$0xff]
  %v2745 = vld [vmem:[%s205 + $0x140] sm:$0xff]
  %v2746 = vld [vmem:[%s205 + $0x148] sm:$0xff]
  %v2747 = vld [vmem:[%s205 + $0x150] sm:$0xff]
  %v2748 = vld [vmem:[%s205 + $0x158] sm:$0xff]
  %v2749 = vld [vmem:[%s205 + $0x160] sm:$0xff]
  %v2750 = vld [vmem:[%s205 + $0x168] sm:$0xff]
  %v2751 = vld [vmem:[%s205 + $0x170] sm:$0xff]
  %v2752 = vld [vmem:[%s205 + $0x178] sm:$0xff]
  %v2753 = vld [vmem:[%s205 + $0x180] sm:$0xff]
  %v2754 = vld [vmem:[%s205 + $0x188] sm:$0xff]
  %v2755 = vld [vmem:[%s205 + $0x190] sm:$0xff]
  %v2756 = vld [vmem:[%s205 + $0x198] sm:$0xff]
  %v2757 = vld [vmem:[%s205 + $0x1a0] sm:$0xff]
  %v2758 = vld [vmem:[%s205 + $0x1a8] sm:$0xff]
  %v2759 = vld [vmem:[%s205 + $0x1b0] sm:$0xff]
  %v2760 = vld [vmem:[%s205 + $0x1b8] sm:$0xff]
  %v2761 = vld [vmem:[%s205 + $0x1c0] sm:$0xff]
  %v2762 = vld [vmem:[%s205 + $0x1c8] sm:$0xff]
  %v2763 = vld [vmem:[%s205 + $0x1d0] sm:$0xff]
  %v2764 = vld [vmem:[%s205 + $0x1d8] sm:$0xff]
  %v2765 = vld [vmem:[%s205 + $0x1e0] sm:$0xff]
  %v2766 = vld [vmem:[%s205 + $0x1e8] sm:$0xff]
  %v2767 = vld [vmem:[%s205 + $0x1f0] sm:$0xff]
  %v2768 = vld [vmem:[%s205 + $0x1f8] sm:$0xff]
  %v2769 = vld [vmem:[%s270] sm:$0xff]
  %v2770 = vld [vmem:[%s272] sm:$0xff]
  %v2771 = vld [vmem:[%s272 + $0x8] sm:$0xff]
  %v2772 = vld [vmem:[%s272 + $0x10] sm:$0xff]
  %v2773 = vld [vmem:[%s272 + $0x18] sm:$0xff]
  %v2774 = vld [vmem:[%s272 + $0x20] sm:$0xff]
  %v2775 = vld [vmem:[%s272 + $0x28] sm:$0xff]
  %v2776 = vld [vmem:[%s272 + $0x30] sm:$0xff]
  %v2777 = vld [vmem:[%s272 + $0x38] sm:$0xff]
  %v2778 = vld [vmem:[%s272 + $0x40] sm:$0xff]
  %v2779 = vld [vmem:[%s272 + $0x48] sm:$0xff]
  %v2780 = vld [vmem:[%s272 + $0x50] sm:$0xff]
  %v2781 = vld [vmem:[%s272 + $0x58] sm:$0xff]
  %v2782 = vld [vmem:[%s272 + $0x60] sm:$0xff]
  %v2783 = vld [vmem:[%s272 + $0x68] sm:$0xff]
  %v2784 = vld [vmem:[%s272 + $0x70] sm:$0xff]
  %v2785 = vld [vmem:[%s272 + $0x78] sm:$0xff]
  %v2786 = vld [vmem:[%s272 + $0x80] sm:$0xff]
  %v2787 = vld [vmem:[%s272 + $0x88] sm:$0xff]
  %v2788 = vld [vmem:[%s272 + $0x90] sm:$0xff]
  %v2789 = vld [vmem:[%s272 + $0x98] sm:$0xff]
  %v2790 = vld [vmem:[%s272 + $0xa0] sm:$0xff]
  %v2791 = vld [vmem:[%s272 + $0xa8] sm:$0xff]
  %v2792 = vld [vmem:[%s272 + $0xb0] sm:$0xff]
  %v2793 = vld [vmem:[%s272 + $0xb8] sm:$0xff]
  %v2794 = vld [vmem:[%s272 + $0xc0] sm:$0xff]
  %v2795 = vld [vmem:[%s272 + $0xc8] sm:$0xff]
  %v2796 = vld [vmem:[%s272 + $0xd0] sm:$0xff]
  %v2797 = vld [vmem:[%s272 + $0xd8] sm:$0xff]
  %v2798 = vld [vmem:[%s272 + $0xe0] sm:$0xff]
  %v2799 = vld [vmem:[%s272 + $0xe8] sm:$0xff]
  %v2800 = vld [vmem:[%s272 + $0xf0] sm:$0xff]
  %v2801 = vld [vmem:[%s272 + $0xf8] sm:$0xff]
  %v2802 = vld [vmem:[%s272 + $0x100] sm:$0xff]
  %v2803 = vld [vmem:[%s272 + $0x108] sm:$0xff]
  %v2804 = vld [vmem:[%s272 + $0x110] sm:$0xff]
  %v2805 = vld [vmem:[%s272 + $0x118] sm:$0xff]
  %v2806 = vld [vmem:[%s272 + $0x120] sm:$0xff]
  %v2807 = vld [vmem:[%s272 + $0x128] sm:$0xff]
  %v2808 = vld [vmem:[%s272 + $0x130] sm:$0xff]
  %v2809 = vld [vmem:[%s272 + $0x138] sm:$0xff]
  %v2810 = vld [vmem:[%s272 + $0x140] sm:$0xff]
  %v2811 = vld [vmem:[%s272 + $0x148] sm:$0xff]
  %v2812 = vld [vmem:[%s272 + $0x150] sm:$0xff]
  %v2813 = vld [vmem:[%s272 + $0x158] sm:$0xff]
  %v2814 = vld [vmem:[%s272 + $0x160] sm:$0xff]
  %v2815 = vld [vmem:[%s272 + $0x168] sm:$0xff]
  %v2816 = vld [vmem:[%s272 + $0x170] sm:$0xff]
  %v2817 = vld [vmem:[%s272 + $0x178] sm:$0xff]
  %v2818 = vld [vmem:[%s272 + $0x180] sm:$0xff]
  %v2819 = vld [vmem:[%s272 + $0x188] sm:$0xff]
  %v2820 = vld [vmem:[%s272 + $0x190] sm:$0xff]
  %v2821 = vld [vmem:[%s272 + $0x198] sm:$0xff]
  %v2822 = vld [vmem:[%s272 + $0x1a0] sm:$0xff]
  %v2823 = vld [vmem:[%s272 + $0x1a8] sm:$0xff]
  %v2824 = vld [vmem:[%s272 + $0x1b0] sm:$0xff]
  %v2825 = vld [vmem:[%s272 + $0x1b8] sm:$0xff]
  %v2826 = vld [vmem:[%s272 + $0x1c0] sm:$0xff]
  %v2827 = vld [vmem:[%s272 + $0x1c8] sm:$0xff]
  %v2828 = vld [vmem:[%s272 + $0x1d0] sm:$0xff]
  %v2829 = vld [vmem:[%s272 + $0x1d8] sm:$0xff]
  %v2830 = vld [vmem:[%s272 + $0x1e0] sm:$0xff]
  %v2831 = vld [vmem:[%s272 + $0x1e8] sm:$0xff]
  %v2832 = vld [vmem:[%s272 + $0x1f0] sm:$0xff]
  %v2833 = vld [vmem:[%s272 + $0x1f8] sm:$0xff]
  %2834 = vmatpush.msra.mxu0 %v2830
  %2835 = vmatpush.msra.mxu0 %v2826
  %2836 = vmatpush.msra.mxu0 %v2822
  %2837 = vmatpush.msra.mxu0 %v2818
  %2838 = vmatpush.msra.mxu0 %v2814
  %2839 = vmatpush.msra.mxu0 %v2810
  %2840 = vmatpush.msra.mxu0 %v2806
  %2841 = vmatpush.msra.mxu0 %v2802
  %2842 = vmatpush.msra.mxu0 %v2798
  %2843 = vmatpush.msra.mxu0 %v2794
  %2844 = vmatpush.msra.mxu0 %v2790
  %2845 = vmatpush.msra.mxu0 %v2786
  %2846 = vmatpush.msra.mxu0 %v2782
  %2847 = vmatpush.msra.mxu0 %v2778
  %2848 = vmatpush.msra.mxu0 %v2774
  %2849 = vmatpush.msra.mxu0 %v2770
  %2850 = vmatmul.f32.gmra.mxu0 %v2769
  %v2851 = vpop.f32.mrf.mxu0
  %v2852 = vadd.f32 0.0, %v2851
  %2853 = vdwg.mxu0
  %2854 = vmatpush.msra.mxu0 %v2831
  %2855 = vmatpush.msra.mxu0 %v2827
  %2856 = vmatpush.msra.mxu0 %v2823
  %2857 = vmatpush.msra.mxu0 %v2819
  %2858 = vmatpush.msra.mxu0 %v2815
  %2859 = vmatpush.msra.mxu0 %v2811
  %2860 = vmatpush.msra.mxu0 %v2807
  %2861 = vmatpush.msra.mxu0 %v2803
  %2862 = vmatpush.msra.mxu0 %v2799
  %2863 = vmatpush.msra.mxu0 %v2795
  %2864 = vmatpush.msra.mxu0 %v2791
  %2865 = vmatpush.msra.mxu0 %v2787
  %2866 = vmatpush.msra.mxu0 %v2783
  %2867 = vmatpush.msra.mxu0 %v2779
  %2868 = vmatpush.msra.mxu0 %v2775
  %2869 = vmatpush.msra.mxu0 %v2771
  %2870 = vmatmul.f32.gmra.mxu0 %v2769
  %v2871 = vpop.f32.mrf.mxu0
  %v2872 = vadd.f32 0.0, %v2871
  %2873 = vdwg.mxu0
  %2874 = vmatpush.msra.mxu0 %v2832
  %2875 = vmatpush.msra.mxu0 %v2828
  %2876 = vmatpush.msra.mxu0 %v2824
  %2877 = vmatpush.msra.mxu0 %v2820
  %2878 = vmatpush.msra.mxu0 %v2816
  %2879 = vmatpush.msra.mxu0 %v2812
  %2880 = vmatpush.msra.mxu0 %v2808
  %2881 = vmatpush.msra.mxu0 %v2804
  %2882 = vmatpush.msra.mxu0 %v2800
  %2883 = vmatpush.msra.mxu0 %v2796
  %2884 = vmatpush.msra.mxu0 %v2792
  %2885 = vmatpush.msra.mxu0 %v2788
  %2886 = vmatpush.msra.mxu0 %v2784
  %2887 = vmatpush.msra.mxu0 %v2780
  %2888 = vmatpush.msra.mxu0 %v2776
  %2889 = vmatpush.msra.mxu0 %v2772
  %2890 = vmatmul.f32.gmra.mxu0 %v2769
  %v2891 = vpop.f32.mrf.mxu0
  %v2892 = vadd.f32 0.0, %v2891
  %2893 = vdwg.mxu0
  %2894 = vmatpush.msra.mxu0 %v2833
  %2895 = vmatpush.msra.mxu0 %v2829
  %2896 = vmatpush.msra.mxu0 %v2825
  %2897 = vmatpush.msra.mxu0 %v2821
  %2898 = vmatpush.msra.mxu0 %v2817
  %2899 = vmatpush.msra.mxu0 %v2813
  %2900 = vmatpush.msra.mxu0 %v2809
  %2901 = vmatpush.msra.mxu0 %v2805
  %2902 = vmatpush.msra.mxu0 %v2801
  %2903 = vmatpush.msra.mxu0 %v2797
  %2904 = vmatpush.msra.mxu0 %v2793
  %2905 = vmatpush.msra.mxu0 %v2789
  %2906 = vmatpush.msra.mxu0 %v2785
  %2907 = vmatpush.msra.mxu0 %v2781
  %2908 = vmatpush.msra.mxu0 %v2777
  %2909 = vmatpush.msra.mxu0 %v2773
  %2910 = vmatmul.f32.gmra.mxu0 %v2769
  %v2911 = vpop.f32.mrf.mxu0
  %v2912 = vadd.f32 0.0, %v2911
  %2913 = vdwg.mxu0
  %2914 = vmatpush.msra.mxu0 %v2765
  %2915 = vmatpush.msra.mxu0 %v2761
  %2916 = vmatpush.msra.mxu0 %v2757
  %2917 = vmatpush.msra.mxu0 %v2753
  %2918 = vmatpush.msra.mxu0 %v2749
  %2919 = vmatpush.msra.mxu0 %v2745
  %2920 = vmatpush.msra.mxu0 %v2741
  %2921 = vmatpush.msra.mxu0 %v2737
  %2922 = vmatpush.msra.mxu0 %v2733
  %2923 = vmatpush.msra.mxu0 %v2729
  %2924 = vmatpush.msra.mxu0 %v2725
  %2925 = vmatpush.msra.mxu0 %v2721
  %2926 = vmatpush.msra.mxu0 %v2717
  %2927 = vmatpush.msra.mxu0 %v2713
  %2928 = vmatpush.msra.mxu0 %v2709
  %2929 = vmatpush.msra.mxu0 %v2705
  %2930 = vmatmul.f32.gmra.mxu0 %v2702
  %v2931 = vpop.f32.mrf.mxu0
  %v2932 = vadd.f32 %v2852, %v2931
  %2933 = vdwg.mxu0
  %2934 = vmatpush.msra.mxu0 %v2766
  %2935 = vmatpush.msra.mxu0 %v2762
  %2936 = vmatpush.msra.mxu0 %v2758
  %2937 = vmatpush.msra.mxu0 %v2754
  %2938 = vmatpush.msra.mxu0 %v2750
  %2939 = vmatpush.msra.mxu0 %v2746
  %2940 = vmatpush.msra.mxu0 %v2742
  %2941 = vmatpush.msra.mxu0 %v2738
  %2942 = vmatpush.msra.mxu0 %v2734
  %2943 = vmatpush.msra.mxu0 %v2730
  %2944 = vmatpush.msra.mxu0 %v2726
  %2945 = vmatpush.msra.mxu0 %v2722
  %2946 = vmatpush.msra.mxu0 %v2718
  %2947 = vmatpush.msra.mxu0 %v2714
  %2948 = vmatpush.msra.mxu0 %v2710
  %2949 = vmatpush.msra.mxu0 %v2706
  %2950 = vmatmul.f32.gmra.mxu0 %v2702
  %v2951 = vpop.f32.mrf.mxu0
  %v2952 = vadd.f32 %v2872, %v2951
  %2953 = vdwg.mxu0
  %2954 = vmatpush.msra.mxu0 %v2767
  %2955 = vmatpush.msra.mxu0 %v2763
  %2956 = vmatpush.msra.mxu0 %v2759
  %2957 = vmatpush.msra.mxu0 %v2755
  %2958 = vmatpush.msra.mxu0 %v2751
  %2959 = vmatpush.msra.mxu0 %v2747
  %2960 = vmatpush.msra.mxu0 %v2743
  %2961 = vmatpush.msra.mxu0 %v2739
  %2962 = vmatpush.msra.mxu0 %v2735
  %2963 = vmatpush.msra.mxu0 %v2731
  %2964 = vmatpush.msra.mxu0 %v2727
  %2965 = vmatpush.msra.mxu0 %v2723
  %2966 = vmatpush.msra.mxu0 %v2719
  %2967 = vmatpush.msra.mxu0 %v2715
  %2968 = vmatpush.msra.mxu0 %v2711
  %2969 = vmatpush.msra.mxu0 %v2707
  %2970 = vmatmul.f32.gmra.mxu0 %v2702
  %v2971 = vpop.f32.mrf.mxu0
  %v2972 = vadd.f32 %v2892, %v2971
  %2973 = vdwg.mxu0
  %2974 = vmatpush.msra.mxu0 %v2768
  %2975 = vmatpush.msra.mxu0 %v2764
  %2976 = vmatpush.msra.mxu0 %v2760
  %2977 = vmatpush.msra.mxu0 %v2756
  %2978 = vmatpush.msra.mxu0 %v2752
  %2979 = vmatpush.msra.mxu0 %v2748
  %2980 = vmatpush.msra.mxu0 %v2744
  %2981 = vmatpush.msra.mxu0 %v2740
  %2982 = vmatpush.msra.mxu0 %v2736
  %2983 = vmatpush.msra.mxu0 %v2732
  %2984 = vmatpush.msra.mxu0 %v2728
  %2985 = vmatpush.msra.mxu0 %v2724
  %2986 = vmatpush.msra.mxu0 %v2720
  %2987 = vmatpush.msra.mxu0 %v2716
  %2988 = vmatpush.msra.mxu0 %v2712
  %2989 = vmatpush.msra.mxu0 %v2708
  %2990 = vmatmul.f32.gmra.mxu0 %v2702
  %v2991 = vpop.f32.mrf.mxu0
  %v2992 = vadd.f32 %v2912, %v2991
  %2993 = vdwg.mxu0
  %v2994 = vld [vmem:[%s497] sm:$0xf]
  %v2996 = vperm.slane %v2994, 0
  %v2997 = vperm.slane %v2994, 1
  %v2998 = vperm.slane %v2994, 2
  %v2999 = vperm.slane %v2994, 3
  %v3004 = vadd.f32 %v2932, %v2996
  %v3005 = vadd.f32 %v2952, %v2997
  %v3006 = vadd.f32 %v2972, %v2998
  %v3007 = vadd.f32 %v2992, %v2999
  %v3008 = vmul.f32 %v3004, 0.5
  %v3009 = vtanh.pop %v3008
  %v3010 = vmul.f32 %v3009, 0.5
  %v3011 = vadd.f32 %v3010, 0.5
  %v3012 = vmul.f32 %v3005, 0.5
  %v3013 = vtanh.pop %v3012
  %v3014 = vmul.f32 %v3013, 0.5
  %v3015 = vadd.f32 %v3014, 0.5
  %v3016 = vtanh.pop %v3006
  %v3017 = vmul.f32 %v3007, 0.5
  %v3018 = vtanh.pop %v3017
  %v3019 = vmul.f32 %v3018, 0.5
  %v3020 = vadd.f32 %v3019, 0.5
  %v3021 = vld [vmem:[%s525] sm:$0xff]
  %v3022 = vmul.f32 %v3015, %v3021
  %v3023 = vmul.f32 %v3011, %v3016
  %v3024 = vadd.f32 %v3022, %v3023
  %v3025 = vtanh.pop %v3024
  %v3026 = vmul.f32 %v3020, %v3025
  %3027 = vst [vmem:[%s525] sm:$0xff] %v3024
  %3028 = vst [vmem:[%s270] sm:$0xff] %v3026
  %s3029 = scalar_lea.vmem %s0, 192
  %v3030 = vld [vmem:[%s3029] sm:$0xff]
  %v3031 = vld [vmem:[%s3029 + $0x8] sm:$0xff]
  %v3032 = vld [vmem:[%s3029 + $0x10] sm:$0xff]
  %v3033 = vld [vmem:[%s3029 + $0x18] sm:$0xff]
  %v3034 = vld [vmem:[#allocation2] sm:$0xff]
  %v3035 = vld [vmem:[%s2] sm:$0xff]
  %v3036 = vld [vmem:[%s2 + $0x8] sm:$0xff]
  %v3037 = vld [vmem:[%s2 + $0x10] sm:$0xff]
  %v3038 = vld [vmem:[%s2 + $0x18] sm:$0xff]
  %v3039 = vld [vmem:[%s2 + $0x20] sm:$0xff]
  %v3040 = vld [vmem:[%s2 + $0x28] sm:$0xff]
  %v3041 = vld [vmem:[%s2 + $0x30] sm:$0xff]
  %v3042 = vld [vmem:[%s2 + $0x38] sm:$0xff]
  %v3043 = vld [vmem:[%s2 + $0x40] sm:$0xff]
  %v3044 = vld [vmem:[%s2 + $0x48] sm:$0xff]
  %v3045 = vld [vmem:[%s2 + $0x50] sm:$0xff]
  %v3046 = vld [vmem:[%s2 + $0x58] sm:$0xff]
  %v3047 = vld [vmem:[%s2 + $0x60] sm:$0xff]
  %v3048 = vld [vmem:[%s2 + $0x68] sm:$0xff]
  %v3049 = vld [vmem:[%s2 + $0x70] sm:$0xff]
  %v3050 = vld [vmem:[%s2 + $0x78] sm:$0xff]
  %v3051 = vld [vmem:[%s2 + $0x80] sm:$0xff]
  %v3052 = vld [vmem:[%s2 + $0x88] sm:$0xff]
  %v3053 = vld [vmem:[%s2 + $0x90] sm:$0xff]
  %v3054 = vld [vmem:[%s2 + $0x98] sm:$0xff]
  %v3055 = vld [vmem:[%s2 + $0xa0] sm:$0xff]
  %v3056 = vld [vmem:[%s2 + $0xa8] sm:$0xff]
  %v3057 = vld [vmem:[%s2 + $0xb0] sm:$0xff]
  %v3058 = vld [vmem:[%s2 + $0xb8] sm:$0xff]
  %v3059 = vld [vmem:[%s2 + $0xc0] sm:$0xff]
  %v3060 = vld [vmem:[%s2 + $0xc8] sm:$0xff]
  %v3061 = vld [vmem:[%s2 + $0xd0] sm:$0xff]
  %v3062 = vld [vmem:[%s2 + $0xd8] sm:$0xff]
  %v3063 = vld [vmem:[%s2 + $0xe0] sm:$0xff]
  %v3064 = vld [vmem:[%s2 + $0xe8] sm:$0xff]
  %v3065 = vld [vmem:[%s2 + $0xf0] sm:$0xff]
  %v3066 = vld [vmem:[%s2 + $0xf8] sm:$0xff]
  %v3067 = vld [vmem:[%s2 + $0x100] sm:$0xff]
  %v3068 = vld [vmem:[%s2 + $0x108] sm:$0xff]
  %v3069 = vld [vmem:[%s2 + $0x110] sm:$0xff]
  %v3070 = vld [vmem:[%s2 + $0x118] sm:$0xff]
  %v3071 = vld [vmem:[%s2 + $0x120] sm:$0xff]
  %v3072 = vld [vmem:[%s2 + $0x128] sm:$0xff]
  %v3073 = vld [vmem:[%s2 + $0x130] sm:$0xff]
  %v3074 = vld [vmem:[%s2 + $0x138] sm:$0xff]
  %v3075 = vld [vmem:[%s2 + $0x140] sm:$0xff]
  %v3076 = vld [vmem:[%s2 + $0x148] sm:$0xff]
  %v3077 = vld [vmem:[%s2 + $0x150] sm:$0xff]
  %v3078 = vld [vmem:[%s2 + $0x158] sm:$0xff]
  %v3079 = vld [vmem:[%s2 + $0x160] sm:$0xff]
  %v3080 = vld [vmem:[%s2 + $0x168] sm:$0xff]
  %v3081 = vld [vmem:[%s2 + $0x170] sm:$0xff]
  %v3082 = vld [vmem:[%s2 + $0x178] sm:$0xff]
  %v3083 = vld [vmem:[%s2 + $0x180] sm:$0xff]
  %v3084 = vld [vmem:[%s2 + $0x188] sm:$0xff]
  %v3085 = vld [vmem:[%s2 + $0x190] sm:$0xff]
  %v3086 = vld [vmem:[%s2 + $0x198] sm:$0xff]
  %v3087 = vld [vmem:[%s2 + $0x1a0] sm:$0xff]
  %v3088 = vld [vmem:[%s2 + $0x1a8] sm:$0xff]
  %v3089 = vld [vmem:[%s2 + $0x1b0] sm:$0xff]
  %v3090 = vld [vmem:[%s2 + $0x1b8] sm:$0xff]
  %v3091 = vld [vmem:[%s2 + $0x1c0] sm:$0xff]
  %v3092 = vld [vmem:[%s2 + $0x1c8] sm:$0xff]
  %v3093 = vld [vmem:[%s2 + $0x1d0] sm:$0xff]
  %v3094 = vld [vmem:[%s2 + $0x1d8] sm:$0xff]
  %v3095 = vld [vmem:[%s2 + $0x1e0] sm:$0xff]
  %v3096 = vld [vmem:[%s2 + $0x1e8] sm:$0xff]
  %v3097 = vld [vmem:[%s2 + $0x1f0] sm:$0xff]
  %v3098 = vld [vmem:[%s2 + $0x1f8] sm:$0xff]
  %3099 = vmatpush.msra.mxu0 %v3095
  %3100 = vmatpush.msra.mxu0 %v3091
  %3101 = vmatpush.msra.mxu0 %v3087
  %3102 = vmatpush.msra.mxu0 %v3083
  %3103 = vmatpush.msra.mxu0 %v3079
  %3104 = vmatpush.msra.mxu0 %v3075
  %3105 = vmatpush.msra.mxu0 %v3071
  %3106 = vmatpush.msra.mxu0 %v3067
  %3107 = vmatpush.msra.mxu0 %v3063
  %3108 = vmatpush.msra.mxu0 %v3059
  %3109 = vmatpush.msra.mxu0 %v3055
  %3110 = vmatpush.msra.mxu0 %v3051
  %3111 = vmatpush.msra.mxu0 %v3047
  %3112 = vmatpush.msra.mxu0 %v3043
  %3113 = vmatpush.msra.mxu0 %v3039
  %3114 = vmatpush.msra.mxu0 %v3035
  %3115 = vmatmul.f32.gmra.mxu0 %v3034
  %v3116 = vpop.f32.mrf.mxu0
  %v3117 = vadd.f32 0.0, %v3116
  %3118 = vdwg.mxu0
  %3119 = vmatpush.msra.mxu0 %v3096
  %3120 = vmatpush.msra.mxu0 %v3092
  %3121 = vmatpush.msra.mxu0 %v3088
  %3122 = vmatpush.msra.mxu0 %v3084
  %3123 = vmatpush.msra.mxu0 %v3080
  %3124 = vmatpush.msra.mxu0 %v3076
  %3125 = vmatpush.msra.mxu0 %v3072
  %3126 = vmatpush.msra.mxu0 %v3068
  %3127 = vmatpush.msra.mxu0 %v3064
  %3128 = vmatpush.msra.mxu0 %v3060
  %3129 = vmatpush.msra.mxu0 %v3056
  %3130 = vmatpush.msra.mxu0 %v3052
  %3131 = vmatpush.msra.mxu0 %v3048
  %3132 = vmatpush.msra.mxu0 %v3044
  %3133 = vmatpush.msra.mxu0 %v3040
  %3134 = vmatpush.msra.mxu0 %v3036
  %3135 = vmatmul.f32.gmra.mxu0 %v3034
  %v3136 = vpop.f32.mrf.mxu0
  %v3137 = vadd.f32 0.0, %v3136
  %3138 = vdwg.mxu0
  %3139 = vmatpush.msra.mxu0 %v3097
  %3140 = vmatpush.msra.mxu0 %v3093
  %3141 = vmatpush.msra.mxu0 %v3089
  %3142 = vmatpush.msra.mxu0 %v3085
  %3143 = vmatpush.msra.mxu0 %v3081
  %3144 = vmatpush.msra.mxu0 %v3077
  %3145 = vmatpush.msra.mxu0 %v3073
  %3146 = vmatpush.msra.mxu0 %v3069
  %3147 = vmatpush.msra.mxu0 %v3065
  %3148 = vmatpush.msra.mxu0 %v3061
  %3149 = vmatpush.msra.mxu0 %v3057
  %3150 = vmatpush.msra.mxu0 %v3053
  %3151 = vmatpush.msra.mxu0 %v3049
  %3152 = vmatpush.msra.mxu0 %v3045
  %3153 = vmatpush.msra.mxu0 %v3041
  %3154 = vmatpush.msra.mxu0 %v3037
  %3155 = vmatmul.f32.gmra.mxu0 %v3034
  %v3156 = vpop.f32.mrf.mxu0
  %v3157 = vadd.f32 0.0, %v3156
  %3158 = vdwg.mxu0
  %3159 = vmatpush.msra.mxu0 %v3098
  %3160 = vmatpush.msra.mxu0 %v3094
  %3161 = vmatpush.msra.mxu0 %v3090
  %3162 = vmatpush.msra.mxu0 %v3086
  %3163 = vmatpush.msra.mxu0 %v3082
  %3164 = vmatpush.msra.mxu0 %v3078
  %3165 = vmatpush.msra.mxu0 %v3074
  %3166 = vmatpush.msra.mxu0 %v3070
  %3167 = vmatpush.msra.mxu0 %v3066
  %3168 = vmatpush.msra.mxu0 %v3062
  %3169 = vmatpush.msra.mxu0 %v3058
  %3170 = vmatpush.msra.mxu0 %v3054
  %3171 = vmatpush.msra.mxu0 %v3050
  %3172 = vmatpush.msra.mxu0 %v3046
  %3173 = vmatpush.msra.mxu0 %v3042
  %3174 = vmatpush.msra.mxu0 %v3038
  %3175 = vmatmul.f32.gmra.mxu0 %v3034
  %v3176 = vpop.f32.mrf.mxu0
  %v3177 = vadd.f32 0.0, %v3176
  %3178 = vdwg.mxu0
  %v3179 = vadd.f32 %v3030, %v3117
  %v3180 = vadd.f32 %v3031, %v3137
  %v3181 = vadd.f32 %v3032, %v3157
  %v3182 = vadd.f32 %v3033, %v3177
  %v3183 = vmul.f32 %v3179, 0.5
  %v3184 = vtanh.pop %v3183
  %v3185 = vmul.f32 %v3184, 0.5
  %v3186 = vadd.f32 %v3185, 0.5
  %v3187 = vmul.f32 %v3180, 0.5
  %v3188 = vtanh.pop %v3187
  %v3189 = vmul.f32 %v3188, 0.5
  %v3190 = vadd.f32 %v3189, 0.5
  %v3191 = vtanh.pop %v3181
  %v3192 = vmul.f32 %v3182, 0.5
  %v3193 = vtanh.pop %v3192
  %v3194 = vmul.f32 %v3193, 0.5
  %v3195 = vadd.f32 %v3194, 0.5
  %v3196 = vld [vmem:[#allocation3] sm:$0xff]
  %v3197 = vmul.f32 %v3190, %v3196
  %v3198 = vmul.f32 %v3186, %v3191
  %v3199 = vadd.f32 %v3197, %v3198
  %v3200 = vtanh.pop %v3199
  %v3201 = vmul.f32 %v3195, %v3200
  %3202 = vst [vmem:[#allocation3] sm:$0xff] %v3199
  %3203 = vst [vmem:[#allocation2] sm:$0xff] %v3201
  %v3204 = vld [vmem:[%s205] sm:$0xff]
  %v3205 = vld [vmem:[%s205 + $0x8] sm:$0xff]
  %v3206 = vld [vmem:[%s205 + $0x10] sm:$0xff]
  %v3207 = vld [vmem:[%s205 + $0x18] sm:$0xff]
  %v3208 = vld [vmem:[%s205 + $0x20] sm:$0xff]
  %v3209 = vld [vmem:[%s205 + $0x28] sm:$0xff]
  %v3210 = vld [vmem:[%s205 + $0x30] sm:$0xff]
  %v3211 = vld [vmem:[%s205 + $0x38] sm:$0xff]
  %v3212 = vld [vmem:[%s205 + $0x40] sm:$0xff]
  %v3213 = vld [vmem:[%s205 + $0x48] sm:$0xff]
  %v3214 = vld [vmem:[%s205 + $0x50] sm:$0xff]
  %v3215 = vld [vmem:[%s205 + $0x58] sm:$0xff]
  %v3216 = vld [vmem:[%s205 + $0x60] sm:$0xff]
  %v3217 = vld [vmem:[%s205 + $0x68] sm:$0xff]
  %v3218 = vld [vmem:[%s205 + $0x70] sm:$0xff]
  %v3219 = vld [vmem:[%s205 + $0x78] sm:$0xff]
  %v3220 = vld [vmem:[%s205 + $0x80] sm:$0xff]
  %v3221 = vld [vmem:[%s205 + $0x88] sm:$0xff]
  %v3222 = vld [vmem:[%s205 + $0x90] sm:$0xff]
  %v3223 = vld [vmem:[%s205 + $0x98] sm:$0xff]
  %v3224 = vld [vmem:[%s205 + $0xa0] sm:$0xff]
  %v3225 = vld [vmem:[%s205 + $0xa8] sm:$0xff]
  %v3226 = vld [vmem:[%s205 + $0xb0] sm:$0xff]
  %v3227 = vld [vmem:[%s205 + $0xb8] sm:$0xff]
  %v3228 = vld [vmem:[%s205 + $0xc0] sm:$0xff]
  %v3229 = vld [vmem:[%s205 + $0xc8] sm:$0xff]
  %v3230 = vld [vmem:[%s205 + $0xd0] sm:$0xff]
  %v3231 = vld [vmem:[%s205 + $0xd8] sm:$0xff]
  %v3232 = vld [vmem:[%s205 + $0xe0] sm:$0xff]
  %v3233 = vld [vmem:[%s205 + $0xe8] sm:$0xff]
  %v3234 = vld [vmem:[%s205 + $0xf0] sm:$0xff]
  %v3235 = vld [vmem:[%s205 + $0xf8] sm:$0xff]
  %v3236 = vld [vmem:[%s205 + $0x100] sm:$0xff]
  %v3237 = vld [vmem:[%s205 + $0x108] sm:$0xff]
  %v3238 = vld [vmem:[%s205 + $0x110] sm:$0xff]
  %v3239 = vld [vmem:[%s205 + $0x118] sm:$0xff]
  %v3240 = vld [vmem:[%s205 + $0x120] sm:$0xff]
  %v3241 = vld [vmem:[%s205 + $0x128] sm:$0xff]
  %v3242 = vld [vmem:[%s205 + $0x130] sm:$0xff]
  %v3243 = vld [vmem:[%s205 + $0x138] sm:$0xff]
  %v3244 = vld [vmem:[%s205 + $0x140] sm:$0xff]
  %v3245 = vld [vmem:[%s205 + $0x148] sm:$0xff]
  %v3246 = vld [vmem:[%s205 + $0x150] sm:$0xff]
  %v3247 = vld [vmem:[%s205 + $0x158] sm:$0xff]
  %v3248 = vld [vmem:[%s205 + $0x160] sm:$0xff]
  %v3249 = vld [vmem:[%s205 + $0x168] sm:$0xff]
  %v3250 = vld [vmem:[%s205 + $0x170] sm:$0xff]
  %v3251 = vld [vmem:[%s205 + $0x178] sm:$0xff]
  %v3252 = vld [vmem:[%s205 + $0x180] sm:$0xff]
  %v3253 = vld [vmem:[%s205 + $0x188] sm:$0xff]
  %v3254 = vld [vmem:[%s205 + $0x190] sm:$0xff]
  %v3255 = vld [vmem:[%s205 + $0x198] sm:$0xff]
  %v3256 = vld [vmem:[%s205 + $0x1a0] sm:$0xff]
  %v3257 = vld [vmem:[%s205 + $0x1a8] sm:$0xff]
  %v3258 = vld [vmem:[%s205 + $0x1b0] sm:$0xff]
  %v3259 = vld [vmem:[%s205 + $0x1b8] sm:$0xff]
  %v3260 = vld [vmem:[%s205 + $0x1c0] sm:$0xff]
  %v3261 = vld [vmem:[%s205 + $0x1c8] sm:$0xff]
  %v3262 = vld [vmem:[%s205 + $0x1d0] sm:$0xff]
  %v3263 = vld [vmem:[%s205 + $0x1d8] sm:$0xff]
  %v3264 = vld [vmem:[%s205 + $0x1e0] sm:$0xff]
  %v3265 = vld [vmem:[%s205 + $0x1e8] sm:$0xff]
  %v3266 = vld [vmem:[%s205 + $0x1f0] sm:$0xff]
  %v3267 = vld [vmem:[%s205 + $0x1f8] sm:$0xff]
  %v3268 = vld [vmem:[%s270] sm:$0xff]
  %v3269 = vld [vmem:[%s272] sm:$0xff]
  %v3270 = vld [vmem:[%s272 + $0x8] sm:$0xff]
  %v3271 = vld [vmem:[%s272 + $0x10] sm:$0xff]
  %v3272 = vld [vmem:[%s272 + $0x18] sm:$0xff]
  %v3273 = vld [vmem:[%s272 + $0x20] sm:$0xff]
  %v3274 = vld [vmem:[%s272 + $0x28] sm:$0xff]
  %v3275 = vld [vmem:[%s272 + $0x30] sm:$0xff]
  %v3276 = vld [vmem:[%s272 + $0x38] sm:$0xff]
  %v3277 = vld [vmem:[%s272 + $0x40] sm:$0xff]
  %v3278 = vld [vmem:[%s272 + $0x48] sm:$0xff]
  %v3279 = vld [vmem:[%s272 + $0x50] sm:$0xff]
  %v3280 = vld [vmem:[%s272 + $0x58] sm:$0xff]
  %v3281 = vld [vmem:[%s272 + $0x60] sm:$0xff]
  %v3282 = vld [vmem:[%s272 + $0x68] sm:$0xff]
  %v3283 = vld [vmem:[%s272 + $0x70] sm:$0xff]
  %v3284 = vld [vmem:[%s272 + $0x78] sm:$0xff]
  %v3285 = vld [vmem:[%s272 + $0x80] sm:$0xff]
  %v3286 = vld [vmem:[%s272 + $0x88] sm:$0xff]
  %v3287 = vld [vmem:[%s272 + $0x90] sm:$0xff]
  %v3288 = vld [vmem:[%s272 + $0x98] sm:$0xff]
  %v3289 = vld [vmem:[%s272 + $0xa0] sm:$0xff]
  %v3290 = vld [vmem:[%s272 + $0xa8] sm:$0xff]
  %v3291 = vld [vmem:[%s272 + $0xb0] sm:$0xff]
  %v3292 = vld [vmem:[%s272 + $0xb8] sm:$0xff]
  %v3293 = vld [vmem:[%s272 + $0xc0] sm:$0xff]
  %v3294 = vld [vmem:[%s272 + $0xc8] sm:$0xff]
  %v3295 = vld [vmem:[%s272 + $0xd0] sm:$0xff]
  %v3296 = vld [vmem:[%s272 + $0xd8] sm:$0xff]
  %v3297 = vld [vmem:[%s272 + $0xe0] sm:$0xff]
  %v3298 = vld [vmem:[%s272 + $0xe8] sm:$0xff]
  %v3299 = vld [vmem:[%s272 + $0xf0] sm:$0xff]
  %v3300 = vld [vmem:[%s272 + $0xf8] sm:$0xff]
  %v3301 = vld [vmem:[%s272 + $0x100] sm:$0xff]
  %v3302 = vld [vmem:[%s272 + $0x108] sm:$0xff]
  %v3303 = vld [vmem:[%s272 + $0x110] sm:$0xff]
  %v3304 = vld [vmem:[%s272 + $0x118] sm:$0xff]
  %v3305 = vld [vmem:[%s272 + $0x120] sm:$0xff]
  %v3306 = vld [vmem:[%s272 + $0x128] sm:$0xff]
  %v3307 = vld [vmem:[%s272 + $0x130] sm:$0xff]
  %v3308 = vld [vmem:[%s272 + $0x138] sm:$0xff]
  %v3309 = vld [vmem:[%s272 + $0x140] sm:$0xff]
  %v3310 = vld [vmem:[%s272 + $0x148] sm:$0xff]
  %v3311 = vld [vmem:[%s272 + $0x150] sm:$0xff]
  %v3312 = vld [vmem:[%s272 + $0x158] sm:$0xff]
  %v3313 = vld [vmem:[%s272 + $0x160] sm:$0xff]
  %v3314 = vld [vmem:[%s272 + $0x168] sm:$0xff]
  %v3315 = vld [vmem:[%s272 + $0x170] sm:$0xff]
  %v3316 = vld [vmem:[%s272 + $0x178] sm:$0xff]
  %v3317 = vld [vmem:[%s272 + $0x180] sm:$0xff]
  %v3318 = vld [vmem:[%s272 + $0x188] sm:$0xff]
  %v3319 = vld [vmem:[%s272 + $0x190] sm:$0xff]
  %v3320 = vld [vmem:[%s272 + $0x198] sm:$0xff]
  %v3321 = vld [vmem:[%s272 + $0x1a0] sm:$0xff]
  %v3322 = vld [vmem:[%s272 + $0x1a8] sm:$0xff]
  %v3323 = vld [vmem:[%s272 + $0x1b0] sm:$0xff]
  %v3324 = vld [vmem:[%s272 + $0x1b8] sm:$0xff]
  %v3325 = vld [vmem:[%s272 + $0x1c0] sm:$0xff]
  %v3326 = vld [vmem:[%s272 + $0x1c8] sm:$0xff]
  %v3327 = vld [vmem:[%s272 + $0x1d0] sm:$0xff]
  %v3328 = vld [vmem:[%s272 + $0x1d8] sm:$0xff]
  %v3329 = vld [vmem:[%s272 + $0x1e0] sm:$0xff]
  %v3330 = vld [vmem:[%s272 + $0x1e8] sm:$0xff]
  %v3331 = vld [vmem:[%s272 + $0x1f0] sm:$0xff]
  %v3332 = vld [vmem:[%s272 + $0x1f8] sm:$0xff]
  %3333 = vmatpush.msra.mxu0 %v3329
  %3334 = vmatpush.msra.mxu0 %v3325
  %3335 = vmatpush.msra.mxu0 %v3321
  %3336 = vmatpush.msra.mxu0 %v3317
  %3337 = vmatpush.msra.mxu0 %v3313
  %3338 = vmatpush.msra.mxu0 %v3309
  %3339 = vmatpush.msra.mxu0 %v3305
  %3340 = vmatpush.msra.mxu0 %v3301
  %3341 = vmatpush.msra.mxu0 %v3297
  %3342 = vmatpush.msra.mxu0 %v3293
  %3343 = vmatpush.msra.mxu0 %v3289
  %3344 = vmatpush.msra.mxu0 %v3285
  %3345 = vmatpush.msra.mxu0 %v3281
  %3346 = vmatpush.msra.mxu0 %v3277
  %3347 = vmatpush.msra.mxu0 %v3273
  %3348 = vmatpush.msra.mxu0 %v3269
  %3349 = vmatmul.f32.gmra.mxu0 %v3268
  %v3350 = vpop.f32.mrf.mxu0
  %v3351 = vadd.f32 0.0, %v3350
  %3352 = vdwg.mxu0
  %3353 = vmatpush.msra.mxu0 %v3330
  %3354 = vmatpush.msra.mxu0 %v3326
  %3355 = vmatpush.msra.mxu0 %v3322
  %3356 = vmatpush.msra.mxu0 %v3318
  %3357 = vmatpush.msra.mxu0 %v3314
  %3358 = vmatpush.msra.mxu0 %v3310
  %3359 = vmatpush.msra.mxu0 %v3306
  %3360 = vmatpush.msra.mxu0 %v3302
  %3361 = vmatpush.msra.mxu0 %v3298
  %3362 = vmatpush.msra.mxu0 %v3294
  %3363 = vmatpush.msra.mxu0 %v3290
  %3364 = vmatpush.msra.mxu0 %v3286
  %3365 = vmatpush.msra.mxu0 %v3282
  %3366 = vmatpush.msra.mxu0 %v3278
  %3367 = vmatpush.msra.mxu0 %v3274
  %3368 = vmatpush.msra.mxu0 %v3270
  %3369 = vmatmul.f32.gmra.mxu0 %v3268
  %v3370 = vpop.f32.mrf.mxu0
  %v3371 = vadd.f32 0.0, %v3370
  %3372 = vdwg.mxu0
  %3373 = vmatpush.msra.mxu0 %v3331
  %3374 = vmatpush.msra.mxu0 %v3327
  %3375 = vmatpush.msra.mxu0 %v3323
  %3376 = vmatpush.msra.mxu0 %v3319
  %3377 = vmatpush.msra.mxu0 %v3315
  %3378 = vmatpush.msra.mxu0 %v3311
  %3379 = vmatpush.msra.mxu0 %v3307
  %3380 = vmatpush.msra.mxu0 %v3303
  %3381 = vmatpush.msra.mxu0 %v3299
  %3382 = vmatpush.msra.mxu0 %v3295
  %3383 = vmatpush.msra.mxu0 %v3291
  %3384 = vmatpush.msra.mxu0 %v3287
  %3385 = vmatpush.msra.mxu0 %v3283
  %3386 = vmatpush.msra.mxu0 %v3279
  %3387 = vmatpush.msra.mxu0 %v3275
  %3388 = vmatpush.msra.mxu0 %v3271
  %3389 = vmatmul.f32.gmra.mxu0 %v3268
  %v3390 = vpop.f32.mrf.mxu0
  %v3391 = vadd.f32 0.0, %v3390
  %3392 = vdwg.mxu0
  %3393 = vmatpush.msra.mxu0 %v3332
  %3394 = vmatpush.msra.mxu0 %v3328
  %3395 = vmatpush.msra.mxu0 %v3324
  %3396 = vmatpush.msra.mxu0 %v3320
  %3397 = vmatpush.msra.mxu0 %v3316
  %3398 = vmatpush.msra.mxu0 %v3312
  %3399 = vmatpush.msra.mxu0 %v3308
  %3400 = vmatpush.msra.mxu0 %v3304
  %3401 = vmatpush.msra.mxu0 %v3300
  %3402 = vmatpush.msra.mxu0 %v3296
  %3403 = vmatpush.msra.mxu0 %v3292
  %3404 = vmatpush.msra.mxu0 %v3288
  %3405 = vmatpush.msra.mxu0 %v3284
  %3406 = vmatpush.msra.mxu0 %v3280
  %3407 = vmatpush.msra.mxu0 %v3276
  %3408 = vmatpush.msra.mxu0 %v3272
  %3409 = vmatmul.f32.gmra.mxu0 %v3268
  %v3410 = vpop.f32.mrf.mxu0
  %v3411 = vadd.f32 0.0, %v3410
  %3412 = vdwg.mxu0
  %3413 = vmatpush.msra.mxu0 %v3264
  %3414 = vmatpush.msra.mxu0 %v3260
  %3415 = vmatpush.msra.mxu0 %v3256
  %3416 = vmatpush.msra.mxu0 %v3252
  %3417 = vmatpush.msra.mxu0 %v3248
  %3418 = vmatpush.msra.mxu0 %v3244
  %3419 = vmatpush.msra.mxu0 %v3240
  %3420 = vmatpush.msra.mxu0 %v3236
  %3421 = vmatpush.msra.mxu0 %v3232
  %3422 = vmatpush.msra.mxu0 %v3228
  %3423 = vmatpush.msra.mxu0 %v3224
  %3424 = vmatpush.msra.mxu0 %v3220
  %3425 = vmatpush.msra.mxu0 %v3216
  %3426 = vmatpush.msra.mxu0 %v3212
  %3427 = vmatpush.msra.mxu0 %v3208
  %3428 = vmatpush.msra.mxu0 %v3204
  %3429 = vmatmul.f32.gmra.mxu0 %v3201
  %v3430 = vpop.f32.mrf.mxu0
  %v3431 = vadd.f32 %v3351, %v3430
  %3432 = vdwg.mxu0
  %3433 = vmatpush.msra.mxu0 %v3265
  %3434 = vmatpush.msra.mxu0 %v3261
  %3435 = vmatpush.msra.mxu0 %v3257
  %3436 = vmatpush.msra.mxu0 %v3253
  %3437 = vmatpush.msra.mxu0 %v3249
  %3438 = vmatpush.msra.mxu0 %v3245
  %3439 = vmatpush.msra.mxu0 %v3241
  %3440 = vmatpush.msra.mxu0 %v3237
  %3441 = vmatpush.msra.mxu0 %v3233
  %3442 = vmatpush.msra.mxu0 %v3229
  %3443 = vmatpush.msra.mxu0 %v3225
  %3444 = vmatpush.msra.mxu0 %v3221
  %3445 = vmatpush.msra.mxu0 %v3217
  %3446 = vmatpush.msra.mxu0 %v3213
  %3447 = vmatpush.msra.mxu0 %v3209
  %3448 = vmatpush.msra.mxu0 %v3205
  %3449 = vmatmul.f32.gmra.mxu0 %v3201
  %v3450 = vpop.f32.mrf.mxu0
  %v3451 = vadd.f32 %v3371, %v3450
  %3452 = vdwg.mxu0
  %3453 = vmatpush.msra.mxu0 %v3266
  %3454 = vmatpush.msra.mxu0 %v3262
  %3455 = vmatpush.msra.mxu0 %v3258
  %3456 = vmatpush.msra.mxu0 %v3254
  %3457 = vmatpush.msra.mxu0 %v3250
  %3458 = vmatpush.msra.mxu0 %v3246
  %3459 = vmatpush.msra.mxu0 %v3242
  %3460 = vmatpush.msra.mxu0 %v3238
  %3461 = vmatpush.msra.mxu0 %v3234
  %3462 = vmatpush.msra.mxu0 %v3230
  %3463 = vmatpush.msra.mxu0 %v3226
  %3464 = vmatpush.msra.mxu0 %v3222
  %3465 = vmatpush.msra.mxu0 %v3218
  %3466 = vmatpush.msra.mxu0 %v3214
  %3467 = vmatpush.msra.mxu0 %v3210
  %3468 = vmatpush.msra.mxu0 %v3206
  %3469 = vmatmul.f32.gmra.mxu0 %v3201
  %v3470 = vpop.f32.mrf.mxu0
  %v3471 = vadd.f32 %v3391, %v3470
  %3472 = vdwg.mxu0
  %3473 = vmatpush.msra.mxu0 %v3267
  %3474 = vmatpush.msra.mxu0 %v3263
  %3475 = vmatpush.msra.mxu0 %v3259
  %3476 = vmatpush.msra.mxu0 %v3255
  %3477 = vmatpush.msra.mxu0 %v3251
  %3478 = vmatpush.msra.mxu0 %v3247
  %3479 = vmatpush.msra.mxu0 %v3243
  %3480 = vmatpush.msra.mxu0 %v3239
  %3481 = vmatpush.msra.mxu0 %v3235
  %3482 = vmatpush.msra.mxu0 %v3231
  %3483 = vmatpush.msra.mxu0 %v3227
  %3484 = vmatpush.msra.mxu0 %v3223
  %3485 = vmatpush.msra.mxu0 %v3219
  %3486 = vmatpush.msra.mxu0 %v3215
  %3487 = vmatpush.msra.mxu0 %v3211
  %3488 = vmatpush.msra.mxu0 %v3207
  %3489 = vmatmul.f32.gmra.mxu0 %v3201
  %v3490 = vpop.f32.mrf.mxu0
  %v3491 = vadd.f32 %v3411, %v3490
  %3492 = vdwg.mxu0
  %v3493 = vld [vmem:[%s497] sm:$0xf]
  %v3495 = vperm.slane %v3493, 0
  %v3496 = vperm.slane %v3493, 1
  %v3497 = vperm.slane %v3493, 2
  %v3498 = vperm.slane %v3493, 3
  %v3503 = vadd.f32 %v3431, %v3495
  %v3504 = vadd.f32 %v3451, %v3496
  %v3505 = vadd.f32 %v3471, %v3497
  %v3506 = vadd.f32 %v3491, %v3498
  %v3507 = vmul.f32 %v3503, 0.5
  %v3508 = vtanh.pop %v3507
  %v3509 = vmul.f32 %v3508, 0.5
  %v3510 = vadd.f32 %v3509, 0.5
  %v3511 = vmul.f32 %v3504, 0.5
  %v3512 = vtanh.pop %v3511
  %v3513 = vmul.f32 %v3512, 0.5
  %v3514 = vadd.f32 %v3513, 0.5
  %v3515 = vtanh.pop %v3505
  %v3516 = vmul.f32 %v3506, 0.5
  %v3517 = vtanh.pop %v3516
  %v3518 = vmul.f32 %v3517, 0.5
  %v3519 = vadd.f32 %v3518, 0.5
  %v3520 = vld [vmem:[%s525] sm:$0xff]
  %v3521 = vmul.f32 %v3514, %v3520
  %v3522 = vmul.f32 %v3510, %v3515
  %v3523 = vadd.f32 %v3521, %v3522
  %v3524 = vtanh.pop %v3523
  %v3525 = vmul.f32 %v3519, %v3524
  %3526 = vst [vmem:[%s525] sm:$0xff] %v3523
  %3527 = vst [vmem:[%s270] sm:$0xff] %v3525
  %s3528 = scalar_lea.vmem %s0, 224
  %v3529 = vld [vmem:[%s3528] sm:$0xff]
  %v3530 = vld [vmem:[%s3528 + $0x8] sm:$0xff]
  %v3531 = vld [vmem:[%s3528 + $0x10] sm:$0xff]
  %v3532 = vld [vmem:[%s3528 + $0x18] sm:$0xff]
  %v3533 = vld [vmem:[#allocation2] sm:$0xff]
  %v3534 = vld [vmem:[%s2] sm:$0xff]
  %v3535 = vld [vmem:[%s2 + $0x8] sm:$0xff]
  %v3536 = vld [vmem:[%s2 + $0x10] sm:$0xff]
  %v3537 = vld [vmem:[%s2 + $0x18] sm:$0xff]
  %v3538 = vld [vmem:[%s2 + $0x20] sm:$0xff]
  %v3539 = vld [vmem:[%s2 + $0x28] sm:$0xff]
  %v3540 = vld [vmem:[%s2 + $0x30] sm:$0xff]
  %v3541 = vld [vmem:[%s2 + $0x38] sm:$0xff]
  %v3542 = vld [vmem:[%s2 + $0x40] sm:$0xff]
  %v3543 = vld [vmem:[%s2 + $0x48] sm:$0xff]
  %v3544 = vld [vmem:[%s2 + $0x50] sm:$0xff]
  %v3545 = vld [vmem:[%s2 + $0x58] sm:$0xff]
  %v3546 = vld [vmem:[%s2 + $0x60] sm:$0xff]
  %v3547 = vld [vmem:[%s2 + $0x68] sm:$0xff]
  %v3548 = vld [vmem:[%s2 + $0x70] sm:$0xff]
  %v3549 = vld [vmem:[%s2 + $0x78] sm:$0xff]
  %v3550 = vld [vmem:[%s2 + $0x80] sm:$0xff]
  %v3551 = vld [vmem:[%s2 + $0x88] sm:$0xff]
  %v3552 = vld [vmem:[%s2 + $0x90] sm:$0xff]
  %v3553 = vld [vmem:[%s2 + $0x98] sm:$0xff]
  %v3554 = vld [vmem:[%s2 + $0xa0] sm:$0xff]
  %v3555 = vld [vmem:[%s2 + $0xa8] sm:$0xff]
  %v3556 = vld [vmem:[%s2 + $0xb0] sm:$0xff]
  %v3557 = vld [vmem:[%s2 + $0xb8] sm:$0xff]
  %v3558 = vld [vmem:[%s2 + $0xc0] sm:$0xff]
  %v3559 = vld [vmem:[%s2 + $0xc8] sm:$0xff]
  %v3560 = vld [vmem:[%s2 + $0xd0] sm:$0xff]
  %v3561 = vld [vmem:[%s2 + $0xd8] sm:$0xff]
  %v3562 = vld [vmem:[%s2 + $0xe0] sm:$0xff]
  %v3563 = vld [vmem:[%s2 + $0xe8] sm:$0xff]
  %v3564 = vld [vmem:[%s2 + $0xf0] sm:$0xff]
  %v3565 = vld [vmem:[%s2 + $0xf8] sm:$0xff]
  %v3566 = vld [vmem:[%s2 + $0x100] sm:$0xff]
  %v3567 = vld [vmem:[%s2 + $0x108] sm:$0xff]
  %v3568 = vld [vmem:[%s2 + $0x110] sm:$0xff]
  %v3569 = vld [vmem:[%s2 + $0x118] sm:$0xff]
  %v3570 = vld [vmem:[%s2 + $0x120] sm:$0xff]
  %v3571 = vld [vmem:[%s2 + $0x128] sm:$0xff]
  %v3572 = vld [vmem:[%s2 + $0x130] sm:$0xff]
  %v3573 = vld [vmem:[%s2 + $0x138] sm:$0xff]
  %v3574 = vld [vmem:[%s2 + $0x140] sm:$0xff]
  %v3575 = vld [vmem:[%s2 + $0x148] sm:$0xff]
  %v3576 = vld [vmem:[%s2 + $0x150] sm:$0xff]
  %v3577 = vld [vmem:[%s2 + $0x158] sm:$0xff]
  %v3578 = vld [vmem:[%s2 + $0x160] sm:$0xff]
  %v3579 = vld [vmem:[%s2 + $0x168] sm:$0xff]
  %v3580 = vld [vmem:[%s2 + $0x170] sm:$0xff]
  %v3581 = vld [vmem:[%s2 + $0x178] sm:$0xff]
  %v3582 = vld [vmem:[%s2 + $0x180] sm:$0xff]
  %v3583 = vld [vmem:[%s2 + $0x188] sm:$0xff]
  %v3584 = vld [vmem:[%s2 + $0x190] sm:$0xff]
  %v3585 = vld [vmem:[%s2 + $0x198] sm:$0xff]
  %v3586 = vld [vmem:[%s2 + $0x1a0] sm:$0xff]
  %v3587 = vld [vmem:[%s2 + $0x1a8] sm:$0xff]
  %v3588 = vld [vmem:[%s2 + $0x1b0] sm:$0xff]
  %v3589 = vld [vmem:[%s2 + $0x1b8] sm:$0xff]
  %v3590 = vld [vmem:[%s2 + $0x1c0] sm:$0xff]
  %v3591 = vld [vmem:[%s2 + $0x1c8] sm:$0xff]
  %v3592 = vld [vmem:[%s2 + $0x1d0] sm:$0xff]
  %v3593 = vld [vmem:[%s2 + $0x1d8] sm:$0xff]
  %v3594 = vld [vmem:[%s2 + $0x1e0] sm:$0xff]
  %v3595 = vld [vmem:[%s2 + $0x1e8] sm:$0xff]
  %v3596 = vld [vmem:[%s2 + $0x1f0] sm:$0xff]
  %v3597 = vld [vmem:[%s2 + $0x1f8] sm:$0xff]
  %3598 = vmatpush.msra.mxu0 %v3594
  %3599 = vmatpush.msra.mxu0 %v3590
  %3600 = vmatpush.msra.mxu0 %v3586
  %3601 = vmatpush.msra.mxu0 %v3582
  %3602 = vmatpush.msra.mxu0 %v3578
  %3603 = vmatpush.msra.mxu0 %v3574
  %3604 = vmatpush.msra.mxu0 %v3570
  %3605 = vmatpush.msra.mxu0 %v3566
  %3606 = vmatpush.msra.mxu0 %v3562
  %3607 = vmatpush.msra.mxu0 %v3558
  %3608 = vmatpush.msra.mxu0 %v3554
  %3609 = vmatpush.msra.mxu0 %v3550
  %3610 = vmatpush.msra.mxu0 %v3546
  %3611 = vmatpush.msra.mxu0 %v3542
  %3612 = vmatpush.msra.mxu0 %v3538
  %3613 = vmatpush.msra.mxu0 %v3534
  %3614 = vmatmul.f32.gmra.mxu0 %v3533
  %v3615 = vpop.f32.mrf.mxu0
  %v3616 = vadd.f32 0.0, %v3615
  %3617 = vdwg.mxu0
  %3618 = vmatpush.msra.mxu0 %v3595
  %3619 = vmatpush.msra.mxu0 %v3591
  %3620 = vmatpush.msra.mxu0 %v3587
  %3621 = vmatpush.msra.mxu0 %v3583
  %3622 = vmatpush.msra.mxu0 %v3579
  %3623 = vmatpush.msra.mxu0 %v3575
  %3624 = vmatpush.msra.mxu0 %v3571
  %3625 = vmatpush.msra.mxu0 %v3567
  %3626 = vmatpush.msra.mxu0 %v3563
  %3627 = vmatpush.msra.mxu0 %v3559
  %3628 = vmatpush.msra.mxu0 %v3555
  %3629 = vmatpush.msra.mxu0 %v3551
  %3630 = vmatpush.msra.mxu0 %v3547
  %3631 = vmatpush.msra.mxu0 %v3543
  %3632 = vmatpush.msra.mxu0 %v3539
  %3633 = vmatpush.msra.mxu0 %v3535
  %3634 = vmatmul.f32.gmra.mxu0 %v3533
  %v3635 = vpop.f32.mrf.mxu0
  %v3636 = vadd.f32 0.0, %v3635
  %3637 = vdwg.mxu0
  %3638 = vmatpush.msra.mxu0 %v3596
  %3639 = vmatpush.msra.mxu0 %v3592
  %3640 = vmatpush.msra.mxu0 %v3588
  %3641 = vmatpush.msra.mxu0 %v3584
  %3642 = vmatpush.msra.mxu0 %v3580
  %3643 = vmatpush.msra.mxu0 %v3576
  %3644 = vmatpush.msra.mxu0 %v3572
  %3645 = vmatpush.msra.mxu0 %v3568
  %3646 = vmatpush.msra.mxu0 %v3564
  %3647 = vmatpush.msra.mxu0 %v3560
  %3648 = vmatpush.msra.mxu0 %v3556
  %3649 = vmatpush.msra.mxu0 %v3552
  %3650 = vmatpush.msra.mxu0 %v3548
  %3651 = vmatpush.msra.mxu0 %v3544
  %3652 = vmatpush.msra.mxu0 %v3540
  %3653 = vmatpush.msra.mxu0 %v3536
  %3654 = vmatmul.f32.gmra.mxu0 %v3533
  %v3655 = vpop.f32.mrf.mxu0
  %v3656 = vadd.f32 0.0, %v3655
  %3657 = vdwg.mxu0
  %3658 = vmatpush.msra.mxu0 %v3597
  %3659 = vmatpush.msra.mxu0 %v3593
  %3660 = vmatpush.msra.mxu0 %v3589
  %3661 = vmatpush.msra.mxu0 %v3585
  %3662 = vmatpush.msra.mxu0 %v3581
  %3663 = vmatpush.msra.mxu0 %v3577
  %3664 = vmatpush.msra.mxu0 %v3573
  %3665 = vmatpush.msra.mxu0 %v3569
  %3666 = vmatpush.msra.mxu0 %v3565
  %3667 = vmatpush.msra.mxu0 %v3561
  %3668 = vmatpush.msra.mxu0 %v3557
  %3669 = vmatpush.msra.mxu0 %v3553
  %3670 = vmatpush.msra.mxu0 %v3549
  %3671 = vmatpush.msra.mxu0 %v3545
  %3672 = vmatpush.msra.mxu0 %v3541
  %3673 = vmatpush.msra.mxu0 %v3537
  %3674 = vmatmul.f32.gmra.mxu0 %v3533
  %v3675 = vpop.f32.mrf.mxu0
  %v3676 = vadd.f32 0.0, %v3675
  %3677 = vdwg.mxu0
  %v3678 = vadd.f32 %v3529, %v3616
  %v3679 = vadd.f32 %v3530, %v3636
  %v3680 = vadd.f32 %v3531, %v3656
  %v3681 = vadd.f32 %v3532, %v3676
  %v3682 = vmul.f32 %v3678, 0.5
  %v3683 = vtanh.pop %v3682
  %v3684 = vmul.f32 %v3683, 0.5
  %v3685 = vadd.f32 %v3684, 0.5
  %v3686 = vmul.f32 %v3679, 0.5
  %v3687 = vtanh.pop %v3686
  %v3688 = vmul.f32 %v3687, 0.5
  %v3689 = vadd.f32 %v3688, 0.5
  %v3690 = vtanh.pop %v3680
  %v3691 = vmul.f32 %v3681, 0.5
  %v3692 = vtanh.pop %v3691
  %v3693 = vmul.f32 %v3692, 0.5
  %v3694 = vadd.f32 %v3693, 0.5
  %v3695 = vld [vmem:[#allocation3] sm:$0xff]
  %v3696 = vmul.f32 %v3689, %v3695
  %v3697 = vmul.f32 %v3685, %v3690
  %v3698 = vadd.f32 %v3696, %v3697
  %v3699 = vtanh.pop %v3698
  %v3700 = vmul.f32 %v3694, %v3699
  %3701 = vst [vmem:[#allocation3] sm:$0xff] %v3698
  %3702 = vst [vmem:[#allocation2] sm:$0xff] %v3700
  %v3703 = vld [vmem:[%s205] sm:$0xff]
  %v3704 = vld [vmem:[%s205 + $0x8] sm:$0xff]
  %v3705 = vld [vmem:[%s205 + $0x10] sm:$0xff]
  %v3706 = vld [vmem:[%s205 + $0x18] sm:$0xff]
  %v3707 = vld [vmem:[%s205 + $0x20] sm:$0xff]
  %v3708 = vld [vmem:[%s205 + $0x28] sm:$0xff]
  %v3709 = vld [vmem:[%s205 + $0x30] sm:$0xff]
  %v3710 = vld [vmem:[%s205 + $0x38] sm:$0xff]
  %v3711 = vld [vmem:[%s205 + $0x40] sm:$0xff]
  %v3712 = vld [vmem:[%s205 + $0x48] sm:$0xff]
  %v3713 = vld [vmem:[%s205 + $0x50] sm:$0xff]
  %v3714 = vld [vmem:[%s205 + $0x58] sm:$0xff]
  %v3715 = vld [vmem:[%s205 + $0x60] sm:$0xff]
  %v3716 = vld [vmem:[%s205 + $0x68] sm:$0xff]
  %v3717 = vld [vmem:[%s205 + $0x70] sm:$0xff]
  %v3718 = vld [vmem:[%s205 + $0x78] sm:$0xff]
  %v3719 = vld [vmem:[%s205 + $0x80] sm:$0xff]
  %v3720 = vld [vmem:[%s205 + $0x88] sm:$0xff]
  %v3721 = vld [vmem:[%s205 + $0x90] sm:$0xff]
  %v3722 = vld [vmem:[%s205 + $0x98] sm:$0xff]
  %v3723 = vld [vmem:[%s205 + $0xa0] sm:$0xff]
  %v3724 = vld [vmem:[%s205 + $0xa8] sm:$0xff]
  %v3725 = vld [vmem:[%s205 + $0xb0] sm:$0xff]
  %v3726 = vld [vmem:[%s205 + $0xb8] sm:$0xff]
  %v3727 = vld [vmem:[%s205 + $0xc0] sm:$0xff]
  %v3728 = vld [vmem:[%s205 + $0xc8] sm:$0xff]
  %v3729 = vld [vmem:[%s205 + $0xd0] sm:$0xff]
  %v3730 = vld [vmem:[%s205 + $0xd8] sm:$0xff]
  %v3731 = vld [vmem:[%s205 + $0xe0] sm:$0xff]
  %v3732 = vld [vmem:[%s205 + $0xe8] sm:$0xff]
  %v3733 = vld [vmem:[%s205 + $0xf0] sm:$0xff]
  %v3734 = vld [vmem:[%s205 + $0xf8] sm:$0xff]
  %v3735 = vld [vmem:[%s205 + $0x100] sm:$0xff]
  %v3736 = vld [vmem:[%s205 + $0x108] sm:$0xff]
  %v3737 = vld [vmem:[%s205 + $0x110] sm:$0xff]
  %v3738 = vld [vmem:[%s205 + $0x118] sm:$0xff]
  %v3739 = vld [vmem:[%s205 + $0x120] sm:$0xff]
  %v3740 = vld [vmem:[%s205 + $0x128] sm:$0xff]
  %v3741 = vld [vmem:[%s205 + $0x130] sm:$0xff]
  %v3742 = vld [vmem:[%s205 + $0x138] sm:$0xff]
  %v3743 = vld [vmem:[%s205 + $0x140] sm:$0xff]
  %v3744 = vld [vmem:[%s205 + $0x148] sm:$0xff]
  %v3745 = vld [vmem:[%s205 + $0x150] sm:$0xff]
  %v3746 = vld [vmem:[%s205 + $0x158] sm:$0xff]
  %v3747 = vld [vmem:[%s205 + $0x160] sm:$0xff]
  %v3748 = vld [vmem:[%s205 + $0x168] sm:$0xff]
  %v3749 = vld [vmem:[%s205 + $0x170] sm:$0xff]
  %v3750 = vld [vmem:[%s205 + $0x178] sm:$0xff]
  %v3751 = vld [vmem:[%s205 + $0x180] sm:$0xff]
  %v3752 = vld [vmem:[%s205 + $0x188] sm:$0xff]
  %v3753 = vld [vmem:[%s205 + $0x190] sm:$0xff]
  %v3754 = vld [vmem:[%s205 + $0x198] sm:$0xff]
  %v3755 = vld [vmem:[%s205 + $0x1a0] sm:$0xff]
  %v3756 = vld [vmem:[%s205 + $0x1a8] sm:$0xff]
  %v3757 = vld [vmem:[%s205 + $0x1b0] sm:$0xff]
  %v3758 = vld [vmem:[%s205 + $0x1b8] sm:$0xff]
  %v3759 = vld [vmem:[%s205 + $0x1c0] sm:$0xff]
  %v3760 = vld [vmem:[%s205 + $0x1c8] sm:$0xff]
  %v3761 = vld [vmem:[%s205 + $0x1d0] sm:$0xff]
  %v3762 = vld [vmem:[%s205 + $0x1d8] sm:$0xff]
  %v3763 = vld [vmem:[%s205 + $0x1e0] sm:$0xff]
  %v3764 = vld [vmem:[%s205 + $0x1e8] sm:$0xff]
  %v3765 = vld [vmem:[%s205 + $0x1f0] sm:$0xff]
  %v3766 = vld [vmem:[%s205 + $0x1f8] sm:$0xff]
  %v3767 = vld [vmem:[%s270] sm:$0xff]
  %v3768 = vld [vmem:[%s272] sm:$0xff]
  %v3769 = vld [vmem:[%s272 + $0x8] sm:$0xff]
  %v3770 = vld [vmem:[%s272 + $0x10] sm:$0xff]
  %v3771 = vld [vmem:[%s272 + $0x18] sm:$0xff]
  %v3772 = vld [vmem:[%s272 + $0x20] sm:$0xff]
  %v3773 = vld [vmem:[%s272 + $0x28] sm:$0xff]
  %v3774 = vld [vmem:[%s272 + $0x30] sm:$0xff]
  %v3775 = vld [vmem:[%s272 + $0x38] sm:$0xff]
  %v3776 = vld [vmem:[%s272 + $0x40] sm:$0xff]
  %v3777 = vld [vmem:[%s272 + $0x48] sm:$0xff]
  %v3778 = vld [vmem:[%s272 + $0x50] sm:$0xff]
  %v3779 = vld [vmem:[%s272 + $0x58] sm:$0xff]
  %v3780 = vld [vmem:[%s272 + $0x60] sm:$0xff]
  %v3781 = vld [vmem:[%s272 + $0x68] sm:$0xff]
  %v3782 = vld [vmem:[%s272 + $0x70] sm:$0xff]
  %v3783 = vld [vmem:[%s272 + $0x78] sm:$0xff]
  %v3784 = vld [vmem:[%s272 + $0x80] sm:$0xff]
  %v3785 = vld [vmem:[%s272 + $0x88] sm:$0xff]
  %v3786 = vld [vmem:[%s272 + $0x90] sm:$0xff]
  %v3787 = vld [vmem:[%s272 + $0x98] sm:$0xff]
  %v3788 = vld [vmem:[%s272 + $0xa0] sm:$0xff]
  %v3789 = vld [vmem:[%s272 + $0xa8] sm:$0xff]
  %v3790 = vld [vmem:[%s272 + $0xb0] sm:$0xff]
  %v3791 = vld [vmem:[%s272 + $0xb8] sm:$0xff]
  %v3792 = vld [vmem:[%s272 + $0xc0] sm:$0xff]
  %v3793 = vld [vmem:[%s272 + $0xc8] sm:$0xff]
  %v3794 = vld [vmem:[%s272 + $0xd0] sm:$0xff]
  %v3795 = vld [vmem:[%s272 + $0xd8] sm:$0xff]
  %v3796 = vld [vmem:[%s272 + $0xe0] sm:$0xff]
  %v3797 = vld [vmem:[%s272 + $0xe8] sm:$0xff]
  %v3798 = vld [vmem:[%s272 + $0xf0] sm:$0xff]
  %v3799 = vld [vmem:[%s272 + $0xf8] sm:$0xff]
  %v3800 = vld [vmem:[%s272 + $0x100] sm:$0xff]
  %v3801 = vld [vmem:[%s272 + $0x108] sm:$0xff]
  %v3802 = vld [vmem:[%s272 + $0x110] sm:$0xff]
  %v3803 = vld [vmem:[%s272 + $0x118] sm:$0xff]
  %v3804 = vld [vmem:[%s272 + $0x120] sm:$0xff]
  %v3805 = vld [vmem:[%s272 + $0x128] sm:$0xff]
  %v3806 = vld [vmem:[%s272 + $0x130] sm:$0xff]
  %v3807 = vld [vmem:[%s272 + $0x138] sm:$0xff]
  %v3808 = vld [vmem:[%s272 + $0x140] sm:$0xff]
  %v3809 = vld [vmem:[%s272 + $0x148] sm:$0xff]
  %v3810 = vld [vmem:[%s272 + $0x150] sm:$0xff]
  %v3811 = vld [vmem:[%s272 + $0x158] sm:$0xff]
  %v3812 = vld [vmem:[%s272 + $0x160] sm:$0xff]
  %v3813 = vld [vmem:[%s272 + $0x168] sm:$0xff]
  %v3814 = vld [vmem:[%s272 + $0x170] sm:$0xff]
  %v3815 = vld [vmem:[%s272 + $0x178] sm:$0xff]
  %v3816 = vld [vmem:[%s272 + $0x180] sm:$0xff]
  %v3817 = vld [vmem:[%s272 + $0x188] sm:$0xff]
  %v3818 = vld [vmem:[%s272 + $0x190] sm:$0xff]
  %v3819 = vld [vmem:[%s272 + $0x198] sm:$0xff]
  %v3820 = vld [vmem:[%s272 + $0x1a0] sm:$0xff]
  %v3821 = vld [vmem:[%s272 + $0x1a8] sm:$0xff]
  %v3822 = vld [vmem:[%s272 + $0x1b0] sm:$0xff]
  %v3823 = vld [vmem:[%s272 + $0x1b8] sm:$0xff]
  %v3824 = vld [vmem:[%s272 + $0x1c0] sm:$0xff]
  %v3825 = vld [vmem:[%s272 + $0x1c8] sm:$0xff]
  %v3826 = vld [vmem:[%s272 + $0x1d0] sm:$0xff]
  %v3827 = vld [vmem:[%s272 + $0x1d8] sm:$0xff]
  %v3828 = vld [vmem:[%s272 + $0x1e0] sm:$0xff]
  %v3829 = vld [vmem:[%s272 + $0x1e8] sm:$0xff]
  %v3830 = vld [vmem:[%s272 + $0x1f0] sm:$0xff]
  %v3831 = vld [vmem:[%s272 + $0x1f8] sm:$0xff]
  %3832 = vmatpush.msra.mxu0 %v3828
  %3833 = vmatpush.msra.mxu0 %v3824
  %3834 = vmatpush.msra.mxu0 %v3820
  %3835 = vmatpush.msra.mxu0 %v3816
  %3836 = vmatpush.msra.mxu0 %v3812
  %3837 = vmatpush.msra.mxu0 %v3808
  %3838 = vmatpush.msra.mxu0 %v3804
  %3839 = vmatpush.msra.mxu0 %v3800
  %3840 = vmatpush.msra.mxu0 %v3796
  %3841 = vmatpush.msra.mxu0 %v3792
  %3842 = vmatpush.msra.mxu0 %v3788
  %3843 = vmatpush.msra.mxu0 %v3784
  %3844 = vmatpush.msra.mxu0 %v3780
  %3845 = vmatpush.msra.mxu0 %v3776
  %3846 = vmatpush.msra.mxu0 %v3772
  %3847 = vmatpush.msra.mxu0 %v3768
  %3848 = vmatmul.f32.gmra.mxu0 %v3767
  %v3849 = vpop.f32.mrf.mxu0
  %v3850 = vadd.f32 0.0, %v3849
  %3851 = vdwg.mxu0
  %3852 = vmatpush.msra.mxu0 %v3829
  %3853 = vmatpush.msra.mxu0 %v3825
  %3854 = vmatpush.msra.mxu0 %v3821
  %3855 = vmatpush.msra.mxu0 %v3817
  %3856 = vmatpush.msra.mxu0 %v3813
  %3857 = vmatpush.msra.mxu0 %v3809
  %3858 = vmatpush.msra.mxu0 %v3805
  %3859 = vmatpush.msra.mxu0 %v3801
  %3860 = vmatpush.msra.mxu0 %v3797
  %3861 = vmatpush.msra.mxu0 %v3793
  %3862 = vmatpush.msra.mxu0 %v3789
  %3863 = vmatpush.msra.mxu0 %v3785
  %3864 = vmatpush.msra.mxu0 %v3781
  %3865 = vmatpush.msra.mxu0 %v3777
  %3866 = vmatpush.msra.mxu0 %v3773
  %3867 = vmatpush.msra.mxu0 %v3769
  %3868 = vmatmul.f32.gmra.mxu0 %v3767
  %v3869 = vpop.f32.mrf.mxu0
  %v3870 = vadd.f32 0.0, %v3869
  %3871 = vdwg.mxu0
  %3872 = vmatpush.msra.mxu0 %v3830
  %3873 = vmatpush.msra.mxu0 %v3826
  %3874 = vmatpush.msra.mxu0 %v3822
  %3875 = vmatpush.msra.mxu0 %v3818
  %3876 = vmatpush.msra.mxu0 %v3814
  %3877 = vmatpush.msra.mxu0 %v3810
  %3878 = vmatpush.msra.mxu0 %v3806
  %3879 = vmatpush.msra.mxu0 %v3802
  %3880 = vmatpush.msra.mxu0 %v3798
  %3881 = vmatpush.msra.mxu0 %v3794
  %3882 = vmatpush.msra.mxu0 %v3790
  %3883 = vmatpush.msra.mxu0 %v3786
  %3884 = vmatpush.msra.mxu0 %v3782
  %3885 = vmatpush.msra.mxu0 %v3778
  %3886 = vmatpush.msra.mxu0 %v3774
  %3887 = vmatpush.msra.mxu0 %v3770
  %3888 = vmatmul.f32.gmra.mxu0 %v3767
  %v3889 = vpop.f32.mrf.mxu0
  %v3890 = vadd.f32 0.0, %v3889
  %3891 = vdwg.mxu0
  %3892 = vmatpush.msra.mxu0 %v3831
  %3893 = vmatpush.msra.mxu0 %v3827
  %3894 = vmatpush.msra.mxu0 %v3823
  %3895 = vmatpush.msra.mxu0 %v3819
  %3896 = vmatpush.msra.mxu0 %v3815
  %3897 = vmatpush.msra.mxu0 %v3811
  %3898 = vmatpush.msra.mxu0 %v3807
  %3899 = vmatpush.msra.mxu0 %v3803
  %3900 = vmatpush.msra.mxu0 %v3799
  %3901 = vmatpush.msra.mxu0 %v3795
  %3902 = vmatpush.msra.mxu0 %v3791
  %3903 = vmatpush.msra.mxu0 %v3787
  %3904 = vmatpush.msra.mxu0 %v3783
  %3905 = vmatpush.msra.mxu0 %v3779
  %3906 = vmatpush.msra.mxu0 %v3775
  %3907 = vmatpush.msra.mxu0 %v3771
  %3908 = vmatmul.f32.gmra.mxu0 %v3767
  %v3909 = vpop.f32.mrf.mxu0
  %v3910 = vadd.f32 0.0, %v3909
  %3911 = vdwg.mxu0
  %3912 = vmatpush.msra.mxu0 %v3763
  %3913 = vmatpush.msra.mxu0 %v3759
  %3914 = vmatpush.msra.mxu0 %v3755
  %3915 = vmatpush.msra.mxu0 %v3751
  %3916 = vmatpush.msra.mxu0 %v3747
  %3917 = vmatpush.msra.mxu0 %v3743
  %3918 = vmatpush.msra.mxu0 %v3739
  %3919 = vmatpush.msra.mxu0 %v3735
  %3920 = vmatpush.msra.mxu0 %v3731
  %3921 = vmatpush.msra.mxu0 %v3727
  %3922 = vmatpush.msra.mxu0 %v3723
  %3923 = vmatpush.msra.mxu0 %v3719
  %3924 = vmatpush.msra.mxu0 %v3715
  %3925 = vmatpush.msra.mxu0 %v3711
  %3926 = vmatpush.msra.mxu0 %v3707
  %3927 = vmatpush.msra.mxu0 %v3703
  %3928 = vmatmul.f32.gmra.mxu0 %v3700
  %v3929 = vpop.f32.mrf.mxu0
  %v3930 = vadd.f32 %v3850, %v3929
  %3931 = vdwg.mxu0
  %3932 = vmatpush.msra.mxu0 %v3764
  %3933 = vmatpush.msra.mxu0 %v3760
  %3934 = vmatpush.msra.mxu0 %v3756
  %3935 = vmatpush.msra.mxu0 %v3752
  %3936 = vmatpush.msra.mxu0 %v3748
  %3937 = vmatpush.msra.mxu0 %v3744
  %3938 = vmatpush.msra.mxu0 %v3740
  %3939 = vmatpush.msra.mxu0 %v3736
  %3940 = vmatpush.msra.mxu0 %v3732
  %3941 = vmatpush.msra.mxu0 %v3728
  %3942 = vmatpush.msra.mxu0 %v3724
  %3943 = vmatpush.msra.mxu0 %v3720
  %3944 = vmatpush.msra.mxu0 %v3716
  %3945 = vmatpush.msra.mxu0 %v3712
  %3946 = vmatpush.msra.mxu0 %v3708
  %3947 = vmatpush.msra.mxu0 %v3704
  %3948 = vmatmul.f32.gmra.mxu0 %v3700
  %v3949 = vpop.f32.mrf.mxu0
  %v3950 = vadd.f32 %v3870, %v3949
  %3951 = vdwg.mxu0
  %3952 = vmatpush.msra.mxu0 %v3765
  %3953 = vmatpush.msra.mxu0 %v3761
  %3954 = vmatpush.msra.mxu0 %v3757
  %3955 = vmatpush.msra.mxu0 %v3753
  %3956 = vmatpush.msra.mxu0 %v3749
  %3957 = vmatpush.msra.mxu0 %v3745
  %3958 = vmatpush.msra.mxu0 %v3741
  %3959 = vmatpush.msra.mxu0 %v3737
  %3960 = vmatpush.msra.mxu0 %v3733
  %3961 = vmatpush.msra.mxu0 %v3729
  %3962 = vmatpush.msra.mxu0 %v3725
  %3963 = vmatpush.msra.mxu0 %v3721
  %3964 = vmatpush.msra.mxu0 %v3717
  %3965 = vmatpush.msra.mxu0 %v3713
  %3966 = vmatpush.msra.mxu0 %v3709
  %3967 = vmatpush.msra.mxu0 %v3705
  %3968 = vmatmul.f32.gmra.mxu0 %v3700
  %v3969 = vpop.f32.mrf.mxu0
  %v3970 = vadd.f32 %v3890, %v3969
  %3971 = vdwg.mxu0
  %3972 = vmatpush.msra.mxu0 %v3766
  %3973 = vmatpush.msra.mxu0 %v3762
  %3974 = vmatpush.msra.mxu0 %v3758
  %3975 = vmatpush.msra.mxu0 %v3754
  %3976 = vmatpush.msra.mxu0 %v3750
  %3977 = vmatpush.msra.mxu0 %v3746
  %3978 = vmatpush.msra.mxu0 %v3742
  %3979 = vmatpush.msra.mxu0 %v3738
  %3980 = vmatpush.msra.mxu0 %v3734
  %3981 = vmatpush.msra.mxu0 %v3730
  %3982 = vmatpush.msra.mxu0 %v3726
  %3983 = vmatpush.msra.mxu0 %v3722
  %3984 = vmatpush.msra.mxu0 %v3718
  %3985 = vmatpush.msra.mxu0 %v3714
  %3986 = vmatpush.msra.mxu0 %v3710
  %3987 = vmatpush.msra.mxu0 %v3706
  %3988 = vmatmul.f32.gmra.mxu0 %v3700
  %v3989 = vpop.f32.mrf.mxu0
  %v3990 = vadd.f32 %v3910, %v3989
  %3991 = vdwg.mxu0
  %v3992 = vld [vmem:[%s497] sm:$0xf]
  %v3994 = vperm.slane %v3992, 0
  %v3995 = vperm.slane %v3992, 1
  %v3996 = vperm.slane %v3992, 2
  %v3997 = vperm.slane %v3992, 3
  %v4002 = vadd.f32 %v3930, %v3994
  %v4003 = vadd.f32 %v3950, %v3995
  %v4004 = vadd.f32 %v3970, %v3996
  %v4005 = vadd.f32 %v3990, %v3997
  %v4006 = vmul.f32 %v4002, 0.5
  %v4007 = vtanh.pop %v4006
  %v4008 = vmul.f32 %v4007, 0.5
  %v4009 = vadd.f32 %v4008, 0.5
  %v4010 = vmul.f32 %v4003, 0.5
  %v4011 = vtanh.pop %v4010
  %v4012 = vmul.f32 %v4011, 0.5
  %v4013 = vadd.f32 %v4012, 0.5
  %v4014 = vtanh.pop %v4004
  %v4015 = vmul.f32 %v4005, 0.5
  %v4016 = vtanh.pop %v4015
  %v4017 = vmul.f32 %v4016, 0.5
  %v4018 = vadd.f32 %v4017, 0.5
  %v4019 = vld [vmem:[%s525] sm:$0xff]
  %v4020 = vmul.f32 %v4013, %v4019
  %v4021 = vmul.f32 %v4009, %v4014
  %v4022 = vadd.f32 %v4020, %v4021
  %v4023 = vtanh.pop %v4022
  %v4024 = vmul.f32 %v4018, %v4023
  %4025 = vst [vmem:[%s525] sm:$0xff] %v4022
  %4026 = vst [vmem:[%s270] sm:$0xff] %v4024
  // Predicated region
  $region30: #{lstm_model_forward.3} parent=0 // pred_check
    %p4027 = pneg %p23
  $region31: #{lstm_model_forward.3} parent=0 // pred_check_branch
    %4029 = sbr.rel (%p4027) target = $region33
  $region32: #{lstm_model_forward.3} parent=0 // pred_region
    %v4030 = vld [vmem:[%s270] sm:$0xff]
    %v4031 = vld [vmem:[%s4] sm:$0xff]
    %v4032 = vld [vmem:[%s4 + $0x8] sm:$0xff]
    %v4033 = vld [vmem:[%s4 + $0x10] sm:$0xff]
    %v4034 = vld [vmem:[%s4 + $0x18] sm:$0xff]
    %v4035 = vld [vmem:[%s4 + $0x20] sm:$0xff]
    %v4036 = vld [vmem:[%s4 + $0x28] sm:$0xff]
    %v4037 = vld [vmem:[%s4 + $0x30] sm:$0xff]
    %v4038 = vld [vmem:[%s4 + $0x38] sm:$0xff]
    %v4039 = vld [vmem:[%s4 + $0x40] sm:$0xff]
    %v4040 = vld [vmem:[%s4 + $0x48] sm:$0xff]
    %v4041 = vld [vmem:[%s4 + $0x50] sm:$0xff]
    %v4042 = vld [vmem:[%s4 + $0x58] sm:$0xff]
    %v4043 = vld [vmem:[%s4 + $0x60] sm:$0xff]
    %v4044 = vld [vmem:[%s4 + $0x68] sm:$0xff]
    %v4045 = vld [vmem:[%s4 + $0x70] sm:$0xff]
    %v4046 = vld [vmem:[%s4 + $0x78] sm:$0xff]
    %v4047 = vld [vmem:[%s5] sm:$0x1]
    %v4049 = vperm.slane %v4047, 0
    %4051 = vmatpush.msra.mxu0 %v4046
    %4052 = vmatpush.msra.mxu0 %v4045
    %4053 = vmatpush.msra.mxu0 %v4044
    %4054 = vmatpush.msra.mxu0 %v4043
    %4055 = vmatpush.msra.mxu0 %v4042
    %4056 = vmatpush.msra.mxu0 %v4041
    %4057 = vmatpush.msra.mxu0 %v4040
    %4058 = vmatpush.msra.mxu0 %v4039
    %4059 = vmatpush.msra.mxu0 %v4038
    %4060 = vmatpush.msra.mxu0 %v4037
    %4061 = vmatpush.msra.mxu0 %v4036
    %4062 = vmatpush.msra.mxu0 %v4035
    %4063 = vmatpush.msra.mxu0 %v4034
    %4064 = vmatpush.msra.mxu0 %v4033
    %4065 = vmatpush.msra.mxu0 %v4032
    %4066 = vmatpush.msra.mxu0 %v4031
    %4067 = vmatmul.f32.gmra.mxu0 %v4030
    %v4068 = vpop.f32.mrf.mxu0
    %v4069 = vadd.f32 %v4049, %v4068
    %4070 = vdwg.mxu0
    %vm4071 = vcmask 31744
    %4072 = vst.msk [vmem:[%s6] sm:$0xff] %vm4071, %v4069
  $region33: #{lstm_model_forward.3} parent=0 // pred_fallthru
    _
  // Predicated region
  $region34: #{lstm_model_forward.3} parent=0 // pred_check
    _
  $region35: #{lstm_model_forward.3} parent=0 // pred_check_branch
    %4074 = sbr.rel (0) target = $region37
  $region36: #{lstm_model_forward.3} parent=0 // pred_region
    _
  $region37: #{lstm_model_forward.3} parent=0 // pred_fallthru
    _
  // Predicated region
  $region38: #{lstm_model_forward.3} parent=0 // pred_check
    _
  $region39: #{lstm_model_forward.3} parent=0 // pred_check_branch
    %4076 = sbr.rel (0) target = $region41
  $region40: #{lstm_model_forward.3} parent=0 // pred_region
    _
  $region41: #{lstm_model_forward.3} parent=0 // pred_fallthru
    _

</llo_original>
